<compile_context>
chip_gen: v7x
topology: tpu7x:2x2x1
jax: 0.10.0
libtpu: 0.0.40
codegen_flags: <defaults>
</compile_context>

<pallas_src>
import jax
import jax.numpy as jnp
from jax.experimental import pallas as pl
from jax.experimental.pallas import tpu as pltpu

EPS = 1e-5   # PyTorch BatchNorm2d default
KTAPS = 9    # 3x3 kernel taps


# ---------------------------------------------------------------------------
# Fused Pallas kernel: conv1 + BN1 + ReLU + conv2 + BN2 + residual + ReLU
# ---------------------------------------------------------------------------
def _basic_block_kernel(xpad_ref, xres_ref, w1_ref, w2_ref,
                        g1_ref, b1_ref, g2_ref, b2_ref,
                        o_ref, patch_ref, h1pad_ref):
    N, HP, WP, C = xpad_ref.shape
    H, W = HP - 2, WP - 2
    M = N * H * W
    K = KTAPS * C                 # real im2col contraction depth (288)
    KP = patch_ref.shape[1]       # 128-aligned padded depth (384)
    inv_m = 1.0 / M

    # Zero only the K-alignment pad columns once; the padded weight rows are
    # zero too, but uninitialized VMEM could hold NaNs (NaN * 0 = NaN).
    if KP > K:
        patch_ref[:, K:KP] = jnp.zeros((M, KP - K), jnp.bfloat16)

    def build_patch(src_ref):
        # im2col in VMEM: patch[:, t*C:(t+1)*C] = shifted tap t (bf16).
        # Each 32-lane column block lies inside a single 128-lane tile.
        for t in range(KTAPS):
            dh, dw = t // 3, t % 3
            tap = src_ref[:, dh:dh + H, dw:dw + W, :].reshape(M, C)
            patch_ref[:, t * C:(t + 1) * C] = tap.astype(jnp.bfloat16)

    def batchnorm(y, g_ref, b_ref):
        # Training-mode BN, shifted two-pass (mean, then sum((y-mean)^2)).
        mean = jnp.sum(y, axis=0, keepdims=True) * inv_m
        d = y - mean
        var = jnp.sum(d * d, axis=0, keepdims=True) * inv_m   # biased var
        return d * jax.lax.rsqrt(var + EPS) * g_ref[...] + b_ref[...]

    # ---- conv1 (single K-wide im2col matmul) -> bn1 -> relu -----------------
    build_patch(xpad_ref)
    y1 = jnp.dot(patch_ref[...], w1_ref[...],
                 preferred_element_type=jnp.float32)
    h1 = jnp.maximum(batchnorm(y1, g1_ref, b1_ref), 0.0)

    # Stage h1 in a zero-halo VMEM scratch so conv2 reuses the same im2col
    # formulation without any HBM round trip.  Zero ONLY the halo strips.
    zrow = jnp.zeros((N, 1, WP, C), jnp.float32)
    zcol = jnp.zeros((N, HP, 1, C), jnp.float32)
    h1pad_ref[:, 0:1, :, :] = zrow
    h1pad_ref[:, HP - 1:HP, :, :] = zrow
    h1pad_ref[:, :, 0:1, :] = zcol
    h1pad_ref[:, :, WP - 1:WP, :] = zcol
    h1pad_ref[:, 1:H + 1, 1:W + 1, :] = h1.reshape(N, H, W, C)

    # ---- conv2 -> bn2 -> + identity shortcut (exact f32) -> relu ------------
    build_patch(h1pad_ref)          # overwrites columns [0:K); pad stays zero
    y2 = jnp.dot(patch_ref[...], w2_ref[...],
                 preferred_element_type=jnp.float32)
    y2 = batchnorm(y2, g2_ref, b2_ref)
    o_ref[...] = jnp.maximum(y2 + xres_ref[...], 0.0)


# ---------------------------------------------------------------------------
# Wrapper
# ---------------------------------------------------------------------------
def basic_block_forward(x, w1, g1, b1, w2, g2, b2):
    """x: (N, H, W, C) NHWC float32; w*: (3, 3, Cin, Cout) HWIO; g*/b*: (C,)."""
    N, H, W, C = x.shape
    M = N * H * W
    K = KTAPS * C
    KP = ((K + 127) // 128) * 128     # 128-lane aligned contraction depth

    xpad = jnp.pad(x, ((0, 0), (1, 1), (1, 1), (0, 0))).astype(jnp.float32)
    xres = x.reshape(M, C).astype(jnp.float32)     # contiguous residual read

    def pack_w(w):
        # (3,3,Cin,Cout) -> (9*Cin, Cout), zero-padded rows up to KP.
        wt = w.reshape(K, C).astype(jnp.bfloat16)
        return jnp.pad(wt, ((0, KP - K), (0, 0)))

    w1p, w2p = pack_w(w1), pack_w(w2)
    g1r = g1.reshape(1, C).astype(jnp.float32)
    b1r = b1.reshape(1, C).astype(jnp.float32)
    g2r = g2.reshape(1, C).astype(jnp.float32)
    b2r = b2.reshape(1, C).astype(jnp.float32)

    flops = 2 * (2 * M * K * C)                        # two 3x3 convs
    bytes_accessed = int(xpad.size * 4 + xres.size * 4
                         + (w1p.size + w2p.size) * 2
                         + 4 * C * 4 + M * C * 4)

    out = pl.pallas_call(
        _basic_block_kernel,
        out_shape=jax.ShapeDtypeStruct((M, C), jnp.float32),
        grid=(1,),
        in_specs=[
            pl.BlockSpec((N, H + 2, W + 2, C), lambda i: (0, 0, 0, 0)),
            pl.BlockSpec((M, C), lambda i: (0, 0)),
            pl.BlockSpec((KP, C), lambda i: (0, 0)),
            pl.BlockSpec((KP, C), lambda i: (0, 0)),
            pl.BlockSpec((1, C), lambda i: (0, 0)),
            pl.BlockSpec((1, C), lambda i: (0, 0)),
            pl.BlockSpec((1, C), lambda i: (0, 0)),
            pl.BlockSpec((1, C), lambda i: (0, 0)),
        ],
        out_specs=pl.BlockSpec((M, C), lambda i: (0, 0)),
        scratch_shapes=[
            pltpu.VMEM((M, KP), jnp.bfloat16),                   # im2col patch
            pltpu.VMEM((N, H + 2, W + 2, C), jnp.float32),       # padded h1
        ],
        compiler_params=pltpu.CompilerParams(
            dimension_semantics=("arbitrary",),
            vmem_limit_bytes=32 * 1024 * 1024,
        ),
        cost_estimate=pl.CostEstimate(
            flops=int(flops),
            transcendentals=int(2 * C),
            bytes_accessed=bytes_accessed,
        ),
    )(xpad, xres, w1p, w2p, g1r, b1r, g2r, b2r)
    return out.reshape(N, H, W, C)


# ---------------------------------------------------------------------------
# Pure-JAX reference (training-mode BN, identity shortcut)
# ---------------------------------------------------------------------------
def _ref_forward(x, w1, g1, b1, w2, g2, b2, matmul_dtype=jnp.float32):
    def conv(a, w):
        return jax.lax.conv_general_dilated(
            a.astype(matmul_dtype), w.astype(matmul_dtype),
            window_strides=(1, 1), padding="SAME",
            dimension_numbers=("NHWC", "HWIO", "NHWC"),
            preferred_element_type=jnp.float32)

    def bn(y, g, b):
        mean = jnp.mean(y, axis=(0, 1, 2), keepdims=True)
        var = jnp.mean((y - mean) ** 2, axis=(0, 1, 2), keepdims=True)
        return (y - mean) * jax.lax.rsqrt(var + EPS) * g + b

    out = jax.nn.relu(bn(conv(x, w1), g1, b1))
    out = bn(conv(out, w2), g2, b2) + x
    return jax.nn.relu(out)


# ---------------------------------------------------------------------------
if __name__ == "__main__":
    N, H, W, C = 2, 16, 16, 32   # in_planes = planes = 32, stride = 1

    key = jax.random.PRNGKey(0)
    ks = jax.random.split(key, 7)
    x = jax.random.normal(ks[0], (N, H, W, C), jnp.float32)
    w1 = jax.random.normal(ks[1], (3, 3, C, C), jnp.float32) * 0.1
    w2 = jax.random.normal(ks[2], (3, 3, C, C), jnp.float32) * 0.1
    g1 = 1.0 + 0.1 * jax.random.normal(ks[3], (C,), jnp.float32)
    b1 = 0.1 * jax.random.normal(ks[4], (C,), jnp.float32)
    g2 = 1.0 + 0.1 * jax.random.normal(ks[5], (C,), jnp.float32)
    b2 = 0.1 * jax.random.normal(ks[6], (C,), jnp.float32)

    out = jax.block_until_ready(basic_block_forward(x, w1, g1, b1, w2, g2, b2))
    assert out.shape == (N, H, W, C)

    # Strict check vs a reference using the kernel's mixed precision
    # (bf16 matmul operands, f32 accumulation / BN / residual).
    ref_mixed = jax.block_until_ready(
        _ref_forward(x, w1, g1, b1, w2, g2, b2, matmul_dtype=jnp.bfloat16))
    err_mixed = float(jnp.max(jnp.abs(out - ref_mixed)))
    assert err_mixed < 1e-2, f"mismatch vs mixed-precision reference: {err_mixed}"

    # Loose sanity check vs the full-f32 reference (bf16 matmuls add ~1e-2 noise).
    ref_f32 = jax.block_until_ready(
        _ref_forward(x, w1, g1, b1, w2, g2, b2, matmul_dtype=jnp.float32))
    err_f32 = float(jnp.max(jnp.abs(out - ref_f32)))
    assert err_f32 < 1e-1, f"mismatch vs f32 reference: {err_f32}"

    print("KERNEL_OK")
</pallas_src>

<mosaic_0001>
module attributes {stable_mosaic.version = 11 : i64} {
  func.func @_basic_block_kernel(%arg0: i32, %arg1: memref<2x18x18x32xf32, #tpu.memory_space<vmem>>, %arg2: memref<512x32xf32, #tpu.memory_space<vmem>>, %arg3: memref<384x32xbf16, #tpu.memory_space<vmem>>, %arg4: memref<384x32xbf16, #tpu.memory_space<vmem>>, %arg5: memref<1x32xf32, #tpu.memory_space<vmem>>, %arg6: memref<1x32xf32, #tpu.memory_space<vmem>>, %arg7: memref<1x32xf32, #tpu.memory_space<vmem>>, %arg8: memref<1x32xf32, #tpu.memory_space<vmem>>, %arg9: memref<512x32xf32, #tpu.memory_space<vmem>>, %arg10: memref<512x384xbf16, #tpu.memory_space<vmem>>, %arg11: memref<2x18x18x32xf32, #tpu.memory_space<vmem>>) attributes {dimension_semantics = [#tpu.dimension_semantics<arbitrary>], iteration_bounds = array<i64: 1>, scalar_prefetch = 0 : i64, scratch_operands = 2 : i64, tpu.core_type = #tpu.core_type<tc>, window_params = [{pipeline_mode = #tpu.pipeline_mode<synchronous>, transform_indices = @transform_0, window_bounds = array<i64: 2, 18, 18, 32>}, {pipeline_mode = #tpu.pipeline_mode<synchronous>, transform_indices = @transform_1, window_bounds = array<i64: 512, 32>}, {pipeline_mode = #tpu.pipeline_mode<synchronous>, transform_indices = @transform_2, window_bounds = array<i64: 384, 32>}, {pipeline_mode = #tpu.pipeline_mode<synchronous>, transform_indices = @transform_3, window_bounds = array<i64: 384, 32>}, {pipeline_mode = #tpu.pipeline_mode<synchronous>, transform_indices = @transform_4, window_bounds = array<i64: 1, 32>}, {pipeline_mode = #tpu.pipeline_mode<synchronous>, transform_indices = @transform_5, window_bounds = array<i64: 1, 32>}, {pipeline_mode = #tpu.pipeline_mode<synchronous>, transform_indices = @transform_6, window_bounds = array<i64: 1, 32>}, {pipeline_mode = #tpu.pipeline_mode<synchronous>, transform_indices = @transform_7, window_bounds = array<i64: 1, 32>}, {pipeline_mode = #tpu.pipeline_mode<synchronous>, transform_indices = @transform_8, window_bounds = array<i64: 512, 32>}]} {
    %cst = arith.constant 0.000000e+00 : bf16
    %0 = vector.broadcast %cst : bf16 to vector<512x96xbf16>
    %c0 = arith.constant 0 : index
    %c288 = arith.constant 288 : index
    %1 = vector.load %arg10[%c0, %c288] : memref<512x384xbf16, #tpu.memory_space<vmem>>, vector<512x96xbf16>
    tpu.vector_store %arg10[%c0, %c288], %0 {strides = array<i32>} : memref<512x384xbf16, #tpu.memory_space<vmem>>, vector<512x96xbf16>,
    %c0_0 = arith.constant 0 : index
    %c0_1 = arith.constant 0 : index
    %c0_2 = arith.constant 0 : index
    %c0_3 = arith.constant 0 : index
    %2 = vector.load %arg1[%c0_0, %c0_1, %c0_2, %c0_3] : memref<2x18x18x32xf32, #tpu.memory_space<vmem>>, vector<2x16x16x32xf32>
    %3 = vector.shape_cast %2 : vector<2x16x16x32xf32> to vector<512x32xf32>
    %4 = arith.truncf %3 : vector<512x32xf32> to vector<512x32xbf16>
    %c0_4 = arith.constant 0 : index
    %c0_5 = arith.constant 0 : index
    %5 = vector.load %arg10[%c0_4, %c0_5] : memref<512x384xbf16, #tpu.memory_space<vmem>>, vector<512x32xbf16>
    tpu.vector_store %arg10[%c0_4, %c0_5], %4 {strides = array<i32>} : memref<512x384xbf16, #tpu.memory_space<vmem>>, vector<512x32xbf16>,
    %c0_6 = arith.constant 0 : index
    %c0_7 = arith.constant 0 : index
    %c1 = arith.constant 1 : index
    %c0_8 = arith.constant 0 : index
    %6 = vector.load %arg1[%c0_6, %c0_7, %c1, %c0_8] : memref<2x18x18x32xf32, #tpu.memory_space<vmem>>, vector<2x16x16x32xf32>
    %7 = vector.shape_cast %6 : vector<2x16x16x32xf32> to vector<512x32xf32>
    %8 = arith.truncf %7 : vector<512x32xf32> to vector<512x32xbf16>
    %c0_9 = arith.constant 0 : index
    %c32 = arith.constant 32 : index
    %9 = vector.load %arg10[%c0_9, %c32] : memref<512x384xbf16, #tpu.memory_space<vmem>>, vector<512x32xbf16>
    tpu.vector_store %arg10[%c0_9, %c32], %8 {strides = array<i32>} : memref<512x384xbf16, #tpu.memory_space<vmem>>, vector<512x32xbf16>,
    %c0_10 = arith.constant 0 : index
    %c0_11 = arith.constant 0 : index
    %c2 = arith.constant 2 : index
    %c0_12 = arith.constant 0 : index
    %10 = vector.load %arg1[%c0_10, %c0_11, %c2, %c0_12] : memref<2x18x18x32xf32, #tpu.memory_space<vmem>>, vector<2x16x16x32xf32>
    %11 = vector.shape_cast %10 : vector<2x16x16x32xf32> to vector<512x32xf32>
    %12 = arith.truncf %11 : vector<512x32xf32> to vector<512x32xbf16>
    %c0_13 = arith.constant 0 : index
    %c64 = arith.constant 64 : index
    %13 = vector.load %arg10[%c0_13, %c64] : memref<512x384xbf16, #tpu.memory_space<vmem>>, vector<512x32xbf16>
    tpu.vector_store %arg10[%c0_13, %c64], %12 {strides = array<i32>} : memref<512x384xbf16, #tpu.memory_space<vmem>>, vector<512x32xbf16>,
    %c0_14 = arith.constant 0 : index
    %c1_15 = arith.constant 1 : index
    %c0_16 = arith.constant 0 : index
    %c0_17 = arith.constant 0 : index
    %14 = vector.load %arg1[%c0_14, %c1_15, %c0_16, %c0_17] : memref<2x18x18x32xf32, #tpu.memory_space<vmem>>, vector<2x16x16x32xf32>
    %15 = vector.shape_cast %14 : vector<2x16x16x32xf32> to vector<512x32xf32>
    %16 = arith.truncf %15 : vector<512x32xf32> to vector<512x32xbf16>
    %c0_18 = arith.constant 0 : index
    %c96 = arith.constant 96 : index
    %17 = vector.load %arg10[%c0_18, %c96] : memref<512x384xbf16, #tpu.memory_space<vmem>>, vector<512x32xbf16>
    tpu.vector_store %arg10[%c0_18, %c96], %16 {strides = array<i32>} : memref<512x384xbf16, #tpu.memory_space<vmem>>, vector<512x32xbf16>,
    %c0_19 = arith.constant 0 : index
    %c1_20 = arith.constant 1 : index
    %c1_21 = arith.constant 1 : index
    %c0_22 = arith.constant 0 : index
    %18 = vector.load %arg1[%c0_19, %c1_20, %c1_21, %c0_22] : memref<2x18x18x32xf32, #tpu.memory_space<vmem>>, vector<2x16x16x32xf32>
    %19 = vector.shape_cast %18 : vector<2x16x16x32xf32> to vector<512x32xf32>
    %20 = arith.truncf %19 : vector<512x32xf32> to vector<512x32xbf16>
    %c0_23 = arith.constant 0 : index
    %c128 = arith.constant 128 : index
    %21 = vector.load %arg10[%c0_23, %c128] : memref<512x384xbf16, #tpu.memory_space<vmem>>, vector<512x32xbf16>
    tpu.vector_store %arg10[%c0_23, %c128], %20 {strides = array<i32>} : memref<512x384xbf16, #tpu.memory_space<vmem>>, vector<512x32xbf16>,
    %c0_24 = arith.constant 0 : index
    %c1_25 = arith.constant 1 : index
    %c2_26 = arith.constant 2 : index
    %c0_27 = arith.constant 0 : index
    %22 = vector.load %arg1[%c0_24, %c1_25, %c2_26, %c0_27] : memref<2x18x18x32xf32, #tpu.memory_space<vmem>>, vector<2x16x16x32xf32>
    %23 = vector.shape_cast %22 : vector<2x16x16x32xf32> to vector<512x32xf32>
    %24 = arith.truncf %23 : vector<512x32xf32> to vector<512x32xbf16>
    %c0_28 = arith.constant 0 : index
    %c160 = arith.constant 160 : index
    %25 = vector.load %arg10[%c0_28, %c160] : memref<512x384xbf16, #tpu.memory_space<vmem>>, vector<512x32xbf16>
    tpu.vector_store %arg10[%c0_28, %c160], %24 {strides = array<i32>} : memref<512x384xbf16, #tpu.memory_space<vmem>>, vector<512x32xbf16>,
    %c0_29 = arith.constant 0 : index
    %c2_30 = arith.constant 2 : index
    %c0_31 = arith.constant 0 : index
    %c0_32 = arith.constant 0 : index
    %26 = vector.load %arg1[%c0_29, %c2_30, %c0_31, %c0_32] : memref<2x18x18x32xf32, #tpu.memory_space<vmem>>, vector<2x16x16x32xf32>
    %27 = vector.shape_cast %26 : vector<2x16x16x32xf32> to vector<512x32xf32>
    %28 = arith.truncf %27 : vector<512x32xf32> to vector<512x32xbf16>
    %c0_33 = arith.constant 0 : index
    %c192 = arith.constant 192 : index
    %29 = vector.load %arg10[%c0_33, %c192] : memref<512x384xbf16, #tpu.memory_space<vmem>>, vector<512x32xbf16>
    tpu.vector_store %arg10[%c0_33, %c192], %28 {strides = array<i32>} : memref<512x384xbf16, #tpu.memory_space<vmem>>, vector<512x32xbf16>,
    %c0_34 = arith.constant 0 : index
    %c2_35 = arith.constant 2 : index
    %c1_36 = arith.constant 1 : index
    %c0_37 = arith.constant 0 : index
    %30 = vector.load %arg1[%c0_34, %c2_35, %c1_36, %c0_37] : memref<2x18x18x32xf32, #tpu.memory_space<vmem>>, vector<2x16x16x32xf32>
    %31 = vector.shape_cast %30 : vector<2x16x16x32xf32> to vector<512x32xf32>
    %32 = arith.truncf %31 : vector<512x32xf32> to vector<512x32xbf16>
    %c0_38 = arith.constant 0 : index
    %c224 = arith.constant 224 : index
    %33 = vector.load %arg10[%c0_38, %c224] : memref<512x384xbf16, #tpu.memory_space<vmem>>, vector<512x32xbf16>
    tpu.vector_store %arg10[%c0_38, %c224], %32 {strides = array<i32>} : memref<512x384xbf16, #tpu.memory_space<vmem>>, vector<512x32xbf16>,
    %c0_39 = arith.constant 0 : index
    %c2_40 = arith.constant 2 : index
    %c2_41 = arith.constant 2 : index
    %c0_42 = arith.constant 0 : index
    %34 = vector.load %arg1[%c0_39, %c2_40, %c2_41, %c0_42] : memref<2x18x18x32xf32, #tpu.memory_space<vmem>>, vector<2x16x16x32xf32>
    %35 = vector.shape_cast %34 : vector<2x16x16x32xf32> to vector<512x32xf32>
    %36 = arith.truncf %35 : vector<512x32xf32> to vector<512x32xbf16>
    %c0_43 = arith.constant 0 : index
    %c256 = arith.constant 256 : index
    %37 = vector.load %arg10[%c0_43, %c256] : memref<512x384xbf16, #tpu.memory_space<vmem>>, vector<512x32xbf16>
    tpu.vector_store %arg10[%c0_43, %c256], %36 {strides = array<i32>} : memref<512x384xbf16, #tpu.memory_space<vmem>>, vector<512x32xbf16>,
    %c0_44 = arith.constant 0 : index
    %c0_45 = arith.constant 0 : index
    %38 = vector.load %arg10[%c0_44, %c0_45] : memref<512x384xbf16, #tpu.memory_space<vmem>>, vector<512x384xbf16>
    %c0_46 = arith.constant 0 : index
    %c0_47 = arith.constant 0 : index
    %39 = vector.load %arg3[%c0_46, %c0_47] : memref<384x32xbf16, #tpu.memory_space<vmem>>, vector<384x32xbf16>
    %cst_48 = arith.constant dense<0.000000e+00> : vector<512x32xf32>
    %40 = tpu.matmul %38, %39, %cst_48 {dimension_numbers = #tpu.dot_dimension_numbers<[1], [0], [0], [1], [0, 0, 1, 1], [], []>} : vector<512x384xbf16>, vector<384x32xbf16>, vector<512x32xf32> -> vector<512x32xf32>
    %cst_49 = arith.constant dense<0.000000e+00> : vector<32xf32>
    %41 = vector.multi_reduction <add>, %40, %cst_49 [0] : vector<512x32xf32> to vector<32xf32>
    %42 = vector.shape_cast %41 : vector<32xf32> to vector<1x32xf32>
    %cst_50 = arith.constant 0.001953125 : f32
    %43 = vector.broadcast %cst_50 : f32 to vector<1x32xf32>
    %44 = arith.mulf %42, %43 : vector<1x32xf32>
    %45 = vector.broadcast %44 : vector<1x32xf32> to vector<512x32xf32>
    %46 = arith.subf %40, %45 : vector<512x32xf32>
    %47 = arith.mulf %46, %46 : vector<512x32xf32>
    %cst_51 = arith.constant dense<0.000000e+00> : vector<32xf32>
    %48 = vector.multi_reduction <add>, %47, %cst_51 [0] : vector<512x32xf32> to vector<32xf32>
    %49 = vector.shape_cast %48 : vector<32xf32> to vector<1x32xf32>
    %cst_52 = arith.constant 0.001953125 : f32
    %50 = vector.broadcast %cst_52 : f32 to vector<1x32xf32>
    %51 = arith.mulf %49, %50 : vector<1x32xf32>
    %cst_53 = arith.constant 9.99999974E-6 : f32
    %52 = vector.broadcast %cst_53 : f32 to vector<1x32xf32>
    %53 = arith.addf %51, %52 : vector<1x32xf32>
    %54 = math.rsqrt %53 : vector<1x32xf32>
    %55 = vector.broadcast %54 : vector<1x32xf32> to vector<512x32xf32>
    %56 = arith.mulf %46, %55 : vector<512x32xf32>
    %c0_54 = arith.constant 0 : index
    %c0_55 = arith.constant 0 : index
    %57 = vector.load %arg5[%c0_54, %c0_55] : memref<1x32xf32, #tpu.memory_space<vmem>>, vector<1x32xf32>
    %58 = vector.broadcast %57 : vector<1x32xf32> to vector<512x32xf32>
    %59 = arith.mulf %56, %58 : vector<512x32xf32>
    %c0_56 = arith.constant 0 : index
    %c0_57 = arith.constant 0 : index
    %60 = vector.load %arg6[%c0_56, %c0_57] : memref<1x32xf32, #tpu.memory_space<vmem>>, vector<1x32xf32>
    %61 = vector.broadcast %60 : vector<1x32xf32> to vector<512x32xf32>
    %62 = arith.addf %59, %61 : vector<512x32xf32>
    %cst_58 = arith.constant 0.000000e+00 : f32
    %63 = vector.broadcast %cst_58 : f32 to vector<512x32xf32>
    %64 = arith.maximumf %62, %63 : vector<512x32xf32>
    %cst_59 = arith.constant 0.000000e+00 : f32
    %65 = vector.broadcast %cst_59 : f32 to vector<2x1x18x32xf32>
    %cst_60 = arith.constant 0.000000e+00 : f32
    %66 = vector.broadcast %cst_60 : f32 to vector<2x18x1x32xf32>
    %c0_61 = arith.constant 0 : index
    %c0_62 = arith.constant 0 : index
    %c0_63 = arith.constant 0 : index
    %c0_64 = arith.constant 0 : index
    %67 = vector.load %arg11[%c0_61, %c0_62, %c0_63, %c0_64] : memref<2x18x18x32xf32, #tpu.memory_space<vmem>>, vector<2x1x18x32xf32>
    tpu.vector_store %arg11[%c0_61, %c0_62, %c0_63, %c0_64], %65 {strides = array<i32>} : memref<2x18x18x32xf32, #tpu.memory_space<vmem>>, vector<2x1x18x32xf32>,
    %c0_65 = arith.constant 0 : index
    %c17 = arith.constant 17 : index
    %c0_66 = arith.constant 0 : index
    %c0_67 = arith.constant 0 : index
    %68 = vector.load %arg11[%c0_65, %c17, %c0_66, %c0_67] : memref<2x18x18x32xf32, #tpu.memory_space<vmem>>, vector<2x1x18x32xf32>
    tpu.vector_store %arg11[%c0_65, %c17, %c0_66, %c0_67], %65 {strides = array<i32>} : memref<2x18x18x32xf32, #tpu.memory_space<vmem>>, vector<2x1x18x32xf32>,
    %c0_68 = arith.constant 0 : index
    %c0_69 = arith.constant 0 : index
    %c0_70 = arith.constant 0 : index
    %c0_71 = arith.constant 0 : index
    %69 = vector.load %arg11[%c0_68, %c0_69, %c0_70, %c0_71] : memref<2x18x18x32xf32, #tpu.memory_space<vmem>>, vector<2x18x1x32xf32>
    tpu.vector_store %arg11[%c0_68, %c0_69, %c0_70, %c0_71], %66 {strides = array<i32>} : memref<2x18x18x32xf32, #tpu.memory_space<vmem>>, vector<2x18x1x32xf32>,
    %c0_72 = arith.constant 0 : index
    %c0_73 = arith.constant 0 : index
    %c17_74 = arith.constant 17 : index
    %c0_75 = arith.constant 0 : index
    %70 = vector.load %arg11[%c0_72, %c0_73, %c17_74, %c0_75] : memref<2x18x18x32xf32, #tpu.memory_space<vmem>>, vector<2x18x1x32xf32>
    tpu.vector_store %arg11[%c0_72, %c0_73, %c17_74, %c0_75], %66 {strides = array<i32>} : memref<2x18x18x32xf32, #tpu.memory_space<vmem>>, vector<2x18x1x32xf32>,
    %71 = vector.shape_cast %64 : vector<512x32xf32> to vector<2x16x16x32xf32>
    %c0_76 = arith.constant 0 : index
    %c1_77 = arith.constant 1 : index
    %c1_78 = arith.constant 1 : index
    %c0_79 = arith.constant 0 : index
    %72 = vector.load %arg11[%c0_76, %c1_77, %c1_78, %c0_79] : memref<2x18x18x32xf32, #tpu.memory_space<vmem>>, vector<2x16x16x32xf32>
    tpu.vector_store %arg11[%c0_76, %c1_77, %c1_78, %c0_79], %71 {strides = array<i32>} : memref<2x18x18x32xf32, #tpu.memory_space<vmem>>, vector<2x16x16x32xf32>,
    %c0_80 = arith.constant 0 : index
    %c0_81 = arith.constant 0 : index
    %c0_82 = arith.constant 0 : index
    %c0_83 = arith.constant 0 : index
    %73 = vector.load %arg11[%c0_80, %c0_81, %c0_82, %c0_83] : memref<2x18x18x32xf32, #tpu.memory_space<vmem>>, vector<2x16x16x32xf32>
    %74 = vector.shape_cast %73 : vector<2x16x16x32xf32> to vector<512x32xf32>
    %75 = arith.truncf %74 : vector<512x32xf32> to vector<512x32xbf16>
    %c0_84 = arith.constant 0 : index
    %c0_85 = arith.constant 0 : index
    %76 = vector.load %arg10[%c0_84, %c0_85] : memref<512x384xbf16, #tpu.memory_space<vmem>>, vector<512x32xbf16>
    tpu.vector_store %arg10[%c0_84, %c0_85], %75 {strides = array<i32>} : memref<512x384xbf16, #tpu.memory_space<vmem>>, vector<512x32xbf16>,
    %c0_86 = arith.constant 0 : index
    %c0_87 = arith.constant 0 : index
    %c1_88 = arith.constant 1 : index
    %c0_89 = arith.constant 0 : index
    %77 = vector.load %arg11[%c0_86, %c0_87, %c1_88, %c0_89] : memref<2x18x18x32xf32, #tpu.memory_space<vmem>>, vector<2x16x16x32xf32>
    %78 = vector.shape_cast %77 : vector<2x16x16x32xf32> to vector<512x32xf32>
    %79 = arith.truncf %78 : vector<512x32xf32> to vector<512x32xbf16>
    %c0_90 = arith.constant 0 : index
    %c32_91 = arith.constant 32 : index
    %80 = vector.load %arg10[%c0_90, %c32_91] : memref<512x384xbf16, #tpu.memory_space<vmem>>, vector<512x32xbf16>
    tpu.vector_store %arg10[%c0_90, %c32_91], %79 {strides = array<i32>} : memref<512x384xbf16, #tpu.memory_space<vmem>>, vector<512x32xbf16>,
    %c0_92 = arith.constant 0 : index
    %c0_93 = arith.constant 0 : index
    %c2_94 = arith.constant 2 : index
    %c0_95 = arith.constant 0 : index
    %81 = vector.load %arg11[%c0_92, %c0_93, %c2_94, %c0_95] : memref<2x18x18x32xf32, #tpu.memory_space<vmem>>, vector<2x16x16x32xf32>
    %82 = vector.shape_cast %81 : vector<2x16x16x32xf32> to vector<512x32xf32>
    %83 = arith.truncf %82 : vector<512x32xf32> to vector<512x32xbf16>
    %c0_96 = arith.constant 0 : index
    %c64_97 = arith.constant 64 : index
    %84 = vector.load %arg10[%c0_96, %c64_97] : memref<512x384xbf16, #tpu.memory_space<vmem>>, vector<512x32xbf16>
    tpu.vector_store %arg10[%c0_96, %c64_97], %83 {strides = array<i32>} : memref<512x384xbf16, #tpu.memory_space<vmem>>, vector<512x32xbf16>,
    %c0_98 = arith.constant 0 : index
    %c1_99 = arith.constant 1 : index
    %c0_100 = arith.constant 0 : index
    %c0_101 = arith.constant 0 : index
    %85 = vector.load %arg11[%c0_98, %c1_99, %c0_100, %c0_101] : memref<2x18x18x32xf32, #tpu.memory_space<vmem>>, vector<2x16x16x32xf32>
    %86 = vector.shape_cast %85 : vector<2x16x16x32xf32> to vector<512x32xf32>
    %87 = arith.truncf %86 : vector<512x32xf32> to vector<512x32xbf16>
    %c0_102 = arith.constant 0 : index
    %c96_103 = arith.constant 96 : index
    %88 = vector.load %arg10[%c0_102, %c96_103] : memref<512x384xbf16, #tpu.memory_space<vmem>>, vector<512x32xbf16>
    tpu.vector_store %arg10[%c0_102, %c96_103], %87 {strides = array<i32>} : memref<512x384xbf16, #tpu.memory_space<vmem>>, vector<512x32xbf16>,
    %c0_104 = arith.constant 0 : index
    %c1_105 = arith.constant 1 : index
    %c1_106 = arith.constant 1 : index
    %c0_107 = arith.constant 0 : index
    %89 = vector.load %arg11[%c0_104, %c1_105, %c1_106, %c0_107] : memref<2x18x18x32xf32, #tpu.memory_space<vmem>>, vector<2x16x16x32xf32>
    %90 = vector.shape_cast %89 : vector<2x16x16x32xf32> to vector<512x32xf32>
    %91 = arith.truncf %90 : vector<512x32xf32> to vector<512x32xbf16>
    %c0_108 = arith.constant 0 : index
    %c128_109 = arith.constant 128 : index
    %92 = vector.load %arg10[%c0_108, %c128_109] : memref<512x384xbf16, #tpu.memory_space<vmem>>, vector<512x32xbf16>
    tpu.vector_store %arg10[%c0_108, %c128_109], %91 {strides = array<i32>} : memref<512x384xbf16, #tpu.memory_space<vmem>>, vector<512x32xbf16>,
    %c0_110 = arith.constant 0 : index
    %c1_111 = arith.constant 1 : index
    %c2_112 = arith.constant 2 : index
    %c0_113 = arith.constant 0 : index
    %93 = vector.load %arg11[%c0_110, %c1_111, %c2_112, %c0_113] : memref<2x18x18x32xf32, #tpu.memory_space<vmem>>, vector<2x16x16x32xf32>
    %94 = vector.shape_cast %93 : vector<2x16x16x32xf32> to vector<512x32xf32>
    %95 = arith.truncf %94 : vector<512x32xf32> to vector<512x32xbf16>
    %c0_114 = arith.constant 0 : index
    %c160_115 = arith.constant 160 : index
    %96 = vector.load %arg10[%c0_114, %c160_115] : memref<512x384xbf16, #tpu.memory_space<vmem>>, vector<512x32xbf16>
    tpu.vector_store %arg10[%c0_114, %c160_115], %95 {strides = array<i32>} : memref<512x384xbf16, #tpu.memory_space<vmem>>, vector<512x32xbf16>,
    %c0_116 = arith.constant 0 : index
    %c2_117 = arith.constant 2 : index
    %c0_118 = arith.constant 0 : index
    %c0_119 = arith.constant 0 : index
    %97 = vector.load %arg11[%c0_116, %c2_117, %c0_118, %c0_119] : memref<2x18x18x32xf32, #tpu.memory_space<vmem>>, vector<2x16x16x32xf32>
    %98 = vector.shape_cast %97 : vector<2x16x16x32xf32> to vector<512x32xf32>
    %99 = arith.truncf %98 : vector<512x32xf32> to vector<512x32xbf16>
    %c0_120 = arith.constant 0 : index
    %c192_121 = arith.constant 192 : index
    %100 = vector.load %arg10[%c0_120, %c192_121] : memref<512x384xbf16, #tpu.memory_space<vmem>>, vector<512x32xbf16>
    tpu.vector_store %arg10[%c0_120, %c192_121], %99 {strides = array<i32>} : memref<512x384xbf16, #tpu.memory_space<vmem>>, vector<512x32xbf16>,
    %c0_122 = arith.constant 0 : index
    %c2_123 = arith.constant 2 : index
    %c1_124 = arith.constant 1 : index
    %c0_125 = arith.constant 0 : index
    %101 = vector.load %arg11[%c0_122, %c2_123, %c1_124, %c0_125] : memref<2x18x18x32xf32, #tpu.memory_space<vmem>>, vector<2x16x16x32xf32>
    %102 = vector.shape_cast %101 : vector<2x16x16x32xf32> to vector<512x32xf32>
    %103 = arith.truncf %102 : vector<512x32xf32> to vector<512x32xbf16>
    %c0_126 = arith.constant 0 : index
    %c224_127 = arith.constant 224 : index
    %104 = vector.load %arg10[%c0_126, %c224_127] : memref<512x384xbf16, #tpu.memory_space<vmem>>, vector<512x32xbf16>
    tpu.vector_store %arg10[%c0_126, %c224_127], %103 {strides = array<i32>} : memref<512x384xbf16, #tpu.memory_space<vmem>>, vector<512x32xbf16>,
    %c0_128 = arith.constant 0 : index
    %c2_129 = arith.constant 2 : index
    %c2_130 = arith.constant 2 : index
    %c0_131 = arith.constant 0 : index
    %105 = vector.load %arg11[%c0_128, %c2_129, %c2_130, %c0_131] : memref<2x18x18x32xf32, #tpu.memory_space<vmem>>, vector<2x16x16x32xf32>
    %106 = vector.shape_cast %105 : vector<2x16x16x32xf32> to vector<512x32xf32>
    %107 = arith.truncf %106 : vector<512x32xf32> to vector<512x32xbf16>
    %c0_132 = arith.constant 0 : index
    %c256_133 = arith.constant 256 : index
    %108 = vector.load %arg10[%c0_132, %c256_133] : memref<512x384xbf16, #tpu.memory_space<vmem>>, vector<512x32xbf16>
    tpu.vector_store %arg10[%c0_132, %c256_133], %107 {strides = array<i32>} : memref<512x384xbf16, #tpu.memory_space<vmem>>, vector<512x32xbf16>,
    %c0_134 = arith.constant 0 : index
    %c0_135 = arith.constant 0 : index
    %109 = vector.load %arg10[%c0_134, %c0_135] : memref<512x384xbf16, #tpu.memory_space<vmem>>, vector<512x384xbf16>
    %c0_136 = arith.constant 0 : index
    %c0_137 = arith.constant 0 : index
    %110 = vector.load %arg4[%c0_136, %c0_137] : memref<384x32xbf16, #tpu.memory_space<vmem>>, vector<384x32xbf16>
    %cst_138 = arith.constant dense<0.000000e+00> : vector<512x32xf32>
    %111 = tpu.matmul %109, %110, %cst_138 {dimension_numbers = #tpu.dot_dimension_numbers<[1], [0], [0], [1], [0, 0, 1, 1], [], []>} : vector<512x384xbf16>, vector<384x32xbf16>, vector<512x32xf32> -> vector<512x32xf32>
    %cst_139 = arith.constant dense<0.000000e+00> : vector<32xf32>
    %112 = vector.multi_reduction <add>, %111, %cst_139 [0] : vector<512x32xf32> to vector<32xf32>
    %113 = vector.shape_cast %112 : vector<32xf32> to vector<1x32xf32>
    %cst_140 = arith.constant 0.001953125 : f32
    %114 = vector.broadcast %cst_140 : f32 to vector<1x32xf32>
    %115 = arith.mulf %113, %114 : vector<1x32xf32>
    %116 = vector.broadcast %115 : vector<1x32xf32> to vector<512x32xf32>
    %117 = arith.subf %111, %116 : vector<512x32xf32>
    %118 = arith.mulf %117, %117 : vector<512x32xf32>
    %cst_141 = arith.constant dense<0.000000e+00> : vector<32xf32>
    %119 = vector.multi_reduction <add>, %118, %cst_141 [0] : vector<512x32xf32> to vector<32xf32>
    %120 = vector.shape_cast %119 : vector<32xf32> to vector<1x32xf32>
    %cst_142 = arith.constant 0.001953125 : f32
    %121 = vector.broadcast %cst_142 : f32 to vector<1x32xf32>
    %122 = arith.mulf %120, %121 : vector<1x32xf32>
    %cst_143 = arith.constant 9.99999974E-6 : f32
    %123 = vector.broadcast %cst_143 : f32 to vector<1x32xf32>
    %124 = arith.addf %122, %123 : vector<1x32xf32>
    %125 = math.rsqrt %124 : vector<1x32xf32>
    %126 = vector.broadcast %125 : vector<1x32xf32> to vector<512x32xf32>
    %127 = arith.mulf %117, %126 : vector<512x32xf32>
    %c0_144 = arith.constant 0 : index
    %c0_145 = arith.constant 0 : index
    %128 = vector.load %arg7[%c0_144, %c0_145] : memref<1x32xf32, #tpu.memory_space<vmem>>, vector<1x32xf32>
    %129 = vector.broadcast %128 : vector<1x32xf32> to vector<512x32xf32>
    %130 = arith.mulf %127, %129 : vector<512x32xf32>
    %c0_146 = arith.constant 0 : index
    %c0_147 = arith.constant 0 : index
    %131 = vector.load %arg8[%c0_146, %c0_147] : memref<1x32xf32, #tpu.memory_space<vmem>>, vector<1x32xf32>
    %132 = vector.broadcast %131 : vector<1x32xf32> to vector<512x32xf32>
    %133 = arith.addf %130, %132 : vector<512x32xf32>
    %c0_148 = arith.constant 0 : index
    %c0_149 = arith.constant 0 : index
    %134 = vector.load %arg2[%c0_148, %c0_149] : memref<512x32xf32, #tpu.memory_space<vmem>>, vector<512x32xf32>
    %135 = arith.addf %133, %134 : vector<512x32xf32>
    %cst_150 = arith.constant 0.000000e+00 : f32
    %136 = vector.broadcast %cst_150 : f32 to vector<512x32xf32>
    %137 = arith.maximumf %135, %136 : vector<512x32xf32>
    %c0_151 = arith.constant 0 : index
    %c0_152 = arith.constant 0 : index
    %138 = vector.load %arg9[%c0_151, %c0_152] : memref<512x32xf32, #tpu.memory_space<vmem>>, vector<512x32xf32>
    tpu.vector_store %arg9[%c0_151, %c0_152], %137 {strides = array<i32>} : memref<512x32xf32, #tpu.memory_space<vmem>>, vector<512x32xf32>,
    return
  }
  func.func @transform_0(%arg0: i32) -> (i32, i32, i32, i32) {
    %c0_i32 = arith.constant 0 : i32
    %c0_i32_0 = arith.constant 0 : i32
    %c0_i32_1 = arith.constant 0 : i32
    %c0_i32_2 = arith.constant 0 : i32
    %c0_i32_3 = arith.constant 0 : i32
    return %c0_i32, %c0_i32_0, %c0_i32_1, %c0_i32_2 : i32, i32, i32, i32
  }
  func.func @transform_1(%arg0: i32) -> (i32, i32) {
    %c0_i32 = arith.constant 0 : i32
    %c0_i32_0 = arith.constant 0 : i32
    %c0_i32_1 = arith.constant 0 : i32
    return %c0_i32, %c0_i32_0 : i32, i32
  }
  func.func @transform_2(%arg0: i32) -> (i32, i32) {
    %c0_i32 = arith.constant 0 : i32
    %c0_i32_0 = arith.constant 0 : i32
    %c0_i32_1 = arith.constant 0 : i32
    return %c0_i32, %c0_i32_0 : i32, i32
  }
  func.func @transform_3(%arg0: i32) -> (i32, i32) {
    %c0_i32 = arith.constant 0 : i32
    %c0_i32_0 = arith.constant 0 : i32
    %c0_i32_1 = arith.constant 0 : i32
    return %c0_i32, %c0_i32_0 : i32, i32
  }
  func.func @transform_4(%arg0: i32) -> (i32, i32) {
    %c0_i32 = arith.constant 0 : i32
    %c0_i32_0 = arith.constant 0 : i32
    %c0_i32_1 = arith.constant 0 : i32
    return %c0_i32, %c0_i32_0 : i32, i32
  }
  func.func @transform_5(%arg0: i32) -> (i32, i32) {
    %c0_i32 = arith.constant 0 : i32
    %c0_i32_0 = arith.constant 0 : i32
    %c0_i32_1 = arith.constant 0 : i32
    return %c0_i32, %c0_i32_0 : i32, i32
  }
  func.func @transform_6(%arg0: i32) -> (i32, i32) {
    %c0_i32 = arith.constant 0 : i32
    %c0_i32_0 = arith.constant 0 : i32
    %c0_i32_1 = arith.constant 0 : i32
    return %c0_i32, %c0_i32_0 : i32, i32
  }
  func.func @transform_7(%arg0: i32) -> (i32, i32) {
    %c0_i32 = arith.constant 0 : i32
    %c0_i32_0 = arith.constant 0 : i32
    %c0_i32_1 = arith.constant 0 : i32
    return %c0_i32, %c0_i32_0 : i32, i32
  }
  func.func @transform_8(%arg0: i32) -> (i32, i32) {
    %c0_i32 = arith.constant 0 : i32
    %c0_i32_0 = arith.constant 0 : i32
    %c0_i32_1 = arith.constant 0 : i32
    return %c0_i32, %c0_i32_0 : i32, i32
  }
}

</mosaic_0001>

<llo_original>
// kernel: tpu_custom_call.1
$region0: #{tpu_custom_call.1}
  #allocation0 [shape = 'u32[]', space=smem, size = 0x4, offset = 0x4, fixed_abs, tag = 'smem constant byte address 0x4 - core index']
  #allocation1 [shape = 'u32[144,128]{1,0:T(1,128)}', space=vmem, size = 0x12000, scoped, tag = 'internal scratch']
  #allocation2 [shape = 'bf16[512,384]{1,0:T(16,128)(2,1)}', space=vmem, size = 0x60000, scoped, tag = 'scratch operand']
  #allocation3 [shape = 'f32[2,18,18,32]{3,2,1,0:T(8,128)}', space=vmem, size = 0x6c000, scoped, tag = 'scratch operand']
  %s0 = inlined_call_operand.vmem [shape: f32[2,18,18,32], index: 0, kind: input, shape index: {}]
  %s1 = inlined_call_operand.vmem [shape: f32[512,32], index: 1, kind: input, shape index: {}]
  %s2 = inlined_call_operand.vmem [shape: bf16[384,32], index: 2, kind: input, shape index: {}]
  %s3 = inlined_call_operand.vmem [shape: bf16[384,32], index: 3, kind: input, shape index: {}]
  %s4 = inlined_call_operand.vmem [shape: f32[1,32], index: 4, kind: input, shape index: {}]
  %s5 = inlined_call_operand.vmem [shape: f32[1,32], index: 5, kind: input, shape index: {}]
  %s6 = inlined_call_operand.vmem [shape: f32[1,32], index: 6, kind: input, shape index: {}]
  %s7 = inlined_call_operand.vmem [shape: f32[1,32], index: 7, kind: input, shape index: {}]
  %s8 = inlined_call_operand.vmem [shape: f32[512,32], index: 8, kind: output, shape index: {}]
  %s9 = sld [smem:[#allocation0]]
  $region42: #{tpu_custom_call.1} parent=0
    _
  %s11 = ssub.s32 1, %s9
  %s12 = scalar_select 0, %s11, %s9
  // Predicated region
  $region2: #{tpu_custom_call.1} parent=0 // pred_check
    _
  $region3: #{tpu_custom_call.1} parent=0 // pred_check_branch
    %14 = sbr.rel (0) target = $region5
  $region4: #{tpu_custom_call.1} parent=0 // pred_region
    _
  $region5: #{tpu_custom_call.1} parent=0 // pred_fallthru
    _
  // Predicated region
  $region6: #{tpu_custom_call.1} parent=0 // pred_check
    _
  $region7: #{tpu_custom_call.1} parent=0 // pred_check_branch
    %16 = sbr.rel (0) target = $region9
  $region8: #{tpu_custom_call.1} parent=0 // pred_region
    _
  $region9: #{tpu_custom_call.1} parent=0 // pred_fallthru
    _
  // Predicated region
  $region10: #{tpu_custom_call.1} parent=0 // pred_check
    _
  $region11: #{tpu_custom_call.1} parent=0 // pred_check_branch
    %18 = sbr.rel (0) target = $region13
  $region12: #{tpu_custom_call.1} parent=0 // pred_region
    _
  $region13: #{tpu_custom_call.1} parent=0 // pred_fallthru
    _
  // Predicated region
  $region14: #{tpu_custom_call.1} parent=0 // pred_check
    _
  $region15: #{tpu_custom_call.1} parent=0 // pred_check_branch
    %20 = sbr.rel (0) target = $region17
  $region16: #{tpu_custom_call.1} parent=0 // pred_region
    _
  $region17: #{tpu_custom_call.1} parent=0 // pred_fallthru
    _
  // Predicated region
  $region18: #{tpu_custom_call.1} parent=0 // pred_check
    _
  $region19: #{tpu_custom_call.1} parent=0 // pred_check_branch
    %22 = sbr.rel (0) target = $region21
  $region20: #{tpu_custom_call.1} parent=0 // pred_region
    _
  $region21: #{tpu_custom_call.1} parent=0 // pred_fallthru
    _
  // Predicated region
  $region22: #{tpu_custom_call.1} parent=0 // pred_check
    _
  $region23: #{tpu_custom_call.1} parent=0 // pred_check_branch
    %24 = sbr.rel (0) target = $region25
  $region24: #{tpu_custom_call.1} parent=0 // pred_region
    _
  $region25: #{tpu_custom_call.1} parent=0 // pred_fallthru
    _
  // Predicated region
  $region26: #{tpu_custom_call.1} parent=0 // pred_check
    _
  $region27: #{tpu_custom_call.1} parent=0 // pred_check_branch
    %26 = sbr.rel (0) target = $region29
  $region28: #{tpu_custom_call.1} parent=0 // pred_region
    _
  $region29: #{tpu_custom_call.1} parent=0 // pred_fallthru
    _
  // Predicated region
  $region30: #{tpu_custom_call.1} parent=0 // pred_check
    _
  $region31: #{tpu_custom_call.1} parent=0 // pred_check_branch
    %28 = sbr.rel (0) target = $region33
  $region32: #{tpu_custom_call.1} parent=0 // pred_region
    _
  $region33: #{tpu_custom_call.1} parent=0 // pred_fallthru
    _
  %vm30 = vcmask 1047808
  %31 = vst.msk [vmem:[#allocation2 + $0x10] sm:$0xff] %vm30, 0
  %32 = vst.msk [vmem:[#allocation2 + $0x28] sm:$0xff] %vm30, 0
  %33 = vst.msk [vmem:[#allocation2 + $0x40] sm:$0xff] %vm30, 0
  %34 = vst.msk [vmem:[#allocation2 + $0x58] sm:$0xff] %vm30, 0
  %35 = vst.msk [vmem:[#allocation2 + $0x70] sm:$0xff] %vm30, 0
  %36 = vst.msk [vmem:[#allocation2 + $0x88] sm:$0xff] %vm30, 0
  %37 = vst.msk [vmem:[#allocation2 + $0xa0] sm:$0xff] %vm30, 0
  %38 = vst.msk [vmem:[#allocation2 + $0xb8] sm:$0xff] %vm30, 0
  %39 = vst.msk [vmem:[#allocation2 + $0xd0] sm:$0xff] %vm30, 0
  %40 = vst.msk [vmem:[#allocation2 + $0xe8] sm:$0xff] %vm30, 0
  %41 = vst.msk [vmem:[#allocation2 + $0x100] sm:$0xff] %vm30, 0
  %42 = vst.msk [vmem:[#allocation2 + $0x118] sm:$0xff] %vm30, 0
  %43 = vst.msk [vmem:[#allocation2 + $0x130] sm:$0xff] %vm30, 0
  %44 = vst.msk [vmem:[#allocation2 + $0x148] sm:$0xff] %vm30, 0
  %45 = vst.msk [vmem:[#allocation2 + $0x160] sm:$0xff] %vm30, 0
  %46 = vst.msk [vmem:[#allocation2 + $0x178] sm:$0xff] %vm30, 0
  %47 = vst.msk [vmem:[#allocation2 + $0x190] sm:$0xff] %vm30, 0
  %48 = vst.msk [vmem:[#allocation2 + $0x1a8] sm:$0xff] %vm30, 0
  %49 = vst.msk [vmem:[#allocation2 + $0x1c0] sm:$0xff] %vm30, 0
  %50 = vst.msk [vmem:[#allocation2 + $0x1d8] sm:$0xff] %vm30, 0
  %51 = vst.msk [vmem:[#allocation2 + $0x1f0] sm:$0xff] %vm30, 0
  %52 = vst.msk [vmem:[#allocation2 + $0x208] sm:$0xff] %vm30, 0
  %53 = vst.msk [vmem:[#allocation2 + $0x220] sm:$0xff] %vm30, 0
  %54 = vst.msk [vmem:[#allocation2 + $0x238] sm:$0xff] %vm30, 0
  %55 = vst.msk [vmem:[#allocation2 + $0x250] sm:$0xff] %vm30, 0
  %56 = vst.msk [vmem:[#allocation2 + $0x268] sm:$0xff] %vm30, 0
  %57 = vst.msk [vmem:[#allocation2 + $0x280] sm:$0xff] %vm30, 0
  %58 = vst.msk [vmem:[#allocation2 + $0x298] sm:$0xff] %vm30, 0
  %59 = vst.msk [vmem:[#allocation2 + $0x2b0] sm:$0xff] %vm30, 0
  %60 = vst.msk [vmem:[#allocation2 + $0x2c8] sm:$0xff] %vm30, 0
  %61 = vst.msk [vmem:[#allocation2 + $0x2e0] sm:$0xff] %vm30, 0
  %62 = vst.msk [vmem:[#allocation2 + $0x2f8] sm:$0xff] %vm30, 0
  %v63 = vld [vmem:[%s0] sm:$0xff]
  %v64 = vld [vmem:[%s0 + $0x8] sm:$0xff]
  %v65 = vld [vmem:[%s0 + $0x18] sm:$0xff]
  %v66 = vld [vmem:[%s0 + $0x20] sm:$0xff]
  %v67 = vld [vmem:[%s0 + $0x30] sm:$0xff]
  %v68 = vld [vmem:[%s0 + $0x38] sm:$0xff]
  %v69 = vld [vmem:[%s0 + $0x48] sm:$0xff]
  %v70 = vld [vmem:[%s0 + $0x50] sm:$0xff]
  %v71 = vld [vmem:[%s0 + $0x60] sm:$0xff]
  %v72 = vld [vmem:[%s0 + $0x68] sm:$0xff]
  %v73 = vld [vmem:[%s0 + $0x78] sm:$0xff]
  %v74 = vld [vmem:[%s0 + $0x80] sm:$0xff]
  %v75 = vld [vmem:[%s0 + $0x90] sm:$0xff]
  %v76 = vld [vmem:[%s0 + $0x98] sm:$0xff]
  %v77 = vld [vmem:[%s0 + $0xa8] sm:$0xff]
  %v78 = vld [vmem:[%s0 + $0xb0] sm:$0xff]
  %v79 = vld [vmem:[%s0 + $0xc0] sm:$0xff]
  %v80 = vld [vmem:[%s0 + $0xc8] sm:$0xff]
  %v81 = vld [vmem:[%s0 + $0xd8] sm:$0xff]
  %v82 = vld [vmem:[%s0 + $0xe0] sm:$0xff]
  %v83 = vld [vmem:[%s0 + $0xf0] sm:$0xff]
  %v84 = vld [vmem:[%s0 + $0xf8] sm:$0xff]
  %v85 = vld [vmem:[%s0 + $0x108] sm:$0xff]
  %v86 = vld [vmem:[%s0 + $0x110] sm:$0xff]
  %v87 = vld [vmem:[%s0 + $0x120] sm:$0xff]
  %v88 = vld [vmem:[%s0 + $0x128] sm:$0xff]
  %v89 = vld [vmem:[%s0 + $0x138] sm:$0xff]
  %v90 = vld [vmem:[%s0 + $0x140] sm:$0xff]
  %v91 = vld [vmem:[%s0 + $0x150] sm:$0xff]
  %v92 = vld [vmem:[%s0 + $0x158] sm:$0xff]
  %v93 = vld [vmem:[%s0 + $0x168] sm:$0xff]
  %v94 = vld [vmem:[%s0 + $0x170] sm:$0xff]
  %v95 = vld [vmem:[%s0 + $0x1b0] sm:$0xff]
  %v96 = vld [vmem:[%s0 + $0x1b8] sm:$0xff]
  %v97 = vld [vmem:[%s0 + $0x1c8] sm:$0xff]
  %v98 = vld [vmem:[%s0 + $0x1d0] sm:$0xff]
  %v99 = vld [vmem:[%s0 + $0x1e0] sm:$0xff]
  %v100 = vld [vmem:[%s0 + $0x1e8] sm:$0xff]
  %v101 = vld [vmem:[%s0 + $0x1f8] sm:$0xff]
  %v102 = vld [vmem:[%s0 + $0x200] sm:$0xff]
  %v103 = vld [vmem:[%s0 + $0x210] sm:$0xff]
  %v104 = vld [vmem:[%s0 + $0x218] sm:$0xff]
  %v105 = vld [vmem:[%s0 + $0x228] sm:$0xff]
  %v106 = vld [vmem:[%s0 + $0x230] sm:$0xff]
  %v107 = vld [vmem:[%s0 + $0x240] sm:$0xff]
  %v108 = vld [vmem:[%s0 + $0x248] sm:$0xff]
  %v109 = vld [vmem:[%s0 + $0x258] sm:$0xff]
  %v110 = vld [vmem:[%s0 + $0x260] sm:$0xff]
  %v111 = vld [vmem:[%s0 + $0x270] sm:$0xff]
  %v112 = vld [vmem:[%s0 + $0x278] sm:$0xff]
  %v113 = vld [vmem:[%s0 + $0x288] sm:$0xff]
  %v114 = vld [vmem:[%s0 + $0x290] sm:$0xff]
  %v115 = vld [vmem:[%s0 + $0x2a0] sm:$0xff]
  %v116 = vld [vmem:[%s0 + $0x2a8] sm:$0xff]
  %v117 = vld [vmem:[%s0 + $0x2b8] sm:$0xff]
  %v118 = vld [vmem:[%s0 + $0x2c0] sm:$0xff]
  %v119 = vld [vmem:[%s0 + $0x2d0] sm:$0xff]
  %v120 = vld [vmem:[%s0 + $0x2d8] sm:$0xff]
  %v121 = vld [vmem:[%s0 + $0x2e8] sm:$0xff]
  %v122 = vld [vmem:[%s0 + $0x2f0] sm:$0xff]
  %v123 = vld [vmem:[%s0 + $0x300] sm:$0xff]
  %v124 = vld [vmem:[%s0 + $0x308] sm:$0xff]
  %v125 = vld [vmem:[%s0 + $0x318] sm:$0xff]
  %v126 = vld [vmem:[%s0 + $0x320] sm:$0xff]
  %v127 = vpack.c.bf16 %v64, %v63
  %v128 = vpack.c.bf16 %v66, %v65
  %v129 = vpack.c.bf16 %v68, %v67
  %v130 = vpack.c.bf16 %v70, %v69
  %v131 = vpack.c.bf16 %v72, %v71
  %v132 = vpack.c.bf16 %v74, %v73
  %v133 = vpack.c.bf16 %v76, %v75
  %v134 = vpack.c.bf16 %v78, %v77
  %v135 = vpack.c.bf16 %v80, %v79
  %v136 = vpack.c.bf16 %v82, %v81
  %v137 = vpack.c.bf16 %v84, %v83
  %v138 = vpack.c.bf16 %v86, %v85
  %v139 = vpack.c.bf16 %v88, %v87
  %v140 = vpack.c.bf16 %v90, %v89
  %v141 = vpack.c.bf16 %v92, %v91
  %v142 = vpack.c.bf16 %v94, %v93
  %v143 = vpack.c.bf16 %v96, %v95
  %v144 = vpack.c.bf16 %v98, %v97
  %v145 = vpack.c.bf16 %v100, %v99
  %v146 = vpack.c.bf16 %v102, %v101
  %v147 = vpack.c.bf16 %v104, %v103
  %v148 = vpack.c.bf16 %v106, %v105
  %v149 = vpack.c.bf16 %v108, %v107
  %v150 = vpack.c.bf16 %v110, %v109
  %v151 = vpack.c.bf16 %v112, %v111
  %v152 = vpack.c.bf16 %v114, %v113
  %v153 = vpack.c.bf16 %v116, %v115
  %v154 = vpack.c.bf16 %v118, %v117
  %v155 = vpack.c.bf16 %v120, %v119
  %v156 = vpack.c.bf16 %v122, %v121
  %v157 = vpack.c.bf16 %v124, %v123
  %v158 = vpack.c.bf16 %v126, %v125
  %vm159 = vcmask 261120
  %160 = vst.msk [vmem:[#allocation2] sm:$0xff] %vm159, %v127
  %161 = vst.msk [vmem:[#allocation2 + $0x18] sm:$0xff] %vm159, %v128
  %162 = vst.msk [vmem:[#allocation2 + $0x30] sm:$0xff] %vm159, %v129
  %163 = vst.msk [vmem:[#allocation2 + $0x48] sm:$0xff] %vm159, %v130
  %164 = vst.msk [vmem:[#allocation2 + $0x60] sm:$0xff] %vm159, %v131
  %165 = vst.msk [vmem:[#allocation2 + $0x78] sm:$0xff] %vm159, %v132
  %166 = vst.msk [vmem:[#allocation2 + $0x90] sm:$0xff] %vm159, %v133
  %167 = vst.msk [vmem:[#allocation2 + $0xa8] sm:$0xff] %vm159, %v134
  %168 = vst.msk [vmem:[#allocation2 + $0xc0] sm:$0xff] %vm159, %v135
  %169 = vst.msk [vmem:[#allocation2 + $0xd8] sm:$0xff] %vm159, %v136
  %170 = vst.msk [vmem:[#allocation2 + $0xf0] sm:$0xff] %vm159, %v137
  %171 = vst.msk [vmem:[#allocation2 + $0x108] sm:$0xff] %vm159, %v138
  %172 = vst.msk [vmem:[#allocation2 + $0x120] sm:$0xff] %vm159, %v139
  %173 = vst.msk [vmem:[#allocation2 + $0x138] sm:$0xff] %vm159, %v140
  %174 = vst.msk [vmem:[#allocation2 + $0x150] sm:$0xff] %vm159, %v141
  %175 = vst.msk [vmem:[#allocation2 + $0x168] sm:$0xff] %vm159, %v142
  %176 = vst.msk [vmem:[#allocation2 + $0x180] sm:$0xff] %vm159, %v143
  %177 = vst.msk [vmem:[#allocation2 + $0x198] sm:$0xff] %vm159, %v144
  %178 = vst.msk [vmem:[#allocation2 + $0x1b0] sm:$0xff] %vm159, %v145
  %179 = vst.msk [vmem:[#allocation2 + $0x1c8] sm:$0xff] %vm159, %v146
  %180 = vst.msk [vmem:[#allocation2 + $0x1e0] sm:$0xff] %vm159, %v147
  %181 = vst.msk [vmem:[#allocation2 + $0x1f8] sm:$0xff] %vm159, %v148
  %182 = vst.msk [vmem:[#allocation2 + $0x210] sm:$0xff] %vm159, %v149
  %183 = vst.msk [vmem:[#allocation2 + $0x228] sm:$0xff] %vm159, %v150
  %184 = vst.msk [vmem:[#allocation2 + $0x240] sm:$0xff] %vm159, %v151
  %185 = vst.msk [vmem:[#allocation2 + $0x258] sm:$0xff] %vm159, %v152
  %186 = vst.msk [vmem:[#allocation2 + $0x270] sm:$0xff] %vm159, %v153
  %187 = vst.msk [vmem:[#allocation2 + $0x288] sm:$0xff] %vm159, %v154
  %188 = vst.msk [vmem:[#allocation2 + $0x2a0] sm:$0xff] %vm159, %v155
  %189 = vst.msk [vmem:[#allocation2 + $0x2b8] sm:$0xff] %vm159, %v156
  %190 = vst.msk [vmem:[#allocation2 + $0x2d0] sm:$0xff] %vm159, %v157
  %191 = vst.msk [vmem:[#allocation2 + $0x2e8] sm:$0xff] %vm159, %v158
  %v192 = vld [vmem:[%s0 + $0x1] sm:$0xff]
  %v193 = vld [vmem:[%s0 + $0x9] sm:$0xff]
  %v194 = vld [vmem:[%s0 + $0x19] sm:$0xff]
  %v195 = vld [vmem:[%s0 + $0x21] sm:$0xff]
  %v196 = vld [vmem:[%s0 + $0x31] sm:$0xff]
  %v197 = vld [vmem:[%s0 + $0x39] sm:$0xff]
  %v198 = vld [vmem:[%s0 + $0x49] sm:$0xff]
  %v199 = vld [vmem:[%s0 + $0x51] sm:$0xff]
  %v200 = vld [vmem:[%s0 + $0x61] sm:$0xff]
  %v201 = vld [vmem:[%s0 + $0x69] sm:$0xff]
  %v202 = vld [vmem:[%s0 + $0x79] sm:$0xff]
  %v203 = vld [vmem:[%s0 + $0x81] sm:$0xff]
  %v204 = vld [vmem:[%s0 + $0x91] sm:$0xff]
  %v205 = vld [vmem:[%s0 + $0x99] sm:$0xff]
  %v206 = vld [vmem:[%s0 + $0xa9] sm:$0xff]
  %v207 = vld [vmem:[%s0 + $0xb1] sm:$0xff]
  %v208 = vld [vmem:[%s0 + $0xc1] sm:$0xff]
  %v209 = vld [vmem:[%s0 + $0xc9] sm:$0xff]
  %v210 = vld [vmem:[%s0 + $0xd9] sm:$0xff]
  %v211 = vld [vmem:[%s0 + $0xe1] sm:$0xff]
  %v212 = vld [vmem:[%s0 + $0xf1] sm:$0xff]
  %v213 = vld [vmem:[%s0 + $0xf9] sm:$0xff]
  %v214 = vld [vmem:[%s0 + $0x109] sm:$0xff]
  %v215 = vld [vmem:[%s0 + $0x111] sm:$0xff]
  %v216 = vld [vmem:[%s0 + $0x121] sm:$0xff]
  %v217 = vld [vmem:[%s0 + $0x129] sm:$0xff]
  %v218 = vld [vmem:[%s0 + $0x139] sm:$0xff]
  %v219 = vld [vmem:[%s0 + $0x141] sm:$0xff]
  %v220 = vld [vmem:[%s0 + $0x151] sm:$0xff]
  %v221 = vld [vmem:[%s0 + $0x159] sm:$0xff]
  %v222 = vld [vmem:[%s0 + $0x169] sm:$0xff]
  %v223 = vld [vmem:[%s0 + $0x171] sm:$0xff]
  %v224 = vld [vmem:[%s0 + $0x1b1] sm:$0xff]
  %v225 = vld [vmem:[%s0 + $0x1b9] sm:$0xff]
  %v226 = vld [vmem:[%s0 + $0x1c9] sm:$0xff]
  %v227 = vld [vmem:[%s0 + $0x1d1] sm:$0xff]
  %v228 = vld [vmem:[%s0 + $0x1e1] sm:$0xff]
  %v229 = vld [vmem:[%s0 + $0x1e9] sm:$0xff]
  %v230 = vld [vmem:[%s0 + $0x1f9] sm:$0xff]
  %v231 = vld [vmem:[%s0 + $0x201] sm:$0xff]
  %v232 = vld [vmem:[%s0 + $0x211] sm:$0xff]
  %v233 = vld [vmem:[%s0 + $0x219] sm:$0xff]
  %v234 = vld [vmem:[%s0 + $0x229] sm:$0xff]
  %v235 = vld [vmem:[%s0 + $0x231] sm:$0xff]
  %v236 = vld [vmem:[%s0 + $0x241] sm:$0xff]
  %v237 = vld [vmem:[%s0 + $0x249] sm:$0xff]
  %v238 = vld [vmem:[%s0 + $0x259] sm:$0xff]
  %v239 = vld [vmem:[%s0 + $0x261] sm:$0xff]
  %v240 = vld [vmem:[%s0 + $0x271] sm:$0xff]
  %v241 = vld [vmem:[%s0 + $0x279] sm:$0xff]
  %v242 = vld [vmem:[%s0 + $0x289] sm:$0xff]
  %v243 = vld [vmem:[%s0 + $0x291] sm:$0xff]
  %v244 = vld [vmem:[%s0 + $0x2a1] sm:$0xff]
  %v245 = vld [vmem:[%s0 + $0x2a9] sm:$0xff]
  %v246 = vld [vmem:[%s0 + $0x2b9] sm:$0xff]
  %v247 = vld [vmem:[%s0 + $0x2c1] sm:$0xff]
  %v248 = vld [vmem:[%s0 + $0x2d1] sm:$0xff]
  %v249 = vld [vmem:[%s0 + $0x2d9] sm:$0xff]
  %v250 = vld [vmem:[%s0 + $0x2e9] sm:$0xff]
  %v251 = vld [vmem:[%s0 + $0x2f1] sm:$0xff]
  %v252 = vld [vmem:[%s0 + $0x301] sm:$0xff]
  %v253 = vld [vmem:[%s0 + $0x309] sm:$0xff]
  %v254 = vld [vmem:[%s0 + $0x319] sm:$0xff]
  %v255 = vld [vmem:[%s0 + $0x321] sm:$0xff]
  %v256 = vpack.c.bf16 %v193, %v192
  %v257 = vpack.c.bf16 %v195, %v194
  %v258 = vpack.c.bf16 %v197, %v196
  %v259 = vpack.c.bf16 %v199, %v198
  %v260 = vpack.c.bf16 %v201, %v200
  %v261 = vpack.c.bf16 %v203, %v202
  %v262 = vpack.c.bf16 %v205, %v204
  %v263 = vpack.c.bf16 %v207, %v206
  %v264 = vpack.c.bf16 %v209, %v208
  %v265 = vpack.c.bf16 %v211, %v210
  %v266 = vpack.c.bf16 %v213, %v212
  %v267 = vpack.c.bf16 %v215, %v214
  %v268 = vpack.c.bf16 %v217, %v216
  %v269 = vpack.c.bf16 %v219, %v218
  %v270 = vpack.c.bf16 %v221, %v220
  %v271 = vpack.c.bf16 %v223, %v222
  %v272 = vpack.c.bf16 %v225, %v224
  %v273 = vpack.c.bf16 %v227, %v226
  %v274 = vpack.c.bf16 %v229, %v228
  %v275 = vpack.c.bf16 %v231, %v230
  %v276 = vpack.c.bf16 %v233, %v232
  %v277 = vpack.c.bf16 %v235, %v234
  %v278 = vpack.c.bf16 %v237, %v236
  %v279 = vpack.c.bf16 %v239, %v238
  %v280 = vpack.c.bf16 %v241, %v240
  %v281 = vpack.c.bf16 %v243, %v242
  %v282 = vpack.c.bf16 %v245, %v244
  %v283 = vpack.c.bf16 %v247, %v246
  %v284 = vpack.c.bf16 %v249, %v248
  %v285 = vpack.c.bf16 %v251, %v250
  %v286 = vpack.c.bf16 %v253, %v252
  %v287 = vpack.c.bf16 %v255, %v254
  %320 = vrot.lane.b32.xlu0 %v256, 32
  %v321 = vpop.permute.xlu0 %320
  %322 = vrot.lane.b32.xlu0 %v257, 32
  %v323 = vpop.permute.xlu0 %322
  %324 = vrot.lane.b32.xlu0 %v258, 32
  %v325 = vpop.permute.xlu0 %324
  %326 = vrot.lane.b32.xlu0 %v259, 32
  %v327 = vpop.permute.xlu0 %326
  %328 = vrot.lane.b32.xlu0 %v260, 32
  %v329 = vpop.permute.xlu0 %328
  %330 = vrot.lane.b32.xlu0 %v261, 32
  %v331 = vpop.permute.xlu0 %330
  %332 = vrot.lane.b32.xlu0 %v262, 32
  %v333 = vpop.permute.xlu0 %332
  %334 = vrot.lane.b32.xlu0 %v263, 32
  %v335 = vpop.permute.xlu0 %334
  %336 = vrot.lane.b32.xlu0 %v264, 32
  %v337 = vpop.permute.xlu0 %336
  %338 = vrot.lane.b32.xlu0 %v265, 32
  %v339 = vpop.permute.xlu0 %338
  %340 = vrot.lane.b32.xlu0 %v266, 32
  %v341 = vpop.permute.xlu0 %340
  %342 = vrot.lane.b32.xlu0 %v267, 32
  %v343 = vpop.permute.xlu0 %342
  %344 = vrot.lane.b32.xlu0 %v268, 32
  %v345 = vpop.permute.xlu0 %344
  %346 = vrot.lane.b32.xlu0 %v269, 32
  %v347 = vpop.permute.xlu0 %346
  %348 = vrot.lane.b32.xlu0 %v270, 32
  %v349 = vpop.permute.xlu0 %348
  %350 = vrot.lane.b32.xlu0 %v271, 32
  %v351 = vpop.permute.xlu0 %350
  %352 = vrot.lane.b32.xlu0 %v272, 32
  %v353 = vpop.permute.xlu0 %352
  %354 = vrot.lane.b32.xlu0 %v273, 32
  %v355 = vpop.permute.xlu0 %354
  %356 = vrot.lane.b32.xlu0 %v274, 32
  %v357 = vpop.permute.xlu0 %356
  %358 = vrot.lane.b32.xlu0 %v275, 32
  %v359 = vpop.permute.xlu0 %358
  %360 = vrot.lane.b32.xlu0 %v276, 32
  %v361 = vpop.permute.xlu0 %360
  %362 = vrot.lane.b32.xlu0 %v277, 32
  %v363 = vpop.permute.xlu0 %362
  %364 = vrot.lane.b32.xlu0 %v278, 32
  %v365 = vpop.permute.xlu0 %364
  %366 = vrot.lane.b32.xlu0 %v279, 32
  %v367 = vpop.permute.xlu0 %366
  %368 = vrot.lane.b32.xlu0 %v280, 32
  %v369 = vpop.permute.xlu0 %368
  %370 = vrot.lane.b32.xlu0 %v281, 32
  %v371 = vpop.permute.xlu0 %370
  %372 = vrot.lane.b32.xlu0 %v282, 32
  %v373 = vpop.permute.xlu0 %372
  %374 = vrot.lane.b32.xlu0 %v283, 32
  %v375 = vpop.permute.xlu0 %374
  %376 = vrot.lane.b32.xlu0 %v284, 32
  %v377 = vpop.permute.xlu0 %376
  %378 = vrot.lane.b32.xlu0 %v285, 32
  %v379 = vpop.permute.xlu0 %378
  %380 = vrot.lane.b32.xlu0 %v286, 32
  %v381 = vpop.permute.xlu0 %380
  %382 = vrot.lane.b32.xlu0 %v287, 32
  %v383 = vpop.permute.xlu0 %382
  %vm416 = vcmask 523520
  %417 = vst.msk [vmem:[#allocation2] sm:$0xff] %vm416, %v321
  %418 = vst.msk [vmem:[#allocation2 + $0x18] sm:$0xff] %vm416, %v323
  %419 = vst.msk [vmem:[#allocation2 + $0x30] sm:$0xff] %vm416, %v325
  %420 = vst.msk [vmem:[#allocation2 + $0x48] sm:$0xff] %vm416, %v327
  %421 = vst.msk [vmem:[#allocation2 + $0x60] sm:$0xff] %vm416, %v329
  %422 = vst.msk [vmem:[#allocation2 + $0x78] sm:$0xff] %vm416, %v331
  %423 = vst.msk [vmem:[#allocation2 + $0x90] sm:$0xff] %vm416, %v333
  %424 = vst.msk [vmem:[#allocation2 + $0xa8] sm:$0xff] %vm416, %v335
  %425 = vst.msk [vmem:[#allocation2 + $0xc0] sm:$0xff] %vm416, %v337
  %426 = vst.msk [vmem:[#allocation2 + $0xd8] sm:$0xff] %vm416, %v339
  %427 = vst.msk [vmem:[#allocation2 + $0xf0] sm:$0xff] %vm416, %v341
  %428 = vst.msk [vmem:[#allocation2 + $0x108] sm:$0xff] %vm416, %v343
  %429 = vst.msk [vmem:[#allocation2 + $0x120] sm:$0xff] %vm416, %v345
  %430 = vst.msk [vmem:[#allocation2 + $0x138] sm:$0xff] %vm416, %v347
  %431 = vst.msk [vmem:[#allocation2 + $0x150] sm:$0xff] %vm416, %v349
  %432 = vst.msk [vmem:[#allocation2 + $0x168] sm:$0xff] %vm416, %v351
  %433 = vst.msk [vmem:[#allocation2 + $0x180] sm:$0xff] %vm416, %v353
  %434 = vst.msk [vmem:[#allocation2 + $0x198] sm:$0xff] %vm416, %v355
  %435 = vst.msk [vmem:[#allocation2 + $0x1b0] sm:$0xff] %vm416, %v357
  %436 = vst.msk [vmem:[#allocation2 + $0x1c8] sm:$0xff] %vm416, %v359
  %437 = vst.msk [vmem:[#allocation2 + $0x1e0] sm:$0xff] %vm416, %v361
  %438 = vst.msk [vmem:[#allocation2 + $0x1f8] sm:$0xff] %vm416, %v363
  %439 = vst.msk [vmem:[#allocation2 + $0x210] sm:$0xff] %vm416, %v365
  %440 = vst.msk [vmem:[#allocation2 + $0x228] sm:$0xff] %vm416, %v367
  %441 = vst.msk [vmem:[#allocation2 + $0x240] sm:$0xff] %vm416, %v369
  %442 = vst.msk [vmem:[#allocation2 + $0x258] sm:$0xff] %vm416, %v371
  %443 = vst.msk [vmem:[#allocation2 + $0x270] sm:$0xff] %vm416, %v373
  %444 = vst.msk [vmem:[#allocation2 + $0x288] sm:$0xff] %vm416, %v375
  %445 = vst.msk [vmem:[#allocation2 + $0x2a0] sm:$0xff] %vm416, %v377
  %446 = vst.msk [vmem:[#allocation2 + $0x2b8] sm:$0xff] %vm416, %v379
  %447 = vst.msk [vmem:[#allocation2 + $0x2d0] sm:$0xff] %vm416, %v381
  %448 = vst.msk [vmem:[#allocation2 + $0x2e8] sm:$0xff] %vm416, %v383
  %v449 = vld [vmem:[%s0 + $0x2] sm:$0xff]
  %v450 = vld [vmem:[%s0 + $0xa] sm:$0xff]
  %v451 = vld [vmem:[%s0 + $0x1a] sm:$0xff]
  %v452 = vld [vmem:[%s0 + $0x22] sm:$0xff]
  %v453 = vld [vmem:[%s0 + $0x32] sm:$0xff]
  %v454 = vld [vmem:[%s0 + $0x3a] sm:$0xff]
  %v455 = vld [vmem:[%s0 + $0x4a] sm:$0xff]
  %v456 = vld [vmem:[%s0 + $0x52] sm:$0xff]
  %v457 = vld [vmem:[%s0 + $0x62] sm:$0xff]
  %v458 = vld [vmem:[%s0 + $0x6a] sm:$0xff]
  %v459 = vld [vmem:[%s0 + $0x7a] sm:$0xff]
  %v460 = vld [vmem:[%s0 + $0x82] sm:$0xff]
  %v461 = vld [vmem:[%s0 + $0x92] sm:$0xff]
  %v462 = vld [vmem:[%s0 + $0x9a] sm:$0xff]
  %v463 = vld [vmem:[%s0 + $0xaa] sm:$0xff]
  %v464 = vld [vmem:[%s0 + $0xb2] sm:$0xff]
  %v465 = vld [vmem:[%s0 + $0xc2] sm:$0xff]
  %v466 = vld [vmem:[%s0 + $0xca] sm:$0xff]
  %v467 = vld [vmem:[%s0 + $0xda] sm:$0xff]
  %v468 = vld [vmem:[%s0 + $0xe2] sm:$0xff]
  %v469 = vld [vmem:[%s0 + $0xf2] sm:$0xff]
  %v470 = vld [vmem:[%s0 + $0xfa] sm:$0xff]
  %v471 = vld [vmem:[%s0 + $0x10a] sm:$0xff]
  %v472 = vld [vmem:[%s0 + $0x112] sm:$0xff]
  %v473 = vld [vmem:[%s0 + $0x122] sm:$0xff]
  %v474 = vld [vmem:[%s0 + $0x12a] sm:$0xff]
  %v475 = vld [vmem:[%s0 + $0x13a] sm:$0xff]
  %v476 = vld [vmem:[%s0 + $0x142] sm:$0xff]
  %v477 = vld [vmem:[%s0 + $0x152] sm:$0xff]
  %v478 = vld [vmem:[%s0 + $0x15a] sm:$0xff]
  %v479 = vld [vmem:[%s0 + $0x16a] sm:$0xff]
  %v480 = vld [vmem:[%s0 + $0x172] sm:$0xff]
  %v481 = vld [vmem:[%s0 + $0x1b2] sm:$0xff]
  %v482 = vld [vmem:[%s0 + $0x1ba] sm:$0xff]
  %v483 = vld [vmem:[%s0 + $0x1ca] sm:$0xff]
  %v484 = vld [vmem:[%s0 + $0x1d2] sm:$0xff]
  %v485 = vld [vmem:[%s0 + $0x1e2] sm:$0xff]
  %v486 = vld [vmem:[%s0 + $0x1ea] sm:$0xff]
  %v487 = vld [vmem:[%s0 + $0x1fa] sm:$0xff]
  %v488 = vld [vmem:[%s0 + $0x202] sm:$0xff]
  %v489 = vld [vmem:[%s0 + $0x212] sm:$0xff]
  %v490 = vld [vmem:[%s0 + $0x21a] sm:$0xff]
  %v491 = vld [vmem:[%s0 + $0x22a] sm:$0xff]
  %v492 = vld [vmem:[%s0 + $0x232] sm:$0xff]
  %v493 = vld [vmem:[%s0 + $0x242] sm:$0xff]
  %v494 = vld [vmem:[%s0 + $0x24a] sm:$0xff]
  %v495 = vld [vmem:[%s0 + $0x25a] sm:$0xff]
  %v496 = vld [vmem:[%s0 + $0x262] sm:$0xff]
  %v497 = vld [vmem:[%s0 + $0x272] sm:$0xff]
  %v498 = vld [vmem:[%s0 + $0x27a] sm:$0xff]
  %v499 = vld [vmem:[%s0 + $0x28a] sm:$0xff]
  %v500 = vld [vmem:[%s0 + $0x292] sm:$0xff]
  %v501 = vld [vmem:[%s0 + $0x2a2] sm:$0xff]
  %v502 = vld [vmem:[%s0 + $0x2aa] sm:$0xff]
  %v503 = vld [vmem:[%s0 + $0x2ba] sm:$0xff]
  %v504 = vld [vmem:[%s0 + $0x2c2] sm:$0xff]
  %v505 = vld [vmem:[%s0 + $0x2d2] sm:$0xff]
  %v506 = vld [vmem:[%s0 + $0x2da] sm:$0xff]
  %v507 = vld [vmem:[%s0 + $0x2ea] sm:$0xff]
  %v508 = vld [vmem:[%s0 + $0x2f2] sm:$0xff]
  %v509 = vld [vmem:[%s0 + $0x302] sm:$0xff]
  %v510 = vld [vmem:[%s0 + $0x30a] sm:$0xff]
  %v511 = vld [vmem:[%s0 + $0x31a] sm:$0xff]
  %v512 = vld [vmem:[%s0 + $0x322] sm:$0xff]
  %v513 = vpack.c.bf16 %v450, %v449
  %v514 = vpack.c.bf16 %v452, %v451
  %v515 = vpack.c.bf16 %v454, %v453
  %v516 = vpack.c.bf16 %v456, %v455
  %v517 = vpack.c.bf16 %v458, %v457
  %v518 = vpack.c.bf16 %v460, %v459
  %v519 = vpack.c.bf16 %v462, %v461
  %v520 = vpack.c.bf16 %v464, %v463
  %v521 = vpack.c.bf16 %v466, %v465
  %v522 = vpack.c.bf16 %v468, %v467
  %v523 = vpack.c.bf16 %v470, %v469
  %v524 = vpack.c.bf16 %v472, %v471
  %v525 = vpack.c.bf16 %v474, %v473
  %v526 = vpack.c.bf16 %v476, %v475
  %v527 = vpack.c.bf16 %v478, %v477
  %v528 = vpack.c.bf16 %v480, %v479
  %v529 = vpack.c.bf16 %v482, %v481
  %v530 = vpack.c.bf16 %v484, %v483
  %v531 = vpack.c.bf16 %v486, %v485
  %v532 = vpack.c.bf16 %v488, %v487
  %v533 = vpack.c.bf16 %v490, %v489
  %v534 = vpack.c.bf16 %v492, %v491
  %v535 = vpack.c.bf16 %v494, %v493
  %v536 = vpack.c.bf16 %v496, %v495
  %v537 = vpack.c.bf16 %v498, %v497
  %v538 = vpack.c.bf16 %v500, %v499
  %v539 = vpack.c.bf16 %v502, %v501
  %v540 = vpack.c.bf16 %v504, %v503
  %v541 = vpack.c.bf16 %v506, %v505
  %v542 = vpack.c.bf16 %v508, %v507
  %v543 = vpack.c.bf16 %v510, %v509
  %v544 = vpack.c.bf16 %v512, %v511
  %577 = vrot.lane.b32.xlu0 %v513, 64
  %v578 = vpop.permute.xlu0 %577
  %579 = vrot.lane.b32.xlu0 %v514, 64
  %v580 = vpop.permute.xlu0 %579
  %581 = vrot.lane.b32.xlu0 %v515, 64
  %v582 = vpop.permute.xlu0 %581
  %583 = vrot.lane.b32.xlu0 %v516, 64
  %v584 = vpop.permute.xlu0 %583
  %585 = vrot.lane.b32.xlu0 %v517, 64
  %v586 = vpop.permute.xlu0 %585
  %587 = vrot.lane.b32.xlu0 %v518, 64
  %v588 = vpop.permute.xlu0 %587
  %589 = vrot.lane.b32.xlu0 %v519, 64
  %v590 = vpop.permute.xlu0 %589
  %591 = vrot.lane.b32.xlu0 %v520, 64
  %v592 = vpop.permute.xlu0 %591
  %593 = vrot.lane.b32.xlu0 %v521, 64
  %v594 = vpop.permute.xlu0 %593
  %595 = vrot.lane.b32.xlu0 %v522, 64
  %v596 = vpop.permute.xlu0 %595
  %597 = vrot.lane.b32.xlu0 %v523, 64
  %v598 = vpop.permute.xlu0 %597
  %599 = vrot.lane.b32.xlu0 %v524, 64
  %v600 = vpop.permute.xlu0 %599
  %601 = vrot.lane.b32.xlu0 %v525, 64
  %v602 = vpop.permute.xlu0 %601
  %603 = vrot.lane.b32.xlu0 %v526, 64
  %v604 = vpop.permute.xlu0 %603
  %605 = vrot.lane.b32.xlu0 %v527, 64
  %v606 = vpop.permute.xlu0 %605
  %607 = vrot.lane.b32.xlu0 %v528, 64
  %v608 = vpop.permute.xlu0 %607
  %609 = vrot.lane.b32.xlu0 %v529, 64
  %v610 = vpop.permute.xlu0 %609
  %611 = vrot.lane.b32.xlu0 %v530, 64
  %v612 = vpop.permute.xlu0 %611
  %613 = vrot.lane.b32.xlu0 %v531, 64
  %v614 = vpop.permute.xlu0 %613
  %615 = vrot.lane.b32.xlu0 %v532, 64
  %v616 = vpop.permute.xlu0 %615
  %617 = vrot.lane.b32.xlu0 %v533, 64
  %v618 = vpop.permute.xlu0 %617
  %619 = vrot.lane.b32.xlu0 %v534, 64
  %v620 = vpop.permute.xlu0 %619
  %621 = vrot.lane.b32.xlu0 %v535, 64
  %v622 = vpop.permute.xlu0 %621
  %623 = vrot.lane.b32.xlu0 %v536, 64
  %v624 = vpop.permute.xlu0 %623
  %625 = vrot.lane.b32.xlu0 %v537, 64
  %v626 = vpop.permute.xlu0 %625
  %627 = vrot.lane.b32.xlu0 %v538, 64
  %v628 = vpop.permute.xlu0 %627
  %629 = vrot.lane.b32.xlu0 %v539, 64
  %v630 = vpop.permute.xlu0 %629
  %631 = vrot.lane.b32.xlu0 %v540, 64
  %v632 = vpop.permute.xlu0 %631
  %633 = vrot.lane.b32.xlu0 %v541, 64
  %v634 = vpop.permute.xlu0 %633
  %635 = vrot.lane.b32.xlu0 %v542, 64
  %v636 = vpop.permute.xlu0 %635
  %637 = vrot.lane.b32.xlu0 %v543, 64
  %v638 = vpop.permute.xlu0 %637
  %639 = vrot.lane.b32.xlu0 %v544, 64
  %v640 = vpop.permute.xlu0 %639
  %vm673 = vcmask 785920
  %674 = vst.msk [vmem:[#allocation2] sm:$0xff] %vm673, %v578
  %675 = vst.msk [vmem:[#allocation2 + $0x18] sm:$0xff] %vm673, %v580
  %676 = vst.msk [vmem:[#allocation2 + $0x30] sm:$0xff] %vm673, %v582
  %677 = vst.msk [vmem:[#allocation2 + $0x48] sm:$0xff] %vm673, %v584
  %678 = vst.msk [vmem:[#allocation2 + $0x60] sm:$0xff] %vm673, %v586
  %679 = vst.msk [vmem:[#allocation2 + $0x78] sm:$0xff] %vm673, %v588
  %680 = vst.msk [vmem:[#allocation2 + $0x90] sm:$0xff] %vm673, %v590
  %681 = vst.msk [vmem:[#allocation2 + $0xa8] sm:$0xff] %vm673, %v592
  %682 = vst.msk [vmem:[#allocation2 + $0xc0] sm:$0xff] %vm673, %v594
  %683 = vst.msk [vmem:[#allocation2 + $0xd8] sm:$0xff] %vm673, %v596
  %684 = vst.msk [vmem:[#allocation2 + $0xf0] sm:$0xff] %vm673, %v598
  %685 = vst.msk [vmem:[#allocation2 + $0x108] sm:$0xff] %vm673, %v600
  %686 = vst.msk [vmem:[#allocation2 + $0x120] sm:$0xff] %vm673, %v602
  %687 = vst.msk [vmem:[#allocation2 + $0x138] sm:$0xff] %vm673, %v604
  %688 = vst.msk [vmem:[#allocation2 + $0x150] sm:$0xff] %vm673, %v606
  %689 = vst.msk [vmem:[#allocation2 + $0x168] sm:$0xff] %vm673, %v608
  %690 = vst.msk [vmem:[#allocation2 + $0x180] sm:$0xff] %vm673, %v610
  %691 = vst.msk [vmem:[#allocation2 + $0x198] sm:$0xff] %vm673, %v612
  %692 = vst.msk [vmem:[#allocation2 + $0x1b0] sm:$0xff] %vm673, %v614
  %693 = vst.msk [vmem:[#allocation2 + $0x1c8] sm:$0xff] %vm673, %v616
  %694 = vst.msk [vmem:[#allocation2 + $0x1e0] sm:$0xff] %vm673, %v618
  %695 = vst.msk [vmem:[#allocation2 + $0x1f8] sm:$0xff] %vm673, %v620
  %696 = vst.msk [vmem:[#allocation2 + $0x210] sm:$0xff] %vm673, %v622
  %697 = vst.msk [vmem:[#allocation2 + $0x228] sm:$0xff] %vm673, %v624
  %698 = vst.msk [vmem:[#allocation2 + $0x240] sm:$0xff] %vm673, %v626
  %699 = vst.msk [vmem:[#allocation2 + $0x258] sm:$0xff] %vm673, %v628
  %700 = vst.msk [vmem:[#allocation2 + $0x270] sm:$0xff] %vm673, %v630
  %701 = vst.msk [vmem:[#allocation2 + $0x288] sm:$0xff] %vm673, %v632
  %702 = vst.msk [vmem:[#allocation2 + $0x2a0] sm:$0xff] %vm673, %v634
  %703 = vst.msk [vmem:[#allocation2 + $0x2b8] sm:$0xff] %vm673, %v636
  %704 = vst.msk [vmem:[#allocation2 + $0x2d0] sm:$0xff] %vm673, %v638
  %705 = vst.msk [vmem:[#allocation2 + $0x2e8] sm:$0xff] %vm673, %v640
  %s706 = scalar_lea.vmem %s0, 24
  %v707 = vld [vmem:[%s706] sm:$0xff]
  %v708 = vld [vmem:[%s706 + $0x8] sm:$0xff]
  %v709 = vld [vmem:[%s706 + $0x18] sm:$0xff]
  %v710 = vld [vmem:[%s706 + $0x20] sm:$0xff]
  %v711 = vld [vmem:[%s706 + $0x30] sm:$0xff]
  %v712 = vld [vmem:[%s706 + $0x38] sm:$0xff]
  %v713 = vld [vmem:[%s706 + $0x48] sm:$0xff]
  %v714 = vld [vmem:[%s706 + $0x50] sm:$0xff]
  %v715 = vld [vmem:[%s706 + $0x60] sm:$0xff]
  %v716 = vld [vmem:[%s706 + $0x68] sm:$0xff]
  %v717 = vld [vmem:[%s706 + $0x78] sm:$0xff]
  %v718 = vld [vmem:[%s706 + $0x80] sm:$0xff]
  %v719 = vld [vmem:[%s706 + $0x90] sm:$0xff]
  %v720 = vld [vmem:[%s706 + $0x98] sm:$0xff]
  %v721 = vld [vmem:[%s706 + $0xa8] sm:$0xff]
  %v722 = vld [vmem:[%s706 + $0xb0] sm:$0xff]
  %v723 = vld [vmem:[%s706 + $0xc0] sm:$0xff]
  %v724 = vld [vmem:[%s706 + $0xc8] sm:$0xff]
  %v725 = vld [vmem:[%s706 + $0xd8] sm:$0xff]
  %v726 = vld [vmem:[%s706 + $0xe0] sm:$0xff]
  %v727 = vld [vmem:[%s706 + $0xf0] sm:$0xff]
  %v728 = vld [vmem:[%s706 + $0xf8] sm:$0xff]
  %v729 = vld [vmem:[%s706 + $0x108] sm:$0xff]
  %v730 = vld [vmem:[%s706 + $0x110] sm:$0xff]
  %v731 = vld [vmem:[%s706 + $0x120] sm:$0xff]
  %v732 = vld [vmem:[%s706 + $0x128] sm:$0xff]
  %v733 = vld [vmem:[%s706 + $0x138] sm:$0xff]
  %v734 = vld [vmem:[%s706 + $0x140] sm:$0xff]
  %v735 = vld [vmem:[%s706 + $0x150] sm:$0xff]
  %v736 = vld [vmem:[%s706 + $0x158] sm:$0xff]
  %v737 = vld [vmem:[%s706 + $0x168] sm:$0xff]
  %v738 = vld [vmem:[%s706 + $0x170] sm:$0xff]
  %v739 = vld [vmem:[%s706 + $0x1b0] sm:$0xff]
  %v740 = vld [vmem:[%s706 + $0x1b8] sm:$0xff]
  %v741 = vld [vmem:[%s706 + $0x1c8] sm:$0xff]
  %v742 = vld [vmem:[%s706 + $0x1d0] sm:$0xff]
  %v743 = vld [vmem:[%s706 + $0x1e0] sm:$0xff]
  %v744 = vld [vmem:[%s706 + $0x1e8] sm:$0xff]
  %v745 = vld [vmem:[%s706 + $0x1f8] sm:$0xff]
  %v746 = vld [vmem:[%s706 + $0x200] sm:$0xff]
  %v747 = vld [vmem:[%s706 + $0x210] sm:$0xff]
  %v748 = vld [vmem:[%s706 + $0x218] sm:$0xff]
  %v749 = vld [vmem:[%s706 + $0x228] sm:$0xff]
  %v750 = vld [vmem:[%s706 + $0x230] sm:$0xff]
  %v751 = vld [vmem:[%s706 + $0x240] sm:$0xff]
  %v752 = vld [vmem:[%s706 + $0x248] sm:$0xff]
  %v753 = vld [vmem:[%s706 + $0x258] sm:$0xff]
  %v754 = vld [vmem:[%s706 + $0x260] sm:$0xff]
  %v755 = vld [vmem:[%s706 + $0x270] sm:$0xff]
  %v756 = vld [vmem:[%s706 + $0x278] sm:$0xff]
  %v757 = vld [vmem:[%s706 + $0x288] sm:$0xff]
  %v758 = vld [vmem:[%s706 + $0x290] sm:$0xff]
  %v759 = vld [vmem:[%s706 + $0x2a0] sm:$0xff]
  %v760 = vld [vmem:[%s706 + $0x2a8] sm:$0xff]
  %v761 = vld [vmem:[%s706 + $0x2b8] sm:$0xff]
  %v762 = vld [vmem:[%s706 + $0x2c0] sm:$0xff]
  %v763 = vld [vmem:[%s706 + $0x2d0] sm:$0xff]
  %v764 = vld [vmem:[%s706 + $0x2d8] sm:$0xff]
  %v765 = vld [vmem:[%s706 + $0x2e8] sm:$0xff]
  %v766 = vld [vmem:[%s706 + $0x2f0] sm:$0xff]
  %v767 = vld [vmem:[%s706 + $0x300] sm:$0xff]
  %v768 = vld [vmem:[%s706 + $0x308] sm:$0xff]
  %v769 = vld [vmem:[%s706 + $0x318] sm:$0xff]
  %v770 = vld [vmem:[%s706 + $0x320] sm:$0xff]
  %v771 = vpack.c.bf16 %v708, %v707
  %v772 = vpack.c.bf16 %v710, %v709
  %v773 = vpack.c.bf16 %v712, %v711
  %v774 = vpack.c.bf16 %v714, %v713
  %v775 = vpack.c.bf16 %v716, %v715
  %v776 = vpack.c.bf16 %v718, %v717
  %v777 = vpack.c.bf16 %v720, %v719
  %v778 = vpack.c.bf16 %v722, %v721
  %v779 = vpack.c.bf16 %v724, %v723
  %v780 = vpack.c.bf16 %v726, %v725
  %v781 = vpack.c.bf16 %v728, %v727
  %v782 = vpack.c.bf16 %v730, %v729
  %v783 = vpack.c.bf16 %v732, %v731
  %v784 = vpack.c.bf16 %v734, %v733
  %v785 = vpack.c.bf16 %v736, %v735
  %v786 = vpack.c.bf16 %v738, %v737
  %v787 = vpack.c.bf16 %v740, %v739
  %v788 = vpack.c.bf16 %v742, %v741
  %v789 = vpack.c.bf16 %v744, %v743
  %v790 = vpack.c.bf16 %v746, %v745
  %v791 = vpack.c.bf16 %v748, %v747
  %v792 = vpack.c.bf16 %v750, %v749
  %v793 = vpack.c.bf16 %v752, %v751
  %v794 = vpack.c.bf16 %v754, %v753
  %v795 = vpack.c.bf16 %v756, %v755
  %v796 = vpack.c.bf16 %v758, %v757
  %v797 = vpack.c.bf16 %v760, %v759
  %v798 = vpack.c.bf16 %v762, %v761
  %v799 = vpack.c.bf16 %v764, %v763
  %v800 = vpack.c.bf16 %v766, %v765
  %v801 = vpack.c.bf16 %v768, %v767
  %v802 = vpack.c.bf16 %v770, %v769
  %835 = vrot.lane.b32.xlu0 %v771, 96
  %v836 = vpop.permute.xlu0 %835
  %837 = vrot.lane.b32.xlu0 %v772, 96
  %v838 = vpop.permute.xlu0 %837
  %839 = vrot.lane.b32.xlu0 %v773, 96
  %v840 = vpop.permute.xlu0 %839
  %841 = vrot.lane.b32.xlu0 %v774, 96
  %v842 = vpop.permute.xlu0 %841
  %843 = vrot.lane.b32.xlu0 %v775, 96
  %v844 = vpop.permute.xlu0 %843
  %845 = vrot.lane.b32.xlu0 %v776, 96
  %v846 = vpop.permute.xlu0 %845
  %847 = vrot.lane.b32.xlu0 %v777, 96
  %v848 = vpop.permute.xlu0 %847
  %849 = vrot.lane.b32.xlu0 %v778, 96
  %v850 = vpop.permute.xlu0 %849
  %851 = vrot.lane.b32.xlu0 %v779, 96
  %v852 = vpop.permute.xlu0 %851
  %853 = vrot.lane.b32.xlu0 %v780, 96
  %v854 = vpop.permute.xlu0 %853
  %855 = vrot.lane.b32.xlu0 %v781, 96
  %v856 = vpop.permute.xlu0 %855
  %857 = vrot.lane.b32.xlu0 %v782, 96
  %v858 = vpop.permute.xlu0 %857
  %859 = vrot.lane.b32.xlu0 %v783, 96
  %v860 = vpop.permute.xlu0 %859
  %861 = vrot.lane.b32.xlu0 %v784, 96
  %v862 = vpop.permute.xlu0 %861
  %863 = vrot.lane.b32.xlu0 %v785, 96
  %v864 = vpop.permute.xlu0 %863
  %865 = vrot.lane.b32.xlu0 %v786, 96
  %v866 = vpop.permute.xlu0 %865
  %867 = vrot.lane.b32.xlu0 %v787, 96
  %v868 = vpop.permute.xlu0 %867
  %869 = vrot.lane.b32.xlu0 %v788, 96
  %v870 = vpop.permute.xlu0 %869
  %871 = vrot.lane.b32.xlu0 %v789, 96
  %v872 = vpop.permute.xlu0 %871
  %873 = vrot.lane.b32.xlu0 %v790, 96
  %v874 = vpop.permute.xlu0 %873
  %875 = vrot.lane.b32.xlu0 %v791, 96
  %v876 = vpop.permute.xlu0 %875
  %877 = vrot.lane.b32.xlu0 %v792, 96
  %v878 = vpop.permute.xlu0 %877
  %879 = vrot.lane.b32.xlu0 %v793, 96
  %v880 = vpop.permute.xlu0 %879
  %881 = vrot.lane.b32.xlu0 %v794, 96
  %v882 = vpop.permute.xlu0 %881
  %883 = vrot.lane.b32.xlu0 %v795, 96
  %v884 = vpop.permute.xlu0 %883
  %885 = vrot.lane.b32.xlu0 %v796, 96
  %v886 = vpop.permute.xlu0 %885
  %887 = vrot.lane.b32.xlu0 %v797, 96
  %v888 = vpop.permute.xlu0 %887
  %889 = vrot.lane.b32.xlu0 %v798, 96
  %v890 = vpop.permute.xlu0 %889
  %891 = vrot.lane.b32.xlu0 %v799, 96
  %v892 = vpop.permute.xlu0 %891
  %893 = vrot.lane.b32.xlu0 %v800, 96
  %v894 = vpop.permute.xlu0 %893
  %895 = vrot.lane.b32.xlu0 %v801, 96
  %v896 = vpop.permute.xlu0 %895
  %897 = vrot.lane.b32.xlu0 %v802, 96
  %v898 = vpop.permute.xlu0 %897
  %vm931 = vcmask 1048320
  %932 = vst.msk [vmem:[#allocation2] sm:$0xff] %vm931, %v836
  %933 = vst.msk [vmem:[#allocation2 + $0x18] sm:$0xff] %vm931, %v838
  %934 = vst.msk [vmem:[#allocation2 + $0x30] sm:$0xff] %vm931, %v840
  %935 = vst.msk [vmem:[#allocation2 + $0x48] sm:$0xff] %vm931, %v842
  %936 = vst.msk [vmem:[#allocation2 + $0x60] sm:$0xff] %vm931, %v844
  %937 = vst.msk [vmem:[#allocation2 + $0x78] sm:$0xff] %vm931, %v846
  %938 = vst.msk [vmem:[#allocation2 + $0x90] sm:$0xff] %vm931, %v848
  %939 = vst.msk [vmem:[#allocation2 + $0xa8] sm:$0xff] %vm931, %v850
  %940 = vst.msk [vmem:[#allocation2 + $0xc0] sm:$0xff] %vm931, %v852
  %941 = vst.msk [vmem:[#allocation2 + $0xd8] sm:$0xff] %vm931, %v854
  %942 = vst.msk [vmem:[#allocation2 + $0xf0] sm:$0xff] %vm931, %v856
  %943 = vst.msk [vmem:[#allocation2 + $0x108] sm:$0xff] %vm931, %v858
  %944 = vst.msk [vmem:[#allocation2 + $0x120] sm:$0xff] %vm931, %v860
  %945 = vst.msk [vmem:[#allocation2 + $0x138] sm:$0xff] %vm931, %v862
  %946 = vst.msk [vmem:[#allocation2 + $0x150] sm:$0xff] %vm931, %v864
  %947 = vst.msk [vmem:[#allocation2 + $0x168] sm:$0xff] %vm931, %v866
  %948 = vst.msk [vmem:[#allocation2 + $0x180] sm:$0xff] %vm931, %v868
  %949 = vst.msk [vmem:[#allocation2 + $0x198] sm:$0xff] %vm931, %v870
  %950 = vst.msk [vmem:[#allocation2 + $0x1b0] sm:$0xff] %vm931, %v872
  %951 = vst.msk [vmem:[#allocation2 + $0x1c8] sm:$0xff] %vm931, %v874
  %952 = vst.msk [vmem:[#allocation2 + $0x1e0] sm:$0xff] %vm931, %v876
  %953 = vst.msk [vmem:[#allocation2 + $0x1f8] sm:$0xff] %vm931, %v878
  %954 = vst.msk [vmem:[#allocation2 + $0x210] sm:$0xff] %vm931, %v880
  %955 = vst.msk [vmem:[#allocation2 + $0x228] sm:$0xff] %vm931, %v882
  %956 = vst.msk [vmem:[#allocation2 + $0x240] sm:$0xff] %vm931, %v884
  %957 = vst.msk [vmem:[#allocation2 + $0x258] sm:$0xff] %vm931, %v886
  %958 = vst.msk [vmem:[#allocation2 + $0x270] sm:$0xff] %vm931, %v888
  %959 = vst.msk [vmem:[#allocation2 + $0x288] sm:$0xff] %vm931, %v890
  %960 = vst.msk [vmem:[#allocation2 + $0x2a0] sm:$0xff] %vm931, %v892
  %961 = vst.msk [vmem:[#allocation2 + $0x2b8] sm:$0xff] %vm931, %v894
  %962 = vst.msk [vmem:[#allocation2 + $0x2d0] sm:$0xff] %vm931, %v896
  %963 = vst.msk [vmem:[#allocation2 + $0x2e8] sm:$0xff] %vm931, %v898
  %v964 = vld [vmem:[%s706 + $0x1] sm:$0xff]
  %v965 = vld [vmem:[%s706 + $0x9] sm:$0xff]
  %v966 = vld [vmem:[%s706 + $0x19] sm:$0xff]
  %v967 = vld [vmem:[%s706 + $0x21] sm:$0xff]
  %v968 = vld [vmem:[%s706 + $0x31] sm:$0xff]
  %v969 = vld [vmem:[%s706 + $0x39] sm:$0xff]
  %v970 = vld [vmem:[%s706 + $0x49] sm:$0xff]
  %v971 = vld [vmem:[%s706 + $0x51] sm:$0xff]
  %v972 = vld [vmem:[%s706 + $0x61] sm:$0xff]
  %v973 = vld [vmem:[%s706 + $0x69] sm:$0xff]
  %v974 = vld [vmem:[%s706 + $0x79] sm:$0xff]
  %v975 = vld [vmem:[%s706 + $0x81] sm:$0xff]
  %v976 = vld [vmem:[%s706 + $0x91] sm:$0xff]
  %v977 = vld [vmem:[%s706 + $0x99] sm:$0xff]
  %v978 = vld [vmem:[%s706 + $0xa9] sm:$0xff]
  %v979 = vld [vmem:[%s706 + $0xb1] sm:$0xff]
  %v980 = vld [vmem:[%s706 + $0xc1] sm:$0xff]
  %v981 = vld [vmem:[%s706 + $0xc9] sm:$0xff]
  %v982 = vld [vmem:[%s706 + $0xd9] sm:$0xff]
  %v983 = vld [vmem:[%s706 + $0xe1] sm:$0xff]
  %v984 = vld [vmem:[%s706 + $0xf1] sm:$0xff]
  %v985 = vld [vmem:[%s706 + $0xf9] sm:$0xff]
  %v986 = vld [vmem:[%s706 + $0x109] sm:$0xff]
  %v987 = vld [vmem:[%s706 + $0x111] sm:$0xff]
  %v988 = vld [vmem:[%s706 + $0x121] sm:$0xff]
  %v989 = vld [vmem:[%s706 + $0x129] sm:$0xff]
  %v990 = vld [vmem:[%s706 + $0x139] sm:$0xff]
  %v991 = vld [vmem:[%s706 + $0x141] sm:$0xff]
  %v992 = vld [vmem:[%s706 + $0x151] sm:$0xff]
  %v993 = vld [vmem:[%s706 + $0x159] sm:$0xff]
  %v994 = vld [vmem:[%s706 + $0x169] sm:$0xff]
  %v995 = vld [vmem:[%s706 + $0x171] sm:$0xff]
  %v996 = vld [vmem:[%s706 + $0x1b1] sm:$0xff]
  %v997 = vld [vmem:[%s706 + $0x1b9] sm:$0xff]
  %v998 = vld [vmem:[%s706 + $0x1c9] sm:$0xff]
  %v999 = vld [vmem:[%s706 + $0x1d1] sm:$0xff]
  %v1000 = vld [vmem:[%s706 + $0x1e1] sm:$0xff]
  %v1001 = vld [vmem:[%s706 + $0x1e9] sm:$0xff]
  %v1002 = vld [vmem:[%s706 + $0x1f9] sm:$0xff]
  %v1003 = vld [vmem:[%s706 + $0x201] sm:$0xff]
  %v1004 = vld [vmem:[%s706 + $0x211] sm:$0xff]
  %v1005 = vld [vmem:[%s706 + $0x219] sm:$0xff]
  %v1006 = vld [vmem:[%s706 + $0x229] sm:$0xff]
  %v1007 = vld [vmem:[%s706 + $0x231] sm:$0xff]
  %v1008 = vld [vmem:[%s706 + $0x241] sm:$0xff]
  %v1009 = vld [vmem:[%s706 + $0x249] sm:$0xff]
  %v1010 = vld [vmem:[%s706 + $0x259] sm:$0xff]
  %v1011 = vld [vmem:[%s706 + $0x261] sm:$0xff]
  %v1012 = vld [vmem:[%s706 + $0x271] sm:$0xff]
  %v1013 = vld [vmem:[%s706 + $0x279] sm:$0xff]
  %v1014 = vld [vmem:[%s706 + $0x289] sm:$0xff]
  %v1015 = vld [vmem:[%s706 + $0x291] sm:$0xff]
  %v1016 = vld [vmem:[%s706 + $0x2a1] sm:$0xff]
  %v1017 = vld [vmem:[%s706 + $0x2a9] sm:$0xff]
  %v1018 = vld [vmem:[%s706 + $0x2b9] sm:$0xff]
  %v1019 = vld [vmem:[%s706 + $0x2c1] sm:$0xff]
  %v1020 = vld [vmem:[%s706 + $0x2d1] sm:$0xff]
  %v1021 = vld [vmem:[%s706 + $0x2d9] sm:$0xff]
  %v1022 = vld [vmem:[%s706 + $0x2e9] sm:$0xff]
  %v1023 = vld [vmem:[%s706 + $0x2f1] sm:$0xff]
  %v1024 = vld [vmem:[%s706 + $0x301] sm:$0xff]
  %v1025 = vld [vmem:[%s706 + $0x309] sm:$0xff]
  %v1026 = vld [vmem:[%s706 + $0x319] sm:$0xff]
  %v1027 = vld [vmem:[%s706 + $0x321] sm:$0xff]
  %v1028 = vpack.c.bf16 %v965, %v964
  %v1029 = vpack.c.bf16 %v967, %v966
  %v1030 = vpack.c.bf16 %v969, %v968
  %v1031 = vpack.c.bf16 %v971, %v970
  %v1032 = vpack.c.bf16 %v973, %v972
  %v1033 = vpack.c.bf16 %v975, %v974
  %v1034 = vpack.c.bf16 %v977, %v976
  %v1035 = vpack.c.bf16 %v979, %v978
  %v1036 = vpack.c.bf16 %v981, %v980
  %v1037 = vpack.c.bf16 %v983, %v982
  %v1038 = vpack.c.bf16 %v985, %v984
  %v1039 = vpack.c.bf16 %v987, %v986
  %v1040 = vpack.c.bf16 %v989, %v988
  %v1041 = vpack.c.bf16 %v991, %v990
  %v1042 = vpack.c.bf16 %v993, %v992
  %v1043 = vpack.c.bf16 %v995, %v994
  %v1044 = vpack.c.bf16 %v997, %v996
  %v1045 = vpack.c.bf16 %v999, %v998
  %v1046 = vpack.c.bf16 %v1001, %v1000
  %v1047 = vpack.c.bf16 %v1003, %v1002
  %v1048 = vpack.c.bf16 %v1005, %v1004
  %v1049 = vpack.c.bf16 %v1007, %v1006
  %v1050 = vpack.c.bf16 %v1009, %v1008
  %v1051 = vpack.c.bf16 %v1011, %v1010
  %v1052 = vpack.c.bf16 %v1013, %v1012
  %v1053 = vpack.c.bf16 %v1015, %v1014
  %v1054 = vpack.c.bf16 %v1017, %v1016
  %v1055 = vpack.c.bf16 %v1019, %v1018
  %v1056 = vpack.c.bf16 %v1021, %v1020
  %v1057 = vpack.c.bf16 %v1023, %v1022
  %v1058 = vpack.c.bf16 %v1025, %v1024
  %v1059 = vpack.c.bf16 %v1027, %v1026
  %1060 = vst.msk [vmem:[#allocation2 + $0x8] sm:$0xff] %vm159, %v1028
  %1061 = vst.msk [vmem:[#allocation2 + $0x20] sm:$0xff] %vm159, %v1029
  %1062 = vst.msk [vmem:[#allocation2 + $0x38] sm:$0xff] %vm159, %v1030
  %1063 = vst.msk [vmem:[#allocation2 + $0x50] sm:$0xff] %vm159, %v1031
  %1064 = vst.msk [vmem:[#allocation2 + $0x68] sm:$0xff] %vm159, %v1032
  %1065 = vst.msk [vmem:[#allocation2 + $0x80] sm:$0xff] %vm159, %v1033
  %1066 = vst.msk [vmem:[#allocation2 + $0x98] sm:$0xff] %vm159, %v1034
  %1067 = vst.msk [vmem:[#allocation2 + $0xb0] sm:$0xff] %vm159, %v1035
  %1068 = vst.msk [vmem:[#allocation2 + $0xc8] sm:$0xff] %vm159, %v1036
  %1069 = vst.msk [vmem:[#allocation2 + $0xe0] sm:$0xff] %vm159, %v1037
  %1070 = vst.msk [vmem:[#allocation2 + $0xf8] sm:$0xff] %vm159, %v1038
  %1071 = vst.msk [vmem:[#allocation2 + $0x110] sm:$0xff] %vm159, %v1039
  %1072 = vst.msk [vmem:[#allocation2 + $0x128] sm:$0xff] %vm159, %v1040
  %1073 = vst.msk [vmem:[#allocation2 + $0x140] sm:$0xff] %vm159, %v1041
  %1074 = vst.msk [vmem:[#allocation2 + $0x158] sm:$0xff] %vm159, %v1042
  %1075 = vst.msk [vmem:[#allocation2 + $0x170] sm:$0xff] %vm159, %v1043
  %1076 = vst.msk [vmem:[#allocation2 + $0x188] sm:$0xff] %vm159, %v1044
  %1077 = vst.msk [vmem:[#allocation2 + $0x1a0] sm:$0xff] %vm159, %v1045
  %1078 = vst.msk [vmem:[#allocation2 + $0x1b8] sm:$0xff] %vm159, %v1046
  %1079 = vst.msk [vmem:[#allocation2 + $0x1d0] sm:$0xff] %vm159, %v1047
  %1080 = vst.msk [vmem:[#allocation2 + $0x1e8] sm:$0xff] %vm159, %v1048
  %1081 = vst.msk [vmem:[#allocation2 + $0x200] sm:$0xff] %vm159, %v1049
  %1082 = vst.msk [vmem:[#allocation2 + $0x218] sm:$0xff] %vm159, %v1050
  %1083 = vst.msk [vmem:[#allocation2 + $0x230] sm:$0xff] %vm159, %v1051
  %1084 = vst.msk [vmem:[#allocation2 + $0x248] sm:$0xff] %vm159, %v1052
  %1085 = vst.msk [vmem:[#allocation2 + $0x260] sm:$0xff] %vm159, %v1053
  %1086 = vst.msk [vmem:[#allocation2 + $0x278] sm:$0xff] %vm159, %v1054
  %1087 = vst.msk [vmem:[#allocation2 + $0x290] sm:$0xff] %vm159, %v1055
  %1088 = vst.msk [vmem:[#allocation2 + $0x2a8] sm:$0xff] %vm159, %v1056
  %1089 = vst.msk [vmem:[#allocation2 + $0x2c0] sm:$0xff] %vm159, %v1057
  %1090 = vst.msk [vmem:[#allocation2 + $0x2d8] sm:$0xff] %vm159, %v1058
  %1091 = vst.msk [vmem:[#allocation2 + $0x2f0] sm:$0xff] %vm159, %v1059
  %v1092 = vld [vmem:[%s706 + $0x2] sm:$0xff]
  %v1093 = vld [vmem:[%s706 + $0xa] sm:$0xff]
  %v1094 = vld [vmem:[%s706 + $0x1a] sm:$0xff]
  %v1095 = vld [vmem:[%s706 + $0x22] sm:$0xff]
  %v1096 = vld [vmem:[%s706 + $0x32] sm:$0xff]
  %v1097 = vld [vmem:[%s706 + $0x3a] sm:$0xff]
  %v1098 = vld [vmem:[%s706 + $0x4a] sm:$0xff]
  %v1099 = vld [vmem:[%s706 + $0x52] sm:$0xff]
  %v1100 = vld [vmem:[%s706 + $0x62] sm:$0xff]
  %v1101 = vld [vmem:[%s706 + $0x6a] sm:$0xff]
  %v1102 = vld [vmem:[%s706 + $0x7a] sm:$0xff]
  %v1103 = vld [vmem:[%s706 + $0x82] sm:$0xff]
  %v1104 = vld [vmem:[%s706 + $0x92] sm:$0xff]
  %v1105 = vld [vmem:[%s706 + $0x9a] sm:$0xff]
  %v1106 = vld [vmem:[%s706 + $0xaa] sm:$0xff]
  %v1107 = vld [vmem:[%s706 + $0xb2] sm:$0xff]
  %v1108 = vld [vmem:[%s706 + $0xc2] sm:$0xff]
  %v1109 = vld [vmem:[%s706 + $0xca] sm:$0xff]
  %v1110 = vld [vmem:[%s706 + $0xda] sm:$0xff]
  %v1111 = vld [vmem:[%s706 + $0xe2] sm:$0xff]
  %v1112 = vld [vmem:[%s706 + $0xf2] sm:$0xff]
  %v1113 = vld [vmem:[%s706 + $0xfa] sm:$0xff]
  %v1114 = vld [vmem:[%s706 + $0x10a] sm:$0xff]
  %v1115 = vld [vmem:[%s706 + $0x112] sm:$0xff]
  %v1116 = vld [vmem:[%s706 + $0x122] sm:$0xff]
  %v1117 = vld [vmem:[%s706 + $0x12a] sm:$0xff]
  %v1118 = vld [vmem:[%s706 + $0x13a] sm:$0xff]
  %v1119 = vld [vmem:[%s706 + $0x142] sm:$0xff]
  %v1120 = vld [vmem:[%s706 + $0x152] sm:$0xff]
  %v1121 = vld [vmem:[%s706 + $0x15a] sm:$0xff]
  %v1122 = vld [vmem:[%s706 + $0x16a] sm:$0xff]
  %v1123 = vld [vmem:[%s706 + $0x172] sm:$0xff]
  %v1124 = vld [vmem:[%s706 + $0x1b2] sm:$0xff]
  %v1125 = vld [vmem:[%s706 + $0x1ba] sm:$0xff]
  %v1126 = vld [vmem:[%s706 + $0x1ca] sm:$0xff]
  %v1127 = vld [vmem:[%s706 + $0x1d2] sm:$0xff]
  %v1128 = vld [vmem:[%s706 + $0x1e2] sm:$0xff]
  %v1129 = vld [vmem:[%s706 + $0x1ea] sm:$0xff]
  %v1130 = vld [vmem:[%s706 + $0x1fa] sm:$0xff]
  %v1131 = vld [vmem:[%s706 + $0x202] sm:$0xff]
  %v1132 = vld [vmem:[%s706 + $0x212] sm:$0xff]
  %v1133 = vld [vmem:[%s706 + $0x21a] sm:$0xff]
  %v1134 = vld [vmem:[%s706 + $0x22a] sm:$0xff]
  %v1135 = vld [vmem:[%s706 + $0x232] sm:$0xff]
  %v1136 = vld [vmem:[%s706 + $0x242] sm:$0xff]
  %v1137 = vld [vmem:[%s706 + $0x24a] sm:$0xff]
  %v1138 = vld [vmem:[%s706 + $0x25a] sm:$0xff]
  %v1139 = vld [vmem:[%s706 + $0x262] sm:$0xff]
  %v1140 = vld [vmem:[%s706 + $0x272] sm:$0xff]
  %v1141 = vld [vmem:[%s706 + $0x27a] sm:$0xff]
  %v1142 = vld [vmem:[%s706 + $0x28a] sm:$0xff]
  %v1143 = vld [vmem:[%s706 + $0x292] sm:$0xff]
  %v1144 = vld [vmem:[%s706 + $0x2a2] sm:$0xff]
  %v1145 = vld [vmem:[%s706 + $0x2aa] sm:$0xff]
  %v1146 = vld [vmem:[%s706 + $0x2ba] sm:$0xff]
  %v1147 = vld [vmem:[%s706 + $0x2c2] sm:$0xff]
  %v1148 = vld [vmem:[%s706 + $0x2d2] sm:$0xff]
  %v1149 = vld [vmem:[%s706 + $0x2da] sm:$0xff]
  %v1150 = vld [vmem:[%s706 + $0x2ea] sm:$0xff]
  %v1151 = vld [vmem:[%s706 + $0x2f2] sm:$0xff]
  %v1152 = vld [vmem:[%s706 + $0x302] sm:$0xff]
  %v1153 = vld [vmem:[%s706 + $0x30a] sm:$0xff]
  %v1154 = vld [vmem:[%s706 + $0x31a] sm:$0xff]
  %v1155 = vld [vmem:[%s706 + $0x322] sm:$0xff]
  %v1156 = vpack.c.bf16 %v1093, %v1092
  %v1157 = vpack.c.bf16 %v1095, %v1094
  %v1158 = vpack.c.bf16 %v1097, %v1096
  %v1159 = vpack.c.bf16 %v1099, %v1098
  %v1160 = vpack.c.bf16 %v1101, %v1100
  %v1161 = vpack.c.bf16 %v1103, %v1102
  %v1162 = vpack.c.bf16 %v1105, %v1104
  %v1163 = vpack.c.bf16 %v1107, %v1106
  %v1164 = vpack.c.bf16 %v1109, %v1108
  %v1165 = vpack.c.bf16 %v1111, %v1110
  %v1166 = vpack.c.bf16 %v1113, %v1112
  %v1167 = vpack.c.bf16 %v1115, %v1114
  %v1168 = vpack.c.bf16 %v1117, %v1116
  %v1169 = vpack.c.bf16 %v1119, %v1118
  %v1170 = vpack.c.bf16 %v1121, %v1120
  %v1171 = vpack.c.bf16 %v1123, %v1122
  %v1172 = vpack.c.bf16 %v1125, %v1124
  %v1173 = vpack.c.bf16 %v1127, %v1126
  %v1174 = vpack.c.bf16 %v1129, %v1128
  %v1175 = vpack.c.bf16 %v1131, %v1130
  %v1176 = vpack.c.bf16 %v1133, %v1132
  %v1177 = vpack.c.bf16 %v1135, %v1134
  %v1178 = vpack.c.bf16 %v1137, %v1136
  %v1179 = vpack.c.bf16 %v1139, %v1138
  %v1180 = vpack.c.bf16 %v1141, %v1140
  %v1181 = vpack.c.bf16 %v1143, %v1142
  %v1182 = vpack.c.bf16 %v1145, %v1144
  %v1183 = vpack.c.bf16 %v1147, %v1146
  %v1184 = vpack.c.bf16 %v1149, %v1148
  %v1185 = vpack.c.bf16 %v1151, %v1150
  %v1186 = vpack.c.bf16 %v1153, %v1152
  %v1187 = vpack.c.bf16 %v1155, %v1154
  %1220 = vrot.lane.b32.xlu0 %v1156, 32
  %v1221 = vpop.permute.xlu0 %1220
  %1222 = vrot.lane.b32.xlu0 %v1157, 32
  %v1223 = vpop.permute.xlu0 %1222
  %1224 = vrot.lane.b32.xlu0 %v1158, 32
  %v1225 = vpop.permute.xlu0 %1224
  %1226 = vrot.lane.b32.xlu0 %v1159, 32
  %v1227 = vpop.permute.xlu0 %1226
  %1228 = vrot.lane.b32.xlu0 %v1160, 32
  %v1229 = vpop.permute.xlu0 %1228
  %1230 = vrot.lane.b32.xlu0 %v1161, 32
  %v1231 = vpop.permute.xlu0 %1230
  %1232 = vrot.lane.b32.xlu0 %v1162, 32
  %v1233 = vpop.permute.xlu0 %1232
  %1234 = vrot.lane.b32.xlu0 %v1163, 32
  %v1235 = vpop.permute.xlu0 %1234
  %1236 = vrot.lane.b32.xlu0 %v1164, 32
  %v1237 = vpop.permute.xlu0 %1236
  %1238 = vrot.lane.b32.xlu0 %v1165, 32
  %v1239 = vpop.permute.xlu0 %1238
  %1240 = vrot.lane.b32.xlu0 %v1166, 32
  %v1241 = vpop.permute.xlu0 %1240
  %1242 = vrot.lane.b32.xlu0 %v1167, 32
  %v1243 = vpop.permute.xlu0 %1242
  %1244 = vrot.lane.b32.xlu0 %v1168, 32
  %v1245 = vpop.permute.xlu0 %1244
  %1246 = vrot.lane.b32.xlu0 %v1169, 32
  %v1247 = vpop.permute.xlu0 %1246
  %1248 = vrot.lane.b32.xlu0 %v1170, 32
  %v1249 = vpop.permute.xlu0 %1248
  %1250 = vrot.lane.b32.xlu0 %v1171, 32
  %v1251 = vpop.permute.xlu0 %1250
  %1252 = vrot.lane.b32.xlu0 %v1172, 32
  %v1253 = vpop.permute.xlu0 %1252
  %1254 = vrot.lane.b32.xlu0 %v1173, 32
  %v1255 = vpop.permute.xlu0 %1254
  %1256 = vrot.lane.b32.xlu0 %v1174, 32
  %v1257 = vpop.permute.xlu0 %1256
  %1258 = vrot.lane.b32.xlu0 %v1175, 32
  %v1259 = vpop.permute.xlu0 %1258
  %1260 = vrot.lane.b32.xlu0 %v1176, 32
  %v1261 = vpop.permute.xlu0 %1260
  %1262 = vrot.lane.b32.xlu0 %v1177, 32
  %v1263 = vpop.permute.xlu0 %1262
  %1264 = vrot.lane.b32.xlu0 %v1178, 32
  %v1265 = vpop.permute.xlu0 %1264
  %1266 = vrot.lane.b32.xlu0 %v1179, 32
  %v1267 = vpop.permute.xlu0 %1266
  %1268 = vrot.lane.b32.xlu0 %v1180, 32
  %v1269 = vpop.permute.xlu0 %1268
  %1270 = vrot.lane.b32.xlu0 %v1181, 32
  %v1271 = vpop.permute.xlu0 %1270
  %1272 = vrot.lane.b32.xlu0 %v1182, 32
  %v1273 = vpop.permute.xlu0 %1272
  %1274 = vrot.lane.b32.xlu0 %v1183, 32
  %v1275 = vpop.permute.xlu0 %1274
  %1276 = vrot.lane.b32.xlu0 %v1184, 32
  %v1277 = vpop.permute.xlu0 %1276
  %1278 = vrot.lane.b32.xlu0 %v1185, 32
  %v1279 = vpop.permute.xlu0 %1278
  %1280 = vrot.lane.b32.xlu0 %v1186, 32
  %v1281 = vpop.permute.xlu0 %1280
  %1282 = vrot.lane.b32.xlu0 %v1187, 32
  %v1283 = vpop.permute.xlu0 %1282
  %1316 = vst.msk [vmem:[#allocation2 + $0x8] sm:$0xff] %vm416, %v1221
  %1317 = vst.msk [vmem:[#allocation2 + $0x20] sm:$0xff] %vm416, %v1223
  %1318 = vst.msk [vmem:[#allocation2 + $0x38] sm:$0xff] %vm416, %v1225
  %1319 = vst.msk [vmem:[#allocation2 + $0x50] sm:$0xff] %vm416, %v1227
  %1320 = vst.msk [vmem:[#allocation2 + $0x68] sm:$0xff] %vm416, %v1229
  %1321 = vst.msk [vmem:[#allocation2 + $0x80] sm:$0xff] %vm416, %v1231
  %1322 = vst.msk [vmem:[#allocation2 + $0x98] sm:$0xff] %vm416, %v1233
  %1323 = vst.msk [vmem:[#allocation2 + $0xb0] sm:$0xff] %vm416, %v1235
  %1324 = vst.msk [vmem:[#allocation2 + $0xc8] sm:$0xff] %vm416, %v1237
  %1325 = vst.msk [vmem:[#allocation2 + $0xe0] sm:$0xff] %vm416, %v1239
  %1326 = vst.msk [vmem:[#allocation2 + $0xf8] sm:$0xff] %vm416, %v1241
  %1327 = vst.msk [vmem:[#allocation2 + $0x110] sm:$0xff] %vm416, %v1243
  %1328 = vst.msk [vmem:[#allocation2 + $0x128] sm:$0xff] %vm416, %v1245
  %1329 = vst.msk [vmem:[#allocation2 + $0x140] sm:$0xff] %vm416, %v1247
  %1330 = vst.msk [vmem:[#allocation2 + $0x158] sm:$0xff] %vm416, %v1249
  %1331 = vst.msk [vmem:[#allocation2 + $0x170] sm:$0xff] %vm416, %v1251
  %1332 = vst.msk [vmem:[#allocation2 + $0x188] sm:$0xff] %vm416, %v1253
  %1333 = vst.msk [vmem:[#allocation2 + $0x1a0] sm:$0xff] %vm416, %v1255
  %1334 = vst.msk [vmem:[#allocation2 + $0x1b8] sm:$0xff] %vm416, %v1257
  %1335 = vst.msk [vmem:[#allocation2 + $0x1d0] sm:$0xff] %vm416, %v1259
  %1336 = vst.msk [vmem:[#allocation2 + $0x1e8] sm:$0xff] %vm416, %v1261
  %1337 = vst.msk [vmem:[#allocation2 + $0x200] sm:$0xff] %vm416, %v1263
  %1338 = vst.msk [vmem:[#allocation2 + $0x218] sm:$0xff] %vm416, %v1265
  %1339 = vst.msk [vmem:[#allocation2 + $0x230] sm:$0xff] %vm416, %v1267
  %1340 = vst.msk [vmem:[#allocation2 + $0x248] sm:$0xff] %vm416, %v1269
  %1341 = vst.msk [vmem:[#allocation2 + $0x260] sm:$0xff] %vm416, %v1271
  %1342 = vst.msk [vmem:[#allocation2 + $0x278] sm:$0xff] %vm416, %v1273
  %1343 = vst.msk [vmem:[#allocation2 + $0x290] sm:$0xff] %vm416, %v1275
  %1344 = vst.msk [vmem:[#allocation2 + $0x2a8] sm:$0xff] %vm416, %v1277
  %1345 = vst.msk [vmem:[#allocation2 + $0x2c0] sm:$0xff] %vm416, %v1279
  %1346 = vst.msk [vmem:[#allocation2 + $0x2d8] sm:$0xff] %vm416, %v1281
  %1347 = vst.msk [vmem:[#allocation2 + $0x2f0] sm:$0xff] %vm416, %v1283
  %s1348 = scalar_lea.vmem %s0, 48
  %v1349 = vld [vmem:[%s1348] sm:$0xff]
  %v1350 = vld [vmem:[%s1348 + $0x8] sm:$0xff]
  %v1351 = vld [vmem:[%s1348 + $0x18] sm:$0xff]
  %v1352 = vld [vmem:[%s1348 + $0x20] sm:$0xff]
  %v1353 = vld [vmem:[%s1348 + $0x30] sm:$0xff]
  %v1354 = vld [vmem:[%s1348 + $0x38] sm:$0xff]
  %v1355 = vld [vmem:[%s1348 + $0x48] sm:$0xff]
  %v1356 = vld [vmem:[%s1348 + $0x50] sm:$0xff]
  %v1357 = vld [vmem:[%s1348 + $0x60] sm:$0xff]
  %v1358 = vld [vmem:[%s1348 + $0x68] sm:$0xff]
  %v1359 = vld [vmem:[%s1348 + $0x78] sm:$0xff]
  %v1360 = vld [vmem:[%s1348 + $0x80] sm:$0xff]
  %v1361 = vld [vmem:[%s1348 + $0x90] sm:$0xff]
  %v1362 = vld [vmem:[%s1348 + $0x98] sm:$0xff]
  %v1363 = vld [vmem:[%s1348 + $0xa8] sm:$0xff]
  %v1364 = vld [vmem:[%s1348 + $0xb0] sm:$0xff]
  %v1365 = vld [vmem:[%s1348 + $0xc0] sm:$0xff]
  %v1366 = vld [vmem:[%s1348 + $0xc8] sm:$0xff]
  %v1367 = vld [vmem:[%s1348 + $0xd8] sm:$0xff]
  %v1368 = vld [vmem:[%s1348 + $0xe0] sm:$0xff]
  %v1369 = vld [vmem:[%s1348 + $0xf0] sm:$0xff]
  %v1370 = vld [vmem:[%s1348 + $0xf8] sm:$0xff]
  %v1371 = vld [vmem:[%s1348 + $0x108] sm:$0xff]
  %v1372 = vld [vmem:[%s1348 + $0x110] sm:$0xff]
  %v1373 = vld [vmem:[%s1348 + $0x120] sm:$0xff]
  %v1374 = vld [vmem:[%s1348 + $0x128] sm:$0xff]
  %v1375 = vld [vmem:[%s1348 + $0x138] sm:$0xff]
  %v1376 = vld [vmem:[%s1348 + $0x140] sm:$0xff]
  %v1377 = vld [vmem:[%s1348 + $0x150] sm:$0xff]
  %v1378 = vld [vmem:[%s1348 + $0x158] sm:$0xff]
  %v1379 = vld [vmem:[%s1348 + $0x168] sm:$0xff]
  %v1380 = vld [vmem:[%s1348 + $0x170] sm:$0xff]
  %v1381 = vld [vmem:[%s1348 + $0x1b0] sm:$0xff]
  %v1382 = vld [vmem:[%s1348 + $0x1b8] sm:$0xff]
  %v1383 = vld [vmem:[%s1348 + $0x1c8] sm:$0xff]
  %v1384 = vld [vmem:[%s1348 + $0x1d0] sm:$0xff]
  %v1385 = vld [vmem:[%s1348 + $0x1e0] sm:$0xff]
  %v1386 = vld [vmem:[%s1348 + $0x1e8] sm:$0xff]
  %v1387 = vld [vmem:[%s1348 + $0x1f8] sm:$0xff]
  %v1388 = vld [vmem:[%s1348 + $0x200] sm:$0xff]
  %v1389 = vld [vmem:[%s1348 + $0x210] sm:$0xff]
  %v1390 = vld [vmem:[%s1348 + $0x218] sm:$0xff]
  %v1391 = vld [vmem:[%s1348 + $0x228] sm:$0xff]
  %v1392 = vld [vmem:[%s1348 + $0x230] sm:$0xff]
  %v1393 = vld [vmem:[%s1348 + $0x240] sm:$0xff]
  %v1394 = vld [vmem:[%s1348 + $0x248] sm:$0xff]
  %v1395 = vld [vmem:[%s1348 + $0x258] sm:$0xff]
  %v1396 = vld [vmem:[%s1348 + $0x260] sm:$0xff]
  %v1397 = vld [vmem:[%s1348 + $0x270] sm:$0xff]
  %v1398 = vld [vmem:[%s1348 + $0x278] sm:$0xff]
  %v1399 = vld [vmem:[%s1348 + $0x288] sm:$0xff]
  %v1400 = vld [vmem:[%s1348 + $0x290] sm:$0xff]
  %v1401 = vld [vmem:[%s1348 + $0x2a0] sm:$0xff]
  %v1402 = vld [vmem:[%s1348 + $0x2a8] sm:$0xff]
  %v1403 = vld [vmem:[%s1348 + $0x2b8] sm:$0xff]
  %v1404 = vld [vmem:[%s1348 + $0x2c0] sm:$0xff]
  %v1405 = vld [vmem:[%s1348 + $0x2d0] sm:$0xff]
  %v1406 = vld [vmem:[%s1348 + $0x2d8] sm:$0xff]
  %v1407 = vld [vmem:[%s1348 + $0x2e8] sm:$0xff]
  %v1408 = vld [vmem:[%s1348 + $0x2f0] sm:$0xff]
  %v1409 = vld [vmem:[%s1348 + $0x300] sm:$0xff]
  %v1410 = vld [vmem:[%s1348 + $0x308] sm:$0xff]
  %v1411 = vld [vmem:[%s1348 + $0x318] sm:$0xff]
  %v1412 = vld [vmem:[%s1348 + $0x320] sm:$0xff]
  %v1413 = vpack.c.bf16 %v1350, %v1349
  %v1414 = vpack.c.bf16 %v1352, %v1351
  %v1415 = vpack.c.bf16 %v1354, %v1353
  %v1416 = vpack.c.bf16 %v1356, %v1355
  %v1417 = vpack.c.bf16 %v1358, %v1357
  %v1418 = vpack.c.bf16 %v1360, %v1359
  %v1419 = vpack.c.bf16 %v1362, %v1361
  %v1420 = vpack.c.bf16 %v1364, %v1363
  %v1421 = vpack.c.bf16 %v1366, %v1365
  %v1422 = vpack.c.bf16 %v1368, %v1367
  %v1423 = vpack.c.bf16 %v1370, %v1369
  %v1424 = vpack.c.bf16 %v1372, %v1371
  %v1425 = vpack.c.bf16 %v1374, %v1373
  %v1426 = vpack.c.bf16 %v1376, %v1375
  %v1427 = vpack.c.bf16 %v1378, %v1377
  %v1428 = vpack.c.bf16 %v1380, %v1379
  %v1429 = vpack.c.bf16 %v1382, %v1381
  %v1430 = vpack.c.bf16 %v1384, %v1383
  %v1431 = vpack.c.bf16 %v1386, %v1385
  %v1432 = vpack.c.bf16 %v1388, %v1387
  %v1433 = vpack.c.bf16 %v1390, %v1389
  %v1434 = vpack.c.bf16 %v1392, %v1391
  %v1435 = vpack.c.bf16 %v1394, %v1393
  %v1436 = vpack.c.bf16 %v1396, %v1395
  %v1437 = vpack.c.bf16 %v1398, %v1397
  %v1438 = vpack.c.bf16 %v1400, %v1399
  %v1439 = vpack.c.bf16 %v1402, %v1401
  %v1440 = vpack.c.bf16 %v1404, %v1403
  %v1441 = vpack.c.bf16 %v1406, %v1405
  %v1442 = vpack.c.bf16 %v1408, %v1407
  %v1443 = vpack.c.bf16 %v1410, %v1409
  %v1444 = vpack.c.bf16 %v1412, %v1411
  %1477 = vrot.lane.b32.xlu0 %v1413, 64
  %v1478 = vpop.permute.xlu0 %1477
  %1479 = vrot.lane.b32.xlu0 %v1414, 64
  %v1480 = vpop.permute.xlu0 %1479
  %1481 = vrot.lane.b32.xlu0 %v1415, 64
  %v1482 = vpop.permute.xlu0 %1481
  %1483 = vrot.lane.b32.xlu0 %v1416, 64
  %v1484 = vpop.permute.xlu0 %1483
  %1485 = vrot.lane.b32.xlu0 %v1417, 64
  %v1486 = vpop.permute.xlu0 %1485
  %1487 = vrot.lane.b32.xlu0 %v1418, 64
  %v1488 = vpop.permute.xlu0 %1487
  %1489 = vrot.lane.b32.xlu0 %v1419, 64
  %v1490 = vpop.permute.xlu0 %1489
  %1491 = vrot.lane.b32.xlu0 %v1420, 64
  %v1492 = vpop.permute.xlu0 %1491
  %1493 = vrot.lane.b32.xlu0 %v1421, 64
  %v1494 = vpop.permute.xlu0 %1493
  %1495 = vrot.lane.b32.xlu0 %v1422, 64
  %v1496 = vpop.permute.xlu0 %1495
  %1497 = vrot.lane.b32.xlu0 %v1423, 64
  %v1498 = vpop.permute.xlu0 %1497
  %1499 = vrot.lane.b32.xlu0 %v1424, 64
  %v1500 = vpop.permute.xlu0 %1499
  %1501 = vrot.lane.b32.xlu0 %v1425, 64
  %v1502 = vpop.permute.xlu0 %1501
  %1503 = vrot.lane.b32.xlu0 %v1426, 64
  %v1504 = vpop.permute.xlu0 %1503
  %1505 = vrot.lane.b32.xlu0 %v1427, 64
  %v1506 = vpop.permute.xlu0 %1505
  %1507 = vrot.lane.b32.xlu0 %v1428, 64
  %v1508 = vpop.permute.xlu0 %1507
  %1509 = vrot.lane.b32.xlu0 %v1429, 64
  %v1510 = vpop.permute.xlu0 %1509
  %1511 = vrot.lane.b32.xlu0 %v1430, 64
  %v1512 = vpop.permute.xlu0 %1511
  %1513 = vrot.lane.b32.xlu0 %v1431, 64
  %v1514 = vpop.permute.xlu0 %1513
  %1515 = vrot.lane.b32.xlu0 %v1432, 64
  %v1516 = vpop.permute.xlu0 %1515
  %1517 = vrot.lane.b32.xlu0 %v1433, 64
  %v1518 = vpop.permute.xlu0 %1517
  %1519 = vrot.lane.b32.xlu0 %v1434, 64
  %v1520 = vpop.permute.xlu0 %1519
  %1521 = vrot.lane.b32.xlu0 %v1435, 64
  %v1522 = vpop.permute.xlu0 %1521
  %1523 = vrot.lane.b32.xlu0 %v1436, 64
  %v1524 = vpop.permute.xlu0 %1523
  %1525 = vrot.lane.b32.xlu0 %v1437, 64
  %v1526 = vpop.permute.xlu0 %1525
  %1527 = vrot.lane.b32.xlu0 %v1438, 64
  %v1528 = vpop.permute.xlu0 %1527
  %1529 = vrot.lane.b32.xlu0 %v1439, 64
  %v1530 = vpop.permute.xlu0 %1529
  %1531 = vrot.lane.b32.xlu0 %v1440, 64
  %v1532 = vpop.permute.xlu0 %1531
  %1533 = vrot.lane.b32.xlu0 %v1441, 64
  %v1534 = vpop.permute.xlu0 %1533
  %1535 = vrot.lane.b32.xlu0 %v1442, 64
  %v1536 = vpop.permute.xlu0 %1535
  %1537 = vrot.lane.b32.xlu0 %v1443, 64
  %v1538 = vpop.permute.xlu0 %1537
  %1539 = vrot.lane.b32.xlu0 %v1444, 64
  %v1540 = vpop.permute.xlu0 %1539
  %1573 = vst.msk [vmem:[#allocation2 + $0x8] sm:$0xff] %vm673, %v1478
  %1574 = vst.msk [vmem:[#allocation2 + $0x20] sm:$0xff] %vm673, %v1480
  %1575 = vst.msk [vmem:[#allocation2 + $0x38] sm:$0xff] %vm673, %v1482
  %1576 = vst.msk [vmem:[#allocation2 + $0x50] sm:$0xff] %vm673, %v1484
  %1577 = vst.msk [vmem:[#allocation2 + $0x68] sm:$0xff] %vm673, %v1486
  %1578 = vst.msk [vmem:[#allocation2 + $0x80] sm:$0xff] %vm673, %v1488
  %1579 = vst.msk [vmem:[#allocation2 + $0x98] sm:$0xff] %vm673, %v1490
  %1580 = vst.msk [vmem:[#allocation2 + $0xb0] sm:$0xff] %vm673, %v1492
  %1581 = vst.msk [vmem:[#allocation2 + $0xc8] sm:$0xff] %vm673, %v1494
  %1582 = vst.msk [vmem:[#allocation2 + $0xe0] sm:$0xff] %vm673, %v1496
  %1583 = vst.msk [vmem:[#allocation2 + $0xf8] sm:$0xff] %vm673, %v1498
  %1584 = vst.msk [vmem:[#allocation2 + $0x110] sm:$0xff] %vm673, %v1500
  %1585 = vst.msk [vmem:[#allocation2 + $0x128] sm:$0xff] %vm673, %v1502
  %1586 = vst.msk [vmem:[#allocation2 + $0x140] sm:$0xff] %vm673, %v1504
  %1587 = vst.msk [vmem:[#allocation2 + $0x158] sm:$0xff] %vm673, %v1506
  %1588 = vst.msk [vmem:[#allocation2 + $0x170] sm:$0xff] %vm673, %v1508
  %1589 = vst.msk [vmem:[#allocation2 + $0x188] sm:$0xff] %vm673, %v1510
  %1590 = vst.msk [vmem:[#allocation2 + $0x1a0] sm:$0xff] %vm673, %v1512
  %1591 = vst.msk [vmem:[#allocation2 + $0x1b8] sm:$0xff] %vm673, %v1514
  %1592 = vst.msk [vmem:[#allocation2 + $0x1d0] sm:$0xff] %vm673, %v1516
  %1593 = vst.msk [vmem:[#allocation2 + $0x1e8] sm:$0xff] %vm673, %v1518
  %1594 = vst.msk [vmem:[#allocation2 + $0x200] sm:$0xff] %vm673, %v1520
  %1595 = vst.msk [vmem:[#allocation2 + $0x218] sm:$0xff] %vm673, %v1522
  %1596 = vst.msk [vmem:[#allocation2 + $0x230] sm:$0xff] %vm673, %v1524
  %1597 = vst.msk [vmem:[#allocation2 + $0x248] sm:$0xff] %vm673, %v1526
  %1598 = vst.msk [vmem:[#allocation2 + $0x260] sm:$0xff] %vm673, %v1528
  %1599 = vst.msk [vmem:[#allocation2 + $0x278] sm:$0xff] %vm673, %v1530
  %1600 = vst.msk [vmem:[#allocation2 + $0x290] sm:$0xff] %vm673, %v1532
  %1601 = vst.msk [vmem:[#allocation2 + $0x2a8] sm:$0xff] %vm673, %v1534
  %1602 = vst.msk [vmem:[#allocation2 + $0x2c0] sm:$0xff] %vm673, %v1536
  %1603 = vst.msk [vmem:[#allocation2 + $0x2d8] sm:$0xff] %vm673, %v1538
  %1604 = vst.msk [vmem:[#allocation2 + $0x2f0] sm:$0xff] %vm673, %v1540
  %v1605 = vld [vmem:[%s1348 + $0x1] sm:$0xff]
  %v1606 = vld [vmem:[%s1348 + $0x9] sm:$0xff]
  %v1607 = vld [vmem:[%s1348 + $0x19] sm:$0xff]
  %v1608 = vld [vmem:[%s1348 + $0x21] sm:$0xff]
  %v1609 = vld [vmem:[%s1348 + $0x31] sm:$0xff]
  %v1610 = vld [vmem:[%s1348 + $0x39] sm:$0xff]
  %v1611 = vld [vmem:[%s1348 + $0x49] sm:$0xff]
  %v1612 = vld [vmem:[%s1348 + $0x51] sm:$0xff]
  %v1613 = vld [vmem:[%s1348 + $0x61] sm:$0xff]
  %v1614 = vld [vmem:[%s1348 + $0x69] sm:$0xff]
  %v1615 = vld [vmem:[%s1348 + $0x79] sm:$0xff]
  %v1616 = vld [vmem:[%s1348 + $0x81] sm:$0xff]
  %v1617 = vld [vmem:[%s1348 + $0x91] sm:$0xff]
  %v1618 = vld [vmem:[%s1348 + $0x99] sm:$0xff]
  %v1619 = vld [vmem:[%s1348 + $0xa9] sm:$0xff]
  %v1620 = vld [vmem:[%s1348 + $0xb1] sm:$0xff]
  %v1621 = vld [vmem:[%s1348 + $0xc1] sm:$0xff]
  %v1622 = vld [vmem:[%s1348 + $0xc9] sm:$0xff]
  %v1623 = vld [vmem:[%s1348 + $0xd9] sm:$0xff]
  %v1624 = vld [vmem:[%s1348 + $0xe1] sm:$0xff]
  %v1625 = vld [vmem:[%s1348 + $0xf1] sm:$0xff]
  %v1626 = vld [vmem:[%s1348 + $0xf9] sm:$0xff]
  %v1627 = vld [vmem:[%s1348 + $0x109] sm:$0xff]
  %v1628 = vld [vmem:[%s1348 + $0x111] sm:$0xff]
  %v1629 = vld [vmem:[%s1348 + $0x121] sm:$0xff]
  %v1630 = vld [vmem:[%s1348 + $0x129] sm:$0xff]
  %v1631 = vld [vmem:[%s1348 + $0x139] sm:$0xff]
  %v1632 = vld [vmem:[%s1348 + $0x141] sm:$0xff]
  %v1633 = vld [vmem:[%s1348 + $0x151] sm:$0xff]
  %v1634 = vld [vmem:[%s1348 + $0x159] sm:$0xff]
  %v1635 = vld [vmem:[%s1348 + $0x169] sm:$0xff]
  %v1636 = vld [vmem:[%s1348 + $0x171] sm:$0xff]
  %v1637 = vld [vmem:[%s1348 + $0x1b1] sm:$0xff]
  %v1638 = vld [vmem:[%s1348 + $0x1b9] sm:$0xff]
  %v1639 = vld [vmem:[%s1348 + $0x1c9] sm:$0xff]
  %v1640 = vld [vmem:[%s1348 + $0x1d1] sm:$0xff]
  %v1641 = vld [vmem:[%s1348 + $0x1e1] sm:$0xff]
  %v1642 = vld [vmem:[%s1348 + $0x1e9] sm:$0xff]
  %v1643 = vld [vmem:[%s1348 + $0x1f9] sm:$0xff]
  %v1644 = vld [vmem:[%s1348 + $0x201] sm:$0xff]
  %v1645 = vld [vmem:[%s1348 + $0x211] sm:$0xff]
  %v1646 = vld [vmem:[%s1348 + $0x219] sm:$0xff]
  %v1647 = vld [vmem:[%s1348 + $0x229] sm:$0xff]
  %v1648 = vld [vmem:[%s1348 + $0x231] sm:$0xff]
  %v1649 = vld [vmem:[%s1348 + $0x241] sm:$0xff]
  %v1650 = vld [vmem:[%s1348 + $0x249] sm:$0xff]
  %v1651 = vld [vmem:[%s1348 + $0x259] sm:$0xff]
  %v1652 = vld [vmem:[%s1348 + $0x261] sm:$0xff]
  %v1653 = vld [vmem:[%s1348 + $0x271] sm:$0xff]
  %v1654 = vld [vmem:[%s1348 + $0x279] sm:$0xff]
  %v1655 = vld [vmem:[%s1348 + $0x289] sm:$0xff]
  %v1656 = vld [vmem:[%s1348 + $0x291] sm:$0xff]
  %v1657 = vld [vmem:[%s1348 + $0x2a1] sm:$0xff]
  %v1658 = vld [vmem:[%s1348 + $0x2a9] sm:$0xff]
  %v1659 = vld [vmem:[%s1348 + $0x2b9] sm:$0xff]
  %v1660 = vld [vmem:[%s1348 + $0x2c1] sm:$0xff]
  %v1661 = vld [vmem:[%s1348 + $0x2d1] sm:$0xff]
  %v1662 = vld [vmem:[%s1348 + $0x2d9] sm:$0xff]
  %v1663 = vld [vmem:[%s1348 + $0x2e9] sm:$0xff]
  %v1664 = vld [vmem:[%s1348 + $0x2f1] sm:$0xff]
  %v1665 = vld [vmem:[%s1348 + $0x301] sm:$0xff]
  %v1666 = vld [vmem:[%s1348 + $0x309] sm:$0xff]
  %v1667 = vld [vmem:[%s1348 + $0x319] sm:$0xff]
  %v1668 = vld [vmem:[%s1348 + $0x321] sm:$0xff]
  %v1669 = vpack.c.bf16 %v1606, %v1605
  %v1670 = vpack.c.bf16 %v1608, %v1607
  %v1671 = vpack.c.bf16 %v1610, %v1609
  %v1672 = vpack.c.bf16 %v1612, %v1611
  %v1673 = vpack.c.bf16 %v1614, %v1613
  %v1674 = vpack.c.bf16 %v1616, %v1615
  %v1675 = vpack.c.bf16 %v1618, %v1617
  %v1676 = vpack.c.bf16 %v1620, %v1619
  %v1677 = vpack.c.bf16 %v1622, %v1621
  %v1678 = vpack.c.bf16 %v1624, %v1623
  %v1679 = vpack.c.bf16 %v1626, %v1625
  %v1680 = vpack.c.bf16 %v1628, %v1627
  %v1681 = vpack.c.bf16 %v1630, %v1629
  %v1682 = vpack.c.bf16 %v1632, %v1631
  %v1683 = vpack.c.bf16 %v1634, %v1633
  %v1684 = vpack.c.bf16 %v1636, %v1635
  %v1685 = vpack.c.bf16 %v1638, %v1637
  %v1686 = vpack.c.bf16 %v1640, %v1639
  %v1687 = vpack.c.bf16 %v1642, %v1641
  %v1688 = vpack.c.bf16 %v1644, %v1643
  %v1689 = vpack.c.bf16 %v1646, %v1645
  %v1690 = vpack.c.bf16 %v1648, %v1647
  %v1691 = vpack.c.bf16 %v1650, %v1649
  %v1692 = vpack.c.bf16 %v1652, %v1651
  %v1693 = vpack.c.bf16 %v1654, %v1653
  %v1694 = vpack.c.bf16 %v1656, %v1655
  %v1695 = vpack.c.bf16 %v1658, %v1657
  %v1696 = vpack.c.bf16 %v1660, %v1659
  %v1697 = vpack.c.bf16 %v1662, %v1661
  %v1698 = vpack.c.bf16 %v1664, %v1663
  %v1699 = vpack.c.bf16 %v1666, %v1665
  %v1700 = vpack.c.bf16 %v1668, %v1667
  %1733 = vrot.lane.b32.xlu0 %v1669, 96
  %v1734 = vpop.permute.xlu0 %1733
  %1735 = vrot.lane.b32.xlu0 %v1670, 96
  %v1736 = vpop.permute.xlu0 %1735
  %1737 = vrot.lane.b32.xlu0 %v1671, 96
  %v1738 = vpop.permute.xlu0 %1737
  %1739 = vrot.lane.b32.xlu0 %v1672, 96
  %v1740 = vpop.permute.xlu0 %1739
  %1741 = vrot.lane.b32.xlu0 %v1673, 96
  %v1742 = vpop.permute.xlu0 %1741
  %1743 = vrot.lane.b32.xlu0 %v1674, 96
  %v1744 = vpop.permute.xlu0 %1743
  %1745 = vrot.lane.b32.xlu0 %v1675, 96
  %v1746 = vpop.permute.xlu0 %1745
  %1747 = vrot.lane.b32.xlu0 %v1676, 96
  %v1748 = vpop.permute.xlu0 %1747
  %1749 = vrot.lane.b32.xlu0 %v1677, 96
  %v1750 = vpop.permute.xlu0 %1749
  %1751 = vrot.lane.b32.xlu0 %v1678, 96
  %v1752 = vpop.permute.xlu0 %1751
  %1753 = vrot.lane.b32.xlu0 %v1679, 96
  %v1754 = vpop.permute.xlu0 %1753
  %1755 = vrot.lane.b32.xlu0 %v1680, 96
  %v1756 = vpop.permute.xlu0 %1755
  %1757 = vrot.lane.b32.xlu0 %v1681, 96
  %v1758 = vpop.permute.xlu0 %1757
  %1759 = vrot.lane.b32.xlu0 %v1682, 96
  %v1760 = vpop.permute.xlu0 %1759
  %1761 = vrot.lane.b32.xlu0 %v1683, 96
  %v1762 = vpop.permute.xlu0 %1761
  %1763 = vrot.lane.b32.xlu0 %v1684, 96
  %v1764 = vpop.permute.xlu0 %1763
  %1765 = vrot.lane.b32.xlu0 %v1685, 96
  %v1766 = vpop.permute.xlu0 %1765
  %1767 = vrot.lane.b32.xlu0 %v1686, 96
  %v1768 = vpop.permute.xlu0 %1767
  %1769 = vrot.lane.b32.xlu0 %v1687, 96
  %v1770 = vpop.permute.xlu0 %1769
  %1771 = vrot.lane.b32.xlu0 %v1688, 96
  %v1772 = vpop.permute.xlu0 %1771
  %1773 = vrot.lane.b32.xlu0 %v1689, 96
  %v1774 = vpop.permute.xlu0 %1773
  %1775 = vrot.lane.b32.xlu0 %v1690, 96
  %v1776 = vpop.permute.xlu0 %1775
  %1777 = vrot.lane.b32.xlu0 %v1691, 96
  %v1778 = vpop.permute.xlu0 %1777
  %1779 = vrot.lane.b32.xlu0 %v1692, 96
  %v1780 = vpop.permute.xlu0 %1779
  %1781 = vrot.lane.b32.xlu0 %v1693, 96
  %v1782 = vpop.permute.xlu0 %1781
  %1783 = vrot.lane.b32.xlu0 %v1694, 96
  %v1784 = vpop.permute.xlu0 %1783
  %1785 = vrot.lane.b32.xlu0 %v1695, 96
  %v1786 = vpop.permute.xlu0 %1785
  %1787 = vrot.lane.b32.xlu0 %v1696, 96
  %v1788 = vpop.permute.xlu0 %1787
  %1789 = vrot.lane.b32.xlu0 %v1697, 96
  %v1790 = vpop.permute.xlu0 %1789
  %1791 = vrot.lane.b32.xlu0 %v1698, 96
  %v1792 = vpop.permute.xlu0 %1791
  %1793 = vrot.lane.b32.xlu0 %v1699, 96
  %v1794 = vpop.permute.xlu0 %1793
  %1795 = vrot.lane.b32.xlu0 %v1700, 96
  %v1796 = vpop.permute.xlu0 %1795
  %1829 = vst.msk [vmem:[#allocation2 + $0x8] sm:$0xff] %vm931, %v1734
  %1830 = vst.msk [vmem:[#allocation2 + $0x20] sm:$0xff] %vm931, %v1736
  %1831 = vst.msk [vmem:[#allocation2 + $0x38] sm:$0xff] %vm931, %v1738
  %1832 = vst.msk [vmem:[#allocation2 + $0x50] sm:$0xff] %vm931, %v1740
  %1833 = vst.msk [vmem:[#allocation2 + $0x68] sm:$0xff] %vm931, %v1742
  %1834 = vst.msk [vmem:[#allocation2 + $0x80] sm:$0xff] %vm931, %v1744
  %1835 = vst.msk [vmem:[#allocation2 + $0x98] sm:$0xff] %vm931, %v1746
  %1836 = vst.msk [vmem:[#allocation2 + $0xb0] sm:$0xff] %vm931, %v1748
  %1837 = vst.msk [vmem:[#allocation2 + $0xc8] sm:$0xff] %vm931, %v1750
  %1838 = vst.msk [vmem:[#allocation2 + $0xe0] sm:$0xff] %vm931, %v1752
  %1839 = vst.msk [vmem:[#allocation2 + $0xf8] sm:$0xff] %vm931, %v1754
  %1840 = vst.msk [vmem:[#allocation2 + $0x110] sm:$0xff] %vm931, %v1756
  %1841 = vst.msk [vmem:[#allocation2 + $0x128] sm:$0xff] %vm931, %v1758
  %1842 = vst.msk [vmem:[#allocation2 + $0x140] sm:$0xff] %vm931, %v1760
  %1843 = vst.msk [vmem:[#allocation2 + $0x158] sm:$0xff] %vm931, %v1762
  %1844 = vst.msk [vmem:[#allocation2 + $0x170] sm:$0xff] %vm931, %v1764
  %1845 = vst.msk [vmem:[#allocation2 + $0x188] sm:$0xff] %vm931, %v1766
  %1846 = vst.msk [vmem:[#allocation2 + $0x1a0] sm:$0xff] %vm931, %v1768
  %1847 = vst.msk [vmem:[#allocation2 + $0x1b8] sm:$0xff] %vm931, %v1770
  %1848 = vst.msk [vmem:[#allocation2 + $0x1d0] sm:$0xff] %vm931, %v1772
  %1849 = vst.msk [vmem:[#allocation2 + $0x1e8] sm:$0xff] %vm931, %v1774
  %1850 = vst.msk [vmem:[#allocation2 + $0x200] sm:$0xff] %vm931, %v1776
  %1851 = vst.msk [vmem:[#allocation2 + $0x218] sm:$0xff] %vm931, %v1778
  %1852 = vst.msk [vmem:[#allocation2 + $0x230] sm:$0xff] %vm931, %v1780
  %1853 = vst.msk [vmem:[#allocation2 + $0x248] sm:$0xff] %vm931, %v1782
  %1854 = vst.msk [vmem:[#allocation2 + $0x260] sm:$0xff] %vm931, %v1784
  %1855 = vst.msk [vmem:[#allocation2 + $0x278] sm:$0xff] %vm931, %v1786
  %1856 = vst.msk [vmem:[#allocation2 + $0x290] sm:$0xff] %vm931, %v1788
  %1857 = vst.msk [vmem:[#allocation2 + $0x2a8] sm:$0xff] %vm931, %v1790
  %1858 = vst.msk [vmem:[#allocation2 + $0x2c0] sm:$0xff] %vm931, %v1792
  %1859 = vst.msk [vmem:[#allocation2 + $0x2d8] sm:$0xff] %vm931, %v1794
  %1860 = vst.msk [vmem:[#allocation2 + $0x2f0] sm:$0xff] %vm931, %v1796
  %v1861 = vld [vmem:[%s1348 + $0x2] sm:$0xff]
  %v1862 = vld [vmem:[%s1348 + $0xa] sm:$0xff]
  %v1863 = vld [vmem:[%s1348 + $0x1a] sm:$0xff]
  %v1864 = vld [vmem:[%s1348 + $0x22] sm:$0xff]
  %v1865 = vld [vmem:[%s1348 + $0x32] sm:$0xff]
  %v1866 = vld [vmem:[%s1348 + $0x3a] sm:$0xff]
  %v1867 = vld [vmem:[%s1348 + $0x4a] sm:$0xff]
  %v1868 = vld [vmem:[%s1348 + $0x52] sm:$0xff]
  %v1869 = vld [vmem:[%s1348 + $0x62] sm:$0xff]
  %v1870 = vld [vmem:[%s1348 + $0x6a] sm:$0xff]
  %v1871 = vld [vmem:[%s1348 + $0x7a] sm:$0xff]
  %v1872 = vld [vmem:[%s1348 + $0x82] sm:$0xff]
  %v1873 = vld [vmem:[%s1348 + $0x92] sm:$0xff]
  %v1874 = vld [vmem:[%s1348 + $0x9a] sm:$0xff]
  %v1875 = vld [vmem:[%s1348 + $0xaa] sm:$0xff]
  %v1876 = vld [vmem:[%s1348 + $0xb2] sm:$0xff]
  %v1877 = vld [vmem:[%s1348 + $0xc2] sm:$0xff]
  %v1878 = vld [vmem:[%s1348 + $0xca] sm:$0xff]
  %v1879 = vld [vmem:[%s1348 + $0xda] sm:$0xff]
  %v1880 = vld [vmem:[%s1348 + $0xe2] sm:$0xff]
  %v1881 = vld [vmem:[%s1348 + $0xf2] sm:$0xff]
  %v1882 = vld [vmem:[%s1348 + $0xfa] sm:$0xff]
  %v1883 = vld [vmem:[%s1348 + $0x10a] sm:$0xff]
  %v1884 = vld [vmem:[%s1348 + $0x112] sm:$0xff]
  %v1885 = vld [vmem:[%s1348 + $0x122] sm:$0xff]
  %v1886 = vld [vmem:[%s1348 + $0x12a] sm:$0xff]
  %v1887 = vld [vmem:[%s1348 + $0x13a] sm:$0xff]
  %v1888 = vld [vmem:[%s1348 + $0x142] sm:$0xff]
  %v1889 = vld [vmem:[%s1348 + $0x152] sm:$0xff]
  %v1890 = vld [vmem:[%s1348 + $0x15a] sm:$0xff]
  %v1891 = vld [vmem:[%s1348 + $0x16a] sm:$0xff]
  %v1892 = vld [vmem:[%s1348 + $0x172] sm:$0xff]
  %v1893 = vld [vmem:[%s1348 + $0x1b2] sm:$0xff]
  %v1894 = vld [vmem:[%s1348 + $0x1ba] sm:$0xff]
  %v1895 = vld [vmem:[%s1348 + $0x1ca] sm:$0xff]
  %v1896 = vld [vmem:[%s1348 + $0x1d2] sm:$0xff]
  %v1897 = vld [vmem:[%s1348 + $0x1e2] sm:$0xff]
  %v1898 = vld [vmem:[%s1348 + $0x1ea] sm:$0xff]
  %v1899 = vld [vmem:[%s1348 + $0x1fa] sm:$0xff]
  %v1900 = vld [vmem:[%s1348 + $0x202] sm:$0xff]
  %v1901 = vld [vmem:[%s1348 + $0x212] sm:$0xff]
  %v1902 = vld [vmem:[%s1348 + $0x21a] sm:$0xff]
  %v1903 = vld [vmem:[%s1348 + $0x22a] sm:$0xff]
  %v1904 = vld [vmem:[%s1348 + $0x232] sm:$0xff]
  %v1905 = vld [vmem:[%s1348 + $0x242] sm:$0xff]
  %v1906 = vld [vmem:[%s1348 + $0x24a] sm:$0xff]
  %v1907 = vld [vmem:[%s1348 + $0x25a] sm:$0xff]
  %v1908 = vld [vmem:[%s1348 + $0x262] sm:$0xff]
  %v1909 = vld [vmem:[%s1348 + $0x272] sm:$0xff]
  %v1910 = vld [vmem:[%s1348 + $0x27a] sm:$0xff]
  %v1911 = vld [vmem:[%s1348 + $0x28a] sm:$0xff]
  %v1912 = vld [vmem:[%s1348 + $0x292] sm:$0xff]
  %v1913 = vld [vmem:[%s1348 + $0x2a2] sm:$0xff]
  %v1914 = vld [vmem:[%s1348 + $0x2aa] sm:$0xff]
  %v1915 = vld [vmem:[%s1348 + $0x2ba] sm:$0xff]
  %v1916 = vld [vmem:[%s1348 + $0x2c2] sm:$0xff]
  %v1917 = vld [vmem:[%s1348 + $0x2d2] sm:$0xff]
  %v1918 = vld [vmem:[%s1348 + $0x2da] sm:$0xff]
  %v1919 = vld [vmem:[%s1348 + $0x2ea] sm:$0xff]
  %v1920 = vld [vmem:[%s1348 + $0x2f2] sm:$0xff]
  %v1921 = vld [vmem:[%s1348 + $0x302] sm:$0xff]
  %v1922 = vld [vmem:[%s1348 + $0x30a] sm:$0xff]
  %v1923 = vld [vmem:[%s1348 + $0x31a] sm:$0xff]
  %v1924 = vld [vmem:[%s1348 + $0x322] sm:$0xff]
  %v1925 = vpack.c.bf16 %v1862, %v1861
  %v1926 = vpack.c.bf16 %v1864, %v1863
  %v1927 = vpack.c.bf16 %v1866, %v1865
  %v1928 = vpack.c.bf16 %v1868, %v1867
  %v1929 = vpack.c.bf16 %v1870, %v1869
  %v1930 = vpack.c.bf16 %v1872, %v1871
  %v1931 = vpack.c.bf16 %v1874, %v1873
  %v1932 = vpack.c.bf16 %v1876, %v1875
  %v1933 = vpack.c.bf16 %v1878, %v1877
  %v1934 = vpack.c.bf16 %v1880, %v1879
  %v1935 = vpack.c.bf16 %v1882, %v1881
  %v1936 = vpack.c.bf16 %v1884, %v1883
  %v1937 = vpack.c.bf16 %v1886, %v1885
  %v1938 = vpack.c.bf16 %v1888, %v1887
  %v1939 = vpack.c.bf16 %v1890, %v1889
  %v1940 = vpack.c.bf16 %v1892, %v1891
  %v1941 = vpack.c.bf16 %v1894, %v1893
  %v1942 = vpack.c.bf16 %v1896, %v1895
  %v1943 = vpack.c.bf16 %v1898, %v1897
  %v1944 = vpack.c.bf16 %v1900, %v1899
  %v1945 = vpack.c.bf16 %v1902, %v1901
  %v1946 = vpack.c.bf16 %v1904, %v1903
  %v1947 = vpack.c.bf16 %v1906, %v1905
  %v1948 = vpack.c.bf16 %v1908, %v1907
  %v1949 = vpack.c.bf16 %v1910, %v1909
  %v1950 = vpack.c.bf16 %v1912, %v1911
  %v1951 = vpack.c.bf16 %v1914, %v1913
  %v1952 = vpack.c.bf16 %v1916, %v1915
  %v1953 = vpack.c.bf16 %v1918, %v1917
  %v1954 = vpack.c.bf16 %v1920, %v1919
  %v1955 = vpack.c.bf16 %v1922, %v1921
  %v1956 = vpack.c.bf16 %v1924, %v1923
  %1957 = vst.msk [vmem:[#allocation2 + $0x10] sm:$0xff] %vm159, %v1925
  %1958 = vst.msk [vmem:[#allocation2 + $0x28] sm:$0xff] %vm159, %v1926
  %1959 = vst.msk [vmem:[#allocation2 + $0x40] sm:$0xff] %vm159, %v1927
  %1960 = vst.msk [vmem:[#allocation2 + $0x58] sm:$0xff] %vm159, %v1928
  %1961 = vst.msk [vmem:[#allocation2 + $0x70] sm:$0xff] %vm159, %v1929
  %1962 = vst.msk [vmem:[#allocation2 + $0x88] sm:$0xff] %vm159, %v1930
  %1963 = vst.msk [vmem:[#allocation2 + $0xa0] sm:$0xff] %vm159, %v1931
  %1964 = vst.msk [vmem:[#allocation2 + $0xb8] sm:$0xff] %vm159, %v1932
  %1965 = vst.msk [vmem:[#allocation2 + $0xd0] sm:$0xff] %vm159, %v1933
  %1966 = vst.msk [vmem:[#allocation2 + $0xe8] sm:$0xff] %vm159, %v1934
  %1967 = vst.msk [vmem:[#allocation2 + $0x100] sm:$0xff] %vm159, %v1935
  %1968 = vst.msk [vmem:[#allocation2 + $0x118] sm:$0xff] %vm159, %v1936
  %1969 = vst.msk [vmem:[#allocation2 + $0x130] sm:$0xff] %vm159, %v1937
  %1970 = vst.msk [vmem:[#allocation2 + $0x148] sm:$0xff] %vm159, %v1938
  %1971 = vst.msk [vmem:[#allocation2 + $0x160] sm:$0xff] %vm159, %v1939
  %1972 = vst.msk [vmem:[#allocation2 + $0x178] sm:$0xff] %vm159, %v1940
  %1973 = vst.msk [vmem:[#allocation2 + $0x190] sm:$0xff] %vm159, %v1941
  %1974 = vst.msk [vmem:[#allocation2 + $0x1a8] sm:$0xff] %vm159, %v1942
  %1975 = vst.msk [vmem:[#allocation2 + $0x1c0] sm:$0xff] %vm159, %v1943
  %1976 = vst.msk [vmem:[#allocation2 + $0x1d8] sm:$0xff] %vm159, %v1944
  %1977 = vst.msk [vmem:[#allocation2 + $0x1f0] sm:$0xff] %vm159, %v1945
  %1978 = vst.msk [vmem:[#allocation2 + $0x208] sm:$0xff] %vm159, %v1946
  %1979 = vst.msk [vmem:[#allocation2 + $0x220] sm:$0xff] %vm159, %v1947
  %1980 = vst.msk [vmem:[#allocation2 + $0x238] sm:$0xff] %vm159, %v1948
  %1981 = vst.msk [vmem:[#allocation2 + $0x250] sm:$0xff] %vm159, %v1949
  %1982 = vst.msk [vmem:[#allocation2 + $0x268] sm:$0xff] %vm159, %v1950
  %1983 = vst.msk [vmem:[#allocation2 + $0x280] sm:$0xff] %vm159, %v1951
  %1984 = vst.msk [vmem:[#allocation2 + $0x298] sm:$0xff] %vm159, %v1952
  %1985 = vst.msk [vmem:[#allocation2 + $0x2b0] sm:$0xff] %vm159, %v1953
  %1986 = vst.msk [vmem:[#allocation2 + $0x2c8] sm:$0xff] %vm159, %v1954
  %1987 = vst.msk [vmem:[#allocation2 + $0x2e0] sm:$0xff] %vm159, %v1955
  %1988 = vst.msk [vmem:[#allocation2 + $0x2f8] sm:$0xff] %vm159, %v1956
  %v1989 = vld [vmem:[#allocation2] sm:$0xff]
  %v1990 = vld [vmem:[#allocation2 + $0x8] sm:$0xff]
  %v1991 = vld [vmem:[#allocation2 + $0x10] sm:$0xff]
  %v1992 = vld [vmem:[#allocation2 + $0x18] sm:$0xff]
  %v1993 = vld [vmem:[#allocation2 + $0x20] sm:$0xff]
  %v1994 = vld [vmem:[#allocation2 + $0x28] sm:$0xff]
  %v1995 = vld [vmem:[#allocation2 + $0x30] sm:$0xff]
  %v1996 = vld [vmem:[#allocation2 + $0x38] sm:$0xff]
  %v1997 = vld [vmem:[#allocation2 + $0x40] sm:$0xff]
  %v1998 = vld [vmem:[#allocation2 + $0x48] sm:$0xff]
  %v1999 = vld [vmem:[#allocation2 + $0x50] sm:$0xff]
  %v2000 = vld [vmem:[#allocation2 + $0x58] sm:$0xff]
  %v2001 = vld [vmem:[#allocation2 + $0x60] sm:$0xff]
  %v2002 = vld [vmem:[#allocation2 + $0x68] sm:$0xff]
  %v2003 = vld [vmem:[#allocation2 + $0x70] sm:$0xff]
  %v2004 = vld [vmem:[#allocation2 + $0x78] sm:$0xff]
  %v2005 = vld [vmem:[#allocation2 + $0x80] sm:$0xff]
  %v2006 = vld [vmem:[#allocation2 + $0x88] sm:$0xff]
  %v2007 = vld [vmem:[#allocation2 + $0x90] sm:$0xff]
  %v2008 = vld [vmem:[#allocation2 + $0x98] sm:$0xff]
  %v2009 = vld [vmem:[#allocation2 + $0xa0] sm:$0xff]
  %v2010 = vld [vmem:[#allocation2 + $0xa8] sm:$0xff]
  %v2011 = vld [vmem:[#allocation2 + $0xb0] sm:$0xff]
  %v2012 = vld [vmem:[#allocation2 + $0xb8] sm:$0xff]
  %v2013 = vld [vmem:[#allocation2 + $0xc0] sm:$0xff]
  %v2014 = vld [vmem:[#allocation2 + $0xc8] sm:$0xff]
  %v2015 = vld [vmem:[#allocation2 + $0xd0] sm:$0xff]
  %v2016 = vld [vmem:[#allocation2 + $0xd8] sm:$0xff]
  %v2017 = vld [vmem:[#allocation2 + $0xe0] sm:$0xff]
  %v2018 = vld [vmem:[#allocation2 + $0xe8] sm:$0xff]
  %v2019 = vld [vmem:[#allocation2 + $0xf0] sm:$0xff]
  %v2020 = vld [vmem:[#allocation2 + $0xf8] sm:$0xff]
  %v2021 = vld [vmem:[#allocation2 + $0x100] sm:$0xff]
  %v2022 = vld [vmem:[#allocation2 + $0x108] sm:$0xff]
  %v2023 = vld [vmem:[#allocation2 + $0x110] sm:$0xff]
  %v2024 = vld [vmem:[#allocation2 + $0x118] sm:$0xff]
  %v2025 = vld [vmem:[#allocation2 + $0x120] sm:$0xff]
  %v2026 = vld [vmem:[#allocation2 + $0x128] sm:$0xff]
  %v2027 = vld [vmem:[#allocation2 + $0x130] sm:$0xff]
  %v2028 = vld [vmem:[#allocation2 + $0x138] sm:$0xff]
  %v2029 = vld [vmem:[#allocation2 + $0x140] sm:$0xff]
  %v2030 = vld [vmem:[#allocation2 + $0x148] sm:$0xff]
  %v2031 = vld [vmem:[#allocation2 + $0x150] sm:$0xff]
  %v2032 = vld [vmem:[#allocation2 + $0x158] sm:$0xff]
  %v2033 = vld [vmem:[#allocation2 + $0x160] sm:$0xff]
  %v2034 = vld [vmem:[#allocation2 + $0x168] sm:$0xff]
  %v2035 = vld [vmem:[#allocation2 + $0x170] sm:$0xff]
  %v2036 = vld [vmem:[#allocation2 + $0x178] sm:$0xff]
  %v2037 = vld [vmem:[#allocation2 + $0x180] sm:$0xff]
  %v2038 = vld [vmem:[#allocation2 + $0x188] sm:$0xff]
  %v2039 = vld [vmem:[#allocation2 + $0x190] sm:$0xff]
  %v2040 = vld [vmem:[#allocation2 + $0x198] sm:$0xff]
  %v2041 = vld [vmem:[#allocation2 + $0x1a0] sm:$0xff]
  %v2042 = vld [vmem:[#allocation2 + $0x1a8] sm:$0xff]
  %v2043 = vld [vmem:[#allocation2 + $0x1b0] sm:$0xff]
  %v2044 = vld [vmem:[#allocation2 + $0x1b8] sm:$0xff]
  %v2045 = vld [vmem:[#allocation2 + $0x1c0] sm:$0xff]
  %v2046 = vld [vmem:[#allocation2 + $0x1c8] sm:$0xff]
  %v2047 = vld [vmem:[#allocation2 + $0x1d0] sm:$0xff]
  %v2048 = vld [vmem:[#allocation2 + $0x1d8] sm:$0xff]
  %v2049 = vld [vmem:[#allocation2 + $0x1e0] sm:$0xff]
  %v2050 = vld [vmem:[#allocation2 + $0x1e8] sm:$0xff]
  %v2051 = vld [vmem:[#allocation2 + $0x1f0] sm:$0xff]
  %v2052 = vld [vmem:[#allocation2 + $0x1f8] sm:$0xff]
  %v2053 = vld [vmem:[#allocation2 + $0x200] sm:$0xff]
  %v2054 = vld [vmem:[#allocation2 + $0x208] sm:$0xff]
  %v2055 = vld [vmem:[#allocation2 + $0x210] sm:$0xff]
  %v2056 = vld [vmem:[#allocation2 + $0x218] sm:$0xff]
  %v2057 = vld [vmem:[#allocation2 + $0x220] sm:$0xff]
  %v2058 = vld [vmem:[#allocation2 + $0x228] sm:$0xff]
  %v2059 = vld [vmem:[#allocation2 + $0x230] sm:$0xff]
  %v2060 = vld [vmem:[#allocation2 + $0x238] sm:$0xff]
  %v2061 = vld [vmem:[#allocation2 + $0x240] sm:$0xff]
  %v2062 = vld [vmem:[#allocation2 + $0x248] sm:$0xff]
  %v2063 = vld [vmem:[#allocation2 + $0x250] sm:$0xff]
  %v2064 = vld [vmem:[#allocation2 + $0x258] sm:$0xff]
  %v2065 = vld [vmem:[#allocation2 + $0x260] sm:$0xff]
  %v2066 = vld [vmem:[#allocation2 + $0x268] sm:$0xff]
  %v2067 = vld [vmem:[#allocation2 + $0x270] sm:$0xff]
  %v2068 = vld [vmem:[#allocation2 + $0x278] sm:$0xff]
  %v2069 = vld [vmem:[#allocation2 + $0x280] sm:$0xff]
  %v2070 = vld [vmem:[#allocation2 + $0x288] sm:$0xff]
  %v2071 = vld [vmem:[#allocation2 + $0x290] sm:$0xff]
  %v2072 = vld [vmem:[#allocation2 + $0x298] sm:$0xff]
  %v2073 = vld [vmem:[#allocation2 + $0x2a0] sm:$0xff]
  %v2074 = vld [vmem:[#allocation2 + $0x2a8] sm:$0xff]
  %v2075 = vld [vmem:[#allocation2 + $0x2b0] sm:$0xff]
  %v2076 = vld [vmem:[#allocation2 + $0x2b8] sm:$0xff]
  %v2077 = vld [vmem:[#allocation2 + $0x2c0] sm:$0xff]
  %v2078 = vld [vmem:[#allocation2 + $0x2c8] sm:$0xff]
  %v2079 = vld [vmem:[#allocation2 + $0x2d0] sm:$0xff]
  %v2080 = vld [vmem:[#allocation2 + $0x2d8] sm:$0xff]
  %v2081 = vld [vmem:[#allocation2 + $0x2e0] sm:$0xff]
  %v2082 = vld [vmem:[#allocation2 + $0x2e8] sm:$0xff]
  %v2083 = vld [vmem:[#allocation2 + $0x2f0] sm:$0xff]
  %v2084 = vld [vmem:[#allocation2 + $0x2f8] sm:$0xff]
  %v2085 = vld [vmem:[%s2] sm:$0xf]
  %v2086 = vld [vmem:[%s2 + $0x4] sm:$0xf]
  %v2087 = vld [vmem:[%s2 + $0x8] sm:$0xf]
  %v2088 = vld [vmem:[%s2 + $0xc] sm:$0xf]
  %v2089 = vld [vmem:[%s2 + $0x10] sm:$0xf]
  %v2090 = vld [vmem:[%s2 + $0x14] sm:$0xf]
  %v2091 = vld [vmem:[%s2 + $0x18] sm:$0xf]
  %v2092 = vld [vmem:[%s2 + $0x1c] sm:$0xf]
  %v2093 = vld [vmem:[%s2 + $0x20] sm:$0xf]
  %v2094 = vld [vmem:[%s2 + $0x24] sm:$0xf]
  %v2095 = vld [vmem:[%s2 + $0x28] sm:$0xf]
  %v2096 = vld [vmem:[%s2 + $0x2c] sm:$0xf]
  %v2097 = vld [vmem:[%s2 + $0x30] sm:$0xf]
  %v2098 = vld [vmem:[%s2 + $0x34] sm:$0xf]
  %v2099 = vld [vmem:[%s2 + $0x38] sm:$0xf]
  %v2100 = vld [vmem:[%s2 + $0x3c] sm:$0xf]
  %v2101 = vld [vmem:[%s2 + $0x40] sm:$0xf]
  %v2102 = vld [vmem:[%s2 + $0x44] sm:$0xf]
  %v2103 = vld [vmem:[%s2 + $0x48] sm:$0xf]
  %v2104 = vld [vmem:[%s2 + $0x4c] sm:$0xf]
  %v2105 = vld [vmem:[%s2 + $0x50] sm:$0xf]
  %v2106 = vld [vmem:[%s2 + $0x54] sm:$0xf]
  %v2107 = vld [vmem:[%s2 + $0x58] sm:$0xf]
  %v2108 = vld [vmem:[%s2 + $0x5c] sm:$0xf]
  %v2109 = vld [vmem:[%s2 + $0x60] sm:$0xf]
  %v2110 = vld [vmem:[%s2 + $0x64] sm:$0xf]
  %v2111 = vld [vmem:[%s2 + $0x68] sm:$0xf]
  %v2112 = vld [vmem:[%s2 + $0x6c] sm:$0xf]
  %v2113 = vld [vmem:[%s2 + $0x70] sm:$0xf]
  %v2114 = vld [vmem:[%s2 + $0x74] sm:$0xf]
  %v2115 = vld [vmem:[%s2 + $0x78] sm:$0xf]
  %v2116 = vld [vmem:[%s2 + $0x7c] sm:$0xf]
  %v2117 = vld [vmem:[%s2 + $0x80] sm:$0xf]
  %v2118 = vld [vmem:[%s2 + $0x84] sm:$0xf]
  %v2119 = vld [vmem:[%s2 + $0x88] sm:$0xf]
  %v2120 = vld [vmem:[%s2 + $0x8c] sm:$0xf]
  %v2121 = vld [vmem:[%s2 + $0x90] sm:$0xf]
  %v2122 = vld [vmem:[%s2 + $0x94] sm:$0xf]
  %v2123 = vld [vmem:[%s2 + $0x98] sm:$0xf]
  %v2124 = vld [vmem:[%s2 + $0x9c] sm:$0xf]
  %v2125 = vld [vmem:[%s2 + $0xa0] sm:$0xf]
  %v2126 = vld [vmem:[%s2 + $0xa4] sm:$0xf]
  %v2127 = vld [vmem:[%s2 + $0xa8] sm:$0xf]
  %v2128 = vld [vmem:[%s2 + $0xac] sm:$0xf]
  %v2129 = vld [vmem:[%s2 + $0xb0] sm:$0xf]
  %v2130 = vld [vmem:[%s2 + $0xb4] sm:$0xf]
  %v2131 = vld [vmem:[%s2 + $0xb8] sm:$0xf]
  %v2132 = vld [vmem:[%s2 + $0xbc] sm:$0xf]
  %v2181 = vunpack.c.l.b16 %v2085
  %v2182 = vunpack.c.l.b16 %v2086
  %v2183 = vunpack.c.l.b16 %v2087
  %v2184 = vunpack.c.l.b16 %v2088
  %v2185 = vunpack.c.l.b16 %v2089
  %v2186 = vunpack.c.l.b16 %v2090
  %v2187 = vunpack.c.l.b16 %v2091
  %v2188 = vunpack.c.l.b16 %v2092
  %v2189 = vunpack.c.l.b16 %v2093
  %v2190 = vunpack.c.l.b16 %v2094
  %v2191 = vunpack.c.l.b16 %v2095
  %v2192 = vunpack.c.l.b16 %v2096
  %v2193 = vunpack.c.l.b16 %v2097
  %v2194 = vunpack.c.l.b16 %v2098
  %v2195 = vunpack.c.l.b16 %v2099
  %v2196 = vunpack.c.l.b16 %v2100
  %v2197 = vunpack.c.l.b16 %v2101
  %v2198 = vunpack.c.l.b16 %v2102
  %v2199 = vunpack.c.l.b16 %v2103
  %v2200 = vunpack.c.l.b16 %v2104
  %v2201 = vunpack.c.l.b16 %v2105
  %v2202 = vunpack.c.l.b16 %v2106
  %v2203 = vunpack.c.l.b16 %v2107
  %v2204 = vunpack.c.l.b16 %v2108
  %v2205 = vunpack.c.l.b16 %v2109
  %v2206 = vunpack.c.l.b16 %v2110
  %v2207 = vunpack.c.l.b16 %v2111
  %v2208 = vunpack.c.l.b16 %v2112
  %v2209 = vunpack.c.l.b16 %v2113
  %v2210 = vunpack.c.l.b16 %v2114
  %v2211 = vunpack.c.l.b16 %v2115
  %v2212 = vunpack.c.l.b16 %v2116
  %v2213 = vunpack.c.l.b16 %v2117
  %v2214 = vunpack.c.l.b16 %v2118
  %v2215 = vunpack.c.l.b16 %v2119
  %v2216 = vunpack.c.l.b16 %v2120
  %v2217 = vunpack.c.l.b16 %v2121
  %v2218 = vunpack.c.l.b16 %v2122
  %v2219 = vunpack.c.l.b16 %v2123
  %v2220 = vunpack.c.l.b16 %v2124
  %v2221 = vunpack.c.l.b16 %v2125
  %v2222 = vunpack.c.l.b16 %v2126
  %v2223 = vunpack.c.l.b16 %v2127
  %v2224 = vunpack.c.l.b16 %v2128
  %v2225 = vunpack.c.l.b16 %v2129
  %v2226 = vunpack.c.l.b16 %v2130
  %v2227 = vunpack.c.l.b16 %v2131
  %v2228 = vunpack.c.l.b16 %v2132
  %v2229 = vpack.c.b16 %v2182, %v2181
  %v2230 = vpack.c.b16 %v2184, %v2183
  %v2231 = vpack.c.b16 %v2186, %v2185
  %v2232 = vpack.c.b16 %v2188, %v2187
  %v2233 = vpack.c.b16 %v2190, %v2189
  %v2234 = vpack.c.b16 %v2192, %v2191
  %v2235 = vpack.c.b16 %v2194, %v2193
  %v2236 = vpack.c.b16 %v2196, %v2195
  %v2237 = vpack.c.b16 %v2198, %v2197
  %v2238 = vpack.c.b16 %v2200, %v2199
  %v2239 = vpack.c.b16 %v2202, %v2201
  %v2240 = vpack.c.b16 %v2204, %v2203
  %v2241 = vpack.c.b16 %v2206, %v2205
  %v2242 = vpack.c.b16 %v2208, %v2207
  %v2243 = vpack.c.b16 %v2210, %v2209
  %v2244 = vpack.c.b16 %v2212, %v2211
  %v2245 = vpack.c.b16 %v2214, %v2213
  %v2246 = vpack.c.b16 %v2216, %v2215
  %v2247 = vpack.c.b16 %v2218, %v2217
  %v2248 = vpack.c.b16 %v2220, %v2219
  %v2249 = vpack.c.b16 %v2222, %v2221
  %v2250 = vpack.c.b16 %v2224, %v2223
  %v2251 = vpack.c.b16 %v2226, %v2225
  %v2252 = vpack.c.b16 %v2228, %v2227
  %2277 = vmatprep.subr.bf16.mxu0 0
  %2278 = vmatpush1.bf16.msra.mxu0 %v2229
  %2279 = vmatprep.subr.bf16.mxu0 0
  %2280 = vmatpush1.bf16.msra.mxu0 %v2230
  %2281 = vmatprep.subr.bf16.mxu0 0
  %2282 = vmatpush1.bf16.msra.mxu0 %v2231
  %2283 = vmatprep.subr.bf16.mxu0 0
  %2284 = vmatpush1.bf16.msra.mxu0 %v2232
  %2285 = vmatprep.subr.bf16.mxu0 0
  %2286 = vmatpush1.bf16.msra.mxu0 %v2233
  %2287 = vmatprep.subr.bf16.mxu0 0
  %2288 = vmatpush1.bf16.msra.mxu0 %v2234
  %2289 = vmatprep.subr.bf16.mxu0 0
  %2290 = vmatpush1.bf16.msra.mxu0 %v2235
  %2291 = vmatprep.subr.bf16.mxu0 0
  %2292 = vmatpush1.bf16.msra.mxu0 %v2236
  %2293 = vmatprep.subr.bf16.mxu0 0
  %2294 = vmatpush1.bf16.msra.mxu0 %v2237
  %2295 = vmatprep.subr.bf16.mxu0 0
  %2296 = vmatpush1.bf16.msra.mxu0 %v2238
  %2297 = vmatprep.subr.bf16.mxu0 0
  %2298 = vmatpush1.bf16.msra.mxu0 %v2239
  %2299 = vmatprep.subr.bf16.mxu0 0
  %2300 = vmatpush1.bf16.msra.mxu0 %v2240
  %2301 = vmatprep.subr.bf16.mxu0 0
  %2302 = vmatpush1.bf16.msra.mxu0 %v2241
  %2303 = vmatprep.subr.bf16.mxu0 0
  %2304 = vmatpush1.bf16.msra.mxu0 %v2242
  %2305 = vmatprep.subr.bf16.mxu0 0
  %2306 = vmatpush1.bf16.msra.mxu0 %v2243
  %2307 = vmatprep.subr.bf16.mxu0 0
  %2308 = vmatpush1.bf16.msra.mxu0 %v2244
  %2309 = vmatprep.mubr.bf16.mxu0 %v1990
  %2310 = vmatmul.mubr.bf16.gmra.mrb[0].mxu0 %v1989
  %v2311 = vpop.f32.mrb[0].mxu0
  %v2312 = vadd.f32 0.0, %v2311
  %v2313 = vpop.f32.mrb[0].mxu0
  %v2314 = vpop.f32.mrb[0].mxu0
  %v2315 = vadd.f32 0.0, %v2314
  %v2316 = vpop.f32.mrb[0].mxu0
  %2317 = vmatprep.mubr.bf16.mxu0 %v1993
  %2318 = vmatmul.mubr.bf16.gmra.mrb[0].mxu0 %v1992
  %v2319 = vpop.f32.mrb[0].mxu0
  %v2320 = vadd.f32 0.0, %v2319
  %v2321 = vpop.f32.mrb[0].mxu0
  %v2322 = vpop.f32.mrb[0].mxu0
  %v2323 = vadd.f32 0.0, %v2322
  %v2324 = vpop.f32.mrb[0].mxu0
  %2325 = vmatprep.mubr.bf16.mxu0 %v1996
  %2326 = vmatmul.mubr.bf16.gmra.mrb[0].mxu0 %v1995
  %v2327 = vpop.f32.mrb[0].mxu0
  %v2328 = vadd.f32 0.0, %v2327
  %v2329 = vpop.f32.mrb[0].mxu0
  %v2330 = vpop.f32.mrb[0].mxu0
  %v2331 = vadd.f32 0.0, %v2330
  %v2332 = vpop.f32.mrb[0].mxu0
  %2333 = vmatprep.mubr.bf16.mxu0 %v1999
  %2334 = vmatmul.mubr.bf16.gmra.mrb[0].mxu0 %v1998
  %v2335 = vpop.f32.mrb[0].mxu0
  %v2336 = vadd.f32 0.0, %v2335
  %v2337 = vpop.f32.mrb[0].mxu0
  %v2338 = vpop.f32.mrb[0].mxu0
  %v2339 = vadd.f32 0.0, %v2338
  %v2340 = vpop.f32.mrb[0].mxu0
  %2341 = vmatprep.mubr.bf16.mxu0 %v2002
  %2342 = vmatmul.mubr.bf16.gmra.mrb[0].mxu0 %v2001
  %v2343 = vpop.f32.mrb[0].mxu0
  %v2344 = vadd.f32 0.0, %v2343
  %v2345 = vpop.f32.mrb[0].mxu0
  %v2346 = vpop.f32.mrb[0].mxu0
  %v2347 = vadd.f32 0.0, %v2346
  %v2348 = vpop.f32.mrb[0].mxu0
  %2349 = vmatprep.mubr.bf16.mxu0 %v2005
  %2350 = vmatmul.mubr.bf16.gmra.mrb[0].mxu0 %v2004
  %v2351 = vpop.f32.mrb[0].mxu0
  %v2352 = vadd.f32 0.0, %v2351
  %v2353 = vpop.f32.mrb[0].mxu0
  %v2354 = vpop.f32.mrb[0].mxu0
  %v2355 = vadd.f32 0.0, %v2354
  %v2356 = vpop.f32.mrb[0].mxu0
  %2357 = vmatprep.mubr.bf16.mxu0 %v2008
  %2358 = vmatmul.mubr.bf16.gmra.mrb[0].mxu0 %v2007
  %v2359 = vpop.f32.mrb[0].mxu0
  %v2360 = vadd.f32 0.0, %v2359
  %v2361 = vpop.f32.mrb[0].mxu0
  %v2362 = vpop.f32.mrb[0].mxu0
  %v2363 = vadd.f32 0.0, %v2362
  %v2364 = vpop.f32.mrb[0].mxu0
  %2365 = vmatprep.mubr.bf16.mxu0 %v2011
  %2366 = vmatmul.mubr.bf16.gmra.mrb[0].mxu0 %v2010
  %v2367 = vpop.f32.mrb[0].mxu0
  %v2368 = vadd.f32 0.0, %v2367
  %v2369 = vpop.f32.mrb[0].mxu0
  %v2370 = vpop.f32.mrb[0].mxu0
  %v2371 = vadd.f32 0.0, %v2370
  %v2372 = vpop.f32.mrb[0].mxu0
  %2373 = vmatprep.mubr.bf16.mxu0 %v2014
  %2374 = vmatmul.mubr.bf16.gmra.mrb[0].mxu0 %v2013
  %v2375 = vpop.f32.mrb[0].mxu0
  %v2376 = vadd.f32 0.0, %v2375
  %v2377 = vpop.f32.mrb[0].mxu0
  %v2378 = vpop.f32.mrb[0].mxu0
  %v2379 = vadd.f32 0.0, %v2378
  %v2380 = vpop.f32.mrb[0].mxu0
  %2381 = vmatprep.mubr.bf16.mxu0 %v2017
  %2382 = vmatmul.mubr.bf16.gmra.mrb[0].mxu0 %v2016
  %v2383 = vpop.f32.mrb[0].mxu0
  %v2384 = vadd.f32 0.0, %v2383
  %v2385 = vpop.f32.mrb[0].mxu0
  %v2386 = vpop.f32.mrb[0].mxu0
  %v2387 = vadd.f32 0.0, %v2386
  %v2388 = vpop.f32.mrb[0].mxu0
  %2389 = vmatprep.mubr.bf16.mxu0 %v2020
  %2390 = vmatmul.mubr.bf16.gmra.mrb[0].mxu0 %v2019
  %v2391 = vpop.f32.mrb[0].mxu0
  %v2392 = vadd.f32 0.0, %v2391
  %v2393 = vpop.f32.mrb[0].mxu0
  %v2394 = vpop.f32.mrb[0].mxu0
  %v2395 = vadd.f32 0.0, %v2394
  %v2396 = vpop.f32.mrb[0].mxu0
  %2397 = vmatprep.mubr.bf16.mxu0 %v2023
  %2398 = vmatmul.mubr.bf16.gmra.mrb[0].mxu0 %v2022
  %v2399 = vpop.f32.mrb[0].mxu0
  %v2400 = vadd.f32 0.0, %v2399
  %v2401 = vpop.f32.mrb[0].mxu0
  %v2402 = vpop.f32.mrb[0].mxu0
  %v2403 = vadd.f32 0.0, %v2402
  %v2404 = vpop.f32.mrb[0].mxu0
  %2405 = vmatprep.mubr.bf16.mxu0 %v2026
  %2406 = vmatmul.mubr.bf16.gmra.mrb[0].mxu0 %v2025
  %v2407 = vpop.f32.mrb[0].mxu0
  %v2408 = vadd.f32 0.0, %v2407
  %v2409 = vpop.f32.mrb[0].mxu0
  %v2410 = vpop.f32.mrb[0].mxu0
  %v2411 = vadd.f32 0.0, %v2410
  %v2412 = vpop.f32.mrb[0].mxu0
  %2413 = vmatprep.mubr.bf16.mxu0 %v2029
  %2414 = vmatmul.mubr.bf16.gmra.mrb[0].mxu0 %v2028
  %v2415 = vpop.f32.mrb[0].mxu0
  %v2416 = vadd.f32 0.0, %v2415
  %v2417 = vpop.f32.mrb[0].mxu0
  %v2418 = vpop.f32.mrb[0].mxu0
  %v2419 = vadd.f32 0.0, %v2418
  %v2420 = vpop.f32.mrb[0].mxu0
  %2421 = vmatprep.mubr.bf16.mxu0 %v2032
  %2422 = vmatmul.mubr.bf16.gmra.mrb[0].mxu0 %v2031
  %v2423 = vpop.f32.mrb[0].mxu0
  %v2424 = vadd.f32 0.0, %v2423
  %v2425 = vpop.f32.mrb[0].mxu0
  %v2426 = vpop.f32.mrb[0].mxu0
  %v2427 = vadd.f32 0.0, %v2426
  %v2428 = vpop.f32.mrb[0].mxu0
  %2429 = vmatprep.mubr.bf16.mxu0 %v2035
  %2430 = vmatmul.mubr.bf16.gmra.mrb[0].mxu0 %v2034
  %v2431 = vpop.f32.mrb[0].mxu0
  %v2432 = vadd.f32 0.0, %v2431
  %v2433 = vpop.f32.mrb[0].mxu0
  %v2434 = vpop.f32.mrb[0].mxu0
  %v2435 = vadd.f32 0.0, %v2434
  %v2436 = vpop.f32.mrb[0].mxu0
  %2437 = vmatprep.mubr.bf16.mxu0 %v2038
  %2438 = vmatmul.mubr.bf16.gmra.mrb[0].mxu0 %v2037
  %v2439 = vpop.f32.mrb[0].mxu0
  %v2440 = vadd.f32 0.0, %v2439
  %v2441 = vpop.f32.mrb[0].mxu0
  %v2442 = vpop.f32.mrb[0].mxu0
  %v2443 = vadd.f32 0.0, %v2442
  %v2444 = vpop.f32.mrb[0].mxu0
  %2445 = vmatprep.mubr.bf16.mxu0 %v2041
  %2446 = vmatmul.mubr.bf16.gmra.mrb[0].mxu0 %v2040
  %v2447 = vpop.f32.mrb[0].mxu0
  %v2448 = vadd.f32 0.0, %v2447
  %v2449 = vpop.f32.mrb[0].mxu0
  %v2450 = vpop.f32.mrb[0].mxu0
  %v2451 = vadd.f32 0.0, %v2450
  %v2452 = vpop.f32.mrb[0].mxu0
  %2453 = vmatprep.mubr.bf16.mxu0 %v2044
  %2454 = vmatmul.mubr.bf16.gmra.mrb[0].mxu0 %v2043
  %v2455 = vpop.f32.mrb[0].mxu0
  %v2456 = vadd.f32 0.0, %v2455
  %v2457 = vpop.f32.mrb[0].mxu0
  %v2458 = vpop.f32.mrb[0].mxu0
  %v2459 = vadd.f32 0.0, %v2458
  %v2460 = vpop.f32.mrb[0].mxu0
  %2461 = vmatprep.mubr.bf16.mxu0 %v2047
  %2462 = vmatmul.mubr.bf16.gmra.mrb[0].mxu0 %v2046
  %v2463 = vpop.f32.mrb[0].mxu0
  %v2464 = vadd.f32 0.0, %v2463
  %v2465 = vpop.f32.mrb[0].mxu0
  %v2466 = vpop.f32.mrb[0].mxu0
  %v2467 = vadd.f32 0.0, %v2466
  %v2468 = vpop.f32.mrb[0].mxu0
  %2469 = vmatprep.mubr.bf16.mxu0 %v2050
  %2470 = vmatmul.mubr.bf16.gmra.mrb[0].mxu0 %v2049
  %v2471 = vpop.f32.mrb[0].mxu0
  %v2472 = vadd.f32 0.0, %v2471
  %v2473 = vpop.f32.mrb[0].mxu0
  %v2474 = vpop.f32.mrb[0].mxu0
  %v2475 = vadd.f32 0.0, %v2474
  %v2476 = vpop.f32.mrb[0].mxu0
  %2477 = vmatprep.mubr.bf16.mxu0 %v2053
  %2478 = vmatmul.mubr.bf16.gmra.mrb[0].mxu0 %v2052
  %v2479 = vpop.f32.mrb[0].mxu0
  %v2480 = vadd.f32 0.0, %v2479
  %v2481 = vpop.f32.mrb[0].mxu0
  %v2482 = vpop.f32.mrb[0].mxu0
  %v2483 = vadd.f32 0.0, %v2482
  %v2484 = vpop.f32.mrb[0].mxu0
  %2485 = vmatprep.mubr.bf16.mxu0 %v2056
  %2486 = vmatmul.mubr.bf16.gmra.mrb[0].mxu0 %v2055
  %v2487 = vpop.f32.mrb[0].mxu0
  %v2488 = vadd.f32 0.0, %v2487
  %v2489 = vpop.f32.mrb[0].mxu0
  %v2490 = vpop.f32.mrb[0].mxu0
  %v2491 = vadd.f32 0.0, %v2490
  %v2492 = vpop.f32.mrb[0].mxu0
  %2493 = vmatprep.mubr.bf16.mxu0 %v2059
  %2494 = vmatmul.mubr.bf16.gmra.mrb[0].mxu0 %v2058
  %v2495 = vpop.f32.mrb[0].mxu0
  %v2496 = vadd.f32 0.0, %v2495
  %v2497 = vpop.f32.mrb[0].mxu0
  %v2498 = vpop.f32.mrb[0].mxu0
  %v2499 = vadd.f32 0.0, %v2498
  %v2500 = vpop.f32.mrb[0].mxu0
  %2501 = vmatprep.mubr.bf16.mxu0 %v2062
  %2502 = vmatmul.mubr.bf16.gmra.mrb[0].mxu0 %v2061
  %v2503 = vpop.f32.mrb[0].mxu0
  %v2504 = vadd.f32 0.0, %v2503
  %v2505 = vpop.f32.mrb[0].mxu0
  %v2506 = vpop.f32.mrb[0].mxu0
  %v2507 = vadd.f32 0.0, %v2506
  %v2508 = vpop.f32.mrb[0].mxu0
  %2509 = vmatprep.mubr.bf16.mxu0 %v2065
  %2510 = vmatmul.mubr.bf16.gmra.mrb[0].mxu0 %v2064
  %v2511 = vpop.f32.mrb[0].mxu0
  %v2512 = vadd.f32 0.0, %v2511
  %v2513 = vpop.f32.mrb[0].mxu0
  %v2514 = vpop.f32.mrb[0].mxu0
  %v2515 = vadd.f32 0.0, %v2514
  %v2516 = vpop.f32.mrb[0].mxu0
  %2517 = vmatprep.mubr.bf16.mxu0 %v2068
  %2518 = vmatmul.mubr.bf16.gmra.mrb[0].mxu0 %v2067
  %v2519 = vpop.f32.mrb[0].mxu0
  %v2520 = vadd.f32 0.0, %v2519
  %v2521 = vpop.f32.mrb[0].mxu0
  %v2522 = vpop.f32.mrb[0].mxu0
  %v2523 = vadd.f32 0.0, %v2522
  %v2524 = vpop.f32.mrb[0].mxu0
  %2525 = vmatprep.mubr.bf16.mxu0 %v2071
  %2526 = vmatmul.mubr.bf16.gmra.mrb[0].mxu0 %v2070
  %v2527 = vpop.f32.mrb[0].mxu0
  %v2528 = vadd.f32 0.0, %v2527
  %v2529 = vpop.f32.mrb[0].mxu0
  %v2530 = vpop.f32.mrb[0].mxu0
  %v2531 = vadd.f32 0.0, %v2530
  %v2532 = vpop.f32.mrb[0].mxu0
  %2533 = vmatprep.mubr.bf16.mxu0 %v2074
  %2534 = vmatmul.mubr.bf16.gmra.mrb[0].mxu0 %v2073
  %v2535 = vpop.f32.mrb[0].mxu0
  %v2536 = vadd.f32 0.0, %v2535
  %v2537 = vpop.f32.mrb[0].mxu0
  %v2538 = vpop.f32.mrb[0].mxu0
  %v2539 = vadd.f32 0.0, %v2538
  %v2540 = vpop.f32.mrb[0].mxu0
  %2541 = vmatprep.mubr.bf16.mxu0 %v2077
  %2542 = vmatmul.mubr.bf16.gmra.mrb[0].mxu0 %v2076
  %v2543 = vpop.f32.mrb[0].mxu0
  %v2544 = vadd.f32 0.0, %v2543
  %v2545 = vpop.f32.mrb[0].mxu0
  %v2546 = vpop.f32.mrb[0].mxu0
  %v2547 = vadd.f32 0.0, %v2546
  %v2548 = vpop.f32.mrb[0].mxu0
  %2549 = vmatprep.mubr.bf16.mxu0 %v2080
  %2550 = vmatmul.mubr.bf16.gmra.mrb[0].mxu0 %v2079
  %v2551 = vpop.f32.mrb[0].mxu0
  %v2552 = vadd.f32 0.0, %v2551
  %v2553 = vpop.f32.mrb[0].mxu0
  %v2554 = vpop.f32.mrb[0].mxu0
  %v2555 = vadd.f32 0.0, %v2554
  %v2556 = vpop.f32.mrb[0].mxu0
  %2557 = vmatprep.mubr.bf16.mxu0 %v2083
  %2558 = vmatmul.mubr.bf16.gmra.mrb[0].mxu0 %v2082
  %v2559 = vpop.f32.mrb[0].mxu0
  %v2560 = vadd.f32 0.0, %v2559
  %v2561 = vpop.f32.mrb[0].mxu0
  %v2562 = vpop.f32.mrb[0].mxu0
  %v2563 = vadd.f32 0.0, %v2562
  %v2564 = vpop.f32.mrb[0].mxu0
  %2565 = vdwg.mxu0
  %2566 = vmatprep.subr.bf16.mxu0 0
  %2567 = vmatpush1.bf16.msra.mxu0 %v2245
  %2568 = vmatprep.subr.bf16.mxu0 0
  %2569 = vmatpush1.bf16.msra.mxu0 %v2246
  %2570 = vmatprep.subr.bf16.mxu0 0
  %2571 = vmatpush1.bf16.msra.mxu0 %v2247
  %2572 = vmatprep.subr.bf16.mxu0 0
  %2573 = vmatpush1.bf16.msra.mxu0 %v2248
  %2574 = vmatprep.subr.bf16.mxu0 0
  %2575 = vmatpush1.bf16.msra.mxu0 %v2249
  %2576 = vmatprep.subr.bf16.mxu0 0
  %2577 = vmatpush1.bf16.msra.mxu0 %v2250
  %2578 = vmatprep.subr.bf16.mxu0 0
  %2579 = vmatpush1.bf16.msra.mxu0 %v2251
  %2580 = vmatprep.subr.bf16.mxu0 0
  %2581 = vmatpush1.bf16.msra.mxu0 %v2252
  %2582 = vmatprep.subr.bf16.mxu0 0
  %2583 = vmatpush1.bf16.msra.mxu0 0
  %2584 = vmatprep.subr.bf16.mxu0 0
  %2585 = vmatpush1.bf16.msra.mxu0 0
  %2586 = vmatprep.subr.bf16.mxu0 0
  %2587 = vmatpush1.bf16.msra.mxu0 0
  %2588 = vmatprep.subr.bf16.mxu0 0
  %2589 = vmatpush1.bf16.msra.mxu0 0
  %2590 = vmatprep.subr.bf16.mxu0 0
  %2591 = vmatpush1.bf16.msra.mxu0 0
  %2592 = vmatprep.subr.bf16.mxu0 0
  %2593 = vmatpush1.bf16.msra.mxu0 0
  %2594 = vmatprep.subr.bf16.mxu0 0
  %2595 = vmatpush1.bf16.msra.mxu0 0
  %2596 = vmatprep.subr.bf16.mxu0 0
  %2597 = vmatpush1.bf16.msra.mxu0 0
  %2598 = vmatprep.mubr.bf16.mxu0 0
  %2599 = vmatmul.mubr.bf16.gmra.mrb[0].mxu0 %v1991
  %v2600 = vpop.f32.mrb[0].mxu0
  %v2601 = vadd.f32 %v2312, %v2600
  %v2602 = vpop.f32.mrb[0].mxu0
  %v2603 = vpop.f32.mrb[0].mxu0
  %v2604 = vadd.f32 %v2315, %v2603
  %v2605 = vpop.f32.mrb[0].mxu0
  %2606 = vmatprep.mubr.bf16.mxu0 0
  %2607 = vmatmul.mubr.bf16.gmra.mrb[0].mxu0 %v1994
  %v2608 = vpop.f32.mrb[0].mxu0
  %v2609 = vadd.f32 %v2320, %v2608
  %v2610 = vpop.f32.mrb[0].mxu0
  %v2611 = vpop.f32.mrb[0].mxu0
  %v2612 = vadd.f32 %v2323, %v2611
  %v2613 = vpop.f32.mrb[0].mxu0
  %2614 = vmatprep.mubr.bf16.mxu0 0
  %2615 = vmatmul.mubr.bf16.gmra.mrb[0].mxu0 %v1997
  %v2616 = vpop.f32.mrb[0].mxu0
  %v2617 = vadd.f32 %v2328, %v2616
  %v2618 = vpop.f32.mrb[0].mxu0
  %v2619 = vpop.f32.mrb[0].mxu0
  %v2620 = vadd.f32 %v2331, %v2619
  %v2621 = vpop.f32.mrb[0].mxu0
  %2622 = vmatprep.mubr.bf16.mxu0 0
  %2623 = vmatmul.mubr.bf16.gmra.mrb[0].mxu0 %v2000
  %v2624 = vpop.f32.mrb[0].mxu0
  %v2625 = vadd.f32 %v2336, %v2624
  %v2626 = vpop.f32.mrb[0].mxu0
  %v2627 = vpop.f32.mrb[0].mxu0
  %v2628 = vadd.f32 %v2339, %v2627
  %v2629 = vpop.f32.mrb[0].mxu0
  %2630 = vmatprep.mubr.bf16.mxu0 0
  %2631 = vmatmul.mubr.bf16.gmra.mrb[0].mxu0 %v2003
  %v2632 = vpop.f32.mrb[0].mxu0
  %v2633 = vadd.f32 %v2344, %v2632
  %v2634 = vpop.f32.mrb[0].mxu0
  %v2635 = vpop.f32.mrb[0].mxu0
  %v2636 = vadd.f32 %v2347, %v2635
  %v2637 = vpop.f32.mrb[0].mxu0
  %2638 = vmatprep.mubr.bf16.mxu0 0
  %2639 = vmatmul.mubr.bf16.gmra.mrb[0].mxu0 %v2006
  %v2640 = vpop.f32.mrb[0].mxu0
  %v2641 = vadd.f32 %v2352, %v2640
  %v2642 = vpop.f32.mrb[0].mxu0
  %v2643 = vpop.f32.mrb[0].mxu0
  %v2644 = vadd.f32 %v2355, %v2643
  %v2645 = vpop.f32.mrb[0].mxu0
  %2646 = vmatprep.mubr.bf16.mxu0 0
  %2647 = vmatmul.mubr.bf16.gmra.mrb[0].mxu0 %v2009
  %v2648 = vpop.f32.mrb[0].mxu0
  %v2649 = vadd.f32 %v2360, %v2648
  %v2650 = vpop.f32.mrb[0].mxu0
  %v2651 = vpop.f32.mrb[0].mxu0
  %v2652 = vadd.f32 %v2363, %v2651
  %v2653 = vpop.f32.mrb[0].mxu0
  %2654 = vmatprep.mubr.bf16.mxu0 0
  %2655 = vmatmul.mubr.bf16.gmra.mrb[0].mxu0 %v2012
  %v2656 = vpop.f32.mrb[0].mxu0
  %v2657 = vadd.f32 %v2368, %v2656
  %v2658 = vpop.f32.mrb[0].mxu0
  %v2659 = vpop.f32.mrb[0].mxu0
  %v2660 = vadd.f32 %v2371, %v2659
  %v2661 = vpop.f32.mrb[0].mxu0
  %2662 = vmatprep.mubr.bf16.mxu0 0
  %2663 = vmatmul.mubr.bf16.gmra.mrb[0].mxu0 %v2015
  %v2664 = vpop.f32.mrb[0].mxu0
  %v2665 = vadd.f32 %v2376, %v2664
  %v2666 = vpop.f32.mrb[0].mxu0
  %v2667 = vpop.f32.mrb[0].mxu0
  %v2668 = vadd.f32 %v2379, %v2667
  %v2669 = vpop.f32.mrb[0].mxu0
  %2670 = vmatprep.mubr.bf16.mxu0 0
  %2671 = vmatmul.mubr.bf16.gmra.mrb[0].mxu0 %v2018
  %v2672 = vpop.f32.mrb[0].mxu0
  %v2673 = vadd.f32 %v2384, %v2672
  %v2674 = vpop.f32.mrb[0].mxu0
  %v2675 = vpop.f32.mrb[0].mxu0
  %v2676 = vadd.f32 %v2387, %v2675
  %v2677 = vpop.f32.mrb[0].mxu0
  %2678 = vmatprep.mubr.bf16.mxu0 0
  %2679 = vmatmul.mubr.bf16.gmra.mrb[0].mxu0 %v2021
  %v2680 = vpop.f32.mrb[0].mxu0
  %v2681 = vadd.f32 %v2392, %v2680
  %v2682 = vpop.f32.mrb[0].mxu0
  %v2683 = vpop.f32.mrb[0].mxu0
  %v2684 = vadd.f32 %v2395, %v2683
  %v2685 = vpop.f32.mrb[0].mxu0
  %2686 = vmatprep.mubr.bf16.mxu0 0
  %2687 = vmatmul.mubr.bf16.gmra.mrb[0].mxu0 %v2024
  %v2688 = vpop.f32.mrb[0].mxu0
  %v2689 = vadd.f32 %v2400, %v2688
  %v2690 = vpop.f32.mrb[0].mxu0
  %v2691 = vpop.f32.mrb[0].mxu0
  %v2692 = vadd.f32 %v2403, %v2691
  %v2693 = vpop.f32.mrb[0].mxu0
  %2694 = vmatprep.mubr.bf16.mxu0 0
  %2695 = vmatmul.mubr.bf16.gmra.mrb[0].mxu0 %v2027
  %v2696 = vpop.f32.mrb[0].mxu0
  %v2697 = vadd.f32 %v2408, %v2696
  %v2698 = vpop.f32.mrb[0].mxu0
  %v2699 = vpop.f32.mrb[0].mxu0
  %v2700 = vadd.f32 %v2411, %v2699
  %v2701 = vpop.f32.mrb[0].mxu0
  %2702 = vmatprep.mubr.bf16.mxu0 0
  %2703 = vmatmul.mubr.bf16.gmra.mrb[0].mxu0 %v2030
  %v2704 = vpop.f32.mrb[0].mxu0
  %v2705 = vadd.f32 %v2416, %v2704
  %v2706 = vpop.f32.mrb[0].mxu0
  %v2707 = vpop.f32.mrb[0].mxu0
  %v2708 = vadd.f32 %v2419, %v2707
  %v2709 = vpop.f32.mrb[0].mxu0
  %2710 = vmatprep.mubr.bf16.mxu0 0
  %2711 = vmatmul.mubr.bf16.gmra.mrb[0].mxu0 %v2033
  %v2712 = vpop.f32.mrb[0].mxu0
  %v2713 = vadd.f32 %v2424, %v2712
  %v2714 = vpop.f32.mrb[0].mxu0
  %v2715 = vpop.f32.mrb[0].mxu0
  %v2716 = vadd.f32 %v2427, %v2715
  %v2717 = vpop.f32.mrb[0].mxu0
  %2718 = vmatprep.mubr.bf16.mxu0 0
  %2719 = vmatmul.mubr.bf16.gmra.mrb[0].mxu0 %v2036
  %v2720 = vpop.f32.mrb[0].mxu0
  %v2721 = vadd.f32 %v2432, %v2720
  %v2722 = vpop.f32.mrb[0].mxu0
  %v2723 = vpop.f32.mrb[0].mxu0
  %v2724 = vadd.f32 %v2435, %v2723
  %v2725 = vpop.f32.mrb[0].mxu0
  %2726 = vmatprep.mubr.bf16.mxu0 0
  %2727 = vmatmul.mubr.bf16.gmra.mrb[0].mxu0 %v2039
  %v2728 = vpop.f32.mrb[0].mxu0
  %v2729 = vadd.f32 %v2440, %v2728
  %v2730 = vpop.f32.mrb[0].mxu0
  %v2731 = vpop.f32.mrb[0].mxu0
  %v2732 = vadd.f32 %v2443, %v2731
  %v2733 = vpop.f32.mrb[0].mxu0
  %2734 = vmatprep.mubr.bf16.mxu0 0
  %2735 = vmatmul.mubr.bf16.gmra.mrb[0].mxu0 %v2042
  %v2736 = vpop.f32.mrb[0].mxu0
  %v2737 = vadd.f32 %v2448, %v2736
  %v2738 = vpop.f32.mrb[0].mxu0
  %v2739 = vpop.f32.mrb[0].mxu0
  %v2740 = vadd.f32 %v2451, %v2739
  %v2741 = vpop.f32.mrb[0].mxu0
  %2742 = vmatprep.mubr.bf16.mxu0 0
  %2743 = vmatmul.mubr.bf16.gmra.mrb[0].mxu0 %v2045
  %v2744 = vpop.f32.mrb[0].mxu0
  %v2745 = vadd.f32 %v2456, %v2744
  %v2746 = vpop.f32.mrb[0].mxu0
  %v2747 = vpop.f32.mrb[0].mxu0
  %v2748 = vadd.f32 %v2459, %v2747
  %v2749 = vpop.f32.mrb[0].mxu0
  %2750 = vmatprep.mubr.bf16.mxu0 0
  %2751 = vmatmul.mubr.bf16.gmra.mrb[0].mxu0 %v2048
  %v2752 = vpop.f32.mrb[0].mxu0
  %v2753 = vadd.f32 %v2464, %v2752
  %v2754 = vpop.f32.mrb[0].mxu0
  %v2755 = vpop.f32.mrb[0].mxu0
  %v2756 = vadd.f32 %v2467, %v2755
  %v2757 = vpop.f32.mrb[0].mxu0
  %2758 = vmatprep.mubr.bf16.mxu0 0
  %2759 = vmatmul.mubr.bf16.gmra.mrb[0].mxu0 %v2051
  %v2760 = vpop.f32.mrb[0].mxu0
  %v2761 = vadd.f32 %v2472, %v2760
  %v2762 = vpop.f32.mrb[0].mxu0
  %v2763 = vpop.f32.mrb[0].mxu0
  %v2764 = vadd.f32 %v2475, %v2763
  %v2765 = vpop.f32.mrb[0].mxu0
  %2766 = vmatprep.mubr.bf16.mxu0 0
  %2767 = vmatmul.mubr.bf16.gmra.mrb[0].mxu0 %v2054
  %v2768 = vpop.f32.mrb[0].mxu0
  %v2769 = vadd.f32 %v2480, %v2768
  %v2770 = vpop.f32.mrb[0].mxu0
  %v2771 = vpop.f32.mrb[0].mxu0
  %v2772 = vadd.f32 %v2483, %v2771
  %v2773 = vpop.f32.mrb[0].mxu0
  %2774 = vmatprep.mubr.bf16.mxu0 0
  %2775 = vmatmul.mubr.bf16.gmra.mrb[0].mxu0 %v2057
  %v2776 = vpop.f32.mrb[0].mxu0
  %v2777 = vadd.f32 %v2488, %v2776
  %v2778 = vpop.f32.mrb[0].mxu0
  %v2779 = vpop.f32.mrb[0].mxu0
  %v2780 = vadd.f32 %v2491, %v2779
  %v2781 = vpop.f32.mrb[0].mxu0
  %2782 = vmatprep.mubr.bf16.mxu0 0
  %2783 = vmatmul.mubr.bf16.gmra.mrb[0].mxu0 %v2060
  %v2784 = vpop.f32.mrb[0].mxu0
  %v2785 = vadd.f32 %v2496, %v2784
  %v2786 = vpop.f32.mrb[0].mxu0
  %v2787 = vpop.f32.mrb[0].mxu0
  %v2788 = vadd.f32 %v2499, %v2787
  %v2789 = vpop.f32.mrb[0].mxu0
  %2790 = vmatprep.mubr.bf16.mxu0 0
  %2791 = vmatmul.mubr.bf16.gmra.mrb[0].mxu0 %v2063
  %v2792 = vpop.f32.mrb[0].mxu0
  %v2793 = vadd.f32 %v2504, %v2792
  %v2794 = vpop.f32.mrb[0].mxu0
  %v2795 = vpop.f32.mrb[0].mxu0
  %v2796 = vadd.f32 %v2507, %v2795
  %v2797 = vpop.f32.mrb[0].mxu0
  %2798 = vmatprep.mubr.bf16.mxu0 0
  %2799 = vmatmul.mubr.bf16.gmra.mrb[0].mxu0 %v2066
  %v2800 = vpop.f32.mrb[0].mxu0
  %v2801 = vadd.f32 %v2512, %v2800
  %v2802 = vpop.f32.mrb[0].mxu0
  %v2803 = vpop.f32.mrb[0].mxu0
  %v2804 = vadd.f32 %v2515, %v2803
  %v2805 = vpop.f32.mrb[0].mxu0
  %2806 = vmatprep.mubr.bf16.mxu0 0
  %2807 = vmatmul.mubr.bf16.gmra.mrb[0].mxu0 %v2069
  %v2808 = vpop.f32.mrb[0].mxu0
  %v2809 = vadd.f32 %v2520, %v2808
  %v2810 = vpop.f32.mrb[0].mxu0
  %v2811 = vpop.f32.mrb[0].mxu0
  %v2812 = vadd.f32 %v2523, %v2811
  %v2813 = vpop.f32.mrb[0].mxu0
  %2814 = vmatprep.mubr.bf16.mxu0 0
  %2815 = vmatmul.mubr.bf16.gmra.mrb[0].mxu0 %v2072
  %v2816 = vpop.f32.mrb[0].mxu0
  %v2817 = vadd.f32 %v2528, %v2816
  %v2818 = vpop.f32.mrb[0].mxu0
  %v2819 = vpop.f32.mrb[0].mxu0
  %v2820 = vadd.f32 %v2531, %v2819
  %v2821 = vpop.f32.mrb[0].mxu0
  %2822 = vmatprep.mubr.bf16.mxu0 0
  %2823 = vmatmul.mubr.bf16.gmra.mrb[0].mxu0 %v2075
  %v2824 = vpop.f32.mrb[0].mxu0
  %v2825 = vadd.f32 %v2536, %v2824
  %v2826 = vpop.f32.mrb[0].mxu0
  %v2827 = vpop.f32.mrb[0].mxu0
  %v2828 = vadd.f32 %v2539, %v2827
  %v2829 = vpop.f32.mrb[0].mxu0
  %2830 = vmatprep.mubr.bf16.mxu0 0
  %2831 = vmatmul.mubr.bf16.gmra.mrb[0].mxu0 %v2078
  %v2832 = vpop.f32.mrb[0].mxu0
  %v2833 = vadd.f32 %v2544, %v2832
  %v2834 = vpop.f32.mrb[0].mxu0
  %v2835 = vpop.f32.mrb[0].mxu0
  %v2836 = vadd.f32 %v2547, %v2835
  %v2837 = vpop.f32.mrb[0].mxu0
  %2838 = vmatprep.mubr.bf16.mxu0 0
  %2839 = vmatmul.mubr.bf16.gmra.mrb[0].mxu0 %v2081
  %v2840 = vpop.f32.mrb[0].mxu0
  %v2841 = vadd.f32 %v2552, %v2840
  %v2842 = vpop.f32.mrb[0].mxu0
  %v2843 = vpop.f32.mrb[0].mxu0
  %v2844 = vadd.f32 %v2555, %v2843
  %v2845 = vpop.f32.mrb[0].mxu0
  %2846 = vmatprep.mubr.bf16.mxu0 0
  %2847 = vmatmul.mubr.bf16.gmra.mrb[0].mxu0 %v2084
  %v2848 = vpop.f32.mrb[0].mxu0
  %v2849 = vadd.f32 %v2560, %v2848
  %v2850 = vpop.f32.mrb[0].mxu0
  %v2851 = vpop.f32.mrb[0].mxu0
  %v2852 = vadd.f32 %v2563, %v2851
  %v2853 = vpop.f32.mrb[0].mxu0
  %2854 = vdwg.mxu0
  %v2855 = vsel %vm159, %v2601, 0.0
  %v2856 = vsel %vm159, %v2604, 0.0
  %v2857 = vadd.f32 %v2855, %v2856
  %v2858 = vsel %vm159, %v2609, 0.0
  %v2859 = vadd.f32 %v2857, %v2858
  %v2860 = vsel %vm159, %v2612, 0.0
  %v2861 = vadd.f32 %v2859, %v2860
  %v2862 = vsel %vm159, %v2617, 0.0
  %v2863 = vadd.f32 %v2861, %v2862
  %v2864 = vsel %vm159, %v2620, 0.0
  %v2865 = vadd.f32 %v2863, %v2864
  %v2866 = vsel %vm159, %v2625, 0.0
  %v2867 = vadd.f32 %v2865, %v2866
  %v2868 = vsel %vm159, %v2628, 0.0
  %v2869 = vadd.f32 %v2867, %v2868
  %v2870 = vsel %vm159, %v2633, 0.0
  %v2871 = vadd.f32 %v2869, %v2870
  %v2872 = vsel %vm159, %v2636, 0.0
  %v2873 = vadd.f32 %v2871, %v2872
  %v2874 = vsel %vm159, %v2641, 0.0
  %v2875 = vadd.f32 %v2873, %v2874
  %v2876 = vsel %vm159, %v2644, 0.0
  %v2877 = vadd.f32 %v2875, %v2876
  %v2878 = vsel %vm159, %v2649, 0.0
  %v2879 = vadd.f32 %v2877, %v2878
  %v2880 = vsel %vm159, %v2652, 0.0
  %v2881 = vadd.f32 %v2879, %v2880
  %v2882 = vsel %vm159, %v2657, 0.0
  %v2883 = vadd.f32 %v2881, %v2882
  %v2884 = vsel %vm159, %v2660, 0.0
  %v2885 = vadd.f32 %v2883, %v2884
  %v2886 = vsel %vm159, %v2665, 0.0
  %v2887 = vadd.f32 %v2885, %v2886
  %v2888 = vsel %vm159, %v2668, 0.0
  %v2889 = vadd.f32 %v2887, %v2888
  %v2890 = vsel %vm159, %v2673, 0.0
  %v2891 = vadd.f32 %v2889, %v2890
  %v2892 = vsel %vm159, %v2676, 0.0
  %v2893 = vadd.f32 %v2891, %v2892
  %v2894 = vsel %vm159, %v2681, 0.0
  %v2895 = vadd.f32 %v2893, %v2894
  %v2896 = vsel %vm159, %v2684, 0.0
  %v2897 = vadd.f32 %v2895, %v2896
  %v2898 = vsel %vm159, %v2689, 0.0
  %v2899 = vadd.f32 %v2897, %v2898
  %v2900 = vsel %vm159, %v2692, 0.0
  %v2901 = vadd.f32 %v2899, %v2900
  %v2902 = vsel %vm159, %v2697, 0.0
  %v2903 = vadd.f32 %v2901, %v2902
  %v2904 = vsel %vm159, %v2700, 0.0
  %v2905 = vadd.f32 %v2903, %v2904
  %v2906 = vsel %vm159, %v2705, 0.0
  %v2907 = vadd.f32 %v2905, %v2906
  %v2908 = vsel %vm159, %v2708, 0.0
  %v2909 = vadd.f32 %v2907, %v2908
  %v2910 = vsel %vm159, %v2713, 0.0
  %v2911 = vadd.f32 %v2909, %v2910
  %v2912 = vsel %vm159, %v2716, 0.0
  %v2913 = vadd.f32 %v2911, %v2912
  %v2914 = vsel %vm159, %v2721, 0.0
  %v2915 = vadd.f32 %v2913, %v2914
  %v2916 = vsel %vm159, %v2724, 0.0
  %v2917 = vadd.f32 %v2915, %v2916
  %v2918 = vsel %vm159, %v2729, 0.0
  %v2919 = vadd.f32 %v2917, %v2918
  %v2920 = vsel %vm159, %v2732, 0.0
  %v2921 = vadd.f32 %v2919, %v2920
  %v2922 = vsel %vm159, %v2737, 0.0
  %v2923 = vadd.f32 %v2921, %v2922
  %v2924 = vsel %vm159, %v2740, 0.0
  %v2925 = vadd.f32 %v2923, %v2924
  %v2926 = vsel %vm159, %v2745, 0.0
  %v2927 = vadd.f32 %v2925, %v2926
  %v2928 = vsel %vm159, %v2748, 0.0
  %v2929 = vadd.f32 %v2927, %v2928
  %v2930 = vsel %vm159, %v2753, 0.0
  %v2931 = vadd.f32 %v2929, %v2930
  %v2932 = vsel %vm159, %v2756, 0.0
  %v2933 = vadd.f32 %v2931, %v2932
  %v2934 = vsel %vm159, %v2761, 0.0
  %v2935 = vadd.f32 %v2933, %v2934
  %v2936 = vsel %vm159, %v2764, 0.0
  %v2937 = vadd.f32 %v2935, %v2936
  %v2938 = vsel %vm159, %v2769, 0.0
  %v2939 = vadd.f32 %v2937, %v2938
  %v2940 = vsel %vm159, %v2772, 0.0
  %v2941 = vadd.f32 %v2939, %v2940
  %v2942 = vsel %vm159, %v2777, 0.0
  %v2943 = vadd.f32 %v2941, %v2942
  %v2944 = vsel %vm159, %v2780, 0.0
  %v2945 = vadd.f32 %v2943, %v2944
  %v2946 = vsel %vm159, %v2785, 0.0
  %v2947 = vadd.f32 %v2945, %v2946
  %v2948 = vsel %vm159, %v2788, 0.0
  %v2949 = vadd.f32 %v2947, %v2948
  %v2950 = vsel %vm159, %v2793, 0.0
  %v2951 = vadd.f32 %v2949, %v2950
  %v2952 = vsel %vm159, %v2796, 0.0
  %v2953 = vadd.f32 %v2951, %v2952
  %v2954 = vsel %vm159, %v2801, 0.0
  %v2955 = vadd.f32 %v2953, %v2954
  %v2956 = vsel %vm159, %v2804, 0.0
  %v2957 = vadd.f32 %v2955, %v2956
  %v2958 = vsel %vm159, %v2809, 0.0
  %v2959 = vadd.f32 %v2957, %v2958
  %v2960 = vsel %vm159, %v2812, 0.0
  %v2961 = vadd.f32 %v2959, %v2960
  %v2962 = vsel %vm159, %v2817, 0.0
  %v2963 = vadd.f32 %v2961, %v2962
  %v2964 = vsel %vm159, %v2820, 0.0
  %v2965 = vadd.f32 %v2963, %v2964
  %v2966 = vsel %vm159, %v2825, 0.0
  %v2967 = vadd.f32 %v2965, %v2966
  %v2968 = vsel %vm159, %v2828, 0.0
  %v2969 = vadd.f32 %v2967, %v2968
  %v2970 = vsel %vm159, %v2833, 0.0
  %v2971 = vadd.f32 %v2969, %v2970
  %v2972 = vsel %vm159, %v2836, 0.0
  %v2973 = vadd.f32 %v2971, %v2972
  %v2974 = vsel %vm159, %v2841, 0.0
  %v2975 = vadd.f32 %v2973, %v2974
  %v2976 = vsel %vm159, %v2844, 0.0
  %v2977 = vadd.f32 %v2975, %v2976
  %v2978 = vsel %vm159, %v2849, 0.0
  %v2979 = vadd.f32 %v2977, %v2978
  %v2980 = vsel %vm159, %v2852, 0.0
  %v2981 = vadd.f32 %v2979, %v2980
  %v2982 = vrot.slane %v2981, 4
  %v2983 = vadd.f32 %v2981, %v2982
  %v2984 = vrot.slane %v2983, 2
  %v2985 = vadd.f32 %v2983, %v2984
  %v2986 = vrot.slane %v2985, 1
  %v2987 = vadd.f32 %v2985, %v2986
  %v2988 = vmul.f32 %v2987, 0.001953125
  %v2989 = vsub.f32 %v2601, %v2988
  %v2990 = vsub.f32 %v2604, %v2988
  %v2991 = vsub.f32 %v2609, %v2988
  %v2992 = vsub.f32 %v2612, %v2988
  %v2993 = vsub.f32 %v2617, %v2988
  %v2994 = vsub.f32 %v2620, %v2988
  %v2995 = vsub.f32 %v2625, %v2988
  %v2996 = vsub.f32 %v2628, %v2988
  %v2997 = vsub.f32 %v2633, %v2988
  %v2998 = vsub.f32 %v2636, %v2988
  %v2999 = vsub.f32 %v2641, %v2988
  %v3000 = vsub.f32 %v2644, %v2988
  %v3001 = vsub.f32 %v2649, %v2988
  %v3002 = vsub.f32 %v2652, %v2988
  %v3003 = vsub.f32 %v2657, %v2988
  %v3004 = vsub.f32 %v2660, %v2988
  %v3005 = vsub.f32 %v2665, %v2988
  %v3006 = vsub.f32 %v2668, %v2988
  %v3007 = vsub.f32 %v2673, %v2988
  %v3008 = vsub.f32 %v2676, %v2988
  %v3009 = vsub.f32 %v2681, %v2988
  %v3010 = vsub.f32 %v2684, %v2988
  %v3011 = vsub.f32 %v2689, %v2988
  %v3012 = vsub.f32 %v2692, %v2988
  %v3013 = vsub.f32 %v2697, %v2988
  %v3014 = vsub.f32 %v2700, %v2988
  %v3015 = vsub.f32 %v2705, %v2988
  %v3016 = vsub.f32 %v2708, %v2988
  %v3017 = vsub.f32 %v2713, %v2988
  %v3018 = vsub.f32 %v2716, %v2988
  %v3019 = vsub.f32 %v2721, %v2988
  %v3020 = vsub.f32 %v2724, %v2988
  %v3021 = vsub.f32 %v2729, %v2988
  %v3022 = vsub.f32 %v2732, %v2988
  %v3023 = vsub.f32 %v2737, %v2988
  %v3024 = vsub.f32 %v2740, %v2988
  %v3025 = vsub.f32 %v2745, %v2988
  %v3026 = vsub.f32 %v2748, %v2988
  %v3027 = vsub.f32 %v2753, %v2988
  %v3028 = vsub.f32 %v2756, %v2988
  %v3029 = vsub.f32 %v2761, %v2988
  %v3030 = vsub.f32 %v2764, %v2988
  %v3031 = vsub.f32 %v2769, %v2988
  %v3032 = vsub.f32 %v2772, %v2988
  %v3033 = vsub.f32 %v2777, %v2988
  %v3034 = vsub.f32 %v2780, %v2988
  %v3035 = vsub.f32 %v2785, %v2988
  %v3036 = vsub.f32 %v2788, %v2988
  %v3037 = vsub.f32 %v2793, %v2988
  %v3038 = vsub.f32 %v2796, %v2988
  %v3039 = vsub.f32 %v2801, %v2988
  %v3040 = vsub.f32 %v2804, %v2988
  %v3041 = vsub.f32 %v2809, %v2988
  %v3042 = vsub.f32 %v2812, %v2988
  %v3043 = vsub.f32 %v2817, %v2988
  %v3044 = vsub.f32 %v2820, %v2988
  %v3045 = vsub.f32 %v2825, %v2988
  %v3046 = vsub.f32 %v2828, %v2988
  %v3047 = vsub.f32 %v2833, %v2988
  %v3048 = vsub.f32 %v2836, %v2988
  %v3049 = vsub.f32 %v2841, %v2988
  %v3050 = vsub.f32 %v2844, %v2988
  %v3051 = vsub.f32 %v2849, %v2988
  %v3052 = vsub.f32 %v2852, %v2988
  %v3053 = vmul.f32 %v2989, %v2989
  %v3054 = vmul.f32 %v2990, %v2990
  %v3055 = vmul.f32 %v2991, %v2991
  %v3056 = vmul.f32 %v2992, %v2992
  %v3057 = vmul.f32 %v2993, %v2993
  %v3058 = vmul.f32 %v2994, %v2994
  %v3059 = vmul.f32 %v2995, %v2995
  %v3060 = vmul.f32 %v2996, %v2996
  %v3061 = vmul.f32 %v2997, %v2997
  %v3062 = vmul.f32 %v2998, %v2998
  %v3063 = vmul.f32 %v2999, %v2999
  %v3064 = vmul.f32 %v3000, %v3000
  %v3065 = vmul.f32 %v3001, %v3001
  %v3066 = vmul.f32 %v3002, %v3002
  %v3067 = vmul.f32 %v3003, %v3003
  %v3068 = vmul.f32 %v3004, %v3004
  %v3069 = vmul.f32 %v3005, %v3005
  %v3070 = vmul.f32 %v3006, %v3006
  %v3071 = vmul.f32 %v3007, %v3007
  %v3072 = vmul.f32 %v3008, %v3008
  %v3073 = vmul.f32 %v3009, %v3009
  %v3074 = vmul.f32 %v3010, %v3010
  %v3075 = vmul.f32 %v3011, %v3011
  %v3076 = vmul.f32 %v3012, %v3012
  %v3077 = vmul.f32 %v3013, %v3013
  %v3078 = vmul.f32 %v3014, %v3014
  %v3079 = vmul.f32 %v3015, %v3015
  %v3080 = vmul.f32 %v3016, %v3016
  %v3081 = vmul.f32 %v3017, %v3017
  %v3082 = vmul.f32 %v3018, %v3018
  %v3083 = vmul.f32 %v3019, %v3019
  %v3084 = vmul.f32 %v3020, %v3020
  %v3085 = vmul.f32 %v3021, %v3021
  %v3086 = vmul.f32 %v3022, %v3022
  %v3087 = vmul.f32 %v3023, %v3023
  %v3088 = vmul.f32 %v3024, %v3024
  %v3089 = vmul.f32 %v3025, %v3025
  %v3090 = vmul.f32 %v3026, %v3026
  %v3091 = vmul.f32 %v3027, %v3027
  %v3092 = vmul.f32 %v3028, %v3028
  %v3093 = vmul.f32 %v3029, %v3029
  %v3094 = vmul.f32 %v3030, %v3030
  %v3095 = vmul.f32 %v3031, %v3031
  %v3096 = vmul.f32 %v3032, %v3032
  %v3097 = vmul.f32 %v3033, %v3033
  %v3098 = vmul.f32 %v3034, %v3034
  %v3099 = vmul.f32 %v3035, %v3035
  %v3100 = vmul.f32 %v3036, %v3036
  %v3101 = vmul.f32 %v3037, %v3037
  %v3102 = vmul.f32 %v3038, %v3038
  %v3103 = vmul.f32 %v3039, %v3039
  %v3104 = vmul.f32 %v3040, %v3040
  %v3105 = vmul.f32 %v3041, %v3041
  %v3106 = vmul.f32 %v3042, %v3042
  %v3107 = vmul.f32 %v3043, %v3043
  %v3108 = vmul.f32 %v3044, %v3044
  %v3109 = vmul.f32 %v3045, %v3045
  %v3110 = vmul.f32 %v3046, %v3046
  %v3111 = vmul.f32 %v3047, %v3047
  %v3112 = vmul.f32 %v3048, %v3048
  %v3113 = vmul.f32 %v3049, %v3049
  %v3114 = vmul.f32 %v3050, %v3050
  %v3115 = vmul.f32 %v3051, %v3051
  %v3116 = vmul.f32 %v3052, %v3052
  %v3117 = vsel %vm159, %v3053, 0.0
  %v3118 = vsel %vm159, %v3054, 0.0
  %v3119 = vadd.f32 %v3117, %v3118
  %v3120 = vsel %vm159, %v3055, 0.0
  %v3121 = vadd.f32 %v3119, %v3120
  %v3122 = vsel %vm159, %v3056, 0.0
  %v3123 = vadd.f32 %v3121, %v3122
  %v3124 = vsel %vm159, %v3057, 0.0
  %v3125 = vadd.f32 %v3123, %v3124
  %v3126 = vsel %vm159, %v3058, 0.0
  %v3127 = vadd.f32 %v3125, %v3126
  %v3128 = vsel %vm159, %v3059, 0.0
  %v3129 = vadd.f32 %v3127, %v3128
  %v3130 = vsel %vm159, %v3060, 0.0
  %v3131 = vadd.f32 %v3129, %v3130
  %v3132 = vsel %vm159, %v3061, 0.0
  %v3133 = vadd.f32 %v3131, %v3132
  %v3134 = vsel %vm159, %v3062, 0.0
  %v3135 = vadd.f32 %v3133, %v3134
  %v3136 = vsel %vm159, %v3063, 0.0
  %v3137 = vadd.f32 %v3135, %v3136
  %v3138 = vsel %vm159, %v3064, 0.0
  %v3139 = vadd.f32 %v3137, %v3138
  %v3140 = vsel %vm159, %v3065, 0.0
  %v3141 = vadd.f32 %v3139, %v3140
  %v3142 = vsel %vm159, %v3066, 0.0
  %v3143 = vadd.f32 %v3141, %v3142
  %v3144 = vsel %vm159, %v3067, 0.0
  %v3145 = vadd.f32 %v3143, %v3144
  %v3146 = vsel %vm159, %v3068, 0.0
  %v3147 = vadd.f32 %v3145, %v3146
  %v3148 = vsel %vm159, %v3069, 0.0
  %v3149 = vadd.f32 %v3147, %v3148
  %v3150 = vsel %vm159, %v3070, 0.0
  %v3151 = vadd.f32 %v3149, %v3150
  %v3152 = vsel %vm159, %v3071, 0.0
  %v3153 = vadd.f32 %v3151, %v3152
  %v3154 = vsel %vm159, %v3072, 0.0
  %v3155 = vadd.f32 %v3153, %v3154
  %v3156 = vsel %vm159, %v3073, 0.0
  %v3157 = vadd.f32 %v3155, %v3156
  %v3158 = vsel %vm159, %v3074, 0.0
  %v3159 = vadd.f32 %v3157, %v3158
  %v3160 = vsel %vm159, %v3075, 0.0
  %v3161 = vadd.f32 %v3159, %v3160
  %v3162 = vsel %vm159, %v3076, 0.0
  %v3163 = vadd.f32 %v3161, %v3162
  %v3164 = vsel %vm159, %v3077, 0.0
  %v3165 = vadd.f32 %v3163, %v3164
  %v3166 = vsel %vm159, %v3078, 0.0
  %v3167 = vadd.f32 %v3165, %v3166
  %v3168 = vsel %vm159, %v3079, 0.0
  %v3169 = vadd.f32 %v3167, %v3168
  %v3170 = vsel %vm159, %v3080, 0.0
  %v3171 = vadd.f32 %v3169, %v3170
  %v3172 = vsel %vm159, %v3081, 0.0
  %v3173 = vadd.f32 %v3171, %v3172
  %v3174 = vsel %vm159, %v3082, 0.0
  %v3175 = vadd.f32 %v3173, %v3174
  %v3176 = vsel %vm159, %v3083, 0.0
  %v3177 = vadd.f32 %v3175, %v3176
  %v3178 = vsel %vm159, %v3084, 0.0
  %v3179 = vadd.f32 %v3177, %v3178
  %v3180 = vsel %vm159, %v3085, 0.0
  %v3181 = vadd.f32 %v3179, %v3180
  %v3182 = vsel %vm159, %v3086, 0.0
  %v3183 = vadd.f32 %v3181, %v3182
  %v3184 = vsel %vm159, %v3087, 0.0
  %v3185 = vadd.f32 %v3183, %v3184
  %v3186 = vsel %vm159, %v3088, 0.0
  %v3187 = vadd.f32 %v3185, %v3186
  %v3188 = vsel %vm159, %v3089, 0.0
  %v3189 = vadd.f32 %v3187, %v3188
  %v3190 = vsel %vm159, %v3090, 0.0
  %v3191 = vadd.f32 %v3189, %v3190
  %v3192 = vsel %vm159, %v3091, 0.0
  %v3193 = vadd.f32 %v3191, %v3192
  %v3194 = vsel %vm159, %v3092, 0.0
  %v3195 = vadd.f32 %v3193, %v3194
  %v3196 = vsel %vm159, %v3093, 0.0
  %v3197 = vadd.f32 %v3195, %v3196
  %v3198 = vsel %vm159, %v3094, 0.0
  %v3199 = vadd.f32 %v3197, %v3198
  %v3200 = vsel %vm159, %v3095, 0.0
  %v3201 = vadd.f32 %v3199, %v3200
  %v3202 = vsel %vm159, %v3096, 0.0
  %v3203 = vadd.f32 %v3201, %v3202
  %v3204 = vsel %vm159, %v3097, 0.0
  %v3205 = vadd.f32 %v3203, %v3204
  %v3206 = vsel %vm159, %v3098, 0.0
  %v3207 = vadd.f32 %v3205, %v3206
  %v3208 = vsel %vm159, %v3099, 0.0
  %v3209 = vadd.f32 %v3207, %v3208
  %v3210 = vsel %vm159, %v3100, 0.0
  %v3211 = vadd.f32 %v3209, %v3210
  %v3212 = vsel %vm159, %v3101, 0.0
  %v3213 = vadd.f32 %v3211, %v3212
  %v3214 = vsel %vm159, %v3102, 0.0
  %v3215 = vadd.f32 %v3213, %v3214
  %v3216 = vsel %vm159, %v3103, 0.0
  %v3217 = vadd.f32 %v3215, %v3216
  %v3218 = vsel %vm159, %v3104, 0.0
  %v3219 = vadd.f32 %v3217, %v3218
  %v3220 = vsel %vm159, %v3105, 0.0
  %v3221 = vadd.f32 %v3219, %v3220
  %v3222 = vsel %vm159, %v3106, 0.0
  %v3223 = vadd.f32 %v3221, %v3222
  %v3224 = vsel %vm159, %v3107, 0.0
  %v3225 = vadd.f32 %v3223, %v3224
  %v3226 = vsel %vm159, %v3108, 0.0
  %v3227 = vadd.f32 %v3225, %v3226
  %v3228 = vsel %vm159, %v3109, 0.0
  %v3229 = vadd.f32 %v3227, %v3228
  %v3230 = vsel %vm159, %v3110, 0.0
  %v3231 = vadd.f32 %v3229, %v3230
  %v3232 = vsel %vm159, %v3111, 0.0
  %v3233 = vadd.f32 %v3231, %v3232
  %v3234 = vsel %vm159, %v3112, 0.0
  %v3235 = vadd.f32 %v3233, %v3234
  %v3236 = vsel %vm159, %v3113, 0.0
  %v3237 = vadd.f32 %v3235, %v3236
  %v3238 = vsel %vm159, %v3114, 0.0
  %v3239 = vadd.f32 %v3237, %v3238
  %v3240 = vsel %vm159, %v3115, 0.0
  %v3241 = vadd.f32 %v3239, %v3240
  %v3242 = vsel %vm159, %v3116, 0.0
  %v3243 = vadd.f32 %v3241, %v3242
  %v3244 = vrot.slane %v3243, 4
  %v3245 = vadd.f32 %v3243, %v3244
  %v3246 = vrot.slane %v3245, 2
  %v3247 = vadd.f32 %v3245, %v3246
  %v3248 = vrot.slane %v3247, 1
  %v3249 = vadd.f32 %v3247, %v3248
  %v3250 = vmul.f32 %v3249, 0.001953125
  %v3251 = vadd.f32 %v3250, 1e-05
  %v3252 = vrsqrt.pop %v3251
  %v3253 = vmul.f32 %v2989, %v3252
  %v3254 = vmul.f32 %v2990, %v3252
  %v3255 = vmul.f32 %v2991, %v3252
  %v3256 = vmul.f32 %v2992, %v3252
  %v3257 = vmul.f32 %v2993, %v3252
  %v3258 = vmul.f32 %v2994, %v3252
  %v3259 = vmul.f32 %v2995, %v3252
  %v3260 = vmul.f32 %v2996, %v3252
  %v3261 = vmul.f32 %v2997, %v3252
  %v3262 = vmul.f32 %v2998, %v3252
  %v3263 = vmul.f32 %v2999, %v3252
  %v3264 = vmul.f32 %v3000, %v3252
  %v3265 = vmul.f32 %v3001, %v3252
  %v3266 = vmul.f32 %v3002, %v3252
  %v3267 = vmul.f32 %v3003, %v3252
  %v3268 = vmul.f32 %v3004, %v3252
  %v3269 = vmul.f32 %v3005, %v3252
  %v3270 = vmul.f32 %v3006, %v3252
  %v3271 = vmul.f32 %v3007, %v3252
  %v3272 = vmul.f32 %v3008, %v3252
  %v3273 = vmul.f32 %v3009, %v3252
  %v3274 = vmul.f32 %v3010, %v3252
  %v3275 = vmul.f32 %v3011, %v3252
  %v3276 = vmul.f32 %v3012, %v3252
  %v3277 = vmul.f32 %v3013, %v3252
  %v3278 = vmul.f32 %v3014, %v3252
  %v3279 = vmul.f32 %v3015, %v3252
  %v3280 = vmul.f32 %v3016, %v3252
  %v3281 = vmul.f32 %v3017, %v3252
  %v3282 = vmul.f32 %v3018, %v3252
  %v3283 = vmul.f32 %v3019, %v3252
  %v3284 = vmul.f32 %v3020, %v3252
  %v3285 = vmul.f32 %v3021, %v3252
  %v3286 = vmul.f32 %v3022, %v3252
  %v3287 = vmul.f32 %v3023, %v3252
  %v3288 = vmul.f32 %v3024, %v3252
  %v3289 = vmul.f32 %v3025, %v3252
  %v3290 = vmul.f32 %v3026, %v3252
  %v3291 = vmul.f32 %v3027, %v3252
  %v3292 = vmul.f32 %v3028, %v3252
  %v3293 = vmul.f32 %v3029, %v3252
  %v3294 = vmul.f32 %v3030, %v3252
  %v3295 = vmul.f32 %v3031, %v3252
  %v3296 = vmul.f32 %v3032, %v3252
  %v3297 = vmul.f32 %v3033, %v3252
  %v3298 = vmul.f32 %v3034, %v3252
  %v3299 = vmul.f32 %v3035, %v3252
  %v3300 = vmul.f32 %v3036, %v3252
  %v3301 = vmul.f32 %v3037, %v3252
  %v3302 = vmul.f32 %v3038, %v3252
  %v3303 = vmul.f32 %v3039, %v3252
  %v3304 = vmul.f32 %v3040, %v3252
  %v3305 = vmul.f32 %v3041, %v3252
  %v3306 = vmul.f32 %v3042, %v3252
  %v3307 = vmul.f32 %v3043, %v3252
  %v3308 = vmul.f32 %v3044, %v3252
  %v3309 = vmul.f32 %v3045, %v3252
  %v3310 = vmul.f32 %v3046, %v3252
  %v3311 = vmul.f32 %v3047, %v3252
  %v3312 = vmul.f32 %v3048, %v3252
  %v3313 = vmul.f32 %v3049, %v3252
  %v3314 = vmul.f32 %v3050, %v3252
  %v3315 = vmul.f32 %v3051, %v3252
  %v3316 = vmul.f32 %v3052, %v3252
  %v3317 = vld [vmem:[%s4] sm:$0x1]
  %v3319 = vlaneseq
  %v3320 = vshrl.u32 %v3319, 7
  %v3321 = vsub.s32 0, %v3320
  %v3322 = vrot.slane %v3317, %v3321
  %v3324 = vmul.f32 %v3253, %v3322
  %v3325 = vmul.f32 %v3254, %v3322
  %v3326 = vmul.f32 %v3255, %v3322
  %v3327 = vmul.f32 %v3256, %v3322
  %v3328 = vmul.f32 %v3257, %v3322
  %v3329 = vmul.f32 %v3258, %v3322
  %v3330 = vmul.f32 %v3259, %v3322
  %v3331 = vmul.f32 %v3260, %v3322
  %v3332 = vmul.f32 %v3261, %v3322
  %v3333 = vmul.f32 %v3262, %v3322
  %v3334 = vmul.f32 %v3263, %v3322
  %v3335 = vmul.f32 %v3264, %v3322
  %v3336 = vmul.f32 %v3265, %v3322
  %v3337 = vmul.f32 %v3266, %v3322
  %v3338 = vmul.f32 %v3267, %v3322
  %v3339 = vmul.f32 %v3268, %v3322
  %v3340 = vmul.f32 %v3269, %v3322
  %v3341 = vmul.f32 %v3270, %v3322
  %v3342 = vmul.f32 %v3271, %v3322
  %v3343 = vmul.f32 %v3272, %v3322
  %v3344 = vmul.f32 %v3273, %v3322
  %v3345 = vmul.f32 %v3274, %v3322
  %v3346 = vmul.f32 %v3275, %v3322
  %v3347 = vmul.f32 %v3276, %v3322
  %v3348 = vmul.f32 %v3277, %v3322
  %v3349 = vmul.f32 %v3278, %v3322
  %v3350 = vmul.f32 %v3279, %v3322
  %v3351 = vmul.f32 %v3280, %v3322
  %v3352 = vmul.f32 %v3281, %v3322
  %v3353 = vmul.f32 %v3282, %v3322
  %v3354 = vmul.f32 %v3283, %v3322
  %v3355 = vmul.f32 %v3284, %v3322
  %v3356 = vmul.f32 %v3285, %v3322
  %v3357 = vmul.f32 %v3286, %v3322
  %v3358 = vmul.f32 %v3287, %v3322
  %v3359 = vmul.f32 %v3288, %v3322
  %v3360 = vmul.f32 %v3289, %v3322
  %v3361 = vmul.f32 %v3290, %v3322
  %v3362 = vmul.f32 %v3291, %v3322
  %v3363 = vmul.f32 %v3292, %v3322
  %v3364 = vmul.f32 %v3293, %v3322
  %v3365 = vmul.f32 %v3294, %v3322
  %v3366 = vmul.f32 %v3295, %v3322
  %v3367 = vmul.f32 %v3296, %v3322
  %v3368 = vmul.f32 %v3297, %v3322
  %v3369 = vmul.f32 %v3298, %v3322
  %v3370 = vmul.f32 %v3299, %v3322
  %v3371 = vmul.f32 %v3300, %v3322
  %v3372 = vmul.f32 %v3301, %v3322
  %v3373 = vmul.f32 %v3302, %v3322
  %v3374 = vmul.f32 %v3303, %v3322
  %v3375 = vmul.f32 %v3304, %v3322
  %v3376 = vmul.f32 %v3305, %v3322
  %v3377 = vmul.f32 %v3306, %v3322
  %v3378 = vmul.f32 %v3307, %v3322
  %v3379 = vmul.f32 %v3308, %v3322
  %v3380 = vmul.f32 %v3309, %v3322
  %v3381 = vmul.f32 %v3310, %v3322
  %v3382 = vmul.f32 %v3311, %v3322
  %v3383 = vmul.f32 %v3312, %v3322
  %v3384 = vmul.f32 %v3313, %v3322
  %v3385 = vmul.f32 %v3314, %v3322
  %v3386 = vmul.f32 %v3315, %v3322
  %v3387 = vmul.f32 %v3316, %v3322
  %v3388 = vld [vmem:[%s5] sm:$0x1]
  %v3390 = vlaneseq
  %v3391 = vshrl.u32 %v3390, 7
  %v3392 = vsub.s32 0, %v3391
  %v3393 = vrot.slane %v3388, %v3392
  %v3395 = vadd.f32 %v3324, %v3393
  %v3396 = vadd.f32 %v3325, %v3393
  %v3397 = vadd.f32 %v3326, %v3393
  %v3398 = vadd.f32 %v3327, %v3393
  %v3399 = vadd.f32 %v3328, %v3393
  %v3400 = vadd.f32 %v3329, %v3393
  %v3401 = vadd.f32 %v3330, %v3393
  %v3402 = vadd.f32 %v3331, %v3393
  %v3403 = vadd.f32 %v3332, %v3393
  %v3404 = vadd.f32 %v3333, %v3393
  %v3405 = vadd.f32 %v3334, %v3393
  %v3406 = vadd.f32 %v3335, %v3393
  %v3407 = vadd.f32 %v3336, %v3393
  %v3408 = vadd.f32 %v3337, %v3393
  %v3409 = vadd.f32 %v3338, %v3393
  %v3410 = vadd.f32 %v3339, %v3393
  %v3411 = vadd.f32 %v3340, %v3393
  %v3412 = vadd.f32 %v3341, %v3393
  %v3413 = vadd.f32 %v3342, %v3393
  %v3414 = vadd.f32 %v3343, %v3393
  %v3415 = vadd.f32 %v3344, %v3393
  %v3416 = vadd.f32 %v3345, %v3393
  %v3417 = vadd.f32 %v3346, %v3393
  %v3418 = vadd.f32 %v3347, %v3393
  %v3419 = vadd.f32 %v3348, %v3393
  %v3420 = vadd.f32 %v3349, %v3393
  %v3421 = vadd.f32 %v3350, %v3393
  %v3422 = vadd.f32 %v3351, %v3393
  %v3423 = vadd.f32 %v3352, %v3393
  %v3424 = vadd.f32 %v3353, %v3393
  %v3425 = vadd.f32 %v3354, %v3393
  %v3426 = vadd.f32 %v3355, %v3393
  %v3427 = vadd.f32 %v3356, %v3393
  %v3428 = vadd.f32 %v3357, %v3393
  %v3429 = vadd.f32 %v3358, %v3393
  %v3430 = vadd.f32 %v3359, %v3393
  %v3431 = vadd.f32 %v3360, %v3393
  %v3432 = vadd.f32 %v3361, %v3393
  %v3433 = vadd.f32 %v3362, %v3393
  %v3434 = vadd.f32 %v3363, %v3393
  %v3435 = vadd.f32 %v3364, %v3393
  %v3436 = vadd.f32 %v3365, %v3393
  %v3437 = vadd.f32 %v3366, %v3393
  %v3438 = vadd.f32 %v3367, %v3393
  %v3439 = vadd.f32 %v3368, %v3393
  %v3440 = vadd.f32 %v3369, %v3393
  %v3441 = vadd.f32 %v3370, %v3393
  %v3442 = vadd.f32 %v3371, %v3393
  %v3443 = vadd.f32 %v3372, %v3393
  %v3444 = vadd.f32 %v3373, %v3393
  %v3445 = vadd.f32 %v3374, %v3393
  %v3446 = vadd.f32 %v3375, %v3393
  %v3447 = vadd.f32 %v3376, %v3393
  %v3448 = vadd.f32 %v3377, %v3393
  %v3449 = vadd.f32 %v3378, %v3393
  %v3450 = vadd.f32 %v3379, %v3393
  %v3451 = vadd.f32 %v3380, %v3393
  %v3452 = vadd.f32 %v3381, %v3393
  %v3453 = vadd.f32 %v3382, %v3393
  %v3454 = vadd.f32 %v3383, %v3393
  %v3455 = vadd.f32 %v3384, %v3393
  %v3456 = vadd.f32 %v3385, %v3393
  %v3457 = vadd.f32 %v3386, %v3393
  %v3458 = vadd.f32 %v3387, %v3393
  %v3459 = vmax.f32 %v3395, 0.0
  %v3460 = vmax.f32 %v3396, 0.0
  %v3461 = vmax.f32 %v3397, 0.0
  %v3462 = vmax.f32 %v3398, 0.0
  %v3463 = vmax.f32 %v3399, 0.0
  %v3464 = vmax.f32 %v3400, 0.0
  %v3465 = vmax.f32 %v3401, 0.0
  %v3466 = vmax.f32 %v3402, 0.0
  %v3467 = vmax.f32 %v3403, 0.0
  %v3468 = vmax.f32 %v3404, 0.0
  %v3469 = vmax.f32 %v3405, 0.0
  %v3470 = vmax.f32 %v3406, 0.0
  %v3471 = vmax.f32 %v3407, 0.0
  %v3472 = vmax.f32 %v3408, 0.0
  %v3473 = vmax.f32 %v3409, 0.0
  %v3474 = vmax.f32 %v3410, 0.0
  %v3475 = vmax.f32 %v3411, 0.0
  %v3476 = vmax.f32 %v3412, 0.0
  %v3477 = vmax.f32 %v3413, 0.0
  %v3478 = vmax.f32 %v3414, 0.0
  %v3479 = vmax.f32 %v3415, 0.0
  %v3480 = vmax.f32 %v3416, 0.0
  %v3481 = vmax.f32 %v3417, 0.0
  %v3482 = vmax.f32 %v3418, 0.0
  %v3483 = vmax.f32 %v3419, 0.0
  %v3484 = vmax.f32 %v3420, 0.0
  %v3485 = vmax.f32 %v3421, 0.0
  %v3486 = vmax.f32 %v3422, 0.0
  %v3487 = vmax.f32 %v3423, 0.0
  %v3488 = vmax.f32 %v3424, 0.0
  %v3489 = vmax.f32 %v3425, 0.0
  %v3490 = vmax.f32 %v3426, 0.0
  %v3491 = vmax.f32 %v3427, 0.0
  %v3492 = vmax.f32 %v3428, 0.0
  %v3493 = vmax.f32 %v3429, 0.0
  %v3494 = vmax.f32 %v3430, 0.0
  %v3495 = vmax.f32 %v3431, 0.0
  %v3496 = vmax.f32 %v3432, 0.0
  %v3497 = vmax.f32 %v3433, 0.0
  %v3498 = vmax.f32 %v3434, 0.0
  %v3499 = vmax.f32 %v3435, 0.0
  %v3500 = vmax.f32 %v3436, 0.0
  %v3501 = vmax.f32 %v3437, 0.0
  %v3502 = vmax.f32 %v3438, 0.0
  %v3503 = vmax.f32 %v3439, 0.0
  %v3504 = vmax.f32 %v3440, 0.0
  %v3505 = vmax.f32 %v3441, 0.0
  %v3506 = vmax.f32 %v3442, 0.0
  %v3507 = vmax.f32 %v3443, 0.0
  %v3508 = vmax.f32 %v3444, 0.0
  %v3509 = vmax.f32 %v3445, 0.0
  %v3510 = vmax.f32 %v3446, 0.0
  %v3511 = vmax.f32 %v3447, 0.0
  %v3512 = vmax.f32 %v3448, 0.0
  %v3513 = vmax.f32 %v3449, 0.0
  %v3514 = vmax.f32 %v3450, 0.0
  %v3515 = vmax.f32 %v3451, 0.0
  %v3516 = vmax.f32 %v3452, 0.0
  %v3517 = vmax.f32 %v3453, 0.0
  %v3518 = vmax.f32 %v3454, 0.0
  %v3519 = vmax.f32 %v3455, 0.0
  %v3520 = vmax.f32 %v3456, 0.0
  %v3521 = vmax.f32 %v3457, 0.0
  %v3522 = vmax.f32 %v3458, 0.0
  %3523 = vst.msk [vmem:[#allocation3] sm:$0xff] %vm159, 0.0
  %3524 = vst.msk [vmem:[#allocation3 + $0x8] sm:$0xff] %vm159, 0.0
  %vm3525 = vcmask 254976
  %3526 = vst.msk [vmem:[#allocation3 + $0x10] sm:$0x3] %vm3525, 0.0
  %3527 = vst.msk [vmem:[#allocation3 + $0x1b0] sm:$0xff] %vm159, 0.0
  %3528 = vst.msk [vmem:[#allocation3 + $0x1b8] sm:$0xff] %vm159, 0.0
  %3529 = vst.msk [vmem:[#allocation3 + $0x1c0] sm:$0x3] %vm3525, 0.0
  %s3530 = scalar_lea.vmem [#allocation3], 408
  %3531 = vst.msk [vmem:[%s3530] sm:$0xff] %vm159, 0.0
  %3532 = vst.msk [vmem:[%s3530 + $0x8] sm:$0xff] %vm159, 0.0
  %3533 = vst.msk [vmem:[%s3530 + $0x10] sm:$0x3] %vm3525, 0.0
  %3534 = vst.msk [vmem:[%s3530 + $0x1b0] sm:$0xff] %vm159, 0.0
  %3535 = vst.msk [vmem:[%s3530 + $0x1b8] sm:$0xff] %vm159, 0.0
  %3536 = vst.msk [vmem:[%s3530 + $0x1c0] sm:$0x3] %vm3525, 0.0
  %vm3537 = vcmask 253952
  %3538 = vst.msk [vmem:[#allocation3] sm:$0x1] %vm3537, 0.0
  %3539 = vst.msk [vmem:[#allocation3 + $0x18] sm:$0x1] %vm3537, 0.0
  %3540 = vst.msk [vmem:[#allocation3 + $0x30] sm:$0x1] %vm3537, 0.0
  %3541 = vst.msk [vmem:[#allocation3 + $0x48] sm:$0x1] %vm3537, 0.0
  %3542 = vst.msk [vmem:[#allocation3 + $0x60] sm:$0x1] %vm3537, 0.0
  %3543 = vst.msk [vmem:[#allocation3 + $0x78] sm:$0x1] %vm3537, 0.0
  %3544 = vst.msk [vmem:[#allocation3 + $0x90] sm:$0x1] %vm3537, 0.0
  %3545 = vst.msk [vmem:[#allocation3 + $0xa8] sm:$0x1] %vm3537, 0.0
  %3546 = vst.msk [vmem:[#allocation3 + $0xc0] sm:$0x1] %vm3537, 0.0
  %3547 = vst.msk [vmem:[#allocation3 + $0xd8] sm:$0x1] %vm3537, 0.0
  %3548 = vst.msk [vmem:[#allocation3 + $0xf0] sm:$0x1] %vm3537, 0.0
  %3549 = vst.msk [vmem:[#allocation3 + $0x108] sm:$0x1] %vm3537, 0.0
  %3550 = vst.msk [vmem:[#allocation3 + $0x120] sm:$0x1] %vm3537, 0.0
  %3551 = vst.msk [vmem:[#allocation3 + $0x138] sm:$0x1] %vm3537, 0.0
  %3552 = vst.msk [vmem:[#allocation3 + $0x150] sm:$0x1] %vm3537, 0.0
  %3553 = vst.msk [vmem:[#allocation3 + $0x168] sm:$0x1] %vm3537, 0.0
  %3554 = vst.msk [vmem:[#allocation3 + $0x180] sm:$0x1] %vm3537, 0.0
  %3555 = vst.msk [vmem:[#allocation3 + $0x198] sm:$0x1] %vm3537, 0.0
  %3556 = vst.msk [vmem:[#allocation3 + $0x1b0] sm:$0x1] %vm3537, 0.0
  %3557 = vst.msk [vmem:[#allocation3 + $0x1c8] sm:$0x1] %vm3537, 0.0
  %3558 = vst.msk [vmem:[#allocation3 + $0x1e0] sm:$0x1] %vm3537, 0.0
  %3559 = vst.msk [vmem:[#allocation3 + $0x1f8] sm:$0x1] %vm3537, 0.0
  %3560 = vst.msk [vmem:[#allocation3 + $0x210] sm:$0x1] %vm3537, 0.0
  %3561 = vst.msk [vmem:[#allocation3 + $0x228] sm:$0x1] %vm3537, 0.0
  %3562 = vst.msk [vmem:[#allocation3 + $0x240] sm:$0x1] %vm3537, 0.0
  %3563 = vst.msk [vmem:[#allocation3 + $0x258] sm:$0x1] %vm3537, 0.0
  %3564 = vst.msk [vmem:[#allocation3 + $0x270] sm:$0x1] %vm3537, 0.0
  %3565 = vst.msk [vmem:[#allocation3 + $0x288] sm:$0x1] %vm3537, 0.0
  %3566 = vst.msk [vmem:[#allocation3 + $0x2a0] sm:$0x1] %vm3537, 0.0
  %3567 = vst.msk [vmem:[#allocation3 + $0x2b8] sm:$0x1] %vm3537, 0.0
  %3568 = vst.msk [vmem:[#allocation3 + $0x2d0] sm:$0x1] %vm3537, 0.0
  %3569 = vst.msk [vmem:[#allocation3 + $0x2e8] sm:$0x1] %vm3537, 0.0
  %3570 = vst.msk [vmem:[#allocation3 + $0x300] sm:$0x1] %vm3537, 0.0
  %3571 = vst.msk [vmem:[#allocation3 + $0x318] sm:$0x1] %vm3537, 0.0
  %3572 = vst.msk [vmem:[#allocation3 + $0x330] sm:$0x1] %vm3537, 0.0
  %3573 = vst.msk [vmem:[#allocation3 + $0x348] sm:$0x1] %vm3537, 0.0
  %3574 = vst.msk [vmem:[#allocation3 + $0x11] sm:$0x1] %vm3537, 0.0
  %3575 = vst.msk [vmem:[#allocation3 + $0x29] sm:$0x1] %vm3537, 0.0
  %3576 = vst.msk [vmem:[#allocation3 + $0x41] sm:$0x1] %vm3537, 0.0
  %3577 = vst.msk [vmem:[#allocation3 + $0x59] sm:$0x1] %vm3537, 0.0
  %3578 = vst.msk [vmem:[#allocation3 + $0x71] sm:$0x1] %vm3537, 0.0
  %3579 = vst.msk [vmem:[#allocation3 + $0x89] sm:$0x1] %vm3537, 0.0
  %3580 = vst.msk [vmem:[#allocation3 + $0xa1] sm:$0x1] %vm3537, 0.0
  %3581 = vst.msk [vmem:[#allocation3 + $0xb9] sm:$0x1] %vm3537, 0.0
  %3582 = vst.msk [vmem:[#allocation3 + $0xd1] sm:$0x1] %vm3537, 0.0
  %3583 = vst.msk [vmem:[#allocation3 + $0xe9] sm:$0x1] %vm3537, 0.0
  %3584 = vst.msk [vmem:[#allocation3 + $0x101] sm:$0x1] %vm3537, 0.0
  %3585 = vst.msk [vmem:[#allocation3 + $0x119] sm:$0x1] %vm3537, 0.0
  %3586 = vst.msk [vmem:[#allocation3 + $0x131] sm:$0x1] %vm3537, 0.0
  %3587 = vst.msk [vmem:[#allocation3 + $0x149] sm:$0x1] %vm3537, 0.0
  %3588 = vst.msk [vmem:[#allocation3 + $0x161] sm:$0x1] %vm3537, 0.0
  %3589 = vst.msk [vmem:[#allocation3 + $0x179] sm:$0x1] %vm3537, 0.0
  %3590 = vst.msk [vmem:[#allocation3 + $0x191] sm:$0x1] %vm3537, 0.0
  %3591 = vst.msk [vmem:[#allocation3 + $0x1a9] sm:$0x1] %vm3537, 0.0
  %3592 = vst.msk [vmem:[#allocation3 + $0x1c1] sm:$0x1] %vm3537, 0.0
  %3593 = vst.msk [vmem:[#allocation3 + $0x1d9] sm:$0x1] %vm3537, 0.0
  %3594 = vst.msk [vmem:[#allocation3 + $0x1f1] sm:$0x1] %vm3537, 0.0
  %3595 = vst.msk [vmem:[#allocation3 + $0x209] sm:$0x1] %vm3537, 0.0
  %3596 = vst.msk [vmem:[#allocation3 + $0x221] sm:$0x1] %vm3537, 0.0
  %3597 = vst.msk [vmem:[#allocation3 + $0x239] sm:$0x1] %vm3537, 0.0
  %3598 = vst.msk [vmem:[#allocation3 + $0x251] sm:$0x1] %vm3537, 0.0
  %3599 = vst.msk [vmem:[#allocation3 + $0x269] sm:$0x1] %vm3537, 0.0
  %3600 = vst.msk [vmem:[#allocation3 + $0x281] sm:$0x1] %vm3537, 0.0
  %3601 = vst.msk [vmem:[#allocation3 + $0x299] sm:$0x1] %vm3537, 0.0
  %3602 = vst.msk [vmem:[#allocation3 + $0x2b1] sm:$0x1] %vm3537, 0.0
  %3603 = vst.msk [vmem:[#allocation3 + $0x2c9] sm:$0x1] %vm3537, 0.0
  %3604 = vst.msk [vmem:[#allocation3 + $0x2e1] sm:$0x1] %vm3537, 0.0
  %3605 = vst.msk [vmem:[#allocation3 + $0x2f9] sm:$0x1] %vm3537, 0.0
  %3606 = vst.msk [vmem:[#allocation3 + $0x311] sm:$0x1] %vm3537, 0.0
  %3607 = vst.msk [vmem:[#allocation3 + $0x329] sm:$0x1] %vm3537, 0.0
  %3608 = vst.msk [vmem:[#allocation3 + $0x341] sm:$0x1] %vm3537, 0.0
  %3609 = vst.msk [vmem:[#allocation3 + $0x359] sm:$0x1] %vm3537, 0.0
  %s3610 = scalar_lea.vmem [#allocation3], 24
  %3611 = vst.msk [vmem:[%s3610 + $0x1] sm:$0xff] %vm159, %v3459
  %3612 = vst.msk [vmem:[%s3610 + $0x9] sm:$0xff] %vm159, %v3460
  %3613 = vst.msk [vmem:[%s3610 + $0x19] sm:$0xff] %vm159, %v3461
  %3614 = vst.msk [vmem:[%s3610 + $0x21] sm:$0xff] %vm159, %v3462
  %3615 = vst.msk [vmem:[%s3610 + $0x31] sm:$0xff] %vm159, %v3463
  %3616 = vst.msk [vmem:[%s3610 + $0x39] sm:$0xff] %vm159, %v3464
  %3617 = vst.msk [vmem:[%s3610 + $0x49] sm:$0xff] %vm159, %v3465
  %3618 = vst.msk [vmem:[%s3610 + $0x51] sm:$0xff] %vm159, %v3466
  %3619 = vst.msk [vmem:[%s3610 + $0x61] sm:$0xff] %vm159, %v3467
  %3620 = vst.msk [vmem:[%s3610 + $0x69] sm:$0xff] %vm159, %v3468
  %3621 = vst.msk [vmem:[%s3610 + $0x79] sm:$0xff] %vm159, %v3469
  %3622 = vst.msk [vmem:[%s3610 + $0x81] sm:$0xff] %vm159, %v3470
  %3623 = vst.msk [vmem:[%s3610 + $0x91] sm:$0xff] %vm159, %v3471
  %3624 = vst.msk [vmem:[%s3610 + $0x99] sm:$0xff] %vm159, %v3472
  %3625 = vst.msk [vmem:[%s3610 + $0xa9] sm:$0xff] %vm159, %v3473
  %3626 = vst.msk [vmem:[%s3610 + $0xb1] sm:$0xff] %vm159, %v3474
  %3627 = vst.msk [vmem:[%s3610 + $0xc1] sm:$0xff] %vm159, %v3475
  %3628 = vst.msk [vmem:[%s3610 + $0xc9] sm:$0xff] %vm159, %v3476
  %3629 = vst.msk [vmem:[%s3610 + $0xd9] sm:$0xff] %vm159, %v3477
  %3630 = vst.msk [vmem:[%s3610 + $0xe1] sm:$0xff] %vm159, %v3478
  %3631 = vst.msk [vmem:[%s3610 + $0xf1] sm:$0xff] %vm159, %v3479
  %3632 = vst.msk [vmem:[%s3610 + $0xf9] sm:$0xff] %vm159, %v3480
  %3633 = vst.msk [vmem:[%s3610 + $0x109] sm:$0xff] %vm159, %v3481
  %3634 = vst.msk [vmem:[%s3610 + $0x111] sm:$0xff] %vm159, %v3482
  %3635 = vst.msk [vmem:[%s3610 + $0x121] sm:$0xff] %vm159, %v3483
  %3636 = vst.msk [vmem:[%s3610 + $0x129] sm:$0xff] %vm159, %v3484
  %3637 = vst.msk [vmem:[%s3610 + $0x139] sm:$0xff] %vm159, %v3485
  %3638 = vst.msk [vmem:[%s3610 + $0x141] sm:$0xff] %vm159, %v3486
  %3639 = vst.msk [vmem:[%s3610 + $0x151] sm:$0xff] %vm159, %v3487
  %3640 = vst.msk [vmem:[%s3610 + $0x159] sm:$0xff] %vm159, %v3488
  %3641 = vst.msk [vmem:[%s3610 + $0x169] sm:$0xff] %vm159, %v3489
  %3642 = vst.msk [vmem:[%s3610 + $0x171] sm:$0xff] %vm159, %v3490
  %3643 = vst.msk [vmem:[%s3610 + $0x1b1] sm:$0xff] %vm159, %v3491
  %3644 = vst.msk [vmem:[%s3610 + $0x1b9] sm:$0xff] %vm159, %v3492
  %3645 = vst.msk [vmem:[%s3610 + $0x1c9] sm:$0xff] %vm159, %v3493
  %3646 = vst.msk [vmem:[%s3610 + $0x1d1] sm:$0xff] %vm159, %v3494
  %3647 = vst.msk [vmem:[%s3610 + $0x1e1] sm:$0xff] %vm159, %v3495
  %3648 = vst.msk [vmem:[%s3610 + $0x1e9] sm:$0xff] %vm159, %v3496
  %3649 = vst.msk [vmem:[%s3610 + $0x1f9] sm:$0xff] %vm159, %v3497
  %3650 = vst.msk [vmem:[%s3610 + $0x201] sm:$0xff] %vm159, %v3498
  %3651 = vst.msk [vmem:[%s3610 + $0x211] sm:$0xff] %vm159, %v3499
  %3652 = vst.msk [vmem:[%s3610 + $0x219] sm:$0xff] %vm159, %v3500
  %3653 = vst.msk [vmem:[%s3610 + $0x229] sm:$0xff] %vm159, %v3501
  %3654 = vst.msk [vmem:[%s3610 + $0x231] sm:$0xff] %vm159, %v3502
  %3655 = vst.msk [vmem:[%s3610 + $0x241] sm:$0xff] %vm159, %v3503
  %3656 = vst.msk [vmem:[%s3610 + $0x249] sm:$0xff] %vm159, %v3504
  %3657 = vst.msk [vmem:[%s3610 + $0x259] sm:$0xff] %vm159, %v3505
  %3658 = vst.msk [vmem:[%s3610 + $0x261] sm:$0xff] %vm159, %v3506
  %3659 = vst.msk [vmem:[%s3610 + $0x271] sm:$0xff] %vm159, %v3507
  %3660 = vst.msk [vmem:[%s3610 + $0x279] sm:$0xff] %vm159, %v3508
  %3661 = vst.msk [vmem:[%s3610 + $0x289] sm:$0xff] %vm159, %v3509
  %3662 = vst.msk [vmem:[%s3610 + $0x291] sm:$0xff] %vm159, %v3510
  %3663 = vst.msk [vmem:[%s3610 + $0x2a1] sm:$0xff] %vm159, %v3511
  %3664 = vst.msk [vmem:[%s3610 + $0x2a9] sm:$0xff] %vm159, %v3512
  %3665 = vst.msk [vmem:[%s3610 + $0x2b9] sm:$0xff] %vm159, %v3513
  %3666 = vst.msk [vmem:[%s3610 + $0x2c1] sm:$0xff] %vm159, %v3514
  %3667 = vst.msk [vmem:[%s3610 + $0x2d1] sm:$0xff] %vm159, %v3515
  %3668 = vst.msk [vmem:[%s3610 + $0x2d9] sm:$0xff] %vm159, %v3516
  %3669 = vst.msk [vmem:[%s3610 + $0x2e9] sm:$0xff] %vm159, %v3517
  %3670 = vst.msk [vmem:[%s3610 + $0x2f1] sm:$0xff] %vm159, %v3518
  %3671 = vst.msk [vmem:[%s3610 + $0x301] sm:$0xff] %vm159, %v3519
  %3672 = vst.msk [vmem:[%s3610 + $0x309] sm:$0xff] %vm159, %v3520
  %3673 = vst.msk [vmem:[%s3610 + $0x319] sm:$0xff] %vm159, %v3521
  %3674 = vst.msk [vmem:[%s3610 + $0x321] sm:$0xff] %vm159, %v3522
  %v3675 = vld [vmem:[#allocation3] sm:$0xff]
  %v3676 = vld [vmem:[#allocation3 + $0x8] sm:$0xff]
  %v3677 = vld [vmem:[#allocation3 + $0x18] sm:$0xff]
  %v3678 = vld [vmem:[#allocation3 + $0x20] sm:$0xff]
  %v3679 = vld [vmem:[#allocation3 + $0x30] sm:$0xff]
  %v3680 = vld [vmem:[#allocation3 + $0x38] sm:$0xff]
  %v3681 = vld [vmem:[#allocation3 + $0x48] sm:$0xff]
  %v3682 = vld [vmem:[#allocation3 + $0x50] sm:$0xff]
  %v3683 = vld [vmem:[#allocation3 + $0x60] sm:$0xff]
  %v3684 = vld [vmem:[#allocation3 + $0x68] sm:$0xff]
  %v3685 = vld [vmem:[#allocation3 + $0x78] sm:$0xff]
  %v3686 = vld [vmem:[#allocation3 + $0x80] sm:$0xff]
  %v3687 = vld [vmem:[#allocation3 + $0x90] sm:$0xff]
  %v3688 = vld [vmem:[#allocation3 + $0x98] sm:$0xff]
  %v3689 = vld [vmem:[#allocation3 + $0xa8] sm:$0xff]
  %v3690 = vld [vmem:[#allocation3 + $0xb0] sm:$0xff]
  %v3691 = vld [vmem:[#allocation3 + $0xc0] sm:$0xff]
  %v3692 = vld [vmem:[#allocation3 + $0xc8] sm:$0xff]
  %v3693 = vld [vmem:[#allocation3 + $0xd8] sm:$0xff]
  %v3694 = vld [vmem:[#allocation3 + $0xe0] sm:$0xff]
  %v3695 = vld [vmem:[#allocation3 + $0xf0] sm:$0xff]
  %v3696 = vld [vmem:[#allocation3 + $0xf8] sm:$0xff]
  %v3697 = vld [vmem:[#allocation3 + $0x108] sm:$0xff]
  %v3698 = vld [vmem:[#allocation3 + $0x110] sm:$0xff]
  %v3699 = vld [vmem:[#allocation3 + $0x120] sm:$0xff]
  %v3700 = vld [vmem:[#allocation3 + $0x128] sm:$0xff]
  %v3701 = vld [vmem:[#allocation3 + $0x138] sm:$0xff]
  %v3702 = vld [vmem:[#allocation3 + $0x140] sm:$0xff]
  %v3703 = vld [vmem:[#allocation3 + $0x150] sm:$0xff]
  %v3704 = vld [vmem:[#allocation3 + $0x158] sm:$0xff]
  %v3705 = vld [vmem:[#allocation3 + $0x168] sm:$0xff]
  %v3706 = vld [vmem:[#allocation3 + $0x170] sm:$0xff]
  %v3707 = vld [vmem:[#allocation3 + $0x1b0] sm:$0xff]
  %v3708 = vld [vmem:[#allocation3 + $0x1b8] sm:$0xff]
  %v3709 = vld [vmem:[#allocation3 + $0x1c8] sm:$0xff]
  %v3710 = vld [vmem:[#allocation3 + $0x1d0] sm:$0xff]
  %v3711 = vld [vmem:[#allocation3 + $0x1e0] sm:$0xff]
  %v3712 = vld [vmem:[#allocation3 + $0x1e8] sm:$0xff]
  %v3713 = vld [vmem:[#allocation3 + $0x1f8] sm:$0xff]
  %v3714 = vld [vmem:[#allocation3 + $0x200] sm:$0xff]
  %v3715 = vld [vmem:[#allocation3 + $0x210] sm:$0xff]
  %v3716 = vld [vmem:[#allocation3 + $0x218] sm:$0xff]
  %v3717 = vld [vmem:[#allocation3 + $0x228] sm:$0xff]
  %v3718 = vld [vmem:[#allocation3 + $0x230] sm:$0xff]
  %v3719 = vld [vmem:[#allocation3 + $0x240] sm:$0xff]
  %v3720 = vld [vmem:[#allocation3 + $0x248] sm:$0xff]
  %v3721 = vld [vmem:[#allocation3 + $0x258] sm:$0xff]
  %v3722 = vld [vmem:[#allocation3 + $0x260] sm:$0xff]
  %v3723 = vld [vmem:[#allocation3 + $0x270] sm:$0xff]
  %v3724 = vld [vmem:[#allocation3 + $0x278] sm:$0xff]
  %v3725 = vld [vmem:[#allocation3 + $0x288] sm:$0xff]
  %v3726 = vld [vmem:[#allocation3 + $0x290] sm:$0xff]
  %v3727 = vld [vmem:[#allocation3 + $0x2a0] sm:$0xff]
  %v3728 = vld [vmem:[#allocation3 + $0x2a8] sm:$0xff]
  %v3729 = vld [vmem:[#allocation3 + $0x2b8] sm:$0xff]
  %v3730 = vld [vmem:[#allocation3 + $0x2c0] sm:$0xff]
  %v3731 = vld [vmem:[#allocation3 + $0x2d0] sm:$0xff]
  %v3732 = vld [vmem:[#allocation3 + $0x2d8] sm:$0xff]
  %v3733 = vld [vmem:[#allocation3 + $0x2e8] sm:$0xff]
  %v3734 = vld [vmem:[#allocation3 + $0x2f0] sm:$0xff]
  %v3735 = vld [vmem:[#allocation3 + $0x300] sm:$0xff]
  %v3736 = vld [vmem:[#allocation3 + $0x308] sm:$0xff]
  %v3737 = vld [vmem:[#allocation3 + $0x318] sm:$0xff]
  %v3738 = vld [vmem:[#allocation3 + $0x320] sm:$0xff]
  %v3739 = vpack.c.bf16 %v3676, %v3675
  %v3740 = vpack.c.bf16 %v3678, %v3677
  %v3741 = vpack.c.bf16 %v3680, %v3679
  %v3742 = vpack.c.bf16 %v3682, %v3681
  %v3743 = vpack.c.bf16 %v3684, %v3683
  %v3744 = vpack.c.bf16 %v3686, %v3685
  %v3745 = vpack.c.bf16 %v3688, %v3687
  %v3746 = vpack.c.bf16 %v3690, %v3689
  %v3747 = vpack.c.bf16 %v3692, %v3691
  %v3748 = vpack.c.bf16 %v3694, %v3693
  %v3749 = vpack.c.bf16 %v3696, %v3695
  %v3750 = vpack.c.bf16 %v3698, %v3697
  %v3751 = vpack.c.bf16 %v3700, %v3699
  %v3752 = vpack.c.bf16 %v3702, %v3701
  %v3753 = vpack.c.bf16 %v3704, %v3703
  %v3754 = vpack.c.bf16 %v3706, %v3705
  %v3755 = vpack.c.bf16 %v3708, %v3707
  %v3756 = vpack.c.bf16 %v3710, %v3709
  %v3757 = vpack.c.bf16 %v3712, %v3711
  %v3758 = vpack.c.bf16 %v3714, %v3713
  %v3759 = vpack.c.bf16 %v3716, %v3715
  %v3760 = vpack.c.bf16 %v3718, %v3717
  %v3761 = vpack.c.bf16 %v3720, %v3719
  %v3762 = vpack.c.bf16 %v3722, %v3721
  %v3763 = vpack.c.bf16 %v3724, %v3723
  %v3764 = vpack.c.bf16 %v3726, %v3725
  %v3765 = vpack.c.bf16 %v3728, %v3727
  %v3766 = vpack.c.bf16 %v3730, %v3729
  %v3767 = vpack.c.bf16 %v3732, %v3731
  %v3768 = vpack.c.bf16 %v3734, %v3733
  %v3769 = vpack.c.bf16 %v3736, %v3735
  %v3770 = vpack.c.bf16 %v3738, %v3737
  %3771 = vst.msk [vmem:[#allocation2] sm:$0xff] %vm159, %v3739
  %3772 = vst.msk [vmem:[#allocation2 + $0x18] sm:$0xff] %vm159, %v3740
  %3773 = vst.msk [vmem:[#allocation2 + $0x30] sm:$0xff] %vm159, %v3741
  %3774 = vst.msk [vmem:[#allocation2 + $0x48] sm:$0xff] %vm159, %v3742
  %3775 = vst.msk [vmem:[#allocation2 + $0x60] sm:$0xff] %vm159, %v3743
  %3776 = vst.msk [vmem:[#allocation2 + $0x78] sm:$0xff] %vm159, %v3744
  %3777 = vst.msk [vmem:[#allocation2 + $0x90] sm:$0xff] %vm159, %v3745
  %3778 = vst.msk [vmem:[#allocation2 + $0xa8] sm:$0xff] %vm159, %v3746
  %3779 = vst.msk [vmem:[#allocation2 + $0xc0] sm:$0xff] %vm159, %v3747
  %3780 = vst.msk [vmem:[#allocation2 + $0xd8] sm:$0xff] %vm159, %v3748
  %3781 = vst.msk [vmem:[#allocation2 + $0xf0] sm:$0xff] %vm159, %v3749
  %3782 = vst.msk [vmem:[#allocation2 + $0x108] sm:$0xff] %vm159, %v3750
  %3783 = vst.msk [vmem:[#allocation2 + $0x120] sm:$0xff] %vm159, %v3751
  %3784 = vst.msk [vmem:[#allocation2 + $0x138] sm:$0xff] %vm159, %v3752
  %3785 = vst.msk [vmem:[#allocation2 + $0x150] sm:$0xff] %vm159, %v3753
  %3786 = vst.msk [vmem:[#allocation2 + $0x168] sm:$0xff] %vm159, %v3754
  %3787 = vst.msk [vmem:[#allocation2 + $0x180] sm:$0xff] %vm159, %v3755
  %3788 = vst.msk [vmem:[#allocation2 + $0x198] sm:$0xff] %vm159, %v3756
  %3789 = vst.msk [vmem:[#allocation2 + $0x1b0] sm:$0xff] %vm159, %v3757
  %3790 = vst.msk [vmem:[#allocation2 + $0x1c8] sm:$0xff] %vm159, %v3758
  %3791 = vst.msk [vmem:[#allocation2 + $0x1e0] sm:$0xff] %vm159, %v3759
  %3792 = vst.msk [vmem:[#allocation2 + $0x1f8] sm:$0xff] %vm159, %v3760
  %3793 = vst.msk [vmem:[#allocation2 + $0x210] sm:$0xff] %vm159, %v3761
  %3794 = vst.msk [vmem:[#allocation2 + $0x228] sm:$0xff] %vm159, %v3762
  %3795 = vst.msk [vmem:[#allocation2 + $0x240] sm:$0xff] %vm159, %v3763
  %3796 = vst.msk [vmem:[#allocation2 + $0x258] sm:$0xff] %vm159, %v3764
  %3797 = vst.msk [vmem:[#allocation2 + $0x270] sm:$0xff] %vm159, %v3765
  %3798 = vst.msk [vmem:[#allocation2 + $0x288] sm:$0xff] %vm159, %v3766
  %3799 = vst.msk [vmem:[#allocation2 + $0x2a0] sm:$0xff] %vm159, %v3767
  %3800 = vst.msk [vmem:[#allocation2 + $0x2b8] sm:$0xff] %vm159, %v3768
  %3801 = vst.msk [vmem:[#allocation2 + $0x2d0] sm:$0xff] %vm159, %v3769
  %3802 = vst.msk [vmem:[#allocation2 + $0x2e8] sm:$0xff] %vm159, %v3770
  %v3803 = vld [vmem:[#allocation3 + $0x1] sm:$0xff]
  %v3804 = vld [vmem:[#allocation3 + $0x9] sm:$0xff]
  %v3805 = vld [vmem:[#allocation3 + $0x19] sm:$0xff]
  %v3806 = vld [vmem:[#allocation3 + $0x21] sm:$0xff]
  %v3807 = vld [vmem:[#allocation3 + $0x31] sm:$0xff]
  %v3808 = vld [vmem:[#allocation3 + $0x39] sm:$0xff]
  %v3809 = vld [vmem:[#allocation3 + $0x49] sm:$0xff]
  %v3810 = vld [vmem:[#allocation3 + $0x51] sm:$0xff]
  %v3811 = vld [vmem:[#allocation3 + $0x61] sm:$0xff]
  %v3812 = vld [vmem:[#allocation3 + $0x69] sm:$0xff]
  %v3813 = vld [vmem:[#allocation3 + $0x79] sm:$0xff]
  %v3814 = vld [vmem:[#allocation3 + $0x81] sm:$0xff]
  %v3815 = vld [vmem:[#allocation3 + $0x91] sm:$0xff]
  %v3816 = vld [vmem:[#allocation3 + $0x99] sm:$0xff]
  %v3817 = vld [vmem:[#allocation3 + $0xa9] sm:$0xff]
  %v3818 = vld [vmem:[#allocation3 + $0xb1] sm:$0xff]
  %v3819 = vld [vmem:[#allocation3 + $0xc1] sm:$0xff]
  %v3820 = vld [vmem:[#allocation3 + $0xc9] sm:$0xff]
  %v3821 = vld [vmem:[#allocation3 + $0xd9] sm:$0xff]
  %v3822 = vld [vmem:[#allocation3 + $0xe1] sm:$0xff]
  %v3823 = vld [vmem:[#allocation3 + $0xf1] sm:$0xff]
  %v3824 = vld [vmem:[#allocation3 + $0xf9] sm:$0xff]
  %v3825 = vld [vmem:[#allocation3 + $0x109] sm:$0xff]
  %v3826 = vld [vmem:[#allocation3 + $0x111] sm:$0xff]
  %v3827 = vld [vmem:[#allocation3 + $0x121] sm:$0xff]
  %v3828 = vld [vmem:[#allocation3 + $0x129] sm:$0xff]
  %v3829 = vld [vmem:[#allocation3 + $0x139] sm:$0xff]
  %v3830 = vld [vmem:[#allocation3 + $0x141] sm:$0xff]
  %v3831 = vld [vmem:[#allocation3 + $0x151] sm:$0xff]
  %v3832 = vld [vmem:[#allocation3 + $0x159] sm:$0xff]
  %v3833 = vld [vmem:[#allocation3 + $0x169] sm:$0xff]
  %v3834 = vld [vmem:[#allocation3 + $0x171] sm:$0xff]
  %v3835 = vld [vmem:[#allocation3 + $0x1b1] sm:$0xff]
  %v3836 = vld [vmem:[#allocation3 + $0x1b9] sm:$0xff]
  %v3837 = vld [vmem:[#allocation3 + $0x1c9] sm:$0xff]
  %v3838 = vld [vmem:[#allocation3 + $0x1d1] sm:$0xff]
  %v3839 = vld [vmem:[#allocation3 + $0x1e1] sm:$0xff]
  %v3840 = vld [vmem:[#allocation3 + $0x1e9] sm:$0xff]
  %v3841 = vld [vmem:[#allocation3 + $0x1f9] sm:$0xff]
  %v3842 = vld [vmem:[#allocation3 + $0x201] sm:$0xff]
  %v3843 = vld [vmem:[#allocation3 + $0x211] sm:$0xff]
  %v3844 = vld [vmem:[#allocation3 + $0x219] sm:$0xff]
  %v3845 = vld [vmem:[#allocation3 + $0x229] sm:$0xff]
  %v3846 = vld [vmem:[#allocation3 + $0x231] sm:$0xff]
  %v3847 = vld [vmem:[#allocation3 + $0x241] sm:$0xff]
  %v3848 = vld [vmem:[#allocation3 + $0x249] sm:$0xff]
  %v3849 = vld [vmem:[#allocation3 + $0x259] sm:$0xff]
  %v3850 = vld [vmem:[#allocation3 + $0x261] sm:$0xff]
  %v3851 = vld [vmem:[#allocation3 + $0x271] sm:$0xff]
  %v3852 = vld [vmem:[#allocation3 + $0x279] sm:$0xff]
  %v3853 = vld [vmem:[#allocation3 + $0x289] sm:$0xff]
  %v3854 = vld [vmem:[#allocation3 + $0x291] sm:$0xff]
  %v3855 = vld [vmem:[#allocation3 + $0x2a1] sm:$0xff]
  %v3856 = vld [vmem:[#allocation3 + $0x2a9] sm:$0xff]
  %v3857 = vld [vmem:[#allocation3 + $0x2b9] sm:$0xff]
  %v3858 = vld [vmem:[#allocation3 + $0x2c1] sm:$0xff]
  %v3859 = vld [vmem:[#allocation3 + $0x2d1] sm:$0xff]
  %v3860 = vld [vmem:[#allocation3 + $0x2d9] sm:$0xff]
  %v3861 = vld [vmem:[#allocation3 + $0x2e9] sm:$0xff]
  %v3862 = vld [vmem:[#allocation3 + $0x2f1] sm:$0xff]
  %v3863 = vld [vmem:[#allocation3 + $0x301] sm:$0xff]
  %v3864 = vld [vmem:[#allocation3 + $0x309] sm:$0xff]
  %v3865 = vld [vmem:[#allocation3 + $0x319] sm:$0xff]
  %v3866 = vld [vmem:[#allocation3 + $0x321] sm:$0xff]
  %v3867 = vpack.c.bf16 %v3804, %v3803
  %v3868 = vpack.c.bf16 %v3806, %v3805
  %v3869 = vpack.c.bf16 %v3808, %v3807
  %v3870 = vpack.c.bf16 %v3810, %v3809
  %v3871 = vpack.c.bf16 %v3812, %v3811
  %v3872 = vpack.c.bf16 %v3814, %v3813
  %v3873 = vpack.c.bf16 %v3816, %v3815
  %v3874 = vpack.c.bf16 %v3818, %v3817
  %v3875 = vpack.c.bf16 %v3820, %v3819
  %v3876 = vpack.c.bf16 %v3822, %v3821
  %v3877 = vpack.c.bf16 %v3824, %v3823
  %v3878 = vpack.c.bf16 %v3826, %v3825
  %v3879 = vpack.c.bf16 %v3828, %v3827
  %v3880 = vpack.c.bf16 %v3830, %v3829
  %v3881 = vpack.c.bf16 %v3832, %v3831
  %v3882 = vpack.c.bf16 %v3834, %v3833
  %v3883 = vpack.c.bf16 %v3836, %v3835
  %v3884 = vpack.c.bf16 %v3838, %v3837
  %v3885 = vpack.c.bf16 %v3840, %v3839
  %v3886 = vpack.c.bf16 %v3842, %v3841
  %v3887 = vpack.c.bf16 %v3844, %v3843
  %v3888 = vpack.c.bf16 %v3846, %v3845
  %v3889 = vpack.c.bf16 %v3848, %v3847
  %v3890 = vpack.c.bf16 %v3850, %v3849
  %v3891 = vpack.c.bf16 %v3852, %v3851
  %v3892 = vpack.c.bf16 %v3854, %v3853
  %v3893 = vpack.c.bf16 %v3856, %v3855
  %v3894 = vpack.c.bf16 %v3858, %v3857
  %v3895 = vpack.c.bf16 %v3860, %v3859
  %v3896 = vpack.c.bf16 %v3862, %v3861
  %v3897 = vpack.c.bf16 %v3864, %v3863
  %v3898 = vpack.c.bf16 %v3866, %v3865
  %3931 = vrot.lane.b32.xlu0 %v3867, 32
  %v3932 = vpop.permute.xlu0 %3931
  %3933 = vrot.lane.b32.xlu0 %v3868, 32
  %v3934 = vpop.permute.xlu0 %3933
  %3935 = vrot.lane.b32.xlu0 %v3869, 32
  %v3936 = vpop.permute.xlu0 %3935
  %3937 = vrot.lane.b32.xlu0 %v3870, 32
  %v3938 = vpop.permute.xlu0 %3937
  %3939 = vrot.lane.b32.xlu0 %v3871, 32
  %v3940 = vpop.permute.xlu0 %3939
  %3941 = vrot.lane.b32.xlu0 %v3872, 32
  %v3942 = vpop.permute.xlu0 %3941
  %3943 = vrot.lane.b32.xlu0 %v3873, 32
  %v3944 = vpop.permute.xlu0 %3943
  %3945 = vrot.lane.b32.xlu0 %v3874, 32
  %v3946 = vpop.permute.xlu0 %3945
  %3947 = vrot.lane.b32.xlu0 %v3875, 32
  %v3948 = vpop.permute.xlu0 %3947
  %3949 = vrot.lane.b32.xlu0 %v3876, 32
  %v3950 = vpop.permute.xlu0 %3949
  %3951 = vrot.lane.b32.xlu0 %v3877, 32
  %v3952 = vpop.permute.xlu0 %3951
  %3953 = vrot.lane.b32.xlu0 %v3878, 32
  %v3954 = vpop.permute.xlu0 %3953
  %3955 = vrot.lane.b32.xlu0 %v3879, 32
  %v3956 = vpop.permute.xlu0 %3955
  %3957 = vrot.lane.b32.xlu0 %v3880, 32
  %v3958 = vpop.permute.xlu0 %3957
  %3959 = vrot.lane.b32.xlu0 %v3881, 32
  %v3960 = vpop.permute.xlu0 %3959
  %3961 = vrot.lane.b32.xlu0 %v3882, 32
  %v3962 = vpop.permute.xlu0 %3961
  %3963 = vrot.lane.b32.xlu0 %v3883, 32
  %v3964 = vpop.permute.xlu0 %3963
  %3965 = vrot.lane.b32.xlu0 %v3884, 32
  %v3966 = vpop.permute.xlu0 %3965
  %3967 = vrot.lane.b32.xlu0 %v3885, 32
  %v3968 = vpop.permute.xlu0 %3967
  %3969 = vrot.lane.b32.xlu0 %v3886, 32
  %v3970 = vpop.permute.xlu0 %3969
  %3971 = vrot.lane.b32.xlu0 %v3887, 32
  %v3972 = vpop.permute.xlu0 %3971
  %3973 = vrot.lane.b32.xlu0 %v3888, 32
  %v3974 = vpop.permute.xlu0 %3973
  %3975 = vrot.lane.b32.xlu0 %v3889, 32
  %v3976 = vpop.permute.xlu0 %3975
  %3977 = vrot.lane.b32.xlu0 %v3890, 32
  %v3978 = vpop.permute.xlu0 %3977
  %3979 = vrot.lane.b32.xlu0 %v3891, 32
  %v3980 = vpop.permute.xlu0 %3979
  %3981 = vrot.lane.b32.xlu0 %v3892, 32
  %v3982 = vpop.permute.xlu0 %3981
  %3983 = vrot.lane.b32.xlu0 %v3893, 32
  %v3984 = vpop.permute.xlu0 %3983
  %3985 = vrot.lane.b32.xlu0 %v3894, 32
  %v3986 = vpop.permute.xlu0 %3985
  %3987 = vrot.lane.b32.xlu0 %v3895, 32
  %v3988 = vpop.permute.xlu0 %3987
  %3989 = vrot.lane.b32.xlu0 %v3896, 32
  %v3990 = vpop.permute.xlu0 %3989
  %3991 = vrot.lane.b32.xlu0 %v3897, 32
  %v3992 = vpop.permute.xlu0 %3991
  %3993 = vrot.lane.b32.xlu0 %v3898, 32
  %v3994 = vpop.permute.xlu0 %3993
  %4027 = vst.msk [vmem:[#allocation2] sm:$0xff] %vm416, %v3932
  %4028 = vst.msk [vmem:[#allocation2 + $0x18] sm:$0xff] %vm416, %v3934
  %4029 = vst.msk [vmem:[#allocation2 + $0x30] sm:$0xff] %vm416, %v3936
  %4030 = vst.msk [vmem:[#allocation2 + $0x48] sm:$0xff] %vm416, %v3938
  %4031 = vst.msk [vmem:[#allocation2 + $0x60] sm:$0xff] %vm416, %v3940
  %4032 = vst.msk [vmem:[#allocation2 + $0x78] sm:$0xff] %vm416, %v3942
  %4033 = vst.msk [vmem:[#allocation2 + $0x90] sm:$0xff] %vm416, %v3944
  %4034 = vst.msk [vmem:[#allocation2 + $0xa8] sm:$0xff] %vm416, %v3946
  %4035 = vst.msk [vmem:[#allocation2 + $0xc0] sm:$0xff] %vm416, %v3948
  %4036 = vst.msk [vmem:[#allocation2 + $0xd8] sm:$0xff] %vm416, %v3950
  %4037 = vst.msk [vmem:[#allocation2 + $0xf0] sm:$0xff] %vm416, %v3952
  %4038 = vst.msk [vmem:[#allocation2 + $0x108] sm:$0xff] %vm416, %v3954
  %4039 = vst.msk [vmem:[#allocation2 + $0x120] sm:$0xff] %vm416, %v3956
  %4040 = vst.msk [vmem:[#allocation2 + $0x138] sm:$0xff] %vm416, %v3958
  %4041 = vst.msk [vmem:[#allocation2 + $0x150] sm:$0xff] %vm416, %v3960
  %4042 = vst.msk [vmem:[#allocation2 + $0x168] sm:$0xff] %vm416, %v3962
  %4043 = vst.msk [vmem:[#allocation2 + $0x180] sm:$0xff] %vm416, %v3964
  %4044 = vst.msk [vmem:[#allocation2 + $0x198] sm:$0xff] %vm416, %v3966
  %4045 = vst.msk [vmem:[#allocation2 + $0x1b0] sm:$0xff] %vm416, %v3968
  %4046 = vst.msk [vmem:[#allocation2 + $0x1c8] sm:$0xff] %vm416, %v3970
  %4047 = vst.msk [vmem:[#allocation2 + $0x1e0] sm:$0xff] %vm416, %v3972
  %4048 = vst.msk [vmem:[#allocation2 + $0x1f8] sm:$0xff] %vm416, %v3974
  %4049 = vst.msk [vmem:[#allocation2 + $0x210] sm:$0xff] %vm416, %v3976
  %4050 = vst.msk [vmem:[#allocation2 + $0x228] sm:$0xff] %vm416, %v3978
  %4051 = vst.msk [vmem:[#allocation2 + $0x240] sm:$0xff] %vm416, %v3980
  %4052 = vst.msk [vmem:[#allocation2 + $0x258] sm:$0xff] %vm416, %v3982
  %4053 = vst.msk [vmem:[#allocation2 + $0x270] sm:$0xff] %vm416, %v3984
  %4054 = vst.msk [vmem:[#allocation2 + $0x288] sm:$0xff] %vm416, %v3986
  %4055 = vst.msk [vmem:[#allocation2 + $0x2a0] sm:$0xff] %vm416, %v3988
  %4056 = vst.msk [vmem:[#allocation2 + $0x2b8] sm:$0xff] %vm416, %v3990
  %4057 = vst.msk [vmem:[#allocation2 + $0x2d0] sm:$0xff] %vm416, %v3992
  %4058 = vst.msk [vmem:[#allocation2 + $0x2e8] sm:$0xff] %vm416, %v3994
  %v4059 = vld [vmem:[#allocation3 + $0x2] sm:$0xff]
  %v4060 = vld [vmem:[#allocation3 + $0xa] sm:$0xff]
  %v4061 = vld [vmem:[#allocation3 + $0x1a] sm:$0xff]
  %v4062 = vld [vmem:[#allocation3 + $0x22] sm:$0xff]
  %v4063 = vld [vmem:[#allocation3 + $0x32] sm:$0xff]
  %v4064 = vld [vmem:[#allocation3 + $0x3a] sm:$0xff]
  %v4065 = vld [vmem:[#allocation3 + $0x4a] sm:$0xff]
  %v4066 = vld [vmem:[#allocation3 + $0x52] sm:$0xff]
  %v4067 = vld [vmem:[#allocation3 + $0x62] sm:$0xff]
  %v4068 = vld [vmem:[#allocation3 + $0x6a] sm:$0xff]
  %v4069 = vld [vmem:[#allocation3 + $0x7a] sm:$0xff]
  %v4070 = vld [vmem:[#allocation3 + $0x82] sm:$0xff]
  %v4071 = vld [vmem:[#allocation3 + $0x92] sm:$0xff]
  %v4072 = vld [vmem:[#allocation3 + $0x9a] sm:$0xff]
  %v4073 = vld [vmem:[#allocation3 + $0xaa] sm:$0xff]
  %v4074 = vld [vmem:[#allocation3 + $0xb2] sm:$0xff]
  %v4075 = vld [vmem:[#allocation3 + $0xc2] sm:$0xff]
  %v4076 = vld [vmem:[#allocation3 + $0xca] sm:$0xff]
  %v4077 = vld [vmem:[#allocation3 + $0xda] sm:$0xff]
  %v4078 = vld [vmem:[#allocation3 + $0xe2] sm:$0xff]
  %v4079 = vld [vmem:[#allocation3 + $0xf2] sm:$0xff]
  %v4080 = vld [vmem:[#allocation3 + $0xfa] sm:$0xff]
  %v4081 = vld [vmem:[#allocation3 + $0x10a] sm:$0xff]
  %v4082 = vld [vmem:[#allocation3 + $0x112] sm:$0xff]
  %v4083 = vld [vmem:[#allocation3 + $0x122] sm:$0xff]
  %v4084 = vld [vmem:[#allocation3 + $0x12a] sm:$0xff]
  %v4085 = vld [vmem:[#allocation3 + $0x13a] sm:$0xff]
  %v4086 = vld [vmem:[#allocation3 + $0x142] sm:$0xff]
  %v4087 = vld [vmem:[#allocation3 + $0x152] sm:$0xff]
  %v4088 = vld [vmem:[#allocation3 + $0x15a] sm:$0xff]
  %v4089 = vld [vmem:[#allocation3 + $0x16a] sm:$0xff]
  %v4090 = vld [vmem:[#allocation3 + $0x172] sm:$0xff]
  %v4091 = vld [vmem:[#allocation3 + $0x1b2] sm:$0xff]
  %v4092 = vld [vmem:[#allocation3 + $0x1ba] sm:$0xff]
  %v4093 = vld [vmem:[#allocation3 + $0x1ca] sm:$0xff]
  %v4094 = vld [vmem:[#allocation3 + $0x1d2] sm:$0xff]
  %v4095 = vld [vmem:[#allocation3 + $0x1e2] sm:$0xff]
  %v4096 = vld [vmem:[#allocation3 + $0x1ea] sm:$0xff]
  %v4097 = vld [vmem:[#allocation3 + $0x1fa] sm:$0xff]
  %v4098 = vld [vmem:[#allocation3 + $0x202] sm:$0xff]
  %v4099 = vld [vmem:[#allocation3 + $0x212] sm:$0xff]
  %v4100 = vld [vmem:[#allocation3 + $0x21a] sm:$0xff]
  %v4101 = vld [vmem:[#allocation3 + $0x22a] sm:$0xff]
  %v4102 = vld [vmem:[#allocation3 + $0x232] sm:$0xff]
  %v4103 = vld [vmem:[#allocation3 + $0x242] sm:$0xff]
  %v4104 = vld [vmem:[#allocation3 + $0x24a] sm:$0xff]
  %v4105 = vld [vmem:[#allocation3 + $0x25a] sm:$0xff]
  %v4106 = vld [vmem:[#allocation3 + $0x262] sm:$0xff]
  %v4107 = vld [vmem:[#allocation3 + $0x272] sm:$0xff]
  %v4108 = vld [vmem:[#allocation3 + $0x27a] sm:$0xff]
  %v4109 = vld [vmem:[#allocation3 + $0x28a] sm:$0xff]
  %v4110 = vld [vmem:[#allocation3 + $0x292] sm:$0xff]
  %v4111 = vld [vmem:[#allocation3 + $0x2a2] sm:$0xff]
  %v4112 = vld [vmem:[#allocation3 + $0x2aa] sm:$0xff]
  %v4113 = vld [vmem:[#allocation3 + $0x2ba] sm:$0xff]
  %v4114 = vld [vmem:[#allocation3 + $0x2c2] sm:$0xff]
  %v4115 = vld [vmem:[#allocation3 + $0x2d2] sm:$0xff]
  %v4116 = vld [vmem:[#allocation3 + $0x2da] sm:$0xff]
  %v4117 = vld [vmem:[#allocation3 + $0x2ea] sm:$0xff]
  %v4118 = vld [vmem:[#allocation3 + $0x2f2] sm:$0xff]
  %v4119 = vld [vmem:[#allocation3 + $0x302] sm:$0xff]
  %v4120 = vld [vmem:[#allocation3 + $0x30a] sm:$0xff]
  %v4121 = vld [vmem:[#allocation3 + $0x31a] sm:$0xff]
  %v4122 = vld [vmem:[#allocation3 + $0x322] sm:$0xff]
  %v4123 = vpack.c.bf16 %v4060, %v4059
  %v4124 = vpack.c.bf16 %v4062, %v4061
  %v4125 = vpack.c.bf16 %v4064, %v4063
  %v4126 = vpack.c.bf16 %v4066, %v4065
  %v4127 = vpack.c.bf16 %v4068, %v4067
  %v4128 = vpack.c.bf16 %v4070, %v4069
  %v4129 = vpack.c.bf16 %v4072, %v4071
  %v4130 = vpack.c.bf16 %v4074, %v4073
  %v4131 = vpack.c.bf16 %v4076, %v4075
  %v4132 = vpack.c.bf16 %v4078, %v4077
  %v4133 = vpack.c.bf16 %v4080, %v4079
  %v4134 = vpack.c.bf16 %v4082, %v4081
  %v4135 = vpack.c.bf16 %v4084, %v4083
  %v4136 = vpack.c.bf16 %v4086, %v4085
  %v4137 = vpack.c.bf16 %v4088, %v4087
  %v4138 = vpack.c.bf16 %v4090, %v4089
  %v4139 = vpack.c.bf16 %v4092, %v4091
  %v4140 = vpack.c.bf16 %v4094, %v4093
  %v4141 = vpack.c.bf16 %v4096, %v4095
  %v4142 = vpack.c.bf16 %v4098, %v4097
  %v4143 = vpack.c.bf16 %v4100, %v4099
  %v4144 = vpack.c.bf16 %v4102, %v4101
  %v4145 = vpack.c.bf16 %v4104, %v4103
  %v4146 = vpack.c.bf16 %v4106, %v4105
  %v4147 = vpack.c.bf16 %v4108, %v4107
  %v4148 = vpack.c.bf16 %v4110, %v4109
  %v4149 = vpack.c.bf16 %v4112, %v4111
  %v4150 = vpack.c.bf16 %v4114, %v4113
  %v4151 = vpack.c.bf16 %v4116, %v4115
  %v4152 = vpack.c.bf16 %v4118, %v4117
  %v4153 = vpack.c.bf16 %v4120, %v4119
  %v4154 = vpack.c.bf16 %v4122, %v4121
  %4187 = vrot.lane.b32.xlu0 %v4123, 64
  %v4188 = vpop.permute.xlu0 %4187
  %4189 = vrot.lane.b32.xlu0 %v4124, 64
  %v4190 = vpop.permute.xlu0 %4189
  %4191 = vrot.lane.b32.xlu0 %v4125, 64
  %v4192 = vpop.permute.xlu0 %4191
  %4193 = vrot.lane.b32.xlu0 %v4126, 64
  %v4194 = vpop.permute.xlu0 %4193
  %4195 = vrot.lane.b32.xlu0 %v4127, 64
  %v4196 = vpop.permute.xlu0 %4195
  %4197 = vrot.lane.b32.xlu0 %v4128, 64
  %v4198 = vpop.permute.xlu0 %4197
  %4199 = vrot.lane.b32.xlu0 %v4129, 64
  %v4200 = vpop.permute.xlu0 %4199
  %4201 = vrot.lane.b32.xlu0 %v4130, 64
  %v4202 = vpop.permute.xlu0 %4201
  %4203 = vrot.lane.b32.xlu0 %v4131, 64
  %v4204 = vpop.permute.xlu0 %4203
  %4205 = vrot.lane.b32.xlu0 %v4132, 64
  %v4206 = vpop.permute.xlu0 %4205
  %4207 = vrot.lane.b32.xlu0 %v4133, 64
  %v4208 = vpop.permute.xlu0 %4207
  %4209 = vrot.lane.b32.xlu0 %v4134, 64
  %v4210 = vpop.permute.xlu0 %4209
  %4211 = vrot.lane.b32.xlu0 %v4135, 64
  %v4212 = vpop.permute.xlu0 %4211
  %4213 = vrot.lane.b32.xlu0 %v4136, 64
  %v4214 = vpop.permute.xlu0 %4213
  %4215 = vrot.lane.b32.xlu0 %v4137, 64
  %v4216 = vpop.permute.xlu0 %4215
  %4217 = vrot.lane.b32.xlu0 %v4138, 64
  %v4218 = vpop.permute.xlu0 %4217
  %4219 = vrot.lane.b32.xlu0 %v4139, 64
  %v4220 = vpop.permute.xlu0 %4219
  %4221 = vrot.lane.b32.xlu0 %v4140, 64
  %v4222 = vpop.permute.xlu0 %4221
  %4223 = vrot.lane.b32.xlu0 %v4141, 64
  %v4224 = vpop.permute.xlu0 %4223
  %4225 = vrot.lane.b32.xlu0 %v4142, 64
  %v4226 = vpop.permute.xlu0 %4225
  %4227 = vrot.lane.b32.xlu0 %v4143, 64
  %v4228 = vpop.permute.xlu0 %4227
  %4229 = vrot.lane.b32.xlu0 %v4144, 64
  %v4230 = vpop.permute.xlu0 %4229
  %4231 = vrot.lane.b32.xlu0 %v4145, 64
  %v4232 = vpop.permute.xlu0 %4231
  %4233 = vrot.lane.b32.xlu0 %v4146, 64
  %v4234 = vpop.permute.xlu0 %4233
  %4235 = vrot.lane.b32.xlu0 %v4147, 64
  %v4236 = vpop.permute.xlu0 %4235
  %4237 = vrot.lane.b32.xlu0 %v4148, 64
  %v4238 = vpop.permute.xlu0 %4237
  %4239 = vrot.lane.b32.xlu0 %v4149, 64
  %v4240 = vpop.permute.xlu0 %4239
  %4241 = vrot.lane.b32.xlu0 %v4150, 64
  %v4242 = vpop.permute.xlu0 %4241
  %4243 = vrot.lane.b32.xlu0 %v4151, 64
  %v4244 = vpop.permute.xlu0 %4243
  %4245 = vrot.lane.b32.xlu0 %v4152, 64
  %v4246 = vpop.permute.xlu0 %4245
  %4247 = vrot.lane.b32.xlu0 %v4153, 64
  %v4248 = vpop.permute.xlu0 %4247
  %4249 = vrot.lane.b32.xlu0 %v4154, 64
  %v4250 = vpop.permute.xlu0 %4249
  %4283 = vst.msk [vmem:[#allocation2] sm:$0xff] %vm673, %v4188
  %4284 = vst.msk [vmem:[#allocation2 + $0x18] sm:$0xff] %vm673, %v4190
  %4285 = vst.msk [vmem:[#allocation2 + $0x30] sm:$0xff] %vm673, %v4192
  %4286 = vst.msk [vmem:[#allocation2 + $0x48] sm:$0xff] %vm673, %v4194
  %4287 = vst.msk [vmem:[#allocation2 + $0x60] sm:$0xff] %vm673, %v4196
  %4288 = vst.msk [vmem:[#allocation2 + $0x78] sm:$0xff] %vm673, %v4198
  %4289 = vst.msk [vmem:[#allocation2 + $0x90] sm:$0xff] %vm673, %v4200
  %4290 = vst.msk [vmem:[#allocation2 + $0xa8] sm:$0xff] %vm673, %v4202
  %4291 = vst.msk [vmem:[#allocation2 + $0xc0] sm:$0xff] %vm673, %v4204
  %4292 = vst.msk [vmem:[#allocation2 + $0xd8] sm:$0xff] %vm673, %v4206
  %4293 = vst.msk [vmem:[#allocation2 + $0xf0] sm:$0xff] %vm673, %v4208
  %4294 = vst.msk [vmem:[#allocation2 + $0x108] sm:$0xff] %vm673, %v4210
  %4295 = vst.msk [vmem:[#allocation2 + $0x120] sm:$0xff] %vm673, %v4212
  %4296 = vst.msk [vmem:[#allocation2 + $0x138] sm:$0xff] %vm673, %v4214
  %4297 = vst.msk [vmem:[#allocation2 + $0x150] sm:$0xff] %vm673, %v4216
  %4298 = vst.msk [vmem:[#allocation2 + $0x168] sm:$0xff] %vm673, %v4218
  %4299 = vst.msk [vmem:[#allocation2 + $0x180] sm:$0xff] %vm673, %v4220
  %4300 = vst.msk [vmem:[#allocation2 + $0x198] sm:$0xff] %vm673, %v4222
  %4301 = vst.msk [vmem:[#allocation2 + $0x1b0] sm:$0xff] %vm673, %v4224
  %4302 = vst.msk [vmem:[#allocation2 + $0x1c8] sm:$0xff] %vm673, %v4226
  %4303 = vst.msk [vmem:[#allocation2 + $0x1e0] sm:$0xff] %vm673, %v4228
  %4304 = vst.msk [vmem:[#allocation2 + $0x1f8] sm:$0xff] %vm673, %v4230
  %4305 = vst.msk [vmem:[#allocation2 + $0x210] sm:$0xff] %vm673, %v4232
  %4306 = vst.msk [vmem:[#allocation2 + $0x228] sm:$0xff] %vm673, %v4234
  %4307 = vst.msk [vmem:[#allocation2 + $0x240] sm:$0xff] %vm673, %v4236
  %4308 = vst.msk [vmem:[#allocation2 + $0x258] sm:$0xff] %vm673, %v4238
  %4309 = vst.msk [vmem:[#allocation2 + $0x270] sm:$0xff] %vm673, %v4240
  %4310 = vst.msk [vmem:[#allocation2 + $0x288] sm:$0xff] %vm673, %v4242
  %4311 = vst.msk [vmem:[#allocation2 + $0x2a0] sm:$0xff] %vm673, %v4244
  %4312 = vst.msk [vmem:[#allocation2 + $0x2b8] sm:$0xff] %vm673, %v4246
  %4313 = vst.msk [vmem:[#allocation2 + $0x2d0] sm:$0xff] %vm673, %v4248
  %4314 = vst.msk [vmem:[#allocation2 + $0x2e8] sm:$0xff] %vm673, %v4250
  %v4315 = vld [vmem:[%s3610] sm:$0xff]
  %v4316 = vld [vmem:[%s3610 + $0x8] sm:$0xff]
  %v4317 = vld [vmem:[%s3610 + $0x18] sm:$0xff]
  %v4318 = vld [vmem:[%s3610 + $0x20] sm:$0xff]
  %v4319 = vld [vmem:[%s3610 + $0x30] sm:$0xff]
  %v4320 = vld [vmem:[%s3610 + $0x38] sm:$0xff]
  %v4321 = vld [vmem:[%s3610 + $0x48] sm:$0xff]
  %v4322 = vld [vmem:[%s3610 + $0x50] sm:$0xff]
  %v4323 = vld [vmem:[%s3610 + $0x60] sm:$0xff]
  %v4324 = vld [vmem:[%s3610 + $0x68] sm:$0xff]
  %v4325 = vld [vmem:[%s3610 + $0x78] sm:$0xff]
  %v4326 = vld [vmem:[%s3610 + $0x80] sm:$0xff]
  %v4327 = vld [vmem:[%s3610 + $0x90] sm:$0xff]
  %v4328 = vld [vmem:[%s3610 + $0x98] sm:$0xff]
  %v4329 = vld [vmem:[%s3610 + $0xa8] sm:$0xff]
  %v4330 = vld [vmem:[%s3610 + $0xb0] sm:$0xff]
  %v4331 = vld [vmem:[%s3610 + $0xc0] sm:$0xff]
  %v4332 = vld [vmem:[%s3610 + $0xc8] sm:$0xff]
  %v4333 = vld [vmem:[%s3610 + $0xd8] sm:$0xff]
  %v4334 = vld [vmem:[%s3610 + $0xe0] sm:$0xff]
  %v4335 = vld [vmem:[%s3610 + $0xf0] sm:$0xff]
  %v4336 = vld [vmem:[%s3610 + $0xf8] sm:$0xff]
  %v4337 = vld [vmem:[%s3610 + $0x108] sm:$0xff]
  %v4338 = vld [vmem:[%s3610 + $0x110] sm:$0xff]
  %v4339 = vld [vmem:[%s3610 + $0x120] sm:$0xff]
  %v4340 = vld [vmem:[%s3610 + $0x128] sm:$0xff]
  %v4341 = vld [vmem:[%s3610 + $0x138] sm:$0xff]
  %v4342 = vld [vmem:[%s3610 + $0x140] sm:$0xff]
  %v4343 = vld [vmem:[%s3610 + $0x150] sm:$0xff]
  %v4344 = vld [vmem:[%s3610 + $0x158] sm:$0xff]
  %v4345 = vld [vmem:[%s3610 + $0x168] sm:$0xff]
  %v4346 = vld [vmem:[%s3610 + $0x170] sm:$0xff]
  %v4347 = vld [vmem:[%s3610 + $0x1b0] sm:$0xff]
  %v4348 = vld [vmem:[%s3610 + $0x1b8] sm:$0xff]
  %v4349 = vld [vmem:[%s3610 + $0x1c8] sm:$0xff]
  %v4350 = vld [vmem:[%s3610 + $0x1d0] sm:$0xff]
  %v4351 = vld [vmem:[%s3610 + $0x1e0] sm:$0xff]
  %v4352 = vld [vmem:[%s3610 + $0x1e8] sm:$0xff]
  %v4353 = vld [vmem:[%s3610 + $0x1f8] sm:$0xff]
  %v4354 = vld [vmem:[%s3610 + $0x200] sm:$0xff]
  %v4355 = vld [vmem:[%s3610 + $0x210] sm:$0xff]
  %v4356 = vld [vmem:[%s3610 + $0x218] sm:$0xff]
  %v4357 = vld [vmem:[%s3610 + $0x228] sm:$0xff]
  %v4358 = vld [vmem:[%s3610 + $0x230] sm:$0xff]
  %v4359 = vld [vmem:[%s3610 + $0x240] sm:$0xff]
  %v4360 = vld [vmem:[%s3610 + $0x248] sm:$0xff]
  %v4361 = vld [vmem:[%s3610 + $0x258] sm:$0xff]
  %v4362 = vld [vmem:[%s3610 + $0x260] sm:$0xff]
  %v4363 = vld [vmem:[%s3610 + $0x270] sm:$0xff]
  %v4364 = vld [vmem:[%s3610 + $0x278] sm:$0xff]
  %v4365 = vld [vmem:[%s3610 + $0x288] sm:$0xff]
  %v4366 = vld [vmem:[%s3610 + $0x290] sm:$0xff]
  %v4367 = vld [vmem:[%s3610 + $0x2a0] sm:$0xff]
  %v4368 = vld [vmem:[%s3610 + $0x2a8] sm:$0xff]
  %v4369 = vld [vmem:[%s3610 + $0x2b8] sm:$0xff]
  %v4370 = vld [vmem:[%s3610 + $0x2c0] sm:$0xff]
  %v4371 = vld [vmem:[%s3610 + $0x2d0] sm:$0xff]
  %v4372 = vld [vmem:[%s3610 + $0x2d8] sm:$0xff]
  %v4373 = vld [vmem:[%s3610 + $0x2e8] sm:$0xff]
  %v4374 = vld [vmem:[%s3610 + $0x2f0] sm:$0xff]
  %v4375 = vld [vmem:[%s3610 + $0x300] sm:$0xff]
  %v4376 = vld [vmem:[%s3610 + $0x308] sm:$0xff]
  %v4377 = vld [vmem:[%s3610 + $0x318] sm:$0xff]
  %v4378 = vld [vmem:[%s3610 + $0x320] sm:$0xff]
  %v4379 = vpack.c.bf16 %v4316, %v4315
  %v4380 = vpack.c.bf16 %v4318, %v4317
  %v4381 = vpack.c.bf16 %v4320, %v4319
  %v4382 = vpack.c.bf16 %v4322, %v4321
  %v4383 = vpack.c.bf16 %v4324, %v4323
  %v4384 = vpack.c.bf16 %v4326, %v4325
  %v4385 = vpack.c.bf16 %v4328, %v4327
  %v4386 = vpack.c.bf16 %v4330, %v4329
  %v4387 = vpack.c.bf16 %v4332, %v4331
  %v4388 = vpack.c.bf16 %v4334, %v4333
  %v4389 = vpack.c.bf16 %v4336, %v4335
  %v4390 = vpack.c.bf16 %v4338, %v4337
  %v4391 = vpack.c.bf16 %v4340, %v4339
  %v4392 = vpack.c.bf16 %v4342, %v4341
  %v4393 = vpack.c.bf16 %v4344, %v4343
  %v4394 = vpack.c.bf16 %v4346, %v4345
  %v4395 = vpack.c.bf16 %v4348, %v4347
  %v4396 = vpack.c.bf16 %v4350, %v4349
  %v4397 = vpack.c.bf16 %v4352, %v4351
  %v4398 = vpack.c.bf16 %v4354, %v4353
  %v4399 = vpack.c.bf16 %v4356, %v4355
  %v4400 = vpack.c.bf16 %v4358, %v4357
  %v4401 = vpack.c.bf16 %v4360, %v4359
  %v4402 = vpack.c.bf16 %v4362, %v4361
  %v4403 = vpack.c.bf16 %v4364, %v4363
  %v4404 = vpack.c.bf16 %v4366, %v4365
  %v4405 = vpack.c.bf16 %v4368, %v4367
  %v4406 = vpack.c.bf16 %v4370, %v4369
  %v4407 = vpack.c.bf16 %v4372, %v4371
  %v4408 = vpack.c.bf16 %v4374, %v4373
  %v4409 = vpack.c.bf16 %v4376, %v4375
  %v4410 = vpack.c.bf16 %v4378, %v4377
  %4443 = vrot.lane.b32.xlu0 %v4379, 96
  %v4444 = vpop.permute.xlu0 %4443
  %4445 = vrot.lane.b32.xlu0 %v4380, 96
  %v4446 = vpop.permute.xlu0 %4445
  %4447 = vrot.lane.b32.xlu0 %v4381, 96
  %v4448 = vpop.permute.xlu0 %4447
  %4449 = vrot.lane.b32.xlu0 %v4382, 96
  %v4450 = vpop.permute.xlu0 %4449
  %4451 = vrot.lane.b32.xlu0 %v4383, 96
  %v4452 = vpop.permute.xlu0 %4451
  %4453 = vrot.lane.b32.xlu0 %v4384, 96
  %v4454 = vpop.permute.xlu0 %4453
  %4455 = vrot.lane.b32.xlu0 %v4385, 96
  %v4456 = vpop.permute.xlu0 %4455
  %4457 = vrot.lane.b32.xlu0 %v4386, 96
  %v4458 = vpop.permute.xlu0 %4457
  %4459 = vrot.lane.b32.xlu0 %v4387, 96
  %v4460 = vpop.permute.xlu0 %4459
  %4461 = vrot.lane.b32.xlu0 %v4388, 96
  %v4462 = vpop.permute.xlu0 %4461
  %4463 = vrot.lane.b32.xlu0 %v4389, 96
  %v4464 = vpop.permute.xlu0 %4463
  %4465 = vrot.lane.b32.xlu0 %v4390, 96
  %v4466 = vpop.permute.xlu0 %4465
  %4467 = vrot.lane.b32.xlu0 %v4391, 96
  %v4468 = vpop.permute.xlu0 %4467
  %4469 = vrot.lane.b32.xlu0 %v4392, 96
  %v4470 = vpop.permute.xlu0 %4469
  %4471 = vrot.lane.b32.xlu0 %v4393, 96
  %v4472 = vpop.permute.xlu0 %4471
  %4473 = vrot.lane.b32.xlu0 %v4394, 96
  %v4474 = vpop.permute.xlu0 %4473
  %4475 = vrot.lane.b32.xlu0 %v4395, 96
  %v4476 = vpop.permute.xlu0 %4475
  %4477 = vrot.lane.b32.xlu0 %v4396, 96
  %v4478 = vpop.permute.xlu0 %4477
  %4479 = vrot.lane.b32.xlu0 %v4397, 96
  %v4480 = vpop.permute.xlu0 %4479
  %4481 = vrot.lane.b32.xlu0 %v4398, 96
  %v4482 = vpop.permute.xlu0 %4481
  %4483 = vrot.lane.b32.xlu0 %v4399, 96
  %v4484 = vpop.permute.xlu0 %4483
  %4485 = vrot.lane.b32.xlu0 %v4400, 96
  %v4486 = vpop.permute.xlu0 %4485
  %4487 = vrot.lane.b32.xlu0 %v4401, 96
  %v4488 = vpop.permute.xlu0 %4487
  %4489 = vrot.lane.b32.xlu0 %v4402, 96
  %v4490 = vpop.permute.xlu0 %4489
  %4491 = vrot.lane.b32.xlu0 %v4403, 96
  %v4492 = vpop.permute.xlu0 %4491
  %4493 = vrot.lane.b32.xlu0 %v4404, 96
  %v4494 = vpop.permute.xlu0 %4493
  %4495 = vrot.lane.b32.xlu0 %v4405, 96
  %v4496 = vpop.permute.xlu0 %4495
  %4497 = vrot.lane.b32.xlu0 %v4406, 96
  %v4498 = vpop.permute.xlu0 %4497
  %4499 = vrot.lane.b32.xlu0 %v4407, 96
  %v4500 = vpop.permute.xlu0 %4499
  %4501 = vrot.lane.b32.xlu0 %v4408, 96
  %v4502 = vpop.permute.xlu0 %4501
  %4503 = vrot.lane.b32.xlu0 %v4409, 96
  %v4504 = vpop.permute.xlu0 %4503
  %4505 = vrot.lane.b32.xlu0 %v4410, 96
  %v4506 = vpop.permute.xlu0 %4505
  %4539 = vst.msk [vmem:[#allocation2] sm:$0xff] %vm931, %v4444
  %4540 = vst.msk [vmem:[#allocation2 + $0x18] sm:$0xff] %vm931, %v4446
  %4541 = vst.msk [vmem:[#allocation2 + $0x30] sm:$0xff] %vm931, %v4448
  %4542 = vst.msk [vmem:[#allocation2 + $0x48] sm:$0xff] %vm931, %v4450
  %4543 = vst.msk [vmem:[#allocation2 + $0x60] sm:$0xff] %vm931, %v4452
  %4544 = vst.msk [vmem:[#allocation2 + $0x78] sm:$0xff] %vm931, %v4454
  %4545 = vst.msk [vmem:[#allocation2 + $0x90] sm:$0xff] %vm931, %v4456
  %4546 = vst.msk [vmem:[#allocation2 + $0xa8] sm:$0xff] %vm931, %v4458
  %4547 = vst.msk [vmem:[#allocation2 + $0xc0] sm:$0xff] %vm931, %v4460
  %4548 = vst.msk [vmem:[#allocation2 + $0xd8] sm:$0xff] %vm931, %v4462
  %4549 = vst.msk [vmem:[#allocation2 + $0xf0] sm:$0xff] %vm931, %v4464
  %4550 = vst.msk [vmem:[#allocation2 + $0x108] sm:$0xff] %vm931, %v4466
  %4551 = vst.msk [vmem:[#allocation2 + $0x120] sm:$0xff] %vm931, %v4468
  %4552 = vst.msk [vmem:[#allocation2 + $0x138] sm:$0xff] %vm931, %v4470
  %4553 = vst.msk [vmem:[#allocation2 + $0x150] sm:$0xff] %vm931, %v4472
  %4554 = vst.msk [vmem:[#allocation2 + $0x168] sm:$0xff] %vm931, %v4474
  %4555 = vst.msk [vmem:[#allocation2 + $0x180] sm:$0xff] %vm931, %v4476
  %4556 = vst.msk [vmem:[#allocation2 + $0x198] sm:$0xff] %vm931, %v4478
  %4557 = vst.msk [vmem:[#allocation2 + $0x1b0] sm:$0xff] %vm931, %v4480
  %4558 = vst.msk [vmem:[#allocation2 + $0x1c8] sm:$0xff] %vm931, %v4482
  %4559 = vst.msk [vmem:[#allocation2 + $0x1e0] sm:$0xff] %vm931, %v4484
  %4560 = vst.msk [vmem:[#allocation2 + $0x1f8] sm:$0xff] %vm931, %v4486
  %4561 = vst.msk [vmem:[#allocation2 + $0x210] sm:$0xff] %vm931, %v4488
  %4562 = vst.msk [vmem:[#allocation2 + $0x228] sm:$0xff] %vm931, %v4490
  %4563 = vst.msk [vmem:[#allocation2 + $0x240] sm:$0xff] %vm931, %v4492
  %4564 = vst.msk [vmem:[#allocation2 + $0x258] sm:$0xff] %vm931, %v4494
  %4565 = vst.msk [vmem:[#allocation2 + $0x270] sm:$0xff] %vm931, %v4496
  %4566 = vst.msk [vmem:[#allocation2 + $0x288] sm:$0xff] %vm931, %v4498
  %4567 = vst.msk [vmem:[#allocation2 + $0x2a0] sm:$0xff] %vm931, %v4500
  %4568 = vst.msk [vmem:[#allocation2 + $0x2b8] sm:$0xff] %vm931, %v4502
  %4569 = vst.msk [vmem:[#allocation2 + $0x2d0] sm:$0xff] %vm931, %v4504
  %4570 = vst.msk [vmem:[#allocation2 + $0x2e8] sm:$0xff] %vm931, %v4506
  %v4571 = vld [vmem:[%s3610 + $0x1] sm:$0xff]
  %v4572 = vld [vmem:[%s3610 + $0x9] sm:$0xff]
  %v4573 = vld [vmem:[%s3610 + $0x19] sm:$0xff]
  %v4574 = vld [vmem:[%s3610 + $0x21] sm:$0xff]
  %v4575 = vld [vmem:[%s3610 + $0x31] sm:$0xff]
  %v4576 = vld [vmem:[%s3610 + $0x39] sm:$0xff]
  %v4577 = vld [vmem:[%s3610 + $0x49] sm:$0xff]
  %v4578 = vld [vmem:[%s3610 + $0x51] sm:$0xff]
  %v4579 = vld [vmem:[%s3610 + $0x61] sm:$0xff]
  %v4580 = vld [vmem:[%s3610 + $0x69] sm:$0xff]
  %v4581 = vld [vmem:[%s3610 + $0x79] sm:$0xff]
  %v4582 = vld [vmem:[%s3610 + $0x81] sm:$0xff]
  %v4583 = vld [vmem:[%s3610 + $0x91] sm:$0xff]
  %v4584 = vld [vmem:[%s3610 + $0x99] sm:$0xff]
  %v4585 = vld [vmem:[%s3610 + $0xa9] sm:$0xff]
  %v4586 = vld [vmem:[%s3610 + $0xb1] sm:$0xff]
  %v4587 = vld [vmem:[%s3610 + $0xc1] sm:$0xff]
  %v4588 = vld [vmem:[%s3610 + $0xc9] sm:$0xff]
  %v4589 = vld [vmem:[%s3610 + $0xd9] sm:$0xff]
  %v4590 = vld [vmem:[%s3610 + $0xe1] sm:$0xff]
  %v4591 = vld [vmem:[%s3610 + $0xf1] sm:$0xff]
  %v4592 = vld [vmem:[%s3610 + $0xf9] sm:$0xff]
  %v4593 = vld [vmem:[%s3610 + $0x109] sm:$0xff]
  %v4594 = vld [vmem:[%s3610 + $0x111] sm:$0xff]
  %v4595 = vld [vmem:[%s3610 + $0x121] sm:$0xff]
  %v4596 = vld [vmem:[%s3610 + $0x129] sm:$0xff]
  %v4597 = vld [vmem:[%s3610 + $0x139] sm:$0xff]
  %v4598 = vld [vmem:[%s3610 + $0x141] sm:$0xff]
  %v4599 = vld [vmem:[%s3610 + $0x151] sm:$0xff]
  %v4600 = vld [vmem:[%s3610 + $0x159] sm:$0xff]
  %v4601 = vld [vmem:[%s3610 + $0x169] sm:$0xff]
  %v4602 = vld [vmem:[%s3610 + $0x171] sm:$0xff]
  %v4603 = vld [vmem:[%s3610 + $0x1b1] sm:$0xff]
  %v4604 = vld [vmem:[%s3610 + $0x1b9] sm:$0xff]
  %v4605 = vld [vmem:[%s3610 + $0x1c9] sm:$0xff]
  %v4606 = vld [vmem:[%s3610 + $0x1d1] sm:$0xff]
  %v4607 = vld [vmem:[%s3610 + $0x1e1] sm:$0xff]
  %v4608 = vld [vmem:[%s3610 + $0x1e9] sm:$0xff]
  %v4609 = vld [vmem:[%s3610 + $0x1f9] sm:$0xff]
  %v4610 = vld [vmem:[%s3610 + $0x201] sm:$0xff]
  %v4611 = vld [vmem:[%s3610 + $0x211] sm:$0xff]
  %v4612 = vld [vmem:[%s3610 + $0x219] sm:$0xff]
  %v4613 = vld [vmem:[%s3610 + $0x229] sm:$0xff]
  %v4614 = vld [vmem:[%s3610 + $0x231] sm:$0xff]
  %v4615 = vld [vmem:[%s3610 + $0x241] sm:$0xff]
  %v4616 = vld [vmem:[%s3610 + $0x249] sm:$0xff]
  %v4617 = vld [vmem:[%s3610 + $0x259] sm:$0xff]
  %v4618 = vld [vmem:[%s3610 + $0x261] sm:$0xff]
  %v4619 = vld [vmem:[%s3610 + $0x271] sm:$0xff]
  %v4620 = vld [vmem:[%s3610 + $0x279] sm:$0xff]
  %v4621 = vld [vmem:[%s3610 + $0x289] sm:$0xff]
  %v4622 = vld [vmem:[%s3610 + $0x291] sm:$0xff]
  %v4623 = vld [vmem:[%s3610 + $0x2a1] sm:$0xff]
  %v4624 = vld [vmem:[%s3610 + $0x2a9] sm:$0xff]
  %v4625 = vld [vmem:[%s3610 + $0x2b9] sm:$0xff]
  %v4626 = vld [vmem:[%s3610 + $0x2c1] sm:$0xff]
  %v4627 = vld [vmem:[%s3610 + $0x2d1] sm:$0xff]
  %v4628 = vld [vmem:[%s3610 + $0x2d9] sm:$0xff]
  %v4629 = vld [vmem:[%s3610 + $0x2e9] sm:$0xff]
  %v4630 = vld [vmem:[%s3610 + $0x2f1] sm:$0xff]
  %v4631 = vld [vmem:[%s3610 + $0x301] sm:$0xff]
  %v4632 = vld [vmem:[%s3610 + $0x309] sm:$0xff]
  %v4633 = vld [vmem:[%s3610 + $0x319] sm:$0xff]
  %v4634 = vld [vmem:[%s3610 + $0x321] sm:$0xff]
  %v4635 = vpack.c.bf16 %v4572, %v4571
  %v4636 = vpack.c.bf16 %v4574, %v4573
  %v4637 = vpack.c.bf16 %v4576, %v4575
  %v4638 = vpack.c.bf16 %v4578, %v4577
  %v4639 = vpack.c.bf16 %v4580, %v4579
  %v4640 = vpack.c.bf16 %v4582, %v4581
  %v4641 = vpack.c.bf16 %v4584, %v4583
  %v4642 = vpack.c.bf16 %v4586, %v4585
  %v4643 = vpack.c.bf16 %v4588, %v4587
  %v4644 = vpack.c.bf16 %v4590, %v4589
  %v4645 = vpack.c.bf16 %v4592, %v4591
  %v4646 = vpack.c.bf16 %v4594, %v4593
  %v4647 = vpack.c.bf16 %v4596, %v4595
  %v4648 = vpack.c.bf16 %v4598, %v4597
  %v4649 = vpack.c.bf16 %v4600, %v4599
  %v4650 = vpack.c.bf16 %v4602, %v4601
  %v4651 = vpack.c.bf16 %v4604, %v4603
  %v4652 = vpack.c.bf16 %v4606, %v4605
  %v4653 = vpack.c.bf16 %v4608, %v4607
  %v4654 = vpack.c.bf16 %v4610, %v4609
  %v4655 = vpack.c.bf16 %v4612, %v4611
  %v4656 = vpack.c.bf16 %v4614, %v4613
  %v4657 = vpack.c.bf16 %v4616, %v4615
  %v4658 = vpack.c.bf16 %v4618, %v4617
  %v4659 = vpack.c.bf16 %v4620, %v4619
  %v4660 = vpack.c.bf16 %v4622, %v4621
  %v4661 = vpack.c.bf16 %v4624, %v4623
  %v4662 = vpack.c.bf16 %v4626, %v4625
  %v4663 = vpack.c.bf16 %v4628, %v4627
  %v4664 = vpack.c.bf16 %v4630, %v4629
  %v4665 = vpack.c.bf16 %v4632, %v4631
  %v4666 = vpack.c.bf16 %v4634, %v4633
  %4667 = vst.msk [vmem:[#allocation2 + $0x8] sm:$0xff] %vm159, %v4635
  %4668 = vst.msk [vmem:[#allocation2 + $0x20] sm:$0xff] %vm159, %v4636
  %4669 = vst.msk [vmem:[#allocation2 + $0x38] sm:$0xff] %vm159, %v4637
  %4670 = vst.msk [vmem:[#allocation2 + $0x50] sm:$0xff] %vm159, %v4638
  %4671 = vst.msk [vmem:[#allocation2 + $0x68] sm:$0xff] %vm159, %v4639
  %4672 = vst.msk [vmem:[#allocation2 + $0x80] sm:$0xff] %vm159, %v4640
  %4673 = vst.msk [vmem:[#allocation2 + $0x98] sm:$0xff] %vm159, %v4641
  %4674 = vst.msk [vmem:[#allocation2 + $0xb0] sm:$0xff] %vm159, %v4642
  %4675 = vst.msk [vmem:[#allocation2 + $0xc8] sm:$0xff] %vm159, %v4643
  %4676 = vst.msk [vmem:[#allocation2 + $0xe0] sm:$0xff] %vm159, %v4644
  %4677 = vst.msk [vmem:[#allocation2 + $0xf8] sm:$0xff] %vm159, %v4645
  %4678 = vst.msk [vmem:[#allocation2 + $0x110] sm:$0xff] %vm159, %v4646
  %4679 = vst.msk [vmem:[#allocation2 + $0x128] sm:$0xff] %vm159, %v4647
  %4680 = vst.msk [vmem:[#allocation2 + $0x140] sm:$0xff] %vm159, %v4648
  %4681 = vst.msk [vmem:[#allocation2 + $0x158] sm:$0xff] %vm159, %v4649
  %4682 = vst.msk [vmem:[#allocation2 + $0x170] sm:$0xff] %vm159, %v4650
  %4683 = vst.msk [vmem:[#allocation2 + $0x188] sm:$0xff] %vm159, %v4651
  %4684 = vst.msk [vmem:[#allocation2 + $0x1a0] sm:$0xff] %vm159, %v4652
  %4685 = vst.msk [vmem:[#allocation2 + $0x1b8] sm:$0xff] %vm159, %v4653
  %4686 = vst.msk [vmem:[#allocation2 + $0x1d0] sm:$0xff] %vm159, %v4654
  %4687 = vst.msk [vmem:[#allocation2 + $0x1e8] sm:$0xff] %vm159, %v4655
  %4688 = vst.msk [vmem:[#allocation2 + $0x200] sm:$0xff] %vm159, %v4656
  %4689 = vst.msk [vmem:[#allocation2 + $0x218] sm:$0xff] %vm159, %v4657
  %4690 = vst.msk [vmem:[#allocation2 + $0x230] sm:$0xff] %vm159, %v4658
  %4691 = vst.msk [vmem:[#allocation2 + $0x248] sm:$0xff] %vm159, %v4659
  %4692 = vst.msk [vmem:[#allocation2 + $0x260] sm:$0xff] %vm159, %v4660
  %4693 = vst.msk [vmem:[#allocation2 + $0x278] sm:$0xff] %vm159, %v4661
  %4694 = vst.msk [vmem:[#allocation2 + $0x290] sm:$0xff] %vm159, %v4662
  %4695 = vst.msk [vmem:[#allocation2 + $0x2a8] sm:$0xff] %vm159, %v4663
  %4696 = vst.msk [vmem:[#allocation2 + $0x2c0] sm:$0xff] %vm159, %v4664
  %4697 = vst.msk [vmem:[#allocation2 + $0x2d8] sm:$0xff] %vm159, %v4665
  %4698 = vst.msk [vmem:[#allocation2 + $0x2f0] sm:$0xff] %vm159, %v4666
  %v4699 = vld [vmem:[%s3610 + $0x2] sm:$0xff]
  %v4700 = vld [vmem:[%s3610 + $0xa] sm:$0xff]
  %v4701 = vld [vmem:[%s3610 + $0x1a] sm:$0xff]
  %v4702 = vld [vmem:[%s3610 + $0x22] sm:$0xff]
  %v4703 = vld [vmem:[%s3610 + $0x32] sm:$0xff]
  %v4704 = vld [vmem:[%s3610 + $0x3a] sm:$0xff]
  %v4705 = vld [vmem:[%s3610 + $0x4a] sm:$0xff]
  %v4706 = vld [vmem:[%s3610 + $0x52] sm:$0xff]
  %v4707 = vld [vmem:[%s3610 + $0x62] sm:$0xff]
  %v4708 = vld [vmem:[%s3610 + $0x6a] sm:$0xff]
  %v4709 = vld [vmem:[%s3610 + $0x7a] sm:$0xff]
  %v4710 = vld [vmem:[%s3610 + $0x82] sm:$0xff]
  %v4711 = vld [vmem:[%s3610 + $0x92] sm:$0xff]
  %v4712 = vld [vmem:[%s3610 + $0x9a] sm:$0xff]
  %v4713 = vld [vmem:[%s3610 + $0xaa] sm:$0xff]
  %v4714 = vld [vmem:[%s3610 + $0xb2] sm:$0xff]
  %v4715 = vld [vmem:[%s3610 + $0xc2] sm:$0xff]
  %v4716 = vld [vmem:[%s3610 + $0xca] sm:$0xff]
  %v4717 = vld [vmem:[%s3610 + $0xda] sm:$0xff]
  %v4718 = vld [vmem:[%s3610 + $0xe2] sm:$0xff]
  %v4719 = vld [vmem:[%s3610 + $0xf2] sm:$0xff]
  %v4720 = vld [vmem:[%s3610 + $0xfa] sm:$0xff]
  %v4721 = vld [vmem:[%s3610 + $0x10a] sm:$0xff]
  %v4722 = vld [vmem:[%s3610 + $0x112] sm:$0xff]
  %v4723 = vld [vmem:[%s3610 + $0x122] sm:$0xff]
  %v4724 = vld [vmem:[%s3610 + $0x12a] sm:$0xff]
  %v4725 = vld [vmem:[%s3610 + $0x13a] sm:$0xff]
  %v4726 = vld [vmem:[%s3610 + $0x142] sm:$0xff]
  %v4727 = vld [vmem:[%s3610 + $0x152] sm:$0xff]
  %v4728 = vld [vmem:[%s3610 + $0x15a] sm:$0xff]
  %v4729 = vld [vmem:[%s3610 + $0x16a] sm:$0xff]
  %v4730 = vld [vmem:[%s3610 + $0x172] sm:$0xff]
  %v4731 = vld [vmem:[%s3610 + $0x1b2] sm:$0xff]
  %v4732 = vld [vmem:[%s3610 + $0x1ba] sm:$0xff]
  %v4733 = vld [vmem:[%s3610 + $0x1ca] sm:$0xff]
  %v4734 = vld [vmem:[%s3610 + $0x1d2] sm:$0xff]
  %v4735 = vld [vmem:[%s3610 + $0x1e2] sm:$0xff]
  %v4736 = vld [vmem:[%s3610 + $0x1ea] sm:$0xff]
  %v4737 = vld [vmem:[%s3610 + $0x1fa] sm:$0xff]
  %v4738 = vld [vmem:[%s3610 + $0x202] sm:$0xff]
  %v4739 = vld [vmem:[%s3610 + $0x212] sm:$0xff]
  %v4740 = vld [vmem:[%s3610 + $0x21a] sm:$0xff]
  %v4741 = vld [vmem:[%s3610 + $0x22a] sm:$0xff]
  %v4742 = vld [vmem:[%s3610 + $0x232] sm:$0xff]
  %v4743 = vld [vmem:[%s3610 + $0x242] sm:$0xff]
  %v4744 = vld [vmem:[%s3610 + $0x24a] sm:$0xff]
  %v4745 = vld [vmem:[%s3610 + $0x25a] sm:$0xff]
  %v4746 = vld [vmem:[%s3610 + $0x262] sm:$0xff]
  %v4747 = vld [vmem:[%s3610 + $0x272] sm:$0xff]
  %v4748 = vld [vmem:[%s3610 + $0x27a] sm:$0xff]
  %v4749 = vld [vmem:[%s3610 + $0x28a] sm:$0xff]
  %v4750 = vld [vmem:[%s3610 + $0x292] sm:$0xff]
  %v4751 = vld [vmem:[%s3610 + $0x2a2] sm:$0xff]
  %v4752 = vld [vmem:[%s3610 + $0x2aa] sm:$0xff]
  %v4753 = vld [vmem:[%s3610 + $0x2ba] sm:$0xff]
  %v4754 = vld [vmem:[%s3610 + $0x2c2] sm:$0xff]
  %v4755 = vld [vmem:[%s3610 + $0x2d2] sm:$0xff]
  %v4756 = vld [vmem:[%s3610 + $0x2da] sm:$0xff]
  %v4757 = vld [vmem:[%s3610 + $0x2ea] sm:$0xff]
  %v4758 = vld [vmem:[%s3610 + $0x2f2] sm:$0xff]
  %v4759 = vld [vmem:[%s3610 + $0x302] sm:$0xff]
  %v4760 = vld [vmem:[%s3610 + $0x30a] sm:$0xff]
  %v4761 = vld [vmem:[%s3610 + $0x31a] sm:$0xff]
  %v4762 = vld [vmem:[%s3610 + $0x322] sm:$0xff]
  %v4763 = vpack.c.bf16 %v4700, %v4699
  %v4764 = vpack.c.bf16 %v4702, %v4701
  %v4765 = vpack.c.bf16 %v4704, %v4703
  %v4766 = vpack.c.bf16 %v4706, %v4705
  %v4767 = vpack.c.bf16 %v4708, %v4707
  %v4768 = vpack.c.bf16 %v4710, %v4709
  %v4769 = vpack.c.bf16 %v4712, %v4711
  %v4770 = vpack.c.bf16 %v4714, %v4713
  %v4771 = vpack.c.bf16 %v4716, %v4715
  %v4772 = vpack.c.bf16 %v4718, %v4717
  %v4773 = vpack.c.bf16 %v4720, %v4719
  %v4774 = vpack.c.bf16 %v4722, %v4721
  %v4775 = vpack.c.bf16 %v4724, %v4723
  %v4776 = vpack.c.bf16 %v4726, %v4725
  %v4777 = vpack.c.bf16 %v4728, %v4727
  %v4778 = vpack.c.bf16 %v4730, %v4729
  %v4779 = vpack.c.bf16 %v4732, %v4731
  %v4780 = vpack.c.bf16 %v4734, %v4733
  %v4781 = vpack.c.bf16 %v4736, %v4735
  %v4782 = vpack.c.bf16 %v4738, %v4737
  %v4783 = vpack.c.bf16 %v4740, %v4739
  %v4784 = vpack.c.bf16 %v4742, %v4741
  %v4785 = vpack.c.bf16 %v4744, %v4743
  %v4786 = vpack.c.bf16 %v4746, %v4745
  %v4787 = vpack.c.bf16 %v4748, %v4747
  %v4788 = vpack.c.bf16 %v4750, %v4749
  %v4789 = vpack.c.bf16 %v4752, %v4751
  %v4790 = vpack.c.bf16 %v4754, %v4753
  %v4791 = vpack.c.bf16 %v4756, %v4755
  %v4792 = vpack.c.bf16 %v4758, %v4757
  %v4793 = vpack.c.bf16 %v4760, %v4759
  %v4794 = vpack.c.bf16 %v4762, %v4761
  %4827 = vrot.lane.b32.xlu0 %v4763, 32
  %v4828 = vpop.permute.xlu0 %4827
  %4829 = vrot.lane.b32.xlu0 %v4764, 32
  %v4830 = vpop.permute.xlu0 %4829
  %4831 = vrot.lane.b32.xlu0 %v4765, 32
  %v4832 = vpop.permute.xlu0 %4831
  %4833 = vrot.lane.b32.xlu0 %v4766, 32
  %v4834 = vpop.permute.xlu0 %4833
  %4835 = vrot.lane.b32.xlu0 %v4767, 32
  %v4836 = vpop.permute.xlu0 %4835
  %4837 = vrot.lane.b32.xlu0 %v4768, 32
  %v4838 = vpop.permute.xlu0 %4837
  %4839 = vrot.lane.b32.xlu0 %v4769, 32
  %v4840 = vpop.permute.xlu0 %4839
  %4841 = vrot.lane.b32.xlu0 %v4770, 32
  %v4842 = vpop.permute.xlu0 %4841
  %4843 = vrot.lane.b32.xlu0 %v4771, 32
  %v4844 = vpop.permute.xlu0 %4843
  %4845 = vrot.lane.b32.xlu0 %v4772, 32
  %v4846 = vpop.permute.xlu0 %4845
  %4847 = vrot.lane.b32.xlu0 %v4773, 32
  %v4848 = vpop.permute.xlu0 %4847
  %4849 = vrot.lane.b32.xlu0 %v4774, 32
  %v4850 = vpop.permute.xlu0 %4849
  %4851 = vrot.lane.b32.xlu0 %v4775, 32
  %v4852 = vpop.permute.xlu0 %4851
  %4853 = vrot.lane.b32.xlu0 %v4776, 32
  %v4854 = vpop.permute.xlu0 %4853
  %4855 = vrot.lane.b32.xlu0 %v4777, 32
  %v4856 = vpop.permute.xlu0 %4855
  %4857 = vrot.lane.b32.xlu0 %v4778, 32
  %v4858 = vpop.permute.xlu0 %4857
  %4859 = vrot.lane.b32.xlu0 %v4779, 32
  %v4860 = vpop.permute.xlu0 %4859
  %4861 = vrot.lane.b32.xlu0 %v4780, 32
  %v4862 = vpop.permute.xlu0 %4861
  %4863 = vrot.lane.b32.xlu0 %v4781, 32
  %v4864 = vpop.permute.xlu0 %4863
  %4865 = vrot.lane.b32.xlu0 %v4782, 32
  %v4866 = vpop.permute.xlu0 %4865
  %4867 = vrot.lane.b32.xlu0 %v4783, 32
  %v4868 = vpop.permute.xlu0 %4867
  %4869 = vrot.lane.b32.xlu0 %v4784, 32
  %v4870 = vpop.permute.xlu0 %4869
  %4871 = vrot.lane.b32.xlu0 %v4785, 32
  %v4872 = vpop.permute.xlu0 %4871
  %4873 = vrot.lane.b32.xlu0 %v4786, 32
  %v4874 = vpop.permute.xlu0 %4873
  %4875 = vrot.lane.b32.xlu0 %v4787, 32
  %v4876 = vpop.permute.xlu0 %4875
  %4877 = vrot.lane.b32.xlu0 %v4788, 32
  %v4878 = vpop.permute.xlu0 %4877
  %4879 = vrot.lane.b32.xlu0 %v4789, 32
  %v4880 = vpop.permute.xlu0 %4879
  %4881 = vrot.lane.b32.xlu0 %v4790, 32
  %v4882 = vpop.permute.xlu0 %4881
  %4883 = vrot.lane.b32.xlu0 %v4791, 32
  %v4884 = vpop.permute.xlu0 %4883
  %4885 = vrot.lane.b32.xlu0 %v4792, 32
  %v4886 = vpop.permute.xlu0 %4885
  %4887 = vrot.lane.b32.xlu0 %v4793, 32
  %v4888 = vpop.permute.xlu0 %4887
  %4889 = vrot.lane.b32.xlu0 %v4794, 32
  %v4890 = vpop.permute.xlu0 %4889
  %4923 = vst.msk [vmem:[#allocation2 + $0x8] sm:$0xff] %vm416, %v4828
  %4924 = vst.msk [vmem:[#allocation2 + $0x20] sm:$0xff] %vm416, %v4830
  %4925 = vst.msk [vmem:[#allocation2 + $0x38] sm:$0xff] %vm416, %v4832
  %4926 = vst.msk [vmem:[#allocation2 + $0x50] sm:$0xff] %vm416, %v4834
  %4927 = vst.msk [vmem:[#allocation2 + $0x68] sm:$0xff] %vm416, %v4836
  %4928 = vst.msk [vmem:[#allocation2 + $0x80] sm:$0xff] %vm416, %v4838
  %4929 = vst.msk [vmem:[#allocation2 + $0x98] sm:$0xff] %vm416, %v4840
  %4930 = vst.msk [vmem:[#allocation2 + $0xb0] sm:$0xff] %vm416, %v4842
  %4931 = vst.msk [vmem:[#allocation2 + $0xc8] sm:$0xff] %vm416, %v4844
  %4932 = vst.msk [vmem:[#allocation2 + $0xe0] sm:$0xff] %vm416, %v4846
  %4933 = vst.msk [vmem:[#allocation2 + $0xf8] sm:$0xff] %vm416, %v4848
  %4934 = vst.msk [vmem:[#allocation2 + $0x110] sm:$0xff] %vm416, %v4850
  %4935 = vst.msk [vmem:[#allocation2 + $0x128] sm:$0xff] %vm416, %v4852
  %4936 = vst.msk [vmem:[#allocation2 + $0x140] sm:$0xff] %vm416, %v4854
  %4937 = vst.msk [vmem:[#allocation2 + $0x158] sm:$0xff] %vm416, %v4856
  %4938 = vst.msk [vmem:[#allocation2 + $0x170] sm:$0xff] %vm416, %v4858
  %4939 = vst.msk [vmem:[#allocation2 + $0x188] sm:$0xff] %vm416, %v4860
  %4940 = vst.msk [vmem:[#allocation2 + $0x1a0] sm:$0xff] %vm416, %v4862
  %4941 = vst.msk [vmem:[#allocation2 + $0x1b8] sm:$0xff] %vm416, %v4864
  %4942 = vst.msk [vmem:[#allocation2 + $0x1d0] sm:$0xff] %vm416, %v4866
  %4943 = vst.msk [vmem:[#allocation2 + $0x1e8] sm:$0xff] %vm416, %v4868
  %4944 = vst.msk [vmem:[#allocation2 + $0x200] sm:$0xff] %vm416, %v4870
  %4945 = vst.msk [vmem:[#allocation2 + $0x218] sm:$0xff] %vm416, %v4872
  %4946 = vst.msk [vmem:[#allocation2 + $0x230] sm:$0xff] %vm416, %v4874
  %4947 = vst.msk [vmem:[#allocation2 + $0x248] sm:$0xff] %vm416, %v4876
  %4948 = vst.msk [vmem:[#allocation2 + $0x260] sm:$0xff] %vm416, %v4878
  %4949 = vst.msk [vmem:[#allocation2 + $0x278] sm:$0xff] %vm416, %v4880
  %4950 = vst.msk [vmem:[#allocation2 + $0x290] sm:$0xff] %vm416, %v4882
  %4951 = vst.msk [vmem:[#allocation2 + $0x2a8] sm:$0xff] %vm416, %v4884
  %4952 = vst.msk [vmem:[#allocation2 + $0x2c0] sm:$0xff] %vm416, %v4886
  %4953 = vst.msk [vmem:[#allocation2 + $0x2d8] sm:$0xff] %vm416, %v4888
  %4954 = vst.msk [vmem:[#allocation2 + $0x2f0] sm:$0xff] %vm416, %v4890
  %s4955 = scalar_lea.vmem [#allocation3], 48
  %v4956 = vld [vmem:[%s4955] sm:$0xff]
  %v4957 = vld [vmem:[%s4955 + $0x8] sm:$0xff]
  %v4958 = vld [vmem:[%s4955 + $0x18] sm:$0xff]
  %v4959 = vld [vmem:[%s4955 + $0x20] sm:$0xff]
  %v4960 = vld [vmem:[%s4955 + $0x30] sm:$0xff]
  %v4961 = vld [vmem:[%s4955 + $0x38] sm:$0xff]
  %v4962 = vld [vmem:[%s4955 + $0x48] sm:$0xff]
  %v4963 = vld [vmem:[%s4955 + $0x50] sm:$0xff]
  %v4964 = vld [vmem:[%s4955 + $0x60] sm:$0xff]
  %v4965 = vld [vmem:[%s4955 + $0x68] sm:$0xff]
  %v4966 = vld [vmem:[%s4955 + $0x78] sm:$0xff]
  %v4967 = vld [vmem:[%s4955 + $0x80] sm:$0xff]
  %v4968 = vld [vmem:[%s4955 + $0x90] sm:$0xff]
  %v4969 = vld [vmem:[%s4955 + $0x98] sm:$0xff]
  %v4970 = vld [vmem:[%s4955 + $0xa8] sm:$0xff]
  %v4971 = vld [vmem:[%s4955 + $0xb0] sm:$0xff]
  %v4972 = vld [vmem:[%s4955 + $0xc0] sm:$0xff]
  %v4973 = vld [vmem:[%s4955 + $0xc8] sm:$0xff]
  %v4974 = vld [vmem:[%s4955 + $0xd8] sm:$0xff]
  %v4975 = vld [vmem:[%s4955 + $0xe0] sm:$0xff]
  %v4976 = vld [vmem:[%s4955 + $0xf0] sm:$0xff]
  %v4977 = vld [vmem:[%s4955 + $0xf8] sm:$0xff]
  %v4978 = vld [vmem:[%s4955 + $0x108] sm:$0xff]
  %v4979 = vld [vmem:[%s4955 + $0x110] sm:$0xff]
  %v4980 = vld [vmem:[%s4955 + $0x120] sm:$0xff]
  %v4981 = vld [vmem:[%s4955 + $0x128] sm:$0xff]
  %v4982 = vld [vmem:[%s4955 + $0x138] sm:$0xff]
  %v4983 = vld [vmem:[%s4955 + $0x140] sm:$0xff]
  %v4984 = vld [vmem:[%s4955 + $0x150] sm:$0xff]
  %v4985 = vld [vmem:[%s4955 + $0x158] sm:$0xff]
  %v4986 = vld [vmem:[%s4955 + $0x168] sm:$0xff]
  %v4987 = vld [vmem:[%s4955 + $0x170] sm:$0xff]
  %v4988 = vld [vmem:[%s4955 + $0x1b0] sm:$0xff]
  %v4989 = vld [vmem:[%s4955 + $0x1b8] sm:$0xff]
  %v4990 = vld [vmem:[%s4955 + $0x1c8] sm:$0xff]
  %v4991 = vld [vmem:[%s4955 + $0x1d0] sm:$0xff]
  %v4992 = vld [vmem:[%s4955 + $0x1e0] sm:$0xff]
  %v4993 = vld [vmem:[%s4955 + $0x1e8] sm:$0xff]
  %v4994 = vld [vmem:[%s4955 + $0x1f8] sm:$0xff]
  %v4995 = vld [vmem:[%s4955 + $0x200] sm:$0xff]
  %v4996 = vld [vmem:[%s4955 + $0x210] sm:$0xff]
  %v4997 = vld [vmem:[%s4955 + $0x218] sm:$0xff]
  %v4998 = vld [vmem:[%s4955 + $0x228] sm:$0xff]
  %v4999 = vld [vmem:[%s4955 + $0x230] sm:$0xff]
  %v5000 = vld [vmem:[%s4955 + $0x240] sm:$0xff]
  %v5001 = vld [vmem:[%s4955 + $0x248] sm:$0xff]
  %v5002 = vld [vmem:[%s4955 + $0x258] sm:$0xff]
  %v5003 = vld [vmem:[%s4955 + $0x260] sm:$0xff]
  %v5004 = vld [vmem:[%s4955 + $0x270] sm:$0xff]
  %v5005 = vld [vmem:[%s4955 + $0x278] sm:$0xff]
  %v5006 = vld [vmem:[%s4955 + $0x288] sm:$0xff]
  %v5007 = vld [vmem:[%s4955 + $0x290] sm:$0xff]
  %v5008 = vld [vmem:[%s4955 + $0x2a0] sm:$0xff]
  %v5009 = vld [vmem:[%s4955 + $0x2a8] sm:$0xff]
  %v5010 = vld [vmem:[%s4955 + $0x2b8] sm:$0xff]
  %v5011 = vld [vmem:[%s4955 + $0x2c0] sm:$0xff]
  %v5012 = vld [vmem:[%s4955 + $0x2d0] sm:$0xff]
  %v5013 = vld [vmem:[%s4955 + $0x2d8] sm:$0xff]
  %v5014 = vld [vmem:[%s4955 + $0x2e8] sm:$0xff]
  %v5015 = vld [vmem:[%s4955 + $0x2f0] sm:$0xff]
  %v5016 = vld [vmem:[%s4955 + $0x300] sm:$0xff]
  %v5017 = vld [vmem:[%s4955 + $0x308] sm:$0xff]
  %v5018 = vld [vmem:[%s4955 + $0x318] sm:$0xff]
  %v5019 = vld [vmem:[%s4955 + $0x320] sm:$0xff]
  %v5020 = vpack.c.bf16 %v4957, %v4956
  %v5021 = vpack.c.bf16 %v4959, %v4958
  %v5022 = vpack.c.bf16 %v4961, %v4960
  %v5023 = vpack.c.bf16 %v4963, %v4962
  %v5024 = vpack.c.bf16 %v4965, %v4964
  %v5025 = vpack.c.bf16 %v4967, %v4966
  %v5026 = vpack.c.bf16 %v4969, %v4968
  %v5027 = vpack.c.bf16 %v4971, %v4970
  %v5028 = vpack.c.bf16 %v4973, %v4972
  %v5029 = vpack.c.bf16 %v4975, %v4974
  %v5030 = vpack.c.bf16 %v4977, %v4976
  %v5031 = vpack.c.bf16 %v4979, %v4978
  %v5032 = vpack.c.bf16 %v4981, %v4980
  %v5033 = vpack.c.bf16 %v4983, %v4982
  %v5034 = vpack.c.bf16 %v4985, %v4984
  %v5035 = vpack.c.bf16 %v4987, %v4986
  %v5036 = vpack.c.bf16 %v4989, %v4988
  %v5037 = vpack.c.bf16 %v4991, %v4990
  %v5038 = vpack.c.bf16 %v4993, %v4992
  %v5039 = vpack.c.bf16 %v4995, %v4994
  %v5040 = vpack.c.bf16 %v4997, %v4996
  %v5041 = vpack.c.bf16 %v4999, %v4998
  %v5042 = vpack.c.bf16 %v5001, %v5000
  %v5043 = vpack.c.bf16 %v5003, %v5002
  %v5044 = vpack.c.bf16 %v5005, %v5004
  %v5045 = vpack.c.bf16 %v5007, %v5006
  %v5046 = vpack.c.bf16 %v5009, %v5008
  %v5047 = vpack.c.bf16 %v5011, %v5010
  %v5048 = vpack.c.bf16 %v5013, %v5012
  %v5049 = vpack.c.bf16 %v5015, %v5014
  %v5050 = vpack.c.bf16 %v5017, %v5016
  %v5051 = vpack.c.bf16 %v5019, %v5018
  %5084 = vrot.lane.b32.xlu0 %v5020, 64
  %v5085 = vpop.permute.xlu0 %5084
  %5086 = vrot.lane.b32.xlu0 %v5021, 64
  %v5087 = vpop.permute.xlu0 %5086
  %5088 = vrot.lane.b32.xlu0 %v5022, 64
  %v5089 = vpop.permute.xlu0 %5088
  %5090 = vrot.lane.b32.xlu0 %v5023, 64
  %v5091 = vpop.permute.xlu0 %5090
  %5092 = vrot.lane.b32.xlu0 %v5024, 64
  %v5093 = vpop.permute.xlu0 %5092
  %5094 = vrot.lane.b32.xlu0 %v5025, 64
  %v5095 = vpop.permute.xlu0 %5094
  %5096 = vrot.lane.b32.xlu0 %v5026, 64
  %v5097 = vpop.permute.xlu0 %5096
  %5098 = vrot.lane.b32.xlu0 %v5027, 64
  %v5099 = vpop.permute.xlu0 %5098
  %5100 = vrot.lane.b32.xlu0 %v5028, 64
  %v5101 = vpop.permute.xlu0 %5100
  %5102 = vrot.lane.b32.xlu0 %v5029, 64
  %v5103 = vpop.permute.xlu0 %5102
  %5104 = vrot.lane.b32.xlu0 %v5030, 64
  %v5105 = vpop.permute.xlu0 %5104
  %5106 = vrot.lane.b32.xlu0 %v5031, 64
  %v5107 = vpop.permute.xlu0 %5106
  %5108 = vrot.lane.b32.xlu0 %v5032, 64
  %v5109 = vpop.permute.xlu0 %5108
  %5110 = vrot.lane.b32.xlu0 %v5033, 64
  %v5111 = vpop.permute.xlu0 %5110
  %5112 = vrot.lane.b32.xlu0 %v5034, 64
  %v5113 = vpop.permute.xlu0 %5112
  %5114 = vrot.lane.b32.xlu0 %v5035, 64
  %v5115 = vpop.permute.xlu0 %5114
  %5116 = vrot.lane.b32.xlu0 %v5036, 64
  %v5117 = vpop.permute.xlu0 %5116
  %5118 = vrot.lane.b32.xlu0 %v5037, 64
  %v5119 = vpop.permute.xlu0 %5118
  %5120 = vrot.lane.b32.xlu0 %v5038, 64
  %v5121 = vpop.permute.xlu0 %5120
  %5122 = vrot.lane.b32.xlu0 %v5039, 64
  %v5123 = vpop.permute.xlu0 %5122
  %5124 = vrot.lane.b32.xlu0 %v5040, 64
  %v5125 = vpop.permute.xlu0 %5124
  %5126 = vrot.lane.b32.xlu0 %v5041, 64
  %v5127 = vpop.permute.xlu0 %5126
  %5128 = vrot.lane.b32.xlu0 %v5042, 64
  %v5129 = vpop.permute.xlu0 %5128
  %5130 = vrot.lane.b32.xlu0 %v5043, 64
  %v5131 = vpop.permute.xlu0 %5130
  %5132 = vrot.lane.b32.xlu0 %v5044, 64
  %v5133 = vpop.permute.xlu0 %5132
  %5134 = vrot.lane.b32.xlu0 %v5045, 64
  %v5135 = vpop.permute.xlu0 %5134
  %5136 = vrot.lane.b32.xlu0 %v5046, 64
  %v5137 = vpop.permute.xlu0 %5136
  %5138 = vrot.lane.b32.xlu0 %v5047, 64
  %v5139 = vpop.permute.xlu0 %5138
  %5140 = vrot.lane.b32.xlu0 %v5048, 64
  %v5141 = vpop.permute.xlu0 %5140
  %5142 = vrot.lane.b32.xlu0 %v5049, 64
  %v5143 = vpop.permute.xlu0 %5142
  %5144 = vrot.lane.b32.xlu0 %v5050, 64
  %v5145 = vpop.permute.xlu0 %5144
  %5146 = vrot.lane.b32.xlu0 %v5051, 64
  %v5147 = vpop.permute.xlu0 %5146
  %5180 = vst.msk [vmem:[#allocation2 + $0x8] sm:$0xff] %vm673, %v5085
  %5181 = vst.msk [vmem:[#allocation2 + $0x20] sm:$0xff] %vm673, %v5087
  %5182 = vst.msk [vmem:[#allocation2 + $0x38] sm:$0xff] %vm673, %v5089
  %5183 = vst.msk [vmem:[#allocation2 + $0x50] sm:$0xff] %vm673, %v5091
  %5184 = vst.msk [vmem:[#allocation2 + $0x68] sm:$0xff] %vm673, %v5093
  %5185 = vst.msk [vmem:[#allocation2 + $0x80] sm:$0xff] %vm673, %v5095
  %5186 = vst.msk [vmem:[#allocation2 + $0x98] sm:$0xff] %vm673, %v5097
  %5187 = vst.msk [vmem:[#allocation2 + $0xb0] sm:$0xff] %vm673, %v5099
  %5188 = vst.msk [vmem:[#allocation2 + $0xc8] sm:$0xff] %vm673, %v5101
  %5189 = vst.msk [vmem:[#allocation2 + $0xe0] sm:$0xff] %vm673, %v5103
  %5190 = vst.msk [vmem:[#allocation2 + $0xf8] sm:$0xff] %vm673, %v5105
  %5191 = vst.msk [vmem:[#allocation2 + $0x110] sm:$0xff] %vm673, %v5107
  %5192 = vst.msk [vmem:[#allocation2 + $0x128] sm:$0xff] %vm673, %v5109
  %5193 = vst.msk [vmem:[#allocation2 + $0x140] sm:$0xff] %vm673, %v5111
  %5194 = vst.msk [vmem:[#allocation2 + $0x158] sm:$0xff] %vm673, %v5113
  %5195 = vst.msk [vmem:[#allocation2 + $0x170] sm:$0xff] %vm673, %v5115
  %5196 = vst.msk [vmem:[#allocation2 + $0x188] sm:$0xff] %vm673, %v5117
  %5197 = vst.msk [vmem:[#allocation2 + $0x1a0] sm:$0xff] %vm673, %v5119
  %5198 = vst.msk [vmem:[#allocation2 + $0x1b8] sm:$0xff] %vm673, %v5121
  %5199 = vst.msk [vmem:[#allocation2 + $0x1d0] sm:$0xff] %vm673, %v5123
  %5200 = vst.msk [vmem:[#allocation2 + $0x1e8] sm:$0xff] %vm673, %v5125
  %5201 = vst.msk [vmem:[#allocation2 + $0x200] sm:$0xff] %vm673, %v5127
  %5202 = vst.msk [vmem:[#allocation2 + $0x218] sm:$0xff] %vm673, %v5129
  %5203 = vst.msk [vmem:[#allocation2 + $0x230] sm:$0xff] %vm673, %v5131
  %5204 = vst.msk [vmem:[#allocation2 + $0x248] sm:$0xff] %vm673, %v5133
  %5205 = vst.msk [vmem:[#allocation2 + $0x260] sm:$0xff] %vm673, %v5135
  %5206 = vst.msk [vmem:[#allocation2 + $0x278] sm:$0xff] %vm673, %v5137
  %5207 = vst.msk [vmem:[#allocation2 + $0x290] sm:$0xff] %vm673, %v5139
  %5208 = vst.msk [vmem:[#allocation2 + $0x2a8] sm:$0xff] %vm673, %v5141
  %5209 = vst.msk [vmem:[#allocation2 + $0x2c0] sm:$0xff] %vm673, %v5143
  %5210 = vst.msk [vmem:[#allocation2 + $0x2d8] sm:$0xff] %vm673, %v5145
  %5211 = vst.msk [vmem:[#allocation2 + $0x2f0] sm:$0xff] %vm673, %v5147
  %v5212 = vld [vmem:[%s4955 + $0x1] sm:$0xff]
  %v5213 = vld [vmem:[%s4955 + $0x9] sm:$0xff]
  %v5214 = vld [vmem:[%s4955 + $0x19] sm:$0xff]
  %v5215 = vld [vmem:[%s4955 + $0x21] sm:$0xff]
  %v5216 = vld [vmem:[%s4955 + $0x31] sm:$0xff]
  %v5217 = vld [vmem:[%s4955 + $0x39] sm:$0xff]
  %v5218 = vld [vmem:[%s4955 + $0x49] sm:$0xff]
  %v5219 = vld [vmem:[%s4955 + $0x51] sm:$0xff]
  %v5220 = vld [vmem:[%s4955 + $0x61] sm:$0xff]
  %v5221 = vld [vmem:[%s4955 + $0x69] sm:$0xff]
  %v5222 = vld [vmem:[%s4955 + $0x79] sm:$0xff]
  %v5223 = vld [vmem:[%s4955 + $0x81] sm:$0xff]
  %v5224 = vld [vmem:[%s4955 + $0x91] sm:$0xff]
  %v5225 = vld [vmem:[%s4955 + $0x99] sm:$0xff]
  %v5226 = vld [vmem:[%s4955 + $0xa9] sm:$0xff]
  %v5227 = vld [vmem:[%s4955 + $0xb1] sm:$0xff]
  %v5228 = vld [vmem:[%s4955 + $0xc1] sm:$0xff]
  %v5229 = vld [vmem:[%s4955 + $0xc9] sm:$0xff]
  %v5230 = vld [vmem:[%s4955 + $0xd9] sm:$0xff]
  %v5231 = vld [vmem:[%s4955 + $0xe1] sm:$0xff]
  %v5232 = vld [vmem:[%s4955 + $0xf1] sm:$0xff]
  %v5233 = vld [vmem:[%s4955 + $0xf9] sm:$0xff]
  %v5234 = vld [vmem:[%s4955 + $0x109] sm:$0xff]
  %v5235 = vld [vmem:[%s4955 + $0x111] sm:$0xff]
  %v5236 = vld [vmem:[%s4955 + $0x121] sm:$0xff]
  %v5237 = vld [vmem:[%s4955 + $0x129] sm:$0xff]
  %v5238 = vld [vmem:[%s4955 + $0x139] sm:$0xff]
  %v5239 = vld [vmem:[%s4955 + $0x141] sm:$0xff]
  %v5240 = vld [vmem:[%s4955 + $0x151] sm:$0xff]
  %v5241 = vld [vmem:[%s4955 + $0x159] sm:$0xff]
  %v5242 = vld [vmem:[%s4955 + $0x169] sm:$0xff]
  %v5243 = vld [vmem:[%s4955 + $0x171] sm:$0xff]
  %v5244 = vld [vmem:[%s4955 + $0x1b1] sm:$0xff]
  %v5245 = vld [vmem:[%s4955 + $0x1b9] sm:$0xff]
  %v5246 = vld [vmem:[%s4955 + $0x1c9] sm:$0xff]
  %v5247 = vld [vmem:[%s4955 + $0x1d1] sm:$0xff]
  %v5248 = vld [vmem:[%s4955 + $0x1e1] sm:$0xff]
  %v5249 = vld [vmem:[%s4955 + $0x1e9] sm:$0xff]
  %v5250 = vld [vmem:[%s4955 + $0x1f9] sm:$0xff]
  %v5251 = vld [vmem:[%s4955 + $0x201] sm:$0xff]
  %v5252 = vld [vmem:[%s4955 + $0x211] sm:$0xff]
  %v5253 = vld [vmem:[%s4955 + $0x219] sm:$0xff]
  %v5254 = vld [vmem:[%s4955 + $0x229] sm:$0xff]
  %v5255 = vld [vmem:[%s4955 + $0x231] sm:$0xff]
  %v5256 = vld [vmem:[%s4955 + $0x241] sm:$0xff]
  %v5257 = vld [vmem:[%s4955 + $0x249] sm:$0xff]
  %v5258 = vld [vmem:[%s4955 + $0x259] sm:$0xff]
  %v5259 = vld [vmem:[%s4955 + $0x261] sm:$0xff]
  %v5260 = vld [vmem:[%s4955 + $0x271] sm:$0xff]
  %v5261 = vld [vmem:[%s4955 + $0x279] sm:$0xff]
  %v5262 = vld [vmem:[%s4955 + $0x289] sm:$0xff]
  %v5263 = vld [vmem:[%s4955 + $0x291] sm:$0xff]
  %v5264 = vld [vmem:[%s4955 + $0x2a1] sm:$0xff]
  %v5265 = vld [vmem:[%s4955 + $0x2a9] sm:$0xff]
  %v5266 = vld [vmem:[%s4955 + $0x2b9] sm:$0xff]
  %v5267 = vld [vmem:[%s4955 + $0x2c1] sm:$0xff]
  %v5268 = vld [vmem:[%s4955 + $0x2d1] sm:$0xff]
  %v5269 = vld [vmem:[%s4955 + $0x2d9] sm:$0xff]
  %v5270 = vld [vmem:[%s4955 + $0x2e9] sm:$0xff]
  %v5271 = vld [vmem:[%s4955 + $0x2f1] sm:$0xff]
  %v5272 = vld [vmem:[%s4955 + $0x301] sm:$0xff]
  %v5273 = vld [vmem:[%s4955 + $0x309] sm:$0xff]
  %v5274 = vld [vmem:[%s4955 + $0x319] sm:$0xff]
  %v5275 = vld [vmem:[%s4955 + $0x321] sm:$0xff]
  %v5276 = vpack.c.bf16 %v5213, %v5212
  %v5277 = vpack.c.bf16 %v5215, %v5214
  %v5278 = vpack.c.bf16 %v5217, %v5216
  %v5279 = vpack.c.bf16 %v5219, %v5218
  %v5280 = vpack.c.bf16 %v5221, %v5220
  %v5281 = vpack.c.bf16 %v5223, %v5222
  %v5282 = vpack.c.bf16 %v5225, %v5224
  %v5283 = vpack.c.bf16 %v5227, %v5226
  %v5284 = vpack.c.bf16 %v5229, %v5228
  %v5285 = vpack.c.bf16 %v5231, %v5230
  %v5286 = vpack.c.bf16 %v5233, %v5232
  %v5287 = vpack.c.bf16 %v5235, %v5234
  %v5288 = vpack.c.bf16 %v5237, %v5236
  %v5289 = vpack.c.bf16 %v5239, %v5238
  %v5290 = vpack.c.bf16 %v5241, %v5240
  %v5291 = vpack.c.bf16 %v5243, %v5242
  %v5292 = vpack.c.bf16 %v5245, %v5244
  %v5293 = vpack.c.bf16 %v5247, %v5246
  %v5294 = vpack.c.bf16 %v5249, %v5248
  %v5295 = vpack.c.bf16 %v5251, %v5250
  %v5296 = vpack.c.bf16 %v5253, %v5252
  %v5297 = vpack.c.bf16 %v5255, %v5254
  %v5298 = vpack.c.bf16 %v5257, %v5256
  %v5299 = vpack.c.bf16 %v5259, %v5258
  %v5300 = vpack.c.bf16 %v5261, %v5260
  %v5301 = vpack.c.bf16 %v5263, %v5262
  %v5302 = vpack.c.bf16 %v5265, %v5264
  %v5303 = vpack.c.bf16 %v5267, %v5266
  %v5304 = vpack.c.bf16 %v5269, %v5268
  %v5305 = vpack.c.bf16 %v5271, %v5270
  %v5306 = vpack.c.bf16 %v5273, %v5272
  %v5307 = vpack.c.bf16 %v5275, %v5274
  %5340 = vrot.lane.b32.xlu0 %v5276, 96
  %v5341 = vpop.permute.xlu0 %5340
  %5342 = vrot.lane.b32.xlu0 %v5277, 96
  %v5343 = vpop.permute.xlu0 %5342
  %5344 = vrot.lane.b32.xlu0 %v5278, 96
  %v5345 = vpop.permute.xlu0 %5344
  %5346 = vrot.lane.b32.xlu0 %v5279, 96
  %v5347 = vpop.permute.xlu0 %5346
  %5348 = vrot.lane.b32.xlu0 %v5280, 96
  %v5349 = vpop.permute.xlu0 %5348
  %5350 = vrot.lane.b32.xlu0 %v5281, 96
  %v5351 = vpop.permute.xlu0 %5350
  %5352 = vrot.lane.b32.xlu0 %v5282, 96
  %v5353 = vpop.permute.xlu0 %5352
  %5354 = vrot.lane.b32.xlu0 %v5283, 96
  %v5355 = vpop.permute.xlu0 %5354
  %5356 = vrot.lane.b32.xlu0 %v5284, 96
  %v5357 = vpop.permute.xlu0 %5356
  %5358 = vrot.lane.b32.xlu0 %v5285, 96
  %v5359 = vpop.permute.xlu0 %5358
  %5360 = vrot.lane.b32.xlu0 %v5286, 96
  %v5361 = vpop.permute.xlu0 %5360
  %5362 = vrot.lane.b32.xlu0 %v5287, 96
  %v5363 = vpop.permute.xlu0 %5362
  %5364 = vrot.lane.b32.xlu0 %v5288, 96
  %v5365 = vpop.permute.xlu0 %5364
  %5366 = vrot.lane.b32.xlu0 %v5289, 96
  %v5367 = vpop.permute.xlu0 %5366
  %5368 = vrot.lane.b32.xlu0 %v5290, 96
  %v5369 = vpop.permute.xlu0 %5368
  %5370 = vrot.lane.b32.xlu0 %v5291, 96
  %v5371 = vpop.permute.xlu0 %5370
  %5372 = vrot.lane.b32.xlu0 %v5292, 96
  %v5373 = vpop.permute.xlu0 %5372
  %5374 = vrot.lane.b32.xlu0 %v5293, 96
  %v5375 = vpop.permute.xlu0 %5374
  %5376 = vrot.lane.b32.xlu0 %v5294, 96
  %v5377 = vpop.permute.xlu0 %5376
  %5378 = vrot.lane.b32.xlu0 %v5295, 96
  %v5379 = vpop.permute.xlu0 %5378
  %5380 = vrot.lane.b32.xlu0 %v5296, 96
  %v5381 = vpop.permute.xlu0 %5380
  %5382 = vrot.lane.b32.xlu0 %v5297, 96
  %v5383 = vpop.permute.xlu0 %5382
  %5384 = vrot.lane.b32.xlu0 %v5298, 96
  %v5385 = vpop.permute.xlu0 %5384
  %5386 = vrot.lane.b32.xlu0 %v5299, 96
  %v5387 = vpop.permute.xlu0 %5386
  %5388 = vrot.lane.b32.xlu0 %v5300, 96
  %v5389 = vpop.permute.xlu0 %5388
  %5390 = vrot.lane.b32.xlu0 %v5301, 96
  %v5391 = vpop.permute.xlu0 %5390
  %5392 = vrot.lane.b32.xlu0 %v5302, 96
  %v5393 = vpop.permute.xlu0 %5392
  %5394 = vrot.lane.b32.xlu0 %v5303, 96
  %v5395 = vpop.permute.xlu0 %5394
  %5396 = vrot.lane.b32.xlu0 %v5304, 96
  %v5397 = vpop.permute.xlu0 %5396
  %5398 = vrot.lane.b32.xlu0 %v5305, 96
  %v5399 = vpop.permute.xlu0 %5398
  %5400 = vrot.lane.b32.xlu0 %v5306, 96
  %v5401 = vpop.permute.xlu0 %5400
  %5402 = vrot.lane.b32.xlu0 %v5307, 96
  %v5403 = vpop.permute.xlu0 %5402
  %5436 = vst.msk [vmem:[#allocation2 + $0x8] sm:$0xff] %vm931, %v5341
  %5437 = vst.msk [vmem:[#allocation2 + $0x20] sm:$0xff] %vm931, %v5343
  %5438 = vst.msk [vmem:[#allocation2 + $0x38] sm:$0xff] %vm931, %v5345
  %5439 = vst.msk [vmem:[#allocation2 + $0x50] sm:$0xff] %vm931, %v5347
  %5440 = vst.msk [vmem:[#allocation2 + $0x68] sm:$0xff] %vm931, %v5349
  %5441 = vst.msk [vmem:[#allocation2 + $0x80] sm:$0xff] %vm931, %v5351
  %5442 = vst.msk [vmem:[#allocation2 + $0x98] sm:$0xff] %vm931, %v5353
  %5443 = vst.msk [vmem:[#allocation2 + $0xb0] sm:$0xff] %vm931, %v5355
  %5444 = vst.msk [vmem:[#allocation2 + $0xc8] sm:$0xff] %vm931, %v5357
  %5445 = vst.msk [vmem:[#allocation2 + $0xe0] sm:$0xff] %vm931, %v5359
  %5446 = vst.msk [vmem:[#allocation2 + $0xf8] sm:$0xff] %vm931, %v5361
  %5447 = vst.msk [vmem:[#allocation2 + $0x110] sm:$0xff] %vm931, %v5363
  %5448 = vst.msk [vmem:[#allocation2 + $0x128] sm:$0xff] %vm931, %v5365
  %5449 = vst.msk [vmem:[#allocation2 + $0x140] sm:$0xff] %vm931, %v5367
  %5450 = vst.msk [vmem:[#allocation2 + $0x158] sm:$0xff] %vm931, %v5369
  %5451 = vst.msk [vmem:[#allocation2 + $0x170] sm:$0xff] %vm931, %v5371
  %5452 = vst.msk [vmem:[#allocation2 + $0x188] sm:$0xff] %vm931, %v5373
  %5453 = vst.msk [vmem:[#allocation2 + $0x1a0] sm:$0xff] %vm931, %v5375
  %5454 = vst.msk [vmem:[#allocation2 + $0x1b8] sm:$0xff] %vm931, %v5377
  %5455 = vst.msk [vmem:[#allocation2 + $0x1d0] sm:$0xff] %vm931, %v5379
  %5456 = vst.msk [vmem:[#allocation2 + $0x1e8] sm:$0xff] %vm931, %v5381
  %5457 = vst.msk [vmem:[#allocation2 + $0x200] sm:$0xff] %vm931, %v5383
  %5458 = vst.msk [vmem:[#allocation2 + $0x218] sm:$0xff] %vm931, %v5385
  %5459 = vst.msk [vmem:[#allocation2 + $0x230] sm:$0xff] %vm931, %v5387
  %5460 = vst.msk [vmem:[#allocation2 + $0x248] sm:$0xff] %vm931, %v5389
  %5461 = vst.msk [vmem:[#allocation2 + $0x260] sm:$0xff] %vm931, %v5391
  %5462 = vst.msk [vmem:[#allocation2 + $0x278] sm:$0xff] %vm931, %v5393
  %5463 = vst.msk [vmem:[#allocation2 + $0x290] sm:$0xff] %vm931, %v5395
  %5464 = vst.msk [vmem:[#allocation2 + $0x2a8] sm:$0xff] %vm931, %v5397
  %5465 = vst.msk [vmem:[#allocation2 + $0x2c0] sm:$0xff] %vm931, %v5399
  %5466 = vst.msk [vmem:[#allocation2 + $0x2d8] sm:$0xff] %vm931, %v5401
  %5467 = vst.msk [vmem:[#allocation2 + $0x2f0] sm:$0xff] %vm931, %v5403
  %v5468 = vld [vmem:[%s4955 + $0x2] sm:$0xff]
  %v5469 = vld [vmem:[%s4955 + $0xa] sm:$0xff]
  %v5470 = vld [vmem:[%s4955 + $0x1a] sm:$0xff]
  %v5471 = vld [vmem:[%s4955 + $0x22] sm:$0xff]
  %v5472 = vld [vmem:[%s4955 + $0x32] sm:$0xff]
  %v5473 = vld [vmem:[%s4955 + $0x3a] sm:$0xff]
  %v5474 = vld [vmem:[%s4955 + $0x4a] sm:$0xff]
  %v5475 = vld [vmem:[%s4955 + $0x52] sm:$0xff]
  %v5476 = vld [vmem:[%s4955 + $0x62] sm:$0xff]
  %v5477 = vld [vmem:[%s4955 + $0x6a] sm:$0xff]
  %v5478 = vld [vmem:[%s4955 + $0x7a] sm:$0xff]
  %v5479 = vld [vmem:[%s4955 + $0x82] sm:$0xff]
  %v5480 = vld [vmem:[%s4955 + $0x92] sm:$0xff]
  %v5481 = vld [vmem:[%s4955 + $0x9a] sm:$0xff]
  %v5482 = vld [vmem:[%s4955 + $0xaa] sm:$0xff]
  %v5483 = vld [vmem:[%s4955 + $0xb2] sm:$0xff]
  %v5484 = vld [vmem:[%s4955 + $0xc2] sm:$0xff]
  %v5485 = vld [vmem:[%s4955 + $0xca] sm:$0xff]
  %v5486 = vld [vmem:[%s4955 + $0xda] sm:$0xff]
  %v5487 = vld [vmem:[%s4955 + $0xe2] sm:$0xff]
  %v5488 = vld [vmem:[%s4955 + $0xf2] sm:$0xff]
  %v5489 = vld [vmem:[%s4955 + $0xfa] sm:$0xff]
  %v5490 = vld [vmem:[%s4955 + $0x10a] sm:$0xff]
  %v5491 = vld [vmem:[%s4955 + $0x112] sm:$0xff]
  %v5492 = vld [vmem:[%s4955 + $0x122] sm:$0xff]
  %v5493 = vld [vmem:[%s4955 + $0x12a] sm:$0xff]
  %v5494 = vld [vmem:[%s4955 + $0x13a] sm:$0xff]
  %v5495 = vld [vmem:[%s4955 + $0x142] sm:$0xff]
  %v5496 = vld [vmem:[%s4955 + $0x152] sm:$0xff]
  %v5497 = vld [vmem:[%s4955 + $0x15a] sm:$0xff]
  %v5498 = vld [vmem:[%s4955 + $0x16a] sm:$0xff]
  %v5499 = vld [vmem:[%s4955 + $0x172] sm:$0xff]
  %v5500 = vld [vmem:[%s4955 + $0x1b2] sm:$0xff]
  %v5501 = vld [vmem:[%s4955 + $0x1ba] sm:$0xff]
  %v5502 = vld [vmem:[%s4955 + $0x1ca] sm:$0xff]
  %v5503 = vld [vmem:[%s4955 + $0x1d2] sm:$0xff]
  %v5504 = vld [vmem:[%s4955 + $0x1e2] sm:$0xff]
  %v5505 = vld [vmem:[%s4955 + $0x1ea] sm:$0xff]
  %v5506 = vld [vmem:[%s4955 + $0x1fa] sm:$0xff]
  %v5507 = vld [vmem:[%s4955 + $0x202] sm:$0xff]
  %v5508 = vld [vmem:[%s4955 + $0x212] sm:$0xff]
  %v5509 = vld [vmem:[%s4955 + $0x21a] sm:$0xff]
  %v5510 = vld [vmem:[%s4955 + $0x22a] sm:$0xff]
  %v5511 = vld [vmem:[%s4955 + $0x232] sm:$0xff]
  %v5512 = vld [vmem:[%s4955 + $0x242] sm:$0xff]
  %v5513 = vld [vmem:[%s4955 + $0x24a] sm:$0xff]
  %v5514 = vld [vmem:[%s4955 + $0x25a] sm:$0xff]
  %v5515 = vld [vmem:[%s4955 + $0x262] sm:$0xff]
  %v5516 = vld [vmem:[%s4955 + $0x272] sm:$0xff]
  %v5517 = vld [vmem:[%s4955 + $0x27a] sm:$0xff]
  %v5518 = vld [vmem:[%s4955 + $0x28a] sm:$0xff]
  %v5519 = vld [vmem:[%s4955 + $0x292] sm:$0xff]
  %v5520 = vld [vmem:[%s4955 + $0x2a2] sm:$0xff]
  %v5521 = vld [vmem:[%s4955 + $0x2aa] sm:$0xff]
  %v5522 = vld [vmem:[%s4955 + $0x2ba] sm:$0xff]
  %v5523 = vld [vmem:[%s4955 + $0x2c2] sm:$0xff]
  %v5524 = vld [vmem:[%s4955 + $0x2d2] sm:$0xff]
  %v5525 = vld [vmem:[%s4955 + $0x2da] sm:$0xff]
  %v5526 = vld [vmem:[%s4955 + $0x2ea] sm:$0xff]
  %v5527 = vld [vmem:[%s4955 + $0x2f2] sm:$0xff]
  %v5528 = vld [vmem:[%s4955 + $0x302] sm:$0xff]
  %v5529 = vld [vmem:[%s4955 + $0x30a] sm:$0xff]
  %v5530 = vld [vmem:[%s4955 + $0x31a] sm:$0xff]
  %v5531 = vld [vmem:[%s4955 + $0x322] sm:$0xff]
  %v5532 = vpack.c.bf16 %v5469, %v5468
  %v5533 = vpack.c.bf16 %v5471, %v5470
  %v5534 = vpack.c.bf16 %v5473, %v5472
  %v5535 = vpack.c.bf16 %v5475, %v5474
  %v5536 = vpack.c.bf16 %v5477, %v5476
  %v5537 = vpack.c.bf16 %v5479, %v5478
  %v5538 = vpack.c.bf16 %v5481, %v5480
  %v5539 = vpack.c.bf16 %v5483, %v5482
  %v5540 = vpack.c.bf16 %v5485, %v5484
  %v5541 = vpack.c.bf16 %v5487, %v5486
  %v5542 = vpack.c.bf16 %v5489, %v5488
  %v5543 = vpack.c.bf16 %v5491, %v5490
  %v5544 = vpack.c.bf16 %v5493, %v5492
  %v5545 = vpack.c.bf16 %v5495, %v5494
  %v5546 = vpack.c.bf16 %v5497, %v5496
  %v5547 = vpack.c.bf16 %v5499, %v5498
  %v5548 = vpack.c.bf16 %v5501, %v5500
  %v5549 = vpack.c.bf16 %v5503, %v5502
  %v5550 = vpack.c.bf16 %v5505, %v5504
  %v5551 = vpack.c.bf16 %v5507, %v5506
  %v5552 = vpack.c.bf16 %v5509, %v5508
  %v5553 = vpack.c.bf16 %v5511, %v5510
  %v5554 = vpack.c.bf16 %v5513, %v5512
  %v5555 = vpack.c.bf16 %v5515, %v5514
  %v5556 = vpack.c.bf16 %v5517, %v5516
  %v5557 = vpack.c.bf16 %v5519, %v5518
  %v5558 = vpack.c.bf16 %v5521, %v5520
  %v5559 = vpack.c.bf16 %v5523, %v5522
  %v5560 = vpack.c.bf16 %v5525, %v5524
  %v5561 = vpack.c.bf16 %v5527, %v5526
  %v5562 = vpack.c.bf16 %v5529, %v5528
  %v5563 = vpack.c.bf16 %v5531, %v5530
  %5564 = vst.msk [vmem:[#allocation2 + $0x10] sm:$0xff] %vm159, %v5532
  %5565 = vst.msk [vmem:[#allocation2 + $0x28] sm:$0xff] %vm159, %v5533
  %5566 = vst.msk [vmem:[#allocation2 + $0x40] sm:$0xff] %vm159, %v5534
  %5567 = vst.msk [vmem:[#allocation2 + $0x58] sm:$0xff] %vm159, %v5535
  %5568 = vst.msk [vmem:[#allocation2 + $0x70] sm:$0xff] %vm159, %v5536
  %5569 = vst.msk [vmem:[#allocation2 + $0x88] sm:$0xff] %vm159, %v5537
  %5570 = vst.msk [vmem:[#allocation2 + $0xa0] sm:$0xff] %vm159, %v5538
  %5571 = vst.msk [vmem:[#allocation2 + $0xb8] sm:$0xff] %vm159, %v5539
  %5572 = vst.msk [vmem:[#allocation2 + $0xd0] sm:$0xff] %vm159, %v5540
  %5573 = vst.msk [vmem:[#allocation2 + $0xe8] sm:$0xff] %vm159, %v5541
  %5574 = vst.msk [vmem:[#allocation2 + $0x100] sm:$0xff] %vm159, %v5542
  %5575 = vst.msk [vmem:[#allocation2 + $0x118] sm:$0xff] %vm159, %v5543
  %5576 = vst.msk [vmem:[#allocation2 + $0x130] sm:$0xff] %vm159, %v5544
  %5577 = vst.msk [vmem:[#allocation2 + $0x148] sm:$0xff] %vm159, %v5545
  %5578 = vst.msk [vmem:[#allocation2 + $0x160] sm:$0xff] %vm159, %v5546
  %5579 = vst.msk [vmem:[#allocation2 + $0x178] sm:$0xff] %vm159, %v5547
  %5580 = vst.msk [vmem:[#allocation2 + $0x190] sm:$0xff] %vm159, %v5548
  %5581 = vst.msk [vmem:[#allocation2 + $0x1a8] sm:$0xff] %vm159, %v5549
  %5582 = vst.msk [vmem:[#allocation2 + $0x1c0] sm:$0xff] %vm159, %v5550
  %5583 = vst.msk [vmem:[#allocation2 + $0x1d8] sm:$0xff] %vm159, %v5551
  %5584 = vst.msk [vmem:[#allocation2 + $0x1f0] sm:$0xff] %vm159, %v5552
  %5585 = vst.msk [vmem:[#allocation2 + $0x208] sm:$0xff] %vm159, %v5553
  %5586 = vst.msk [vmem:[#allocation2 + $0x220] sm:$0xff] %vm159, %v5554
  %5587 = vst.msk [vmem:[#allocation2 + $0x238] sm:$0xff] %vm159, %v5555
  %5588 = vst.msk [vmem:[#allocation2 + $0x250] sm:$0xff] %vm159, %v5556
  %5589 = vst.msk [vmem:[#allocation2 + $0x268] sm:$0xff] %vm159, %v5557
  %5590 = vst.msk [vmem:[#allocation2 + $0x280] sm:$0xff] %vm159, %v5558
  %5591 = vst.msk [vmem:[#allocation2 + $0x298] sm:$0xff] %vm159, %v5559
  %5592 = vst.msk [vmem:[#allocation2 + $0x2b0] sm:$0xff] %vm159, %v5560
  %5593 = vst.msk [vmem:[#allocation2 + $0x2c8] sm:$0xff] %vm159, %v5561
  %5594 = vst.msk [vmem:[#allocation2 + $0x2e0] sm:$0xff] %vm159, %v5562
  %5595 = vst.msk [vmem:[#allocation2 + $0x2f8] sm:$0xff] %vm159, %v5563
  %v5596 = vld [vmem:[#allocation2] sm:$0xff]
  %v5597 = vld [vmem:[#allocation2 + $0x8] sm:$0xff]
  %v5598 = vld [vmem:[#allocation2 + $0x10] sm:$0xff]
  %v5599 = vld [vmem:[#allocation2 + $0x18] sm:$0xff]
  %v5600 = vld [vmem:[#allocation2 + $0x20] sm:$0xff]
  %v5601 = vld [vmem:[#allocation2 + $0x28] sm:$0xff]
  %v5602 = vld [vmem:[#allocation2 + $0x30] sm:$0xff]
  %v5603 = vld [vmem:[#allocation2 + $0x38] sm:$0xff]
  %v5604 = vld [vmem:[#allocation2 + $0x40] sm:$0xff]
  %v5605 = vld [vmem:[#allocation2 + $0x48] sm:$0xff]
  %v5606 = vld [vmem:[#allocation2 + $0x50] sm:$0xff]
  %v5607 = vld [vmem:[#allocation2 + $0x58] sm:$0xff]
  %v5608 = vld [vmem:[#allocation2 + $0x60] sm:$0xff]
  %v5609 = vld [vmem:[#allocation2 + $0x68] sm:$0xff]
  %v5610 = vld [vmem:[#allocation2 + $0x70] sm:$0xff]
  %v5611 = vld [vmem:[#allocation2 + $0x78] sm:$0xff]
  %v5612 = vld [vmem:[#allocation2 + $0x80] sm:$0xff]
  %v5613 = vld [vmem:[#allocation2 + $0x88] sm:$0xff]
  %v5614 = vld [vmem:[#allocation2 + $0x90] sm:$0xff]
  %v5615 = vld [vmem:[#allocation2 + $0x98] sm:$0xff]
  %v5616 = vld [vmem:[#allocation2 + $0xa0] sm:$0xff]
  %v5617 = vld [vmem:[#allocation2 + $0xa8] sm:$0xff]
  %v5618 = vld [vmem:[#allocation2 + $0xb0] sm:$0xff]
  %v5619 = vld [vmem:[#allocation2 + $0xb8] sm:$0xff]
  %v5620 = vld [vmem:[#allocation2 + $0xc0] sm:$0xff]
  %v5621 = vld [vmem:[#allocation2 + $0xc8] sm:$0xff]
  %v5622 = vld [vmem:[#allocation2 + $0xd0] sm:$0xff]
  %v5623 = vld [vmem:[#allocation2 + $0xd8] sm:$0xff]
  %v5624 = vld [vmem:[#allocation2 + $0xe0] sm:$0xff]
  %v5625 = vld [vmem:[#allocation2 + $0xe8] sm:$0xff]
  %v5626 = vld [vmem:[#allocation2 + $0xf0] sm:$0xff]
  %v5627 = vld [vmem:[#allocation2 + $0xf8] sm:$0xff]
  %v5628 = vld [vmem:[#allocation2 + $0x100] sm:$0xff]
  %v5629 = vld [vmem:[#allocation2 + $0x108] sm:$0xff]
  %v5630 = vld [vmem:[#allocation2 + $0x110] sm:$0xff]
  %v5631 = vld [vmem:[#allocation2 + $0x118] sm:$0xff]
  %v5632 = vld [vmem:[#allocation2 + $0x120] sm:$0xff]
  %v5633 = vld [vmem:[#allocation2 + $0x128] sm:$0xff]
  %v5634 = vld [vmem:[#allocation2 + $0x130] sm:$0xff]
  %v5635 = vld [vmem:[#allocation2 + $0x138] sm:$0xff]
  %v5636 = vld [vmem:[#allocation2 + $0x140] sm:$0xff]
  %v5637 = vld [vmem:[#allocation2 + $0x148] sm:$0xff]
  %v5638 = vld [vmem:[#allocation2 + $0x150] sm:$0xff]
  %v5639 = vld [vmem:[#allocation2 + $0x158] sm:$0xff]
  %v5640 = vld [vmem:[#allocation2 + $0x160] sm:$0xff]
  %v5641 = vld [vmem:[#allocation2 + $0x168] sm:$0xff]
  %v5642 = vld [vmem:[#allocation2 + $0x170] sm:$0xff]
  %v5643 = vld [vmem:[#allocation2 + $0x178] sm:$0xff]
  %v5644 = vld [vmem:[#allocation2 + $0x180] sm:$0xff]
  %v5645 = vld [vmem:[#allocation2 + $0x188] sm:$0xff]
  %v5646 = vld [vmem:[#allocation2 + $0x190] sm:$0xff]
  %v5647 = vld [vmem:[#allocation2 + $0x198] sm:$0xff]
  %v5648 = vld [vmem:[#allocation2 + $0x1a0] sm:$0xff]
  %v5649 = vld [vmem:[#allocation2 + $0x1a8] sm:$0xff]
  %v5650 = vld [vmem:[#allocation2 + $0x1b0] sm:$0xff]
  %v5651 = vld [vmem:[#allocation2 + $0x1b8] sm:$0xff]
  %v5652 = vld [vmem:[#allocation2 + $0x1c0] sm:$0xff]
  %v5653 = vld [vmem:[#allocation2 + $0x1c8] sm:$0xff]
  %v5654 = vld [vmem:[#allocation2 + $0x1d0] sm:$0xff]
  %v5655 = vld [vmem:[#allocation2 + $0x1d8] sm:$0xff]
  %v5656 = vld [vmem:[#allocation2 + $0x1e0] sm:$0xff]
  %v5657 = vld [vmem:[#allocation2 + $0x1e8] sm:$0xff]
  %v5658 = vld [vmem:[#allocation2 + $0x1f0] sm:$0xff]
  %v5659 = vld [vmem:[#allocation2 + $0x1f8] sm:$0xff]
  %v5660 = vld [vmem:[#allocation2 + $0x200] sm:$0xff]
  %v5661 = vld [vmem:[#allocation2 + $0x208] sm:$0xff]
  %v5662 = vld [vmem:[#allocation2 + $0x210] sm:$0xff]
  %v5663 = vld [vmem:[#allocation2 + $0x218] sm:$0xff]
  %v5664 = vld [vmem:[#allocation2 + $0x220] sm:$0xff]
  %v5665 = vld [vmem:[#allocation2 + $0x228] sm:$0xff]
  %v5666 = vld [vmem:[#allocation2 + $0x230] sm:$0xff]
  %v5667 = vld [vmem:[#allocation2 + $0x238] sm:$0xff]
  %v5668 = vld [vmem:[#allocation2 + $0x240] sm:$0xff]
  %v5669 = vld [vmem:[#allocation2 + $0x248] sm:$0xff]
  %v5670 = vld [vmem:[#allocation2 + $0x250] sm:$0xff]
  %v5671 = vld [vmem:[#allocation2 + $0x258] sm:$0xff]
  %v5672 = vld [vmem:[#allocation2 + $0x260] sm:$0xff]
  %v5673 = vld [vmem:[#allocation2 + $0x268] sm:$0xff]
  %v5674 = vld [vmem:[#allocation2 + $0x270] sm:$0xff]
  %v5675 = vld [vmem:[#allocation2 + $0x278] sm:$0xff]
  %v5676 = vld [vmem:[#allocation2 + $0x280] sm:$0xff]
  %v5677 = vld [vmem:[#allocation2 + $0x288] sm:$0xff]
  %v5678 = vld [vmem:[#allocation2 + $0x290] sm:$0xff]
  %v5679 = vld [vmem:[#allocation2 + $0x298] sm:$0xff]
  %v5680 = vld [vmem:[#allocation2 + $0x2a0] sm:$0xff]
  %v5681 = vld [vmem:[#allocation2 + $0x2a8] sm:$0xff]
  %v5682 = vld [vmem:[#allocation2 + $0x2b0] sm:$0xff]
  %v5683 = vld [vmem:[#allocation2 + $0x2b8] sm:$0xff]
  %v5684 = vld [vmem:[#allocation2 + $0x2c0] sm:$0xff]
  %v5685 = vld [vmem:[#allocation2 + $0x2c8] sm:$0xff]
  %v5686 = vld [vmem:[#allocation2 + $0x2d0] sm:$0xff]
  %v5687 = vld [vmem:[#allocation2 + $0x2d8] sm:$0xff]
  %v5688 = vld [vmem:[#allocation2 + $0x2e0] sm:$0xff]
  %v5689 = vld [vmem:[#allocation2 + $0x2e8] sm:$0xff]
  %v5690 = vld [vmem:[#allocation2 + $0x2f0] sm:$0xff]
  %v5691 = vld [vmem:[#allocation2 + $0x2f8] sm:$0xff]
  %v5692 = vld [vmem:[%s3] sm:$0xf]
  %v5693 = vld [vmem:[%s3 + $0x4] sm:$0xf]
  %v5694 = vld [vmem:[%s3 + $0x8] sm:$0xf]
  %v5695 = vld [vmem:[%s3 + $0xc] sm:$0xf]
  %v5696 = vld [vmem:[%s3 + $0x10] sm:$0xf]
  %v5697 = vld [vmem:[%s3 + $0x14] sm:$0xf]
  %v5698 = vld [vmem:[%s3 + $0x18] sm:$0xf]
  %v5699 = vld [vmem:[%s3 + $0x1c] sm:$0xf]
  %v5700 = vld [vmem:[%s3 + $0x20] sm:$0xf]
  %v5701 = vld [vmem:[%s3 + $0x24] sm:$0xf]
  %v5702 = vld [vmem:[%s3 + $0x28] sm:$0xf]
  %v5703 = vld [vmem:[%s3 + $0x2c] sm:$0xf]
  %v5704 = vld [vmem:[%s3 + $0x30] sm:$0xf]
  %v5705 = vld [vmem:[%s3 + $0x34] sm:$0xf]
  %v5706 = vld [vmem:[%s3 + $0x38] sm:$0xf]
  %v5707 = vld [vmem:[%s3 + $0x3c] sm:$0xf]
  %v5708 = vld [vmem:[%s3 + $0x40] sm:$0xf]
  %v5709 = vld [vmem:[%s3 + $0x44] sm:$0xf]
  %v5710 = vld [vmem:[%s3 + $0x48] sm:$0xf]
  %v5711 = vld [vmem:[%s3 + $0x4c] sm:$0xf]
  %v5712 = vld [vmem:[%s3 + $0x50] sm:$0xf]
  %v5713 = vld [vmem:[%s3 + $0x54] sm:$0xf]
  %v5714 = vld [vmem:[%s3 + $0x58] sm:$0xf]
  %v5715 = vld [vmem:[%s3 + $0x5c] sm:$0xf]
  %v5716 = vld [vmem:[%s3 + $0x60] sm:$0xf]
  %v5717 = vld [vmem:[%s3 + $0x64] sm:$0xf]
  %v5718 = vld [vmem:[%s3 + $0x68] sm:$0xf]
  %v5719 = vld [vmem:[%s3 + $0x6c] sm:$0xf]
  %v5720 = vld [vmem:[%s3 + $0x70] sm:$0xf]
  %v5721 = vld [vmem:[%s3 + $0x74] sm:$0xf]
  %v5722 = vld [vmem:[%s3 + $0x78] sm:$0xf]
  %v5723 = vld [vmem:[%s3 + $0x7c] sm:$0xf]
  %v5724 = vld [vmem:[%s3 + $0x80] sm:$0xf]
  %v5725 = vld [vmem:[%s3 + $0x84] sm:$0xf]
  %v5726 = vld [vmem:[%s3 + $0x88] sm:$0xf]
  %v5727 = vld [vmem:[%s3 + $0x8c] sm:$0xf]
  %v5728 = vld [vmem:[%s3 + $0x90] sm:$0xf]
  %v5729 = vld [vmem:[%s3 + $0x94] sm:$0xf]
  %v5730 = vld [vmem:[%s3 + $0x98] sm:$0xf]
  %v5731 = vld [vmem:[%s3 + $0x9c] sm:$0xf]
  %v5732 = vld [vmem:[%s3 + $0xa0] sm:$0xf]
  %v5733 = vld [vmem:[%s3 + $0xa4] sm:$0xf]
  %v5734 = vld [vmem:[%s3 + $0xa8] sm:$0xf]
  %v5735 = vld [vmem:[%s3 + $0xac] sm:$0xf]
  %v5736 = vld [vmem:[%s3 + $0xb0] sm:$0xf]
  %v5737 = vld [vmem:[%s3 + $0xb4] sm:$0xf]
  %v5738 = vld [vmem:[%s3 + $0xb8] sm:$0xf]
  %v5739 = vld [vmem:[%s3 + $0xbc] sm:$0xf]
  %v5788 = vunpack.c.l.b16 %v5692
  %v5789 = vunpack.c.l.b16 %v5693
  %v5790 = vunpack.c.l.b16 %v5694
  %v5791 = vunpack.c.l.b16 %v5695
  %v5792 = vunpack.c.l.b16 %v5696
  %v5793 = vunpack.c.l.b16 %v5697
  %v5794 = vunpack.c.l.b16 %v5698
  %v5795 = vunpack.c.l.b16 %v5699
  %v5796 = vunpack.c.l.b16 %v5700
  %v5797 = vunpack.c.l.b16 %v5701
  %v5798 = vunpack.c.l.b16 %v5702
  %v5799 = vunpack.c.l.b16 %v5703
  %v5800 = vunpack.c.l.b16 %v5704
  %v5801 = vunpack.c.l.b16 %v5705
  %v5802 = vunpack.c.l.b16 %v5706
  %v5803 = vunpack.c.l.b16 %v5707
  %v5804 = vunpack.c.l.b16 %v5708
  %v5805 = vunpack.c.l.b16 %v5709
  %v5806 = vunpack.c.l.b16 %v5710
  %v5807 = vunpack.c.l.b16 %v5711
  %v5808 = vunpack.c.l.b16 %v5712
  %v5809 = vunpack.c.l.b16 %v5713
  %v5810 = vunpack.c.l.b16 %v5714
  %v5811 = vunpack.c.l.b16 %v5715
  %v5812 = vunpack.c.l.b16 %v5716
  %v5813 = vunpack.c.l.b16 %v5717
  %v5814 = vunpack.c.l.b16 %v5718
  %v5815 = vunpack.c.l.b16 %v5719
  %v5816 = vunpack.c.l.b16 %v5720
  %v5817 = vunpack.c.l.b16 %v5721
  %v5818 = vunpack.c.l.b16 %v5722
  %v5819 = vunpack.c.l.b16 %v5723
  %v5820 = vunpack.c.l.b16 %v5724
  %v5821 = vunpack.c.l.b16 %v5725
  %v5822 = vunpack.c.l.b16 %v5726
  %v5823 = vunpack.c.l.b16 %v5727
  %v5824 = vunpack.c.l.b16 %v5728
  %v5825 = vunpack.c.l.b16 %v5729
  %v5826 = vunpack.c.l.b16 %v5730
  %v5827 = vunpack.c.l.b16 %v5731
  %v5828 = vunpack.c.l.b16 %v5732
  %v5829 = vunpack.c.l.b16 %v5733
  %v5830 = vunpack.c.l.b16 %v5734
  %v5831 = vunpack.c.l.b16 %v5735
  %v5832 = vunpack.c.l.b16 %v5736
  %v5833 = vunpack.c.l.b16 %v5737
  %v5834 = vunpack.c.l.b16 %v5738
  %v5835 = vunpack.c.l.b16 %v5739
  %v5836 = vpack.c.b16 %v5789, %v5788
  %v5837 = vpack.c.b16 %v5791, %v5790
  %v5838 = vpack.c.b16 %v5793, %v5792
  %v5839 = vpack.c.b16 %v5795, %v5794
  %v5840 = vpack.c.b16 %v5797, %v5796
  %v5841 = vpack.c.b16 %v5799, %v5798
  %v5842 = vpack.c.b16 %v5801, %v5800
  %v5843 = vpack.c.b16 %v5803, %v5802
  %v5844 = vpack.c.b16 %v5805, %v5804
  %v5845 = vpack.c.b16 %v5807, %v5806
  %v5846 = vpack.c.b16 %v5809, %v5808
  %v5847 = vpack.c.b16 %v5811, %v5810
  %v5848 = vpack.c.b16 %v5813, %v5812
  %v5849 = vpack.c.b16 %v5815, %v5814
  %v5850 = vpack.c.b16 %v5817, %v5816
  %v5851 = vpack.c.b16 %v5819, %v5818
  %v5852 = vpack.c.b16 %v5821, %v5820
  %v5853 = vpack.c.b16 %v5823, %v5822
  %v5854 = vpack.c.b16 %v5825, %v5824
  %v5855 = vpack.c.b16 %v5827, %v5826
  %v5856 = vpack.c.b16 %v5829, %v5828
  %v5857 = vpack.c.b16 %v5831, %v5830
  %v5858 = vpack.c.b16 %v5833, %v5832
  %v5859 = vpack.c.b16 %v5835, %v5834
  %5884 = vmatprep.subr.bf16.mxu0 0
  %5885 = vmatpush1.bf16.msra.mxu0 %v5836
  %5886 = vmatprep.subr.bf16.mxu0 0
  %5887 = vmatpush1.bf16.msra.mxu0 %v5837
  %5888 = vmatprep.subr.bf16.mxu0 0
  %5889 = vmatpush1.bf16.msra.mxu0 %v5838
  %5890 = vmatprep.subr.bf16.mxu0 0
  %5891 = vmatpush1.bf16.msra.mxu0 %v5839
  %5892 = vmatprep.subr.bf16.mxu0 0
  %5893 = vmatpush1.bf16.msra.mxu0 %v5840
  %5894 = vmatprep.subr.bf16.mxu0 0
  %5895 = vmatpush1.bf16.msra.mxu0 %v5841
  %5896 = vmatprep.subr.bf16.mxu0 0
  %5897 = vmatpush1.bf16.msra.mxu0 %v5842
  %5898 = vmatprep.subr.bf16.mxu0 0
  %5899 = vmatpush1.bf16.msra.mxu0 %v5843
  %5900 = vmatprep.subr.bf16.mxu0 0
  %5901 = vmatpush1.bf16.msra.mxu0 %v5844
  %5902 = vmatprep.subr.bf16.mxu0 0
  %5903 = vmatpush1.bf16.msra.mxu0 %v5845
  %5904 = vmatprep.subr.bf16.mxu0 0
  %5905 = vmatpush1.bf16.msra.mxu0 %v5846
  %5906 = vmatprep.subr.bf16.mxu0 0
  %5907 = vmatpush1.bf16.msra.mxu0 %v5847
  %5908 = vmatprep.subr.bf16.mxu0 0
  %5909 = vmatpush1.bf16.msra.mxu0 %v5848
  %5910 = vmatprep.subr.bf16.mxu0 0
  %5911 = vmatpush1.bf16.msra.mxu0 %v5849
  %5912 = vmatprep.subr.bf16.mxu0 0
  %5913 = vmatpush1.bf16.msra.mxu0 %v5850
  %5914 = vmatprep.subr.bf16.mxu0 0
  %5915 = vmatpush1.bf16.msra.mxu0 %v5851
  %5916 = vmatprep.mubr.bf16.mxu0 %v5597
  %5917 = vmatmul.mubr.bf16.gmra.mrb[0].mxu0 %v5596
  %v5918 = vpop.f32.mrb[0].mxu0
  %v5919 = vadd.f32 0.0, %v5918
  %v5920 = vpop.f32.mrb[0].mxu0
  %v5921 = vpop.f32.mrb[0].mxu0
  %v5922 = vadd.f32 0.0, %v5921
  %v5923 = vpop.f32.mrb[0].mxu0
  %5924 = vmatprep.mubr.bf16.mxu0 %v5600
  %5925 = vmatmul.mubr.bf16.gmra.mrb[0].mxu0 %v5599
  %v5926 = vpop.f32.mrb[0].mxu0
  %v5927 = vadd.f32 0.0, %v5926
  %v5928 = vpop.f32.mrb[0].mxu0
  %v5929 = vpop.f32.mrb[0].mxu0
  %v5930 = vadd.f32 0.0, %v5929
  %v5931 = vpop.f32.mrb[0].mxu0
  %5932 = vmatprep.mubr.bf16.mxu0 %v5603
  %5933 = vmatmul.mubr.bf16.gmra.mrb[0].mxu0 %v5602
  %v5934 = vpop.f32.mrb[0].mxu0
  %v5935 = vadd.f32 0.0, %v5934
  %v5936 = vpop.f32.mrb[0].mxu0
  %v5937 = vpop.f32.mrb[0].mxu0
  %v5938 = vadd.f32 0.0, %v5937
  %v5939 = vpop.f32.mrb[0].mxu0
  %5940 = vmatprep.mubr.bf16.mxu0 %v5606
  %5941 = vmatmul.mubr.bf16.gmra.mrb[0].mxu0 %v5605
  %v5942 = vpop.f32.mrb[0].mxu0
  %v5943 = vadd.f32 0.0, %v5942
  %v5944 = vpop.f32.mrb[0].mxu0
  %v5945 = vpop.f32.mrb[0].mxu0
  %v5946 = vadd.f32 0.0, %v5945
  %v5947 = vpop.f32.mrb[0].mxu0
  %5948 = vmatprep.mubr.bf16.mxu0 %v5609
  %5949 = vmatmul.mubr.bf16.gmra.mrb[0].mxu0 %v5608
  %v5950 = vpop.f32.mrb[0].mxu0
  %v5951 = vadd.f32 0.0, %v5950
  %v5952 = vpop.f32.mrb[0].mxu0
  %v5953 = vpop.f32.mrb[0].mxu0
  %v5954 = vadd.f32 0.0, %v5953
  %v5955 = vpop.f32.mrb[0].mxu0
  %5956 = vmatprep.mubr.bf16.mxu0 %v5612
  %5957 = vmatmul.mubr.bf16.gmra.mrb[0].mxu0 %v5611
  %v5958 = vpop.f32.mrb[0].mxu0
  %v5959 = vadd.f32 0.0, %v5958
  %v5960 = vpop.f32.mrb[0].mxu0
  %v5961 = vpop.f32.mrb[0].mxu0
  %v5962 = vadd.f32 0.0, %v5961
  %v5963 = vpop.f32.mrb[0].mxu0
  %5964 = vmatprep.mubr.bf16.mxu0 %v5615
  %5965 = vmatmul.mubr.bf16.gmra.mrb[0].mxu0 %v5614
  %v5966 = vpop.f32.mrb[0].mxu0
  %v5967 = vadd.f32 0.0, %v5966
  %v5968 = vpop.f32.mrb[0].mxu0
  %v5969 = vpop.f32.mrb[0].mxu0
  %v5970 = vadd.f32 0.0, %v5969
  %v5971 = vpop.f32.mrb[0].mxu0
  %5972 = vmatprep.mubr.bf16.mxu0 %v5618
  %5973 = vmatmul.mubr.bf16.gmra.mrb[0].mxu0 %v5617
  %v5974 = vpop.f32.mrb[0].mxu0
  %v5975 = vadd.f32 0.0, %v5974
  %v5976 = vpop.f32.mrb[0].mxu0
  %v5977 = vpop.f32.mrb[0].mxu0
  %v5978 = vadd.f32 0.0, %v5977
  %v5979 = vpop.f32.mrb[0].mxu0
  %5980 = vmatprep.mubr.bf16.mxu0 %v5621
  %5981 = vmatmul.mubr.bf16.gmra.mrb[0].mxu0 %v5620
  %v5982 = vpop.f32.mrb[0].mxu0
  %v5983 = vadd.f32 0.0, %v5982
  %v5984 = vpop.f32.mrb[0].mxu0
  %v5985 = vpop.f32.mrb[0].mxu0
  %v5986 = vadd.f32 0.0, %v5985
  %v5987 = vpop.f32.mrb[0].mxu0
  %5988 = vmatprep.mubr.bf16.mxu0 %v5624
  %5989 = vmatmul.mubr.bf16.gmra.mrb[0].mxu0 %v5623
  %v5990 = vpop.f32.mrb[0].mxu0
  %v5991 = vadd.f32 0.0, %v5990
  %v5992 = vpop.f32.mrb[0].mxu0
  %v5993 = vpop.f32.mrb[0].mxu0
  %v5994 = vadd.f32 0.0, %v5993
  %v5995 = vpop.f32.mrb[0].mxu0
  %5996 = vmatprep.mubr.bf16.mxu0 %v5627
  %5997 = vmatmul.mubr.bf16.gmra.mrb[0].mxu0 %v5626
  %v5998 = vpop.f32.mrb[0].mxu0
  %v5999 = vadd.f32 0.0, %v5998
  %v6000 = vpop.f32.mrb[0].mxu0
  %v6001 = vpop.f32.mrb[0].mxu0
  %v6002 = vadd.f32 0.0, %v6001
  %v6003 = vpop.f32.mrb[0].mxu0
  %6004 = vmatprep.mubr.bf16.mxu0 %v5630
  %6005 = vmatmul.mubr.bf16.gmra.mrb[0].mxu0 %v5629
  %v6006 = vpop.f32.mrb[0].mxu0
  %v6007 = vadd.f32 0.0, %v6006
  %v6008 = vpop.f32.mrb[0].mxu0
  %v6009 = vpop.f32.mrb[0].mxu0
  %v6010 = vadd.f32 0.0, %v6009
  %v6011 = vpop.f32.mrb[0].mxu0
  %6012 = vmatprep.mubr.bf16.mxu0 %v5633
  %6013 = vmatmul.mubr.bf16.gmra.mrb[0].mxu0 %v5632
  %v6014 = vpop.f32.mrb[0].mxu0
  %v6015 = vadd.f32 0.0, %v6014
  %v6016 = vpop.f32.mrb[0].mxu0
  %v6017 = vpop.f32.mrb[0].mxu0
  %v6018 = vadd.f32 0.0, %v6017
  %v6019 = vpop.f32.mrb[0].mxu0
  %6020 = vmatprep.mubr.bf16.mxu0 %v5636
  %6021 = vmatmul.mubr.bf16.gmra.mrb[0].mxu0 %v5635
  %v6022 = vpop.f32.mrb[0].mxu0
  %v6023 = vadd.f32 0.0, %v6022
  %v6024 = vpop.f32.mrb[0].mxu0
  %v6025 = vpop.f32.mrb[0].mxu0
  %v6026 = vadd.f32 0.0, %v6025
  %v6027 = vpop.f32.mrb[0].mxu0
  %6028 = vmatprep.mubr.bf16.mxu0 %v5639
  %6029 = vmatmul.mubr.bf16.gmra.mrb[0].mxu0 %v5638
  %v6030 = vpop.f32.mrb[0].mxu0
  %v6031 = vadd.f32 0.0, %v6030
  %v6032 = vpop.f32.mrb[0].mxu0
  %v6033 = vpop.f32.mrb[0].mxu0
  %v6034 = vadd.f32 0.0, %v6033
  %v6035 = vpop.f32.mrb[0].mxu0
  %6036 = vmatprep.mubr.bf16.mxu0 %v5642
  %6037 = vmatmul.mubr.bf16.gmra.mrb[0].mxu0 %v5641
  %v6038 = vpop.f32.mrb[0].mxu0
  %v6039 = vadd.f32 0.0, %v6038
  %v6040 = vpop.f32.mrb[0].mxu0
  %v6041 = vpop.f32.mrb[0].mxu0
  %v6042 = vadd.f32 0.0, %v6041
  %v6043 = vpop.f32.mrb[0].mxu0
  %6044 = vmatprep.mubr.bf16.mxu0 %v5645
  %6045 = vmatmul.mubr.bf16.gmra.mrb[0].mxu0 %v5644
  %v6046 = vpop.f32.mrb[0].mxu0
  %v6047 = vadd.f32 0.0, %v6046
  %v6048 = vpop.f32.mrb[0].mxu0
  %v6049 = vpop.f32.mrb[0].mxu0
  %v6050 = vadd.f32 0.0, %v6049
  %v6051 = vpop.f32.mrb[0].mxu0
  %6052 = vmatprep.mubr.bf16.mxu0 %v5648
  %6053 = vmatmul.mubr.bf16.gmra.mrb[0].mxu0 %v5647
  %v6054 = vpop.f32.mrb[0].mxu0
  %v6055 = vadd.f32 0.0, %v6054
  %v6056 = vpop.f32.mrb[0].mxu0
  %v6057 = vpop.f32.mrb[0].mxu0
  %v6058 = vadd.f32 0.0, %v6057
  %v6059 = vpop.f32.mrb[0].mxu0
  %6060 = vmatprep.mubr.bf16.mxu0 %v5651
  %6061 = vmatmul.mubr.bf16.gmra.mrb[0].mxu0 %v5650
  %v6062 = vpop.f32.mrb[0].mxu0
  %v6063 = vadd.f32 0.0, %v6062
  %v6064 = vpop.f32.mrb[0].mxu0
  %v6065 = vpop.f32.mrb[0].mxu0
  %v6066 = vadd.f32 0.0, %v6065
  %v6067 = vpop.f32.mrb[0].mxu0
  %6068 = vmatprep.mubr.bf16.mxu0 %v5654
  %6069 = vmatmul.mubr.bf16.gmra.mrb[0].mxu0 %v5653
  %v6070 = vpop.f32.mrb[0].mxu0
  %v6071 = vadd.f32 0.0, %v6070
  %v6072 = vpop.f32.mrb[0].mxu0
  %v6073 = vpop.f32.mrb[0].mxu0
  %v6074 = vadd.f32 0.0, %v6073
  %v6075 = vpop.f32.mrb[0].mxu0
  %6076 = vmatprep.mubr.bf16.mxu0 %v5657
  %6077 = vmatmul.mubr.bf16.gmra.mrb[0].mxu0 %v5656
  %v6078 = vpop.f32.mrb[0].mxu0
  %v6079 = vadd.f32 0.0, %v6078
  %v6080 = vpop.f32.mrb[0].mxu0
  %v6081 = vpop.f32.mrb[0].mxu0
  %v6082 = vadd.f32 0.0, %v6081
  %v6083 = vpop.f32.mrb[0].mxu0
  %6084 = vmatprep.mubr.bf16.mxu0 %v5660
  %6085 = vmatmul.mubr.bf16.gmra.mrb[0].mxu0 %v5659
  %v6086 = vpop.f32.mrb[0].mxu0
  %v6087 = vadd.f32 0.0, %v6086
  %v6088 = vpop.f32.mrb[0].mxu0
  %v6089 = vpop.f32.mrb[0].mxu0
  %v6090 = vadd.f32 0.0, %v6089
  %v6091 = vpop.f32.mrb[0].mxu0
  %6092 = vmatprep.mubr.bf16.mxu0 %v5663
  %6093 = vmatmul.mubr.bf16.gmra.mrb[0].mxu0 %v5662
  %v6094 = vpop.f32.mrb[0].mxu0
  %v6095 = vadd.f32 0.0, %v6094
  %v6096 = vpop.f32.mrb[0].mxu0
  %v6097 = vpop.f32.mrb[0].mxu0
  %v6098 = vadd.f32 0.0, %v6097
  %v6099 = vpop.f32.mrb[0].mxu0
  %6100 = vmatprep.mubr.bf16.mxu0 %v5666
  %6101 = vmatmul.mubr.bf16.gmra.mrb[0].mxu0 %v5665
  %v6102 = vpop.f32.mrb[0].mxu0
  %v6103 = vadd.f32 0.0, %v6102
  %v6104 = vpop.f32.mrb[0].mxu0
  %v6105 = vpop.f32.mrb[0].mxu0
  %v6106 = vadd.f32 0.0, %v6105
  %v6107 = vpop.f32.mrb[0].mxu0
  %6108 = vmatprep.mubr.bf16.mxu0 %v5669
  %6109 = vmatmul.mubr.bf16.gmra.mrb[0].mxu0 %v5668
  %v6110 = vpop.f32.mrb[0].mxu0
  %v6111 = vadd.f32 0.0, %v6110
  %v6112 = vpop.f32.mrb[0].mxu0
  %v6113 = vpop.f32.mrb[0].mxu0
  %v6114 = vadd.f32 0.0, %v6113
  %v6115 = vpop.f32.mrb[0].mxu0
  %6116 = vmatprep.mubr.bf16.mxu0 %v5672
  %6117 = vmatmul.mubr.bf16.gmra.mrb[0].mxu0 %v5671
  %v6118 = vpop.f32.mrb[0].mxu0
  %v6119 = vadd.f32 0.0, %v6118
  %v6120 = vpop.f32.mrb[0].mxu0
  %v6121 = vpop.f32.mrb[0].mxu0
  %v6122 = vadd.f32 0.0, %v6121
  %v6123 = vpop.f32.mrb[0].mxu0
  %6124 = vmatprep.mubr.bf16.mxu0 %v5675
  %6125 = vmatmul.mubr.bf16.gmra.mrb[0].mxu0 %v5674
  %v6126 = vpop.f32.mrb[0].mxu0
  %v6127 = vadd.f32 0.0, %v6126
  %v6128 = vpop.f32.mrb[0].mxu0
  %v6129 = vpop.f32.mrb[0].mxu0
  %v6130 = vadd.f32 0.0, %v6129
  %v6131 = vpop.f32.mrb[0].mxu0
  %6132 = vmatprep.mubr.bf16.mxu0 %v5678
  %6133 = vmatmul.mubr.bf16.gmra.mrb[0].mxu0 %v5677
  %v6134 = vpop.f32.mrb[0].mxu0
  %v6135 = vadd.f32 0.0, %v6134
  %v6136 = vpop.f32.mrb[0].mxu0
  %v6137 = vpop.f32.mrb[0].mxu0
  %v6138 = vadd.f32 0.0, %v6137
  %v6139 = vpop.f32.mrb[0].mxu0
  %6140 = vmatprep.mubr.bf16.mxu0 %v5681
  %6141 = vmatmul.mubr.bf16.gmra.mrb[0].mxu0 %v5680
  %v6142 = vpop.f32.mrb[0].mxu0
  %v6143 = vadd.f32 0.0, %v6142
  %v6144 = vpop.f32.mrb[0].mxu0
  %v6145 = vpop.f32.mrb[0].mxu0
  %v6146 = vadd.f32 0.0, %v6145
  %v6147 = vpop.f32.mrb[0].mxu0
  %6148 = vmatprep.mubr.bf16.mxu0 %v5684
  %6149 = vmatmul.mubr.bf16.gmra.mrb[0].mxu0 %v5683
  %v6150 = vpop.f32.mrb[0].mxu0
  %v6151 = vadd.f32 0.0, %v6150
  %v6152 = vpop.f32.mrb[0].mxu0
  %v6153 = vpop.f32.mrb[0].mxu0
  %v6154 = vadd.f32 0.0, %v6153
  %v6155 = vpop.f32.mrb[0].mxu0
  %6156 = vmatprep.mubr.bf16.mxu0 %v5687
  %6157 = vmatmul.mubr.bf16.gmra.mrb[0].mxu0 %v5686
  %v6158 = vpop.f32.mrb[0].mxu0
  %v6159 = vadd.f32 0.0, %v6158
  %v6160 = vpop.f32.mrb[0].mxu0
  %v6161 = vpop.f32.mrb[0].mxu0
  %v6162 = vadd.f32 0.0, %v6161
  %v6163 = vpop.f32.mrb[0].mxu0
  %6164 = vmatprep.mubr.bf16.mxu0 %v5690
  %6165 = vmatmul.mubr.bf16.gmra.mrb[0].mxu0 %v5689
  %v6166 = vpop.f32.mrb[0].mxu0
  %v6167 = vadd.f32 0.0, %v6166
  %v6168 = vpop.f32.mrb[0].mxu0
  %v6169 = vpop.f32.mrb[0].mxu0
  %v6170 = vadd.f32 0.0, %v6169
  %v6171 = vpop.f32.mrb[0].mxu0
  %6172 = vdwg.mxu0
  %6173 = vmatprep.subr.bf16.mxu0 0
  %6174 = vmatpush1.bf16.msra.mxu0 %v5852
  %6175 = vmatprep.subr.bf16.mxu0 0
  %6176 = vmatpush1.bf16.msra.mxu0 %v5853
  %6177 = vmatprep.subr.bf16.mxu0 0
  %6178 = vmatpush1.bf16.msra.mxu0 %v5854
  %6179 = vmatprep.subr.bf16.mxu0 0
  %6180 = vmatpush1.bf16.msra.mxu0 %v5855
  %6181 = vmatprep.subr.bf16.mxu0 0
  %6182 = vmatpush1.bf16.msra.mxu0 %v5856
  %6183 = vmatprep.subr.bf16.mxu0 0
  %6184 = vmatpush1.bf16.msra.mxu0 %v5857
  %6185 = vmatprep.subr.bf16.mxu0 0
  %6186 = vmatpush1.bf16.msra.mxu0 %v5858
  %6187 = vmatprep.subr.bf16.mxu0 0
  %6188 = vmatpush1.bf16.msra.mxu0 %v5859
  %6189 = vmatprep.subr.bf16.mxu0 0
  %6190 = vmatpush1.bf16.msra.mxu0 0
  %6191 = vmatprep.subr.bf16.mxu0 0
  %6192 = vmatpush1.bf16.msra.mxu0 0
  %6193 = vmatprep.subr.bf16.mxu0 0
  %6194 = vmatpush1.bf16.msra.mxu0 0
  %6195 = vmatprep.subr.bf16.mxu0 0
  %6196 = vmatpush1.bf16.msra.mxu0 0
  %6197 = vmatprep.subr.bf16.mxu0 0
  %6198 = vmatpush1.bf16.msra.mxu0 0
  %6199 = vmatprep.subr.bf16.mxu0 0
  %6200 = vmatpush1.bf16.msra.mxu0 0
  %6201 = vmatprep.subr.bf16.mxu0 0
  %6202 = vmatpush1.bf16.msra.mxu0 0
  %6203 = vmatprep.subr.bf16.mxu0 0
  %6204 = vmatpush1.bf16.msra.mxu0 0
  %6205 = vmatprep.mubr.bf16.mxu0 0
  %6206 = vmatmul.mubr.bf16.gmra.mrb[0].mxu0 %v5598
  %v6207 = vpop.f32.mrb[0].mxu0
  %v6208 = vadd.f32 %v5919, %v6207
  %v6209 = vpop.f32.mrb[0].mxu0
  %v6210 = vpop.f32.mrb[0].mxu0
  %v6211 = vadd.f32 %v5922, %v6210
  %v6212 = vpop.f32.mrb[0].mxu0
  %6213 = vmatprep.mubr.bf16.mxu0 0
  %6214 = vmatmul.mubr.bf16.gmra.mrb[0].mxu0 %v5601
  %v6215 = vpop.f32.mrb[0].mxu0
  %v6216 = vadd.f32 %v5927, %v6215
  %v6217 = vpop.f32.mrb[0].mxu0
  %v6218 = vpop.f32.mrb[0].mxu0
  %v6219 = vadd.f32 %v5930, %v6218
  %v6220 = vpop.f32.mrb[0].mxu0
  %6221 = vmatprep.mubr.bf16.mxu0 0
  %6222 = vmatmul.mubr.bf16.gmra.mrb[0].mxu0 %v5604
  %v6223 = vpop.f32.mrb[0].mxu0
  %v6224 = vadd.f32 %v5935, %v6223
  %v6225 = vpop.f32.mrb[0].mxu0
  %v6226 = vpop.f32.mrb[0].mxu0
  %v6227 = vadd.f32 %v5938, %v6226
  %v6228 = vpop.f32.mrb[0].mxu0
  %6229 = vmatprep.mubr.bf16.mxu0 0
  %6230 = vmatmul.mubr.bf16.gmra.mrb[0].mxu0 %v5607
  %v6231 = vpop.f32.mrb[0].mxu0
  %v6232 = vadd.f32 %v5943, %v6231
  %v6233 = vpop.f32.mrb[0].mxu0
  %v6234 = vpop.f32.mrb[0].mxu0
  %v6235 = vadd.f32 %v5946, %v6234
  %v6236 = vpop.f32.mrb[0].mxu0
  %6237 = vmatprep.mubr.bf16.mxu0 0
  %6238 = vmatmul.mubr.bf16.gmra.mrb[0].mxu0 %v5610
  %v6239 = vpop.f32.mrb[0].mxu0
  %v6240 = vadd.f32 %v5951, %v6239
  %v6241 = vpop.f32.mrb[0].mxu0
  %v6242 = vpop.f32.mrb[0].mxu0
  %v6243 = vadd.f32 %v5954, %v6242
  %v6244 = vpop.f32.mrb[0].mxu0
  %6245 = vmatprep.mubr.bf16.mxu0 0
  %6246 = vmatmul.mubr.bf16.gmra.mrb[0].mxu0 %v5613
  %v6247 = vpop.f32.mrb[0].mxu0
  %v6248 = vadd.f32 %v5959, %v6247
  %v6249 = vpop.f32.mrb[0].mxu0
  %v6250 = vpop.f32.mrb[0].mxu0
  %v6251 = vadd.f32 %v5962, %v6250
  %v6252 = vpop.f32.mrb[0].mxu0
  %6253 = vmatprep.mubr.bf16.mxu0 0
  %6254 = vmatmul.mubr.bf16.gmra.mrb[0].mxu0 %v5616
  %v6255 = vpop.f32.mrb[0].mxu0
  %v6256 = vadd.f32 %v5967, %v6255
  %v6257 = vpop.f32.mrb[0].mxu0
  %v6258 = vpop.f32.mrb[0].mxu0
  %v6259 = vadd.f32 %v5970, %v6258
  %v6260 = vpop.f32.mrb[0].mxu0
  %6261 = vmatprep.mubr.bf16.mxu0 0
  %6262 = vmatmul.mubr.bf16.gmra.mrb[0].mxu0 %v5619
  %v6263 = vpop.f32.mrb[0].mxu0
  %v6264 = vadd.f32 %v5975, %v6263
  %v6265 = vpop.f32.mrb[0].mxu0
  %v6266 = vpop.f32.mrb[0].mxu0
  %v6267 = vadd.f32 %v5978, %v6266
  %v6268 = vpop.f32.mrb[0].mxu0
  %6269 = vmatprep.mubr.bf16.mxu0 0
  %6270 = vmatmul.mubr.bf16.gmra.mrb[0].mxu0 %v5622
  %v6271 = vpop.f32.mrb[0].mxu0
  %v6272 = vadd.f32 %v5983, %v6271
  %v6273 = vpop.f32.mrb[0].mxu0
  %v6274 = vpop.f32.mrb[0].mxu0
  %v6275 = vadd.f32 %v5986, %v6274
  %v6276 = vpop.f32.mrb[0].mxu0
  %6277 = vmatprep.mubr.bf16.mxu0 0
  %6278 = vmatmul.mubr.bf16.gmra.mrb[0].mxu0 %v5625
  %v6279 = vpop.f32.mrb[0].mxu0
  %v6280 = vadd.f32 %v5991, %v6279
  %v6281 = vpop.f32.mrb[0].mxu0
  %v6282 = vpop.f32.mrb[0].mxu0
  %v6283 = vadd.f32 %v5994, %v6282
  %v6284 = vpop.f32.mrb[0].mxu0
  %6285 = vmatprep.mubr.bf16.mxu0 0
  %6286 = vmatmul.mubr.bf16.gmra.mrb[0].mxu0 %v5628
  %v6287 = vpop.f32.mrb[0].mxu0
  %v6288 = vadd.f32 %v5999, %v6287
  %v6289 = vpop.f32.mrb[0].mxu0
  %v6290 = vpop.f32.mrb[0].mxu0
  %v6291 = vadd.f32 %v6002, %v6290
  %v6292 = vpop.f32.mrb[0].mxu0
  %6293 = vmatprep.mubr.bf16.mxu0 0
  %6294 = vmatmul.mubr.bf16.gmra.mrb[0].mxu0 %v5631
  %v6295 = vpop.f32.mrb[0].mxu0
  %v6296 = vadd.f32 %v6007, %v6295
  %v6297 = vpop.f32.mrb[0].mxu0
  %v6298 = vpop.f32.mrb[0].mxu0
  %v6299 = vadd.f32 %v6010, %v6298
  %v6300 = vpop.f32.mrb[0].mxu0
  %6301 = vmatprep.mubr.bf16.mxu0 0
  %6302 = vmatmul.mubr.bf16.gmra.mrb[0].mxu0 %v5634
  %v6303 = vpop.f32.mrb[0].mxu0
  %v6304 = vadd.f32 %v6015, %v6303
  %v6305 = vpop.f32.mrb[0].mxu0
  %v6306 = vpop.f32.mrb[0].mxu0
  %v6307 = vadd.f32 %v6018, %v6306
  %v6308 = vpop.f32.mrb[0].mxu0
  %6309 = vmatprep.mubr.bf16.mxu0 0
  %6310 = vmatmul.mubr.bf16.gmra.mrb[0].mxu0 %v5637
  %v6311 = vpop.f32.mrb[0].mxu0
  %v6312 = vadd.f32 %v6023, %v6311
  %v6313 = vpop.f32.mrb[0].mxu0
  %v6314 = vpop.f32.mrb[0].mxu0
  %v6315 = vadd.f32 %v6026, %v6314
  %v6316 = vpop.f32.mrb[0].mxu0
  %6317 = vmatprep.mubr.bf16.mxu0 0
  %6318 = vmatmul.mubr.bf16.gmra.mrb[0].mxu0 %v5640
  %v6319 = vpop.f32.mrb[0].mxu0
  %v6320 = vadd.f32 %v6031, %v6319
  %v6321 = vpop.f32.mrb[0].mxu0
  %v6322 = vpop.f32.mrb[0].mxu0
  %v6323 = vadd.f32 %v6034, %v6322
  %v6324 = vpop.f32.mrb[0].mxu0
  %6325 = vmatprep.mubr.bf16.mxu0 0
  %6326 = vmatmul.mubr.bf16.gmra.mrb[0].mxu0 %v5643
  %v6327 = vpop.f32.mrb[0].mxu0
  %v6328 = vadd.f32 %v6039, %v6327
  %v6329 = vpop.f32.mrb[0].mxu0
  %v6330 = vpop.f32.mrb[0].mxu0
  %v6331 = vadd.f32 %v6042, %v6330
  %v6332 = vpop.f32.mrb[0].mxu0
  %6333 = vmatprep.mubr.bf16.mxu0 0
  %6334 = vmatmul.mubr.bf16.gmra.mrb[0].mxu0 %v5646
  %v6335 = vpop.f32.mrb[0].mxu0
  %v6336 = vadd.f32 %v6047, %v6335
  %v6337 = vpop.f32.mrb[0].mxu0
  %v6338 = vpop.f32.mrb[0].mxu0
  %v6339 = vadd.f32 %v6050, %v6338
  %v6340 = vpop.f32.mrb[0].mxu0
  %6341 = vmatprep.mubr.bf16.mxu0 0
  %6342 = vmatmul.mubr.bf16.gmra.mrb[0].mxu0 %v5649
  %v6343 = vpop.f32.mrb[0].mxu0
  %v6344 = vadd.f32 %v6055, %v6343
  %v6345 = vpop.f32.mrb[0].mxu0
  %v6346 = vpop.f32.mrb[0].mxu0
  %v6347 = vadd.f32 %v6058, %v6346
  %v6348 = vpop.f32.mrb[0].mxu0
  %6349 = vmatprep.mubr.bf16.mxu0 0
  %6350 = vmatmul.mubr.bf16.gmra.mrb[0].mxu0 %v5652
  %v6351 = vpop.f32.mrb[0].mxu0
  %v6352 = vadd.f32 %v6063, %v6351
  %v6353 = vpop.f32.mrb[0].mxu0
  %v6354 = vpop.f32.mrb[0].mxu0
  %v6355 = vadd.f32 %v6066, %v6354
  %v6356 = vpop.f32.mrb[0].mxu0
  %6357 = vmatprep.mubr.bf16.mxu0 0
  %6358 = vmatmul.mubr.bf16.gmra.mrb[0].mxu0 %v5655
  %v6359 = vpop.f32.mrb[0].mxu0
  %v6360 = vadd.f32 %v6071, %v6359
  %v6361 = vpop.f32.mrb[0].mxu0
  %v6362 = vpop.f32.mrb[0].mxu0
  %v6363 = vadd.f32 %v6074, %v6362
  %v6364 = vpop.f32.mrb[0].mxu0
  %6365 = vmatprep.mubr.bf16.mxu0 0
  %6366 = vmatmul.mubr.bf16.gmra.mrb[0].mxu0 %v5658
  %v6367 = vpop.f32.mrb[0].mxu0
  %v6368 = vadd.f32 %v6079, %v6367
  %v6369 = vpop.f32.mrb[0].mxu0
  %v6370 = vpop.f32.mrb[0].mxu0
  %v6371 = vadd.f32 %v6082, %v6370
  %v6372 = vpop.f32.mrb[0].mxu0
  %6373 = vmatprep.mubr.bf16.mxu0 0
  %6374 = vmatmul.mubr.bf16.gmra.mrb[0].mxu0 %v5661
  %v6375 = vpop.f32.mrb[0].mxu0
  %v6376 = vadd.f32 %v6087, %v6375
  %v6377 = vpop.f32.mrb[0].mxu0
  %v6378 = vpop.f32.mrb[0].mxu0
  %v6379 = vadd.f32 %v6090, %v6378
  %v6380 = vpop.f32.mrb[0].mxu0
  %6381 = vmatprep.mubr.bf16.mxu0 0
  %6382 = vmatmul.mubr.bf16.gmra.mrb[0].mxu0 %v5664
  %v6383 = vpop.f32.mrb[0].mxu0
  %v6384 = vadd.f32 %v6095, %v6383
  %v6385 = vpop.f32.mrb[0].mxu0
  %v6386 = vpop.f32.mrb[0].mxu0
  %v6387 = vadd.f32 %v6098, %v6386
  %v6388 = vpop.f32.mrb[0].mxu0
  %6389 = vmatprep.mubr.bf16.mxu0 0
  %6390 = vmatmul.mubr.bf16.gmra.mrb[0].mxu0 %v5667
  %v6391 = vpop.f32.mrb[0].mxu0
  %v6392 = vadd.f32 %v6103, %v6391
  %v6393 = vpop.f32.mrb[0].mxu0
  %v6394 = vpop.f32.mrb[0].mxu0
  %v6395 = vadd.f32 %v6106, %v6394
  %v6396 = vpop.f32.mrb[0].mxu0
  %6397 = vmatprep.mubr.bf16.mxu0 0
  %6398 = vmatmul.mubr.bf16.gmra.mrb[0].mxu0 %v5670
  %v6399 = vpop.f32.mrb[0].mxu0
  %v6400 = vadd.f32 %v6111, %v6399
  %v6401 = vpop.f32.mrb[0].mxu0
  %v6402 = vpop.f32.mrb[0].mxu0
  %v6403 = vadd.f32 %v6114, %v6402
  %v6404 = vpop.f32.mrb[0].mxu0
  %6405 = vmatprep.mubr.bf16.mxu0 0
  %6406 = vmatmul.mubr.bf16.gmra.mrb[0].mxu0 %v5673
  %v6407 = vpop.f32.mrb[0].mxu0
  %v6408 = vadd.f32 %v6119, %v6407
  %v6409 = vpop.f32.mrb[0].mxu0
  %v6410 = vpop.f32.mrb[0].mxu0
  %v6411 = vadd.f32 %v6122, %v6410
  %v6412 = vpop.f32.mrb[0].mxu0
  %6413 = vmatprep.mubr.bf16.mxu0 0
  %6414 = vmatmul.mubr.bf16.gmra.mrb[0].mxu0 %v5676
  %v6415 = vpop.f32.mrb[0].mxu0
  %v6416 = vadd.f32 %v6127, %v6415
  %v6417 = vpop.f32.mrb[0].mxu0
  %v6418 = vpop.f32.mrb[0].mxu0
  %v6419 = vadd.f32 %v6130, %v6418
  %v6420 = vpop.f32.mrb[0].mxu0
  %6421 = vmatprep.mubr.bf16.mxu0 0
  %6422 = vmatmul.mubr.bf16.gmra.mrb[0].mxu0 %v5679
  %v6423 = vpop.f32.mrb[0].mxu0
  %v6424 = vadd.f32 %v6135, %v6423
  %v6425 = vpop.f32.mrb[0].mxu0
  %v6426 = vpop.f32.mrb[0].mxu0
  %v6427 = vadd.f32 %v6138, %v6426
  %v6428 = vpop.f32.mrb[0].mxu0
  %6429 = vmatprep.mubr.bf16.mxu0 0
  %6430 = vmatmul.mubr.bf16.gmra.mrb[0].mxu0 %v5682
  %v6431 = vpop.f32.mrb[0].mxu0
  %v6432 = vadd.f32 %v6143, %v6431
  %v6433 = vpop.f32.mrb[0].mxu0
  %v6434 = vpop.f32.mrb[0].mxu0
  %v6435 = vadd.f32 %v6146, %v6434
  %v6436 = vpop.f32.mrb[0].mxu0
  %6437 = vmatprep.mubr.bf16.mxu0 0
  %6438 = vmatmul.mubr.bf16.gmra.mrb[0].mxu0 %v5685
  %v6439 = vpop.f32.mrb[0].mxu0
  %v6440 = vadd.f32 %v6151, %v6439
  %v6441 = vpop.f32.mrb[0].mxu0
  %v6442 = vpop.f32.mrb[0].mxu0
  %v6443 = vadd.f32 %v6154, %v6442
  %v6444 = vpop.f32.mrb[0].mxu0
  %6445 = vmatprep.mubr.bf16.mxu0 0
  %6446 = vmatmul.mubr.bf16.gmra.mrb[0].mxu0 %v5688
  %v6447 = vpop.f32.mrb[0].mxu0
  %v6448 = vadd.f32 %v6159, %v6447
  %v6449 = vpop.f32.mrb[0].mxu0
  %v6450 = vpop.f32.mrb[0].mxu0
  %v6451 = vadd.f32 %v6162, %v6450
  %v6452 = vpop.f32.mrb[0].mxu0
  %6453 = vmatprep.mubr.bf16.mxu0 0
  %6454 = vmatmul.mubr.bf16.gmra.mrb[0].mxu0 %v5691
  %v6455 = vpop.f32.mrb[0].mxu0
  %v6456 = vadd.f32 %v6167, %v6455
  %v6457 = vpop.f32.mrb[0].mxu0
  %v6458 = vpop.f32.mrb[0].mxu0
  %v6459 = vadd.f32 %v6170, %v6458
  %v6460 = vpop.f32.mrb[0].mxu0
  %6461 = vdwg.mxu0
  %v6462 = vsel %vm159, %v6208, 0.0
  %v6463 = vsel %vm159, %v6211, 0.0
  %v6464 = vadd.f32 %v6462, %v6463
  %v6465 = vsel %vm159, %v6216, 0.0
  %v6466 = vadd.f32 %v6464, %v6465
  %v6467 = vsel %vm159, %v6219, 0.0
  %v6468 = vadd.f32 %v6466, %v6467
  %v6469 = vsel %vm159, %v6224, 0.0
  %v6470 = vadd.f32 %v6468, %v6469
  %v6471 = vsel %vm159, %v6227, 0.0
  %v6472 = vadd.f32 %v6470, %v6471
  %v6473 = vsel %vm159, %v6232, 0.0
  %v6474 = vadd.f32 %v6472, %v6473
  %v6475 = vsel %vm159, %v6235, 0.0
  %v6476 = vadd.f32 %v6474, %v6475
  %v6477 = vsel %vm159, %v6240, 0.0
  %v6478 = vadd.f32 %v6476, %v6477
  %v6479 = vsel %vm159, %v6243, 0.0
  %v6480 = vadd.f32 %v6478, %v6479
  %v6481 = vsel %vm159, %v6248, 0.0
  %v6482 = vadd.f32 %v6480, %v6481
  %v6483 = vsel %vm159, %v6251, 0.0
  %v6484 = vadd.f32 %v6482, %v6483
  %v6485 = vsel %vm159, %v6256, 0.0
  %v6486 = vadd.f32 %v6484, %v6485
  %v6487 = vsel %vm159, %v6259, 0.0
  %v6488 = vadd.f32 %v6486, %v6487
  %v6489 = vsel %vm159, %v6264, 0.0
  %v6490 = vadd.f32 %v6488, %v6489
  %v6491 = vsel %vm159, %v6267, 0.0
  %v6492 = vadd.f32 %v6490, %v6491
  %v6493 = vsel %vm159, %v6272, 0.0
  %v6494 = vadd.f32 %v6492, %v6493
  %v6495 = vsel %vm159, %v6275, 0.0
  %v6496 = vadd.f32 %v6494, %v6495
  %v6497 = vsel %vm159, %v6280, 0.0
  %v6498 = vadd.f32 %v6496, %v6497
  %v6499 = vsel %vm159, %v6283, 0.0
  %v6500 = vadd.f32 %v6498, %v6499
  %v6501 = vsel %vm159, %v6288, 0.0
  %v6502 = vadd.f32 %v6500, %v6501
  %v6503 = vsel %vm159, %v6291, 0.0
  %v6504 = vadd.f32 %v6502, %v6503
  %v6505 = vsel %vm159, %v6296, 0.0
  %v6506 = vadd.f32 %v6504, %v6505
  %v6507 = vsel %vm159, %v6299, 0.0
  %v6508 = vadd.f32 %v6506, %v6507
  %v6509 = vsel %vm159, %v6304, 0.0
  %v6510 = vadd.f32 %v6508, %v6509
  %v6511 = vsel %vm159, %v6307, 0.0
  %v6512 = vadd.f32 %v6510, %v6511
  %v6513 = vsel %vm159, %v6312, 0.0
  %v6514 = vadd.f32 %v6512, %v6513
  %v6515 = vsel %vm159, %v6315, 0.0
  %v6516 = vadd.f32 %v6514, %v6515
  %v6517 = vsel %vm159, %v6320, 0.0
  %v6518 = vadd.f32 %v6516, %v6517
  %v6519 = vsel %vm159, %v6323, 0.0
  %v6520 = vadd.f32 %v6518, %v6519
  %v6521 = vsel %vm159, %v6328, 0.0
  %v6522 = vadd.f32 %v6520, %v6521
  %v6523 = vsel %vm159, %v6331, 0.0
  %v6524 = vadd.f32 %v6522, %v6523
  %v6525 = vsel %vm159, %v6336, 0.0
  %v6526 = vadd.f32 %v6524, %v6525
  %v6527 = vsel %vm159, %v6339, 0.0
  %v6528 = vadd.f32 %v6526, %v6527
  %v6529 = vsel %vm159, %v6344, 0.0
  %v6530 = vadd.f32 %v6528, %v6529
  %v6531 = vsel %vm159, %v6347, 0.0
  %v6532 = vadd.f32 %v6530, %v6531
  %v6533 = vsel %vm159, %v6352, 0.0
  %v6534 = vadd.f32 %v6532, %v6533
  %v6535 = vsel %vm159, %v6355, 0.0
  %v6536 = vadd.f32 %v6534, %v6535
  %v6537 = vsel %vm159, %v6360, 0.0
  %v6538 = vadd.f32 %v6536, %v6537
  %v6539 = vsel %vm159, %v6363, 0.0
  %v6540 = vadd.f32 %v6538, %v6539
  %v6541 = vsel %vm159, %v6368, 0.0
  %v6542 = vadd.f32 %v6540, %v6541
  %v6543 = vsel %vm159, %v6371, 0.0
  %v6544 = vadd.f32 %v6542, %v6543
  %v6545 = vsel %vm159, %v6376, 0.0
  %v6546 = vadd.f32 %v6544, %v6545
  %v6547 = vsel %vm159, %v6379, 0.0
  %v6548 = vadd.f32 %v6546, %v6547
  %v6549 = vsel %vm159, %v6384, 0.0
  %v6550 = vadd.f32 %v6548, %v6549
  %v6551 = vsel %vm159, %v6387, 0.0
  %v6552 = vadd.f32 %v6550, %v6551
  %v6553 = vsel %vm159, %v6392, 0.0
  %v6554 = vadd.f32 %v6552, %v6553
  %v6555 = vsel %vm159, %v6395, 0.0
  %v6556 = vadd.f32 %v6554, %v6555
  %v6557 = vsel %vm159, %v6400, 0.0
  %v6558 = vadd.f32 %v6556, %v6557
  %v6559 = vsel %vm159, %v6403, 0.0
  %v6560 = vadd.f32 %v6558, %v6559
  %v6561 = vsel %vm159, %v6408, 0.0
  %v6562 = vadd.f32 %v6560, %v6561
  %v6563 = vsel %vm159, %v6411, 0.0
  %v6564 = vadd.f32 %v6562, %v6563
  %v6565 = vsel %vm159, %v6416, 0.0
  %v6566 = vadd.f32 %v6564, %v6565
  %v6567 = vsel %vm159, %v6419, 0.0
  %v6568 = vadd.f32 %v6566, %v6567
  %v6569 = vsel %vm159, %v6424, 0.0
  %v6570 = vadd.f32 %v6568, %v6569
  %v6571 = vsel %vm159, %v6427, 0.0
  %v6572 = vadd.f32 %v6570, %v6571
  %v6573 = vsel %vm159, %v6432, 0.0
  %v6574 = vadd.f32 %v6572, %v6573
  %v6575 = vsel %vm159, %v6435, 0.0
  %v6576 = vadd.f32 %v6574, %v6575
  %v6577 = vsel %vm159, %v6440, 0.0
  %v6578 = vadd.f32 %v6576, %v6577
  %v6579 = vsel %vm159, %v6443, 0.0
  %v6580 = vadd.f32 %v6578, %v6579
  %v6581 = vsel %vm159, %v6448, 0.0
  %v6582 = vadd.f32 %v6580, %v6581
  %v6583 = vsel %vm159, %v6451, 0.0
  %v6584 = vadd.f32 %v6582, %v6583
  %v6585 = vsel %vm159, %v6456, 0.0
  %v6586 = vadd.f32 %v6584, %v6585
  %v6587 = vsel %vm159, %v6459, 0.0
  %v6588 = vadd.f32 %v6586, %v6587
  %v6589 = vrot.slane %v6588, 4
  %v6590 = vadd.f32 %v6588, %v6589
  %v6591 = vrot.slane %v6590, 2
  %v6592 = vadd.f32 %v6590, %v6591
  %v6593 = vrot.slane %v6592, 1
  %v6594 = vadd.f32 %v6592, %v6593
  %v6595 = vmul.f32 %v6594, 0.001953125
  %v6596 = vsub.f32 %v6208, %v6595
  %v6597 = vsub.f32 %v6211, %v6595
  %v6598 = vsub.f32 %v6216, %v6595
  %v6599 = vsub.f32 %v6219, %v6595
  %v6600 = vsub.f32 %v6224, %v6595
  %v6601 = vsub.f32 %v6227, %v6595
  %v6602 = vsub.f32 %v6232, %v6595
  %v6603 = vsub.f32 %v6235, %v6595
  %v6604 = vsub.f32 %v6240, %v6595
  %v6605 = vsub.f32 %v6243, %v6595
  %v6606 = vsub.f32 %v6248, %v6595
  %v6607 = vsub.f32 %v6251, %v6595
  %v6608 = vsub.f32 %v6256, %v6595
  %v6609 = vsub.f32 %v6259, %v6595
  %v6610 = vsub.f32 %v6264, %v6595
  %v6611 = vsub.f32 %v6267, %v6595
  %v6612 = vsub.f32 %v6272, %v6595
  %v6613 = vsub.f32 %v6275, %v6595
  %v6614 = vsub.f32 %v6280, %v6595
  %v6615 = vsub.f32 %v6283, %v6595
  %v6616 = vsub.f32 %v6288, %v6595
  %v6617 = vsub.f32 %v6291, %v6595
  %v6618 = vsub.f32 %v6296, %v6595
  %v6619 = vsub.f32 %v6299, %v6595
  %v6620 = vsub.f32 %v6304, %v6595
  %v6621 = vsub.f32 %v6307, %v6595
  %v6622 = vsub.f32 %v6312, %v6595
  %v6623 = vsub.f32 %v6315, %v6595
  %v6624 = vsub.f32 %v6320, %v6595
  %v6625 = vsub.f32 %v6323, %v6595
  %v6626 = vsub.f32 %v6328, %v6595
  %v6627 = vsub.f32 %v6331, %v6595
  %v6628 = vsub.f32 %v6336, %v6595
  %v6629 = vsub.f32 %v6339, %v6595
  %v6630 = vsub.f32 %v6344, %v6595
  %v6631 = vsub.f32 %v6347, %v6595
  %v6632 = vsub.f32 %v6352, %v6595
  %v6633 = vsub.f32 %v6355, %v6595
  %v6634 = vsub.f32 %v6360, %v6595
  %v6635 = vsub.f32 %v6363, %v6595
  %v6636 = vsub.f32 %v6368, %v6595
  %v6637 = vsub.f32 %v6371, %v6595
  %v6638 = vsub.f32 %v6376, %v6595
  %v6639 = vsub.f32 %v6379, %v6595
  %v6640 = vsub.f32 %v6384, %v6595
  %v6641 = vsub.f32 %v6387, %v6595
  %v6642 = vsub.f32 %v6392, %v6595
  %v6643 = vsub.f32 %v6395, %v6595
  %v6644 = vsub.f32 %v6400, %v6595
  %v6645 = vsub.f32 %v6403, %v6595
  %v6646 = vsub.f32 %v6408, %v6595
  %v6647 = vsub.f32 %v6411, %v6595
  %v6648 = vsub.f32 %v6416, %v6595
  %v6649 = vsub.f32 %v6419, %v6595
  %v6650 = vsub.f32 %v6424, %v6595
  %v6651 = vsub.f32 %v6427, %v6595
  %v6652 = vsub.f32 %v6432, %v6595
  %v6653 = vsub.f32 %v6435, %v6595
  %v6654 = vsub.f32 %v6440, %v6595
  %v6655 = vsub.f32 %v6443, %v6595
  %v6656 = vsub.f32 %v6448, %v6595
  %v6657 = vsub.f32 %v6451, %v6595
  %v6658 = vsub.f32 %v6456, %v6595
  %v6659 = vsub.f32 %v6459, %v6595
  %v6660 = vmul.f32 %v6596, %v6596
  %v6661 = vmul.f32 %v6597, %v6597
  %v6662 = vmul.f32 %v6598, %v6598
  %v6663 = vmul.f32 %v6599, %v6599
  %v6664 = vmul.f32 %v6600, %v6600
  %v6665 = vmul.f32 %v6601, %v6601
  %v6666 = vmul.f32 %v6602, %v6602
  %v6667 = vmul.f32 %v6603, %v6603
  %v6668 = vmul.f32 %v6604, %v6604
  %v6669 = vmul.f32 %v6605, %v6605
  %v6670 = vmul.f32 %v6606, %v6606
  %v6671 = vmul.f32 %v6607, %v6607
  %v6672 = vmul.f32 %v6608, %v6608
  %v6673 = vmul.f32 %v6609, %v6609
  %v6674 = vmul.f32 %v6610, %v6610
  %v6675 = vmul.f32 %v6611, %v6611
  %v6676 = vmul.f32 %v6612, %v6612
  %v6677 = vmul.f32 %v6613, %v6613
  %v6678 = vmul.f32 %v6614, %v6614
  %v6679 = vmul.f32 %v6615, %v6615
  %v6680 = vmul.f32 %v6616, %v6616
  %v6681 = vmul.f32 %v6617, %v6617
  %v6682 = vmul.f32 %v6618, %v6618
  %v6683 = vmul.f32 %v6619, %v6619
  %v6684 = vmul.f32 %v6620, %v6620
  %v6685 = vmul.f32 %v6621, %v6621
  %v6686 = vmul.f32 %v6622, %v6622
  %v6687 = vmul.f32 %v6623, %v6623
  %v6688 = vmul.f32 %v6624, %v6624
  %v6689 = vmul.f32 %v6625, %v6625
  %v6690 = vmul.f32 %v6626, %v6626
  %v6691 = vmul.f32 %v6627, %v6627
  %v6692 = vmul.f32 %v6628, %v6628
  %v6693 = vmul.f32 %v6629, %v6629
  %v6694 = vmul.f32 %v6630, %v6630
  %v6695 = vmul.f32 %v6631, %v6631
  %v6696 = vmul.f32 %v6632, %v6632
  %v6697 = vmul.f32 %v6633, %v6633
  %v6698 = vmul.f32 %v6634, %v6634
  %v6699 = vmul.f32 %v6635, %v6635
  %v6700 = vmul.f32 %v6636, %v6636
  %v6701 = vmul.f32 %v6637, %v6637
  %v6702 = vmul.f32 %v6638, %v6638
  %v6703 = vmul.f32 %v6639, %v6639
  %v6704 = vmul.f32 %v6640, %v6640
  %v6705 = vmul.f32 %v6641, %v6641
  %v6706 = vmul.f32 %v6642, %v6642
  %v6707 = vmul.f32 %v6643, %v6643
  %v6708 = vmul.f32 %v6644, %v6644
  %v6709 = vmul.f32 %v6645, %v6645
  %v6710 = vmul.f32 %v6646, %v6646
  %v6711 = vmul.f32 %v6647, %v6647
  %v6712 = vmul.f32 %v6648, %v6648
  %v6713 = vmul.f32 %v6649, %v6649
  %v6714 = vmul.f32 %v6650, %v6650
  %v6715 = vmul.f32 %v6651, %v6651
  %v6716 = vmul.f32 %v6652, %v6652
  %v6717 = vmul.f32 %v6653, %v6653
  %v6718 = vmul.f32 %v6654, %v6654
  %v6719 = vmul.f32 %v6655, %v6655
  %v6720 = vmul.f32 %v6656, %v6656
  %v6721 = vmul.f32 %v6657, %v6657
  %v6722 = vmul.f32 %v6658, %v6658
  %v6723 = vmul.f32 %v6659, %v6659
  %v6724 = vsel %vm159, %v6660, 0.0
  %v6725 = vsel %vm159, %v6661, 0.0
  %v6726 = vadd.f32 %v6724, %v6725
  %v6727 = vsel %vm159, %v6662, 0.0
  %v6728 = vadd.f32 %v6726, %v6727
  %v6729 = vsel %vm159, %v6663, 0.0
  %v6730 = vadd.f32 %v6728, %v6729
  %v6731 = vsel %vm159, %v6664, 0.0
  %v6732 = vadd.f32 %v6730, %v6731
  %v6733 = vsel %vm159, %v6665, 0.0
  %v6734 = vadd.f32 %v6732, %v6733
  %v6735 = vsel %vm159, %v6666, 0.0
  %v6736 = vadd.f32 %v6734, %v6735
  %v6737 = vsel %vm159, %v6667, 0.0
  %v6738 = vadd.f32 %v6736, %v6737
  %v6739 = vsel %vm159, %v6668, 0.0
  %v6740 = vadd.f32 %v6738, %v6739
  %v6741 = vsel %vm159, %v6669, 0.0
  %v6742 = vadd.f32 %v6740, %v6741
  %v6743 = vsel %vm159, %v6670, 0.0
  %v6744 = vadd.f32 %v6742, %v6743
  %v6745 = vsel %vm159, %v6671, 0.0
  %v6746 = vadd.f32 %v6744, %v6745
  %v6747 = vsel %vm159, %v6672, 0.0
  %v6748 = vadd.f32 %v6746, %v6747
  %v6749 = vsel %vm159, %v6673, 0.0
  %v6750 = vadd.f32 %v6748, %v6749
  %v6751 = vsel %vm159, %v6674, 0.0
  %v6752 = vadd.f32 %v6750, %v6751
  %v6753 = vsel %vm159, %v6675, 0.0
  %v6754 = vadd.f32 %v6752, %v6753
  %v6755 = vsel %vm159, %v6676, 0.0
  %v6756 = vadd.f32 %v6754, %v6755
  %v6757 = vsel %vm159, %v6677, 0.0
  %v6758 = vadd.f32 %v6756, %v6757
  %v6759 = vsel %vm159, %v6678, 0.0
  %v6760 = vadd.f32 %v6758, %v6759
  %v6761 = vsel %vm159, %v6679, 0.0
  %v6762 = vadd.f32 %v6760, %v6761
  %v6763 = vsel %vm159, %v6680, 0.0
  %v6764 = vadd.f32 %v6762, %v6763
  %v6765 = vsel %vm159, %v6681, 0.0
  %v6766 = vadd.f32 %v6764, %v6765
  %v6767 = vsel %vm159, %v6682, 0.0
  %v6768 = vadd.f32 %v6766, %v6767
  %v6769 = vsel %vm159, %v6683, 0.0
  %v6770 = vadd.f32 %v6768, %v6769
  %v6771 = vsel %vm159, %v6684, 0.0
  %v6772 = vadd.f32 %v6770, %v6771
  %v6773 = vsel %vm159, %v6685, 0.0
  %v6774 = vadd.f32 %v6772, %v6773
  %v6775 = vsel %vm159, %v6686, 0.0
  %v6776 = vadd.f32 %v6774, %v6775
  %v6777 = vsel %vm159, %v6687, 0.0
  %v6778 = vadd.f32 %v6776, %v6777
  %v6779 = vsel %vm159, %v6688, 0.0
  %v6780 = vadd.f32 %v6778, %v6779
  %v6781 = vsel %vm159, %v6689, 0.0
  %v6782 = vadd.f32 %v6780, %v6781
  %v6783 = vsel %vm159, %v6690, 0.0
  %v6784 = vadd.f32 %v6782, %v6783
  %v6785 = vsel %vm159, %v6691, 0.0
  %v6786 = vadd.f32 %v6784, %v6785
  %v6787 = vsel %vm159, %v6692, 0.0
  %v6788 = vadd.f32 %v6786, %v6787
  %v6789 = vsel %vm159, %v6693, 0.0
  %v6790 = vadd.f32 %v6788, %v6789
  %v6791 = vsel %vm159, %v6694, 0.0
  %v6792 = vadd.f32 %v6790, %v6791
  %v6793 = vsel %vm159, %v6695, 0.0
  %v6794 = vadd.f32 %v6792, %v6793
  %v6795 = vsel %vm159, %v6696, 0.0
  %v6796 = vadd.f32 %v6794, %v6795
  %v6797 = vsel %vm159, %v6697, 0.0
  %v6798 = vadd.f32 %v6796, %v6797
  %v6799 = vsel %vm159, %v6698, 0.0
  %v6800 = vadd.f32 %v6798, %v6799
  %v6801 = vsel %vm159, %v6699, 0.0
  %v6802 = vadd.f32 %v6800, %v6801
  %v6803 = vsel %vm159, %v6700, 0.0
  %v6804 = vadd.f32 %v6802, %v6803
  %v6805 = vsel %vm159, %v6701, 0.0
  %v6806 = vadd.f32 %v6804, %v6805
  %v6807 = vsel %vm159, %v6702, 0.0
  %v6808 = vadd.f32 %v6806, %v6807
  %v6809 = vsel %vm159, %v6703, 0.0
  %v6810 = vadd.f32 %v6808, %v6809
  %v6811 = vsel %vm159, %v6704, 0.0
  %v6812 = vadd.f32 %v6810, %v6811
  %v6813 = vsel %vm159, %v6705, 0.0
  %v6814 = vadd.f32 %v6812, %v6813
  %v6815 = vsel %vm159, %v6706, 0.0
  %v6816 = vadd.f32 %v6814, %v6815
  %v6817 = vsel %vm159, %v6707, 0.0
  %v6818 = vadd.f32 %v6816, %v6817
  %v6819 = vsel %vm159, %v6708, 0.0
  %v6820 = vadd.f32 %v6818, %v6819
  %v6821 = vsel %vm159, %v6709, 0.0
  %v6822 = vadd.f32 %v6820, %v6821
  %v6823 = vsel %vm159, %v6710, 0.0
  %v6824 = vadd.f32 %v6822, %v6823
  %v6825 = vsel %vm159, %v6711, 0.0
  %v6826 = vadd.f32 %v6824, %v6825
  %v6827 = vsel %vm159, %v6712, 0.0
  %v6828 = vadd.f32 %v6826, %v6827
  %v6829 = vsel %vm159, %v6713, 0.0
  %v6830 = vadd.f32 %v6828, %v6829
  %v6831 = vsel %vm159, %v6714, 0.0
  %v6832 = vadd.f32 %v6830, %v6831
  %v6833 = vsel %vm159, %v6715, 0.0
  %v6834 = vadd.f32 %v6832, %v6833
  %v6835 = vsel %vm159, %v6716, 0.0
  %v6836 = vadd.f32 %v6834, %v6835
  %v6837 = vsel %vm159, %v6717, 0.0
  %v6838 = vadd.f32 %v6836, %v6837
  %v6839 = vsel %vm159, %v6718, 0.0
  %v6840 = vadd.f32 %v6838, %v6839
  %v6841 = vsel %vm159, %v6719, 0.0
  %v6842 = vadd.f32 %v6840, %v6841
  %v6843 = vsel %vm159, %v6720, 0.0
  %v6844 = vadd.f32 %v6842, %v6843
  %v6845 = vsel %vm159, %v6721, 0.0
  %v6846 = vadd.f32 %v6844, %v6845
  %v6847 = vsel %vm159, %v6722, 0.0
  %v6848 = vadd.f32 %v6846, %v6847
  %v6849 = vsel %vm159, %v6723, 0.0
  %v6850 = vadd.f32 %v6848, %v6849
  %v6851 = vrot.slane %v6850, 4
  %v6852 = vadd.f32 %v6850, %v6851
  %v6853 = vrot.slane %v6852, 2
  %v6854 = vadd.f32 %v6852, %v6853
  %v6855 = vrot.slane %v6854, 1
  %v6856 = vadd.f32 %v6854, %v6855
  %v6857 = vmul.f32 %v6856, 0.001953125
  %v6858 = vadd.f32 %v6857, 1e-05
  %v6859 = vrsqrt.pop %v6858
  %v6860 = vmul.f32 %v6596, %v6859
  %v6861 = vmul.f32 %v6597, %v6859
  %v6862 = vmul.f32 %v6598, %v6859
  %v6863 = vmul.f32 %v6599, %v6859
  %v6864 = vmul.f32 %v6600, %v6859
  %v6865 = vmul.f32 %v6601, %v6859
  %v6866 = vmul.f32 %v6602, %v6859
  %v6867 = vmul.f32 %v6603, %v6859
  %v6868 = vmul.f32 %v6604, %v6859
  %v6869 = vmul.f32 %v6605, %v6859
  %v6870 = vmul.f32 %v6606, %v6859
  %v6871 = vmul.f32 %v6607, %v6859
  %v6872 = vmul.f32 %v6608, %v6859
  %v6873 = vmul.f32 %v6609, %v6859
  %v6874 = vmul.f32 %v6610, %v6859
  %v6875 = vmul.f32 %v6611, %v6859
  %v6876 = vmul.f32 %v6612, %v6859
  %v6877 = vmul.f32 %v6613, %v6859
  %v6878 = vmul.f32 %v6614, %v6859
  %v6879 = vmul.f32 %v6615, %v6859
  %v6880 = vmul.f32 %v6616, %v6859
  %v6881 = vmul.f32 %v6617, %v6859
  %v6882 = vmul.f32 %v6618, %v6859
  %v6883 = vmul.f32 %v6619, %v6859
  %v6884 = vmul.f32 %v6620, %v6859
  %v6885 = vmul.f32 %v6621, %v6859
  %v6886 = vmul.f32 %v6622, %v6859
  %v6887 = vmul.f32 %v6623, %v6859
  %v6888 = vmul.f32 %v6624, %v6859
  %v6889 = vmul.f32 %v6625, %v6859
  %v6890 = vmul.f32 %v6626, %v6859
  %v6891 = vmul.f32 %v6627, %v6859
  %v6892 = vmul.f32 %v6628, %v6859
  %v6893 = vmul.f32 %v6629, %v6859
  %v6894 = vmul.f32 %v6630, %v6859
  %v6895 = vmul.f32 %v6631, %v6859
  %v6896 = vmul.f32 %v6632, %v6859
  %v6897 = vmul.f32 %v6633, %v6859
  %v6898 = vmul.f32 %v6634, %v6859
  %v6899 = vmul.f32 %v6635, %v6859
  %v6900 = vmul.f32 %v6636, %v6859
  %v6901 = vmul.f32 %v6637, %v6859
  %v6902 = vmul.f32 %v6638, %v6859
  %v6903 = vmul.f32 %v6639, %v6859
  %v6904 = vmul.f32 %v6640, %v6859
  %v6905 = vmul.f32 %v6641, %v6859
  %v6906 = vmul.f32 %v6642, %v6859
  %v6907 = vmul.f32 %v6643, %v6859
  %v6908 = vmul.f32 %v6644, %v6859
  %v6909 = vmul.f32 %v6645, %v6859
  %v6910 = vmul.f32 %v6646, %v6859
  %v6911 = vmul.f32 %v6647, %v6859
  %v6912 = vmul.f32 %v6648, %v6859
  %v6913 = vmul.f32 %v6649, %v6859
  %v6914 = vmul.f32 %v6650, %v6859
  %v6915 = vmul.f32 %v6651, %v6859
  %v6916 = vmul.f32 %v6652, %v6859
  %v6917 = vmul.f32 %v6653, %v6859
  %v6918 = vmul.f32 %v6654, %v6859
  %v6919 = vmul.f32 %v6655, %v6859
  %v6920 = vmul.f32 %v6656, %v6859
  %v6921 = vmul.f32 %v6657, %v6859
  %v6922 = vmul.f32 %v6658, %v6859
  %v6923 = vmul.f32 %v6659, %v6859
  %v6924 = vld [vmem:[%s6] sm:$0x1]
  %v6926 = vlaneseq
  %v6927 = vshrl.u32 %v6926, 7
  %v6928 = vsub.s32 0, %v6927
  %v6929 = vrot.slane %v6924, %v6928
  %v6931 = vmul.f32 %v6860, %v6929
  %v6932 = vmul.f32 %v6861, %v6929
  %v6933 = vmul.f32 %v6862, %v6929
  %v6934 = vmul.f32 %v6863, %v6929
  %v6935 = vmul.f32 %v6864, %v6929
  %v6936 = vmul.f32 %v6865, %v6929
  %v6937 = vmul.f32 %v6866, %v6929
  %v6938 = vmul.f32 %v6867, %v6929
  %v6939 = vmul.f32 %v6868, %v6929
  %v6940 = vmul.f32 %v6869, %v6929
  %v6941 = vmul.f32 %v6870, %v6929
  %v6942 = vmul.f32 %v6871, %v6929
  %v6943 = vmul.f32 %v6872, %v6929
  %v6944 = vmul.f32 %v6873, %v6929
  %v6945 = vmul.f32 %v6874, %v6929
  %v6946 = vmul.f32 %v6875, %v6929
  %v6947 = vmul.f32 %v6876, %v6929
  %v6948 = vmul.f32 %v6877, %v6929
  %v6949 = vmul.f32 %v6878, %v6929
  %v6950 = vmul.f32 %v6879, %v6929
  %v6951 = vmul.f32 %v6880, %v6929
  %v6952 = vmul.f32 %v6881, %v6929
  %v6953 = vmul.f32 %v6882, %v6929
  %v6954 = vmul.f32 %v6883, %v6929
  %v6955 = vmul.f32 %v6884, %v6929
  %v6956 = vmul.f32 %v6885, %v6929
  %v6957 = vmul.f32 %v6886, %v6929
  %v6958 = vmul.f32 %v6887, %v6929
  %v6959 = vmul.f32 %v6888, %v6929
  %v6960 = vmul.f32 %v6889, %v6929
  %v6961 = vmul.f32 %v6890, %v6929
  %v6962 = vmul.f32 %v6891, %v6929
  %v6963 = vmul.f32 %v6892, %v6929
  %v6964 = vmul.f32 %v6893, %v6929
  %v6965 = vmul.f32 %v6894, %v6929
  %v6966 = vmul.f32 %v6895, %v6929
  %v6967 = vmul.f32 %v6896, %v6929
  %v6968 = vmul.f32 %v6897, %v6929
  %v6969 = vmul.f32 %v6898, %v6929
  %v6970 = vmul.f32 %v6899, %v6929
  %v6971 = vmul.f32 %v6900, %v6929
  %v6972 = vmul.f32 %v6901, %v6929
  %v6973 = vmul.f32 %v6902, %v6929
  %v6974 = vmul.f32 %v6903, %v6929
  %v6975 = vmul.f32 %v6904, %v6929
  %v6976 = vmul.f32 %v6905, %v6929
  %v6977 = vmul.f32 %v6906, %v6929
  %v6978 = vmul.f32 %v6907, %v6929
  %v6979 = vmul.f32 %v6908, %v6929
  %v6980 = vmul.f32 %v6909, %v6929
  %v6981 = vmul.f32 %v6910, %v6929
  %v6982 = vmul.f32 %v6911, %v6929
  %v6983 = vmul.f32 %v6912, %v6929
  %v6984 = vmul.f32 %v6913, %v6929
  %v6985 = vmul.f32 %v6914, %v6929
  %v6986 = vmul.f32 %v6915, %v6929
  %v6987 = vmul.f32 %v6916, %v6929
  %v6988 = vmul.f32 %v6917, %v6929
  %v6989 = vmul.f32 %v6918, %v6929
  %v6990 = vmul.f32 %v6919, %v6929
  %v6991 = vmul.f32 %v6920, %v6929
  %v6992 = vmul.f32 %v6921, %v6929
  %v6993 = vmul.f32 %v6922, %v6929
  %v6994 = vmul.f32 %v6923, %v6929
  %v6995 = vld [vmem:[%s7] sm:$0x1]
  %v6997 = vlaneseq
  %v6998 = vshrl.u32 %v6997, 7
  %v6999 = vsub.s32 0, %v6998
  %v7000 = vrot.slane %v6995, %v6999
  %v7002 = vadd.f32 %v6931, %v7000
  %v7003 = vadd.f32 %v6932, %v7000
  %v7004 = vadd.f32 %v6933, %v7000
  %v7005 = vadd.f32 %v6934, %v7000
  %v7006 = vadd.f32 %v6935, %v7000
  %v7007 = vadd.f32 %v6936, %v7000
  %v7008 = vadd.f32 %v6937, %v7000
  %v7009 = vadd.f32 %v6938, %v7000
  %v7010 = vadd.f32 %v6939, %v7000
  %v7011 = vadd.f32 %v6940, %v7000
  %v7012 = vadd.f32 %v6941, %v7000
  %v7013 = vadd.f32 %v6942, %v7000
  %v7014 = vadd.f32 %v6943, %v7000
  %v7015 = vadd.f32 %v6944, %v7000
  %v7016 = vadd.f32 %v6945, %v7000
  %v7017 = vadd.f32 %v6946, %v7000
  %v7018 = vadd.f32 %v6947, %v7000
  %v7019 = vadd.f32 %v6948, %v7000
  %v7020 = vadd.f32 %v6949, %v7000
  %v7021 = vadd.f32 %v6950, %v7000
  %v7022 = vadd.f32 %v6951, %v7000
  %v7023 = vadd.f32 %v6952, %v7000
  %v7024 = vadd.f32 %v6953, %v7000
  %v7025 = vadd.f32 %v6954, %v7000
  %v7026 = vadd.f32 %v6955, %v7000
  %v7027 = vadd.f32 %v6956, %v7000
  %v7028 = vadd.f32 %v6957, %v7000
  %v7029 = vadd.f32 %v6958, %v7000
  %v7030 = vadd.f32 %v6959, %v7000
  %v7031 = vadd.f32 %v6960, %v7000
  %v7032 = vadd.f32 %v6961, %v7000
  %v7033 = vadd.f32 %v6962, %v7000
  %v7034 = vadd.f32 %v6963, %v7000
  %v7035 = vadd.f32 %v6964, %v7000
  %v7036 = vadd.f32 %v6965, %v7000
  %v7037 = vadd.f32 %v6966, %v7000
  %v7038 = vadd.f32 %v6967, %v7000
  %v7039 = vadd.f32 %v6968, %v7000
  %v7040 = vadd.f32 %v6969, %v7000
  %v7041 = vadd.f32 %v6970, %v7000
  %v7042 = vadd.f32 %v6971, %v7000
  %v7043 = vadd.f32 %v6972, %v7000
  %v7044 = vadd.f32 %v6973, %v7000
  %v7045 = vadd.f32 %v6974, %v7000
  %v7046 = vadd.f32 %v6975, %v7000
  %v7047 = vadd.f32 %v6976, %v7000
  %v7048 = vadd.f32 %v6977, %v7000
  %v7049 = vadd.f32 %v6978, %v7000
  %v7050 = vadd.f32 %v6979, %v7000
  %v7051 = vadd.f32 %v6980, %v7000
  %v7052 = vadd.f32 %v6981, %v7000
  %v7053 = vadd.f32 %v6982, %v7000
  %v7054 = vadd.f32 %v6983, %v7000
  %v7055 = vadd.f32 %v6984, %v7000
  %v7056 = vadd.f32 %v6985, %v7000
  %v7057 = vadd.f32 %v6986, %v7000
  %v7058 = vadd.f32 %v6987, %v7000
  %v7059 = vadd.f32 %v6988, %v7000
  %v7060 = vadd.f32 %v6989, %v7000
  %v7061 = vadd.f32 %v6990, %v7000
  %v7062 = vadd.f32 %v6991, %v7000
  %v7063 = vadd.f32 %v6992, %v7000
  %v7064 = vadd.f32 %v6993, %v7000
  %v7065 = vadd.f32 %v6994, %v7000
  %v7066 = vld [vmem:[%s1] sm:$0xff]
  %v7067 = vld [vmem:[%s1 + $0x8] sm:$0xff]
  %v7068 = vld [vmem:[%s1 + $0x10] sm:$0xff]
  %v7069 = vld [vmem:[%s1 + $0x18] sm:$0xff]
  %v7070 = vld [vmem:[%s1 + $0x20] sm:$0xff]
  %v7071 = vld [vmem:[%s1 + $0x28] sm:$0xff]
  %v7072 = vld [vmem:[%s1 + $0x30] sm:$0xff]
  %v7073 = vld [vmem:[%s1 + $0x38] sm:$0xff]
  %v7074 = vld [vmem:[%s1 + $0x40] sm:$0xff]
  %v7075 = vld [vmem:[%s1 + $0x48] sm:$0xff]
  %v7076 = vld [vmem:[%s1 + $0x50] sm:$0xff]
  %v7077 = vld [vmem:[%s1 + $0x58] sm:$0xff]
  %v7078 = vld [vmem:[%s1 + $0x60] sm:$0xff]
  %v7079 = vld [vmem:[%s1 + $0x68] sm:$0xff]
  %v7080 = vld [vmem:[%s1 + $0x70] sm:$0xff]
  %v7081 = vld [vmem:[%s1 + $0x78] sm:$0xff]
  %v7082 = vld [vmem:[%s1 + $0x80] sm:$0xff]
  %v7083 = vld [vmem:[%s1 + $0x88] sm:$0xff]
  %v7084 = vld [vmem:[%s1 + $0x90] sm:$0xff]
  %v7085 = vld [vmem:[%s1 + $0x98] sm:$0xff]
  %v7086 = vld [vmem:[%s1 + $0xa0] sm:$0xff]
  %v7087 = vld [vmem:[%s1 + $0xa8] sm:$0xff]
  %v7088 = vld [vmem:[%s1 + $0xb0] sm:$0xff]
  %v7089 = vld [vmem:[%s1 + $0xb8] sm:$0xff]
  %v7090 = vld [vmem:[%s1 + $0xc0] sm:$0xff]
  %v7091 = vld [vmem:[%s1 + $0xc8] sm:$0xff]
  %v7092 = vld [vmem:[%s1 + $0xd0] sm:$0xff]
  %v7093 = vld [vmem:[%s1 + $0xd8] sm:$0xff]
  %v7094 = vld [vmem:[%s1 + $0xe0] sm:$0xff]
  %v7095 = vld [vmem:[%s1 + $0xe8] sm:$0xff]
  %v7096 = vld [vmem:[%s1 + $0xf0] sm:$0xff]
  %v7097 = vld [vmem:[%s1 + $0xf8] sm:$0xff]
  %v7098 = vld [vmem:[%s1 + $0x100] sm:$0xff]
  %v7099 = vld [vmem:[%s1 + $0x108] sm:$0xff]
  %v7100 = vld [vmem:[%s1 + $0x110] sm:$0xff]
  %v7101 = vld [vmem:[%s1 + $0x118] sm:$0xff]
  %v7102 = vld [vmem:[%s1 + $0x120] sm:$0xff]
  %v7103 = vld [vmem:[%s1 + $0x128] sm:$0xff]
  %v7104 = vld [vmem:[%s1 + $0x130] sm:$0xff]
  %v7105 = vld [vmem:[%s1 + $0x138] sm:$0xff]
  %v7106 = vld [vmem:[%s1 + $0x140] sm:$0xff]
  %v7107 = vld [vmem:[%s1 + $0x148] sm:$0xff]
  %v7108 = vld [vmem:[%s1 + $0x150] sm:$0xff]
  %v7109 = vld [vmem:[%s1 + $0x158] sm:$0xff]
  %v7110 = vld [vmem:[%s1 + $0x160] sm:$0xff]
  %v7111 = vld [vmem:[%s1 + $0x168] sm:$0xff]
  %v7112 = vld [vmem:[%s1 + $0x170] sm:$0xff]
  %v7113 = vld [vmem:[%s1 + $0x178] sm:$0xff]
  %v7114 = vld [vmem:[%s1 + $0x180] sm:$0xff]
  %v7115 = vld [vmem:[%s1 + $0x188] sm:$0xff]
  %v7116 = vld [vmem:[%s1 + $0x190] sm:$0xff]
  %v7117 = vld [vmem:[%s1 + $0x198] sm:$0xff]
  %v7118 = vld [vmem:[%s1 + $0x1a0] sm:$0xff]
  %v7119 = vld [vmem:[%s1 + $0x1a8] sm:$0xff]
  %v7120 = vld [vmem:[%s1 + $0x1b0] sm:$0xff]
  %v7121 = vld [vmem:[%s1 + $0x1b8] sm:$0xff]
  %v7122 = vld [vmem:[%s1 + $0x1c0] sm:$0xff]
  %v7123 = vld [vmem:[%s1 + $0x1c8] sm:$0xff]
  %v7124 = vld [vmem:[%s1 + $0x1d0] sm:$0xff]
  %v7125 = vld [vmem:[%s1 + $0x1d8] sm:$0xff]
  %v7126 = vld [vmem:[%s1 + $0x1e0] sm:$0xff]
  %v7127 = vld [vmem:[%s1 + $0x1e8] sm:$0xff]
  %v7128 = vld [vmem:[%s1 + $0x1f0] sm:$0xff]
  %v7129 = vld [vmem:[%s1 + $0x1f8] sm:$0xff]
  %v7130 = vadd.f32 %v7002, %v7066
  %v7131 = vadd.f32 %v7003, %v7067
  %v7132 = vadd.f32 %v7004, %v7068
  %v7133 = vadd.f32 %v7005, %v7069
  %v7134 = vadd.f32 %v7006, %v7070
  %v7135 = vadd.f32 %v7007, %v7071
  %v7136 = vadd.f32 %v7008, %v7072
  %v7137 = vadd.f32 %v7009, %v7073
  %v7138 = vadd.f32 %v7010, %v7074
  %v7139 = vadd.f32 %v7011, %v7075
  %v7140 = vadd.f32 %v7012, %v7076
  %v7141 = vadd.f32 %v7013, %v7077
  %v7142 = vadd.f32 %v7014, %v7078
  %v7143 = vadd.f32 %v7015, %v7079
  %v7144 = vadd.f32 %v7016, %v7080
  %v7145 = vadd.f32 %v7017, %v7081
  %v7146 = vadd.f32 %v7018, %v7082
  %v7147 = vadd.f32 %v7019, %v7083
  %v7148 = vadd.f32 %v7020, %v7084
  %v7149 = vadd.f32 %v7021, %v7085
  %v7150 = vadd.f32 %v7022, %v7086
  %v7151 = vadd.f32 %v7023, %v7087
  %v7152 = vadd.f32 %v7024, %v7088
  %v7153 = vadd.f32 %v7025, %v7089
  %v7154 = vadd.f32 %v7026, %v7090
  %v7155 = vadd.f32 %v7027, %v7091
  %v7156 = vadd.f32 %v7028, %v7092
  %v7157 = vadd.f32 %v7029, %v7093
  %v7158 = vadd.f32 %v7030, %v7094
  %v7159 = vadd.f32 %v7031, %v7095
  %v7160 = vadd.f32 %v7032, %v7096
  %v7161 = vadd.f32 %v7033, %v7097
  %v7162 = vadd.f32 %v7034, %v7098
  %v7163 = vadd.f32 %v7035, %v7099
  %v7164 = vadd.f32 %v7036, %v7100
  %v7165 = vadd.f32 %v7037, %v7101
  %v7166 = vadd.f32 %v7038, %v7102
  %v7167 = vadd.f32 %v7039, %v7103
  %v7168 = vadd.f32 %v7040, %v7104
  %v7169 = vadd.f32 %v7041, %v7105
  %v7170 = vadd.f32 %v7042, %v7106
  %v7171 = vadd.f32 %v7043, %v7107
  %v7172 = vadd.f32 %v7044, %v7108
  %v7173 = vadd.f32 %v7045, %v7109
  %v7174 = vadd.f32 %v7046, %v7110
  %v7175 = vadd.f32 %v7047, %v7111
  %v7176 = vadd.f32 %v7048, %v7112
  %v7177 = vadd.f32 %v7049, %v7113
  %v7178 = vadd.f32 %v7050, %v7114
  %v7179 = vadd.f32 %v7051, %v7115
  %v7180 = vadd.f32 %v7052, %v7116
  %v7181 = vadd.f32 %v7053, %v7117
  %v7182 = vadd.f32 %v7054, %v7118
  %v7183 = vadd.f32 %v7055, %v7119
  %v7184 = vadd.f32 %v7056, %v7120
  %v7185 = vadd.f32 %v7057, %v7121
  %v7186 = vadd.f32 %v7058, %v7122
  %v7187 = vadd.f32 %v7059, %v7123
  %v7188 = vadd.f32 %v7060, %v7124
  %v7189 = vadd.f32 %v7061, %v7125
  %v7190 = vadd.f32 %v7062, %v7126
  %v7191 = vadd.f32 %v7063, %v7127
  %v7192 = vadd.f32 %v7064, %v7128
  %v7193 = vadd.f32 %v7065, %v7129
  %v7194 = vmax.f32 %v7130, 0.0
  %v7195 = vmax.f32 %v7131, 0.0
  %v7196 = vmax.f32 %v7132, 0.0
  %v7197 = vmax.f32 %v7133, 0.0
  %v7198 = vmax.f32 %v7134, 0.0
  %v7199 = vmax.f32 %v7135, 0.0
  %v7200 = vmax.f32 %v7136, 0.0
  %v7201 = vmax.f32 %v7137, 0.0
  %v7202 = vmax.f32 %v7138, 0.0
  %v7203 = vmax.f32 %v7139, 0.0
  %v7204 = vmax.f32 %v7140, 0.0
  %v7205 = vmax.f32 %v7141, 0.0
  %v7206 = vmax.f32 %v7142, 0.0
  %v7207 = vmax.f32 %v7143, 0.0
  %v7208 = vmax.f32 %v7144, 0.0
  %v7209 = vmax.f32 %v7145, 0.0
  %v7210 = vmax.f32 %v7146, 0.0
  %v7211 = vmax.f32 %v7147, 0.0
  %v7212 = vmax.f32 %v7148, 0.0
  %v7213 = vmax.f32 %v7149, 0.0
  %v7214 = vmax.f32 %v7150, 0.0
  %v7215 = vmax.f32 %v7151, 0.0
  %v7216 = vmax.f32 %v7152, 0.0
  %v7217 = vmax.f32 %v7153, 0.0
  %v7218 = vmax.f32 %v7154, 0.0
  %v7219 = vmax.f32 %v7155, 0.0
  %v7220 = vmax.f32 %v7156, 0.0
  %v7221 = vmax.f32 %v7157, 0.0
  %v7222 = vmax.f32 %v7158, 0.0
  %v7223 = vmax.f32 %v7159, 0.0
  %v7224 = vmax.f32 %v7160, 0.0
  %v7225 = vmax.f32 %v7161, 0.0
  %v7226 = vmax.f32 %v7162, 0.0
  %v7227 = vmax.f32 %v7163, 0.0
  %v7228 = vmax.f32 %v7164, 0.0
  %v7229 = vmax.f32 %v7165, 0.0
  %v7230 = vmax.f32 %v7166, 0.0
  %v7231 = vmax.f32 %v7167, 0.0
  %v7232 = vmax.f32 %v7168, 0.0
  %v7233 = vmax.f32 %v7169, 0.0
  %v7234 = vmax.f32 %v7170, 0.0
  %v7235 = vmax.f32 %v7171, 0.0
  %v7236 = vmax.f32 %v7172, 0.0
  %v7237 = vmax.f32 %v7173, 0.0
  %v7238 = vmax.f32 %v7174, 0.0
  %v7239 = vmax.f32 %v7175, 0.0
  %v7240 = vmax.f32 %v7176, 0.0
  %v7241 = vmax.f32 %v7177, 0.0
  %v7242 = vmax.f32 %v7178, 0.0
  %v7243 = vmax.f32 %v7179, 0.0
  %v7244 = vmax.f32 %v7180, 0.0
  %v7245 = vmax.f32 %v7181, 0.0
  %v7246 = vmax.f32 %v7182, 0.0
  %v7247 = vmax.f32 %v7183, 0.0
  %v7248 = vmax.f32 %v7184, 0.0
  %v7249 = vmax.f32 %v7185, 0.0
  %v7250 = vmax.f32 %v7186, 0.0
  %v7251 = vmax.f32 %v7187, 0.0
  %v7252 = vmax.f32 %v7188, 0.0
  %v7253 = vmax.f32 %v7189, 0.0
  %v7254 = vmax.f32 %v7190, 0.0
  %v7255 = vmax.f32 %v7191, 0.0
  %v7256 = vmax.f32 %v7192, 0.0
  %v7257 = vmax.f32 %v7193, 0.0
  %7258 = vst.msk [vmem:[%s8] sm:$0xff] %vm159, %v7194
  %7259 = vst.msk [vmem:[%s8 + $0x8] sm:$0xff] %vm159, %v7195
  %7260 = vst.msk [vmem:[%s8 + $0x10] sm:$0xff] %vm159, %v7196
  %7261 = vst.msk [vmem:[%s8 + $0x18] sm:$0xff] %vm159, %v7197
  %7262 = vst.msk [vmem:[%s8 + $0x20] sm:$0xff] %vm159, %v7198
  %7263 = vst.msk [vmem:[%s8 + $0x28] sm:$0xff] %vm159, %v7199
  %7264 = vst.msk [vmem:[%s8 + $0x30] sm:$0xff] %vm159, %v7200
  %7265 = vst.msk [vmem:[%s8 + $0x38] sm:$0xff] %vm159, %v7201
  %7266 = vst.msk [vmem:[%s8 + $0x40] sm:$0xff] %vm159, %v7202
  %7267 = vst.msk [vmem:[%s8 + $0x48] sm:$0xff] %vm159, %v7203
  %7268 = vst.msk [vmem:[%s8 + $0x50] sm:$0xff] %vm159, %v7204
  %7269 = vst.msk [vmem:[%s8 + $0x58] sm:$0xff] %vm159, %v7205
  %7270 = vst.msk [vmem:[%s8 + $0x60] sm:$0xff] %vm159, %v7206
  %7271 = vst.msk [vmem:[%s8 + $0x68] sm:$0xff] %vm159, %v7207
  %7272 = vst.msk [vmem:[%s8 + $0x70] sm:$0xff] %vm159, %v7208
  %7273 = vst.msk [vmem:[%s8 + $0x78] sm:$0xff] %vm159, %v7209
  %7274 = vst.msk [vmem:[%s8 + $0x80] sm:$0xff] %vm159, %v7210
  %7275 = vst.msk [vmem:[%s8 + $0x88] sm:$0xff] %vm159, %v7211
  %7276 = vst.msk [vmem:[%s8 + $0x90] sm:$0xff] %vm159, %v7212
  %7277 = vst.msk [vmem:[%s8 + $0x98] sm:$0xff] %vm159, %v7213
  %7278 = vst.msk [vmem:[%s8 + $0xa0] sm:$0xff] %vm159, %v7214
  %7279 = vst.msk [vmem:[%s8 + $0xa8] sm:$0xff] %vm159, %v7215
  %7280 = vst.msk [vmem:[%s8 + $0xb0] sm:$0xff] %vm159, %v7216
  %7281 = vst.msk [vmem:[%s8 + $0xb8] sm:$0xff] %vm159, %v7217
  %7282 = vst.msk [vmem:[%s8 + $0xc0] sm:$0xff] %vm159, %v7218
  %7283 = vst.msk [vmem:[%s8 + $0xc8] sm:$0xff] %vm159, %v7219
  %7284 = vst.msk [vmem:[%s8 + $0xd0] sm:$0xff] %vm159, %v7220
  %7285 = vst.msk [vmem:[%s8 + $0xd8] sm:$0xff] %vm159, %v7221
  %7286 = vst.msk [vmem:[%s8 + $0xe0] sm:$0xff] %vm159, %v7222
  %7287 = vst.msk [vmem:[%s8 + $0xe8] sm:$0xff] %vm159, %v7223
  %7288 = vst.msk [vmem:[%s8 + $0xf0] sm:$0xff] %vm159, %v7224
  %7289 = vst.msk [vmem:[%s8 + $0xf8] sm:$0xff] %vm159, %v7225
  %7290 = vst.msk [vmem:[%s8 + $0x100] sm:$0xff] %vm159, %v7226
  %7291 = vst.msk [vmem:[%s8 + $0x108] sm:$0xff] %vm159, %v7227
  %7292 = vst.msk [vmem:[%s8 + $0x110] sm:$0xff] %vm159, %v7228
  %7293 = vst.msk [vmem:[%s8 + $0x118] sm:$0xff] %vm159, %v7229
  %7294 = vst.msk [vmem:[%s8 + $0x120] sm:$0xff] %vm159, %v7230
  %7295 = vst.msk [vmem:[%s8 + $0x128] sm:$0xff] %vm159, %v7231
  %7296 = vst.msk [vmem:[%s8 + $0x130] sm:$0xff] %vm159, %v7232
  %7297 = vst.msk [vmem:[%s8 + $0x138] sm:$0xff] %vm159, %v7233
  %7298 = vst.msk [vmem:[%s8 + $0x140] sm:$0xff] %vm159, %v7234
  %7299 = vst.msk [vmem:[%s8 + $0x148] sm:$0xff] %vm159, %v7235
  %7300 = vst.msk [vmem:[%s8 + $0x150] sm:$0xff] %vm159, %v7236
  %7301 = vst.msk [vmem:[%s8 + $0x158] sm:$0xff] %vm159, %v7237
  %7302 = vst.msk [vmem:[%s8 + $0x160] sm:$0xff] %vm159, %v7238
  %7303 = vst.msk [vmem:[%s8 + $0x168] sm:$0xff] %vm159, %v7239
  %7304 = vst.msk [vmem:[%s8 + $0x170] sm:$0xff] %vm159, %v7240
  %7305 = vst.msk [vmem:[%s8 + $0x178] sm:$0xff] %vm159, %v7241
  %7306 = vst.msk [vmem:[%s8 + $0x180] sm:$0xff] %vm159, %v7242
  %7307 = vst.msk [vmem:[%s8 + $0x188] sm:$0xff] %vm159, %v7243
  %7308 = vst.msk [vmem:[%s8 + $0x190] sm:$0xff] %vm159, %v7244
  %7309 = vst.msk [vmem:[%s8 + $0x198] sm:$0xff] %vm159, %v7245
  %7310 = vst.msk [vmem:[%s8 + $0x1a0] sm:$0xff] %vm159, %v7246
  %7311 = vst.msk [vmem:[%s8 + $0x1a8] sm:$0xff] %vm159, %v7247
  %7312 = vst.msk [vmem:[%s8 + $0x1b0] sm:$0xff] %vm159, %v7248
  %7313 = vst.msk [vmem:[%s8 + $0x1b8] sm:$0xff] %vm159, %v7249
  %7314 = vst.msk [vmem:[%s8 + $0x1c0] sm:$0xff] %vm159, %v7250
  %7315 = vst.msk [vmem:[%s8 + $0x1c8] sm:$0xff] %vm159, %v7251
  %7316 = vst.msk [vmem:[%s8 + $0x1d0] sm:$0xff] %vm159, %v7252
  %7317 = vst.msk [vmem:[%s8 + $0x1d8] sm:$0xff] %vm159, %v7253
  %7318 = vst.msk [vmem:[%s8 + $0x1e0] sm:$0xff] %vm159, %v7254
  %7319 = vst.msk [vmem:[%s8 + $0x1e8] sm:$0xff] %vm159, %v7255
  %7320 = vst.msk [vmem:[%s8 + $0x1f0] sm:$0xff] %vm159, %v7256
  %7321 = vst.msk [vmem:[%s8 + $0x1f8] sm:$0xff] %vm159, %v7257
  // Predicated region
  $region34: #{tpu_custom_call.1} parent=0 // pred_check
    _
  $region35: #{tpu_custom_call.1} parent=0 // pred_check_branch
    %7323 = sbr.rel (0) target = $region37
  $region36: #{tpu_custom_call.1} parent=0 // pred_region
    _
  $region37: #{tpu_custom_call.1} parent=0 // pred_fallthru
    _
  // Predicated region
  $region38: #{tpu_custom_call.1} parent=0 // pred_check
    _
  $region39: #{tpu_custom_call.1} parent=0 // pred_check_branch
    %7325 = sbr.rel (0) target = $region41
  $region40: #{tpu_custom_call.1} parent=0 // pred_region
    _
  $region41: #{tpu_custom_call.1} parent=0 // pred_fallthru
    _

</llo_original>
